<compile_context>
chip_gen: v7x
topology: tpu7x:2x2x1
jax: 0.10.0
libtpu: 0.0.40
codegen_flags: <defaults>
</compile_context>

<pallas_src>
import functools
import math

import numpy as np
import jax
import jax.numpy as jnp
from jax.experimental import pallas as pl
from jax.experimental.pallas import tpu as pltpu


# --------------------------- per-branch fused kernel ---------------------------

def _branch_kernel(layout, cfg, batch, x_ref, slab_ref, o_ref):
    f32 = jnp.float32
    N = batch
    L = cfg['seq_len']
    NL = N * L
    E = cfg['affine_dim_list'][0]
    H = cfg['nheads'][0]
    nlayers = cfg['nlayers'][0]
    K = cfg['kernel_size'][0]
    channels = cfg['num_channels'][0]

    def get(name):
        off, r, c = layout[name]
        return slab_ref[off:off + r, :c]

    # Block-"diagonal" additive attention mask built in-kernel from iotas (zero VMEM / DMA,
    # never scales O((N*L)^2) in memory).  Rows are (l, n)-interleaved, so "same batch"
    # means (row % N) == (col % N).  Hoisted once (broadcast_in_dim is not CSE'd).
    ri = jax.lax.broadcasted_iota(jnp.int32, (NL, NL), 0)
    ci = jax.lax.broadcasted_iota(jnp.int32, (NL, NL), 1)
    attn_bias = jnp.where((ri % N) == (ci % N), 0.0, -1e30).astype(f32)

    def layer_norm(x, g, b, eps=1e-5):
        mu = jnp.mean(x, axis=-1, keepdims=True)
        xc = x - mu
        var = jnp.mean(xc * xc, axis=-1, keepdims=True)
        return xc * jax.lax.rsqrt(var + eps) * g + b

    def shift_down(x, rows):
        # Causal time-shift by rows // N steps.  In (l, n)-interleaved row order the rows with
        # l < s are exactly the first s*N rows, so a zero-fill row shift needs no extra mask
        # and stays entirely off the MXU (sublane slice + concat only).
        return jnp.concatenate(
            [jnp.zeros((rows, x.shape[1]), f32), x[:NL - rows, :]], axis=0)

    def causal_conv(x, wcat, b, dil, relu):
        # Dilated causal conv == chomp'd padded conv; all k taps gathered once, single dot.
        taps = []
        for j in range(K):
            s = (K - 1 - j) * dil
            taps.append(x if s == 0 else shift_down(x, s * N))
        xk = jnp.concatenate(taps, axis=1) if K > 1 else taps[0]
        y = jnp.dot(xk, wcat, preferred_element_type=f32) + b
        return jnp.maximum(y, 0.0) if relu else y

    def mha(h, li):
        # Per-head pre-split weights (q already scaled by 1/sqrt(hd)); out-proj accumulated
        # per head; softmax denominator via the EUP approximate reciprocal.
        acc = jnp.zeros((NL, E), f32) + get(f'enc{li}_ob')
        for hh in range(H):
            pre = f'enc{li}_h{hh}'
            b3 = get(f'{pre}_b3')                         # rows: [q_bias(scaled), k_bias, v_bias]
            q = jnp.dot(h, get(f'{pre}_qw'), preferred_element_type=f32) + b3[0:1, :]
            km = jnp.dot(h, get(f'{pre}_kw'), preferred_element_type=f32) + b3[1:2, :]
            v = jnp.dot(h, get(f'{pre}_vw'), preferred_element_type=f32) + b3[2:3, :]
            s = jax.lax.dot_general(q, km, (((1,), (1,)), ((), ())),
                                    preferred_element_type=f32) + attn_bias
            s = s - jnp.max(s, axis=-1, keepdims=True)
            e = jnp.exp(s)
            p = e * pl.reciprocal(jnp.sum(e, axis=-1, keepdims=True), approx=True)
            oh = jnp.dot(p, v, preferred_element_type=f32)
            acc = acc + jnp.dot(oh, get(f'{pre}_ow'), preferred_element_type=f32)
        return acc

    def encoder_layer(h, li):
        h = layer_norm(h + mha(h, li), get(f'enc{li}_ln1_g'), get(f'enc{li}_ln1_b'))
        ff = jnp.maximum(jnp.dot(h, get(f'enc{li}_lin1_w'), preferred_element_type=f32)
                         + get(f'enc{li}_lin1_b'), 0.0)
        ff = jnp.dot(ff, get(f'enc{li}_lin2_w'), preferred_element_type=f32) \
            + get(f'enc{li}_lin2_b')
        return layer_norm(h + ff, get(f'enc{li}_ln2_g'), get(f'enc{li}_ln2_b'))

    # affine (column split folded into zero-padded rows of affine_w) + positional embedding
    x = x_ref[...]
    f = jnp.dot(x, get('affine_w'), preferred_element_type=f32) + get('pe')

    # ---- TCN branch ----
    t = f
    for bi in range(len(channels)):
        dil = 2 ** bi
        out = causal_conv(t, get(f'tcn{bi}_w1'), get(f'tcn{bi}_b1'), dil, relu=True)
        out = causal_conv(out, get(f'tcn{bi}_w2'), get(f'tcn{bi}_b2'), dil, relu=True)
        if f'tcn{bi}_dw' in layout:
            res = jnp.dot(t, get(f'tcn{bi}_dw'), preferred_element_type=f32) + get(f'tcn{bi}_db')
        else:
            res = t
        t = jnp.maximum(out + res, 0.0)

    # ---- transformer branch ----
    h = f
    for li in range(nlayers):
        h = encoder_layer(h, li)
    otr = jnp.dot(h, get('fuse_w'), preferred_element_type=f32) + get('fuse_b')

    # concat([tcn, transformer], -1) @ lin_w  ==  row-split matmuls (split done at pack time)
    o_ref[...] = (jnp.dot(t, get('lin_w_tcn'), preferred_element_type=f32)
                  + jnp.dot(otr, get('lin_w_trm'), preferred_element_type=f32)
                  + get('lin_b'))


# ----------------------------- parameter packing -----------------------------

class _Packer:
    """Packs small 2D params into one (rows, 128) f32 slab, each block 8-row aligned."""

    def __init__(self, lane=128):
        self.lane = lane
        self.blocks = []
        self.layout = {}
        self.off = 0

    def add(self, name, arr):
        a = np.asarray(arr, np.float32)
        if a.ndim == 1:
            a = a[None, :]
        r, c = a.shape
        assert c <= self.lane, (name, a.shape)
        rp = ((r + 7) // 8) * 8
        blk = np.zeros((rp, self.lane), np.float32)
        blk[:r, :c] = a
        self.blocks.append(blk)
        self.layout[name] = (self.off, r, c)
        self.off += rp

    def slab(self):
        return np.concatenate(self.blocks, axis=0)


def _pack_branch(i, params, cfg, batch):
    """Pack branch i (1 or 2) into a (rows, 128) slab + static layout dict."""
    L = cfg['seq_len']
    D = cfg['input_dim']
    N = batch
    split = cfg['feat_split_list']
    s_lo = sum(split[:i - 1])
    s_hi = s_lo + split[i - 1]
    inc = cfg['affine_dim_list'][i - 1]
    H = cfg['nheads'][i - 1]
    hd = inc // H
    scale = 1.0 / math.sqrt(hd)

    pk = _Packer()

    # Affine weight zero-padded to full input_dim rows: folds the per-branch column split of
    # x into the matmul, so the kernel can take the whole (N*L, D) x slab for both branches.
    aw = np.zeros((D, inc), np.float32)
    aw[s_lo:s_hi, :] = np.asarray(params[f'f{i}_affine_w'], np.float32)
    pk.add('affine_w', aw)

    # Positional embedding, pre-repeated to (L*N, inc) in (l, n)-interleaved row order.
    pk.add('pe', np.repeat(np.asarray(params[f'pe{i}'], np.float32), N, axis=0))

    # TCN blocks: conv weights as (k*Cin, Cout) tap-major slabs.
    def conv_cat(w):
        w = np.asarray(w, np.float32)           # (Cout, Cin, k)
        co, ci, kk = w.shape
        return np.transpose(w, (2, 1, 0)).reshape(kk * ci, co)

    for bi, blk in enumerate(params[f'tcn{i}']):
        pk.add(f'tcn{bi}_w1', conv_cat(blk['conv1_w']))
        pk.add(f'tcn{bi}_b1', blk['conv1_b'])
        pk.add(f'tcn{bi}_w2', conv_cat(blk['conv2_w']))
        pk.add(f'tcn{bi}_b2', blk['conv2_b'])
        if 'down_w' in blk:
            pk.add(f'tcn{bi}_dw', np.asarray(blk['down_w'], np.float32)[:, :, 0].T)
            pk.add(f'tcn{bi}_db', blk['down_b'])

    # Transformer encoder layers: attention weights pre-split per head, scale folded into q.
    for li, lp in enumerate(params[f'trans{i}']):
        E = inc
        in_w = np.asarray(lp['attn']['in_w'], np.float32)    # (E, 3E) cols = [q | k | v]
        in_b = np.asarray(lp['attn']['in_b'], np.float32)    # (3E,)
        out_w = np.asarray(lp['attn']['out_w'], np.float32)  # (E, E), rows = head-concat input
        for hh in range(H):
            qs = slice(hh * hd, (hh + 1) * hd)
            ks = slice(E + hh * hd, E + (hh + 1) * hd)
            vs = slice(2 * E + hh * hd, 2 * E + (hh + 1) * hd)
            pk.add(f'enc{li}_h{hh}_qw', in_w[:, qs] * scale)
            pk.add(f'enc{li}_h{hh}_kw', in_w[:, ks])
            pk.add(f'enc{li}_h{hh}_vw', in_w[:, vs])
            pk.add(f'enc{li}_h{hh}_b3',
                   np.stack([in_b[qs] * scale, in_b[ks], in_b[vs]], axis=0))
            pk.add(f'enc{li}_h{hh}_ow', out_w[hh * hd:(hh + 1) * hd, :])
        pk.add(f'enc{li}_ob', lp['attn']['out_b'])
        pk.add(f'enc{li}_lin1_w', lp['lin1_w'])
        pk.add(f'enc{li}_lin1_b', lp['lin1_b'])
        pk.add(f'enc{li}_lin2_w', lp['lin2_w'])
        pk.add(f'enc{li}_lin2_b', lp['lin2_b'])
        pk.add(f'enc{li}_ln1_g', lp['ln1_g'])
        pk.add(f'enc{li}_ln1_b', lp['ln1_b'])
        pk.add(f'enc{li}_ln2_g', lp['ln2_g'])
        pk.add(f'enc{li}_ln2_b', lp['ln2_b'])

    # fuse linear + branch output linear (row-split at pack time -> no lane concat in-kernel)
    pk.add('fuse_w', params[f'fuse{i}_w'])
    pk.add('fuse_b', params[f'fuse{i}_b'])
    C = cfg['num_channels'][i - 1][-1]
    lw = np.asarray(params[f'f{i}_lin_w'], np.float32)
    pk.add('lin_w_tcn', lw[:C, :])
    pk.add('lin_w_trm', lw[C:, :])
    pk.add('lin_b', params[f'f{i}_lin_b'])

    return pk.slab(), pk.layout


def prepare_params(params, cfg, batch):
    """Done ONCE outside jit: pack all branch params into a stacked (2, rows, 128) slab."""
    for key_ in ('affine_dim_list', 'feedforward_dim', 'num_channels',
                 'kernel_size', 'nheads', 'nlayers', 'feat_split_list'):
        assert cfg[key_][0] == cfg[key_][1], \
            f"branches must be symmetric to stack across the grid ({key_})"
    # Head row-split assumes head input = 2 * branch-output width (true for this config).
    assert int(np.asarray(params['head_w0']).shape[0]) == 2 * min(cfg['num_channels'][0])

    slab1, lay1 = _pack_branch(1, params, cfg, batch)
    slab2, lay2 = _pack_branch(2, params, cfg, batch)
    assert lay1 == lay2 and slab1.shape == slab2.shape
    slabs = jnp.asarray(np.stack([slab1, slab2], axis=0))      # (2, rows, 128)

    head = (jnp.asarray(params['head_w0'], jnp.float32),
            jnp.asarray(params['head_b0'], jnp.float32).reshape(1, -1),
            jnp.asarray(params['head_w1'], jnp.float32),
            jnp.asarray(params['head_b1'], jnp.float32).reshape(1, -1))
    return slabs, head, lay1


# ------------------------------- full forward -------------------------------

def multi_tbert_forward(x, slabs, head, *, layout, cfg):
    L, N, D = x.shape
    NL = N * L
    out_mid = min(cfg['num_channels'][0])
    assert layout['pe'][1] == NL, "params were packed for a different batch size"

    # (L, N, D) -> (L*N, D): (l, n)-interleaved rows, plain reshape (no wrapper transpose).
    x2d = x.reshape(NL, D)
    nbr, R, lanes = slabs.shape

    # Advisory cost estimate so XLA schedules around the custom call sensibly.
    E = cfg['affine_dim_list'][0]
    FF = cfg['feedforward_dim'][0]
    C = cfg['num_channels'][0][-1]
    nl_ = cfg['nlayers'][0]
    flops_branch = (2 * NL * D * E
                    + nl_ * (8 * NL * E * E + 4 * NL * E * FF + 4 * NL * NL * E)
                    + len(cfg['num_channels'][0]) * (12 * NL * C * C + 4 * NL * E * C)
                    + 2 * NL * E * C + 4 * NL * C * out_mid)
    cost = pl.CostEstimate(
        flops=int(2 * flops_branch),
        transcendentals=int(2 * nl_ * cfg['nheads'][0] * NL * NL),
        bytes_accessed=int(4 * (slabs.size + x2d.size + nbr * NL * out_mid)))

    branch_out = pl.pallas_call(
        functools.partial(_branch_kernel, layout, cfg, N),
        grid=(nbr,),
        out_shape=jax.ShapeDtypeStruct((nbr, NL, out_mid), jnp.float32),
        in_specs=[
            pl.BlockSpec((NL, D), lambda b: (0, 0)),            # whole x slab, both branches
            pl.BlockSpec((None, R, lanes), lambda b: (b, 0, 0)),  # this branch's param slab
        ],
        out_specs=pl.BlockSpec((None, NL, out_mid), lambda b: (b, 0, 0)),
        compiler_params=pltpu.CompilerParams(dimension_semantics=("parallel",)),
        cost_estimate=cost,
    )(x2d, slabs)

    # Tiny regressor head (Linear -> ReLU -> Linear on 16x16 operands) stays in XLA so the two
    # branch grid steps remain fully independent (v7x: one per TensorCore).  Concat folded
    # into a row-split of head_w0.
    w0, b0, w1, b1 = head
    m = out_mid
    hid = jnp.maximum(branch_out[0] @ w0[:m, :] + branch_out[1] @ w0[m:2 * m, :] + b0, 0.0)
    y = hid @ w1 + b1
    return y.reshape(L, N, -1)


# -------------------------------- param init ---------------------------------

def sinusoid_table(n_pos, d_hid):
    pos = np.arange(n_pos, dtype=np.float64)[:, None]
    idx = np.arange(d_hid, dtype=np.float64)[None, :]
    angle = pos / np.power(10000.0, 2.0 * (idx // 2) / d_hid)
    table = np.zeros((n_pos, d_hid), dtype=np.float32)
    table[:, 0::2] = np.sin(angle[:, 0::2])
    table[:, 1::2] = np.cos(angle[:, 1::2])
    return jnp.asarray(table)


def make_params(key, cfg):
    keys = iter(jax.random.split(key, 256))

    def w(shape, scale=0.05):
        return scale * jax.random.normal(next(keys), shape, dtype=jnp.float32)

    def b(n):
        return 0.01 * jax.random.normal(next(keys), (n,), dtype=jnp.float32)

    s1, s2 = cfg['feat_split_list']
    inc1, inc2 = cfg['affine_dim_list']
    ff1, ff2 = cfg['feedforward_dim']
    nc1, nc2 = cfg['num_channels']
    k1, k2 = cfg['kernel_size']
    L = cfg['seq_len']

    def enc_layer(E, ff):
        return {
            'attn': {'in_w': w((E, 3 * E)), 'in_b': b(3 * E),
                     'out_w': w((E, E)), 'out_b': b(E)},
            'lin1_w': w((E, ff)), 'lin1_b': b(ff),
            'lin2_w': w((ff, E)), 'lin2_b': b(E),
            'ln1_g': jnp.ones((E,), jnp.float32), 'ln1_b': jnp.zeros((E,), jnp.float32),
            'ln2_g': jnp.ones((E,), jnp.float32), 'ln2_b': jnp.zeros((E,), jnp.float32),
        }

    def tcn_params(cin, channels, k):
        blocks = []
        prev = cin
        for co in channels:
            p = {'conv1_w': w((co, prev, k)), 'conv1_b': b(co),
                 'conv2_w': w((co, co, k)), 'conv2_b': b(co)}
            if prev != co:
                p['down_w'] = w((co, prev, 1))
                p['down_b'] = b(co)
            blocks.append(p)
            prev = co
        return blocks

    C1, C2 = nc1[-1], nc2[-1]
    out_mid = min(nc1)
    head_in = C1 * 2
    hd0 = cfg['head_dims'][0]

    return {
        'f1_affine_w': w((s1, inc1)),
        'f2_affine_w': w((s2, inc2)),
        'pe1': sinusoid_table(L, inc1),
        'pe2': sinusoid_table(L, inc2),
        'trans1': [enc_layer(inc1, ff1) for _ in range(cfg['nlayers'][0])],
        'trans2': [enc_layer(inc2, ff2) for _ in range(cfg['nlayers'][1])],
        'tcn1': tcn_params(inc1, nc1, k1),
        'tcn2': tcn_params(inc2, nc2, k2),
        'fuse1_w': w((inc1, C1)), 'fuse1_b': b(C1),
        'fuse2_w': w((inc2, C2)), 'fuse2_b': b(C2),
        'f1_lin_w': w((C1 * 2, out_mid)), 'f1_lin_b': b(out_mid),
        'f2_lin_w': w((C2 * 2, out_mid)), 'f2_lin_b': b(out_mid),
        'head_w0': w((head_in, hd0)), 'head_b0': b(hd0),
        'head_w1': w((hd0, cfg['out_dim'])), 'head_b1': b(cfg['out_dim']),
    }


# ----------------------------------- main ------------------------------------

if __name__ == "__main__":
    cfg = {
        'input_dim': 12,
        'feat_split_list': [6, 6],
        'affine_dim_list': [16, 16],
        'feedforward_dim': [32, 32],
        'num_channels': [[8, 8], [8, 8]],
        'kernel_size': [3, 3],
        'nheads': [4, 4],
        'nlayers': [2, 2],
        'seq_len': 8,
        'head_dims': [16],
        'out_dim': 4,
    }
    # TODO(synk): dropout layers are identity here (inference / eval-mode semantics).

    key = jax.random.PRNGKey(0)
    kx, kp = jax.random.split(key)
    batch = 2
    x = jax.random.normal(kx, (cfg['seq_len'], batch, cfg['input_dim']), dtype=jnp.float32)
    params = make_params(kp, cfg)

    # Pack once outside jit (real deployments do this at checkpoint-load time).
    slabs, head, layout = prepare_params(params, cfg, batch)

    fwd = jax.jit(functools.partial(multi_tbert_forward, layout=layout, cfg=cfg))
    out = fwd(x, slabs, head)
    out = jax.block_until_ready(out)
    assert out.shape == (cfg['seq_len'], batch, cfg['out_dim']), out.shape
    assert bool(jnp.all(jnp.isfinite(out)))
    print("KERNEL_OK")
</pallas_src>

<mosaic_0001>
module attributes {stable_mosaic.version = 11 : i64} {
  func.func @_branch_kernel(%arg0: i32, %arg1: memref<16x12xf32, #tpu.memory_space<vmem>>, %arg2: memref<1x976x128xf32, #tpu.memory_space<vmem>>, %arg3: memref<1x16x8xf32, #tpu.memory_space<vmem>>) attributes {dimension_semantics = [#tpu.dimension_semantics<parallel>], iteration_bounds = array<i64: 2>, scalar_prefetch = 0 : i64, scratch_operands = 0 : i64, tpu.core_type = #tpu.core_type<tc>, window_params = [{pipeline_mode = #tpu.pipeline_mode<synchronous>, transform_indices = @transform_0, window_bounds = array<i64: 16, 12>}, {transform_indices = @transform_1, window_bounds = array<i64: 1, 976, 128>}, {transform_indices = @transform_2, window_bounds = array<i64: 1, 16, 8>}]} {
    %0 = tpu.iota {dimensions = array<i32: 0>} : vector<16x16xi32>
    %1 = tpu.iota {dimensions = array<i32: 1>} : vector<16x16xi32>
    %c2_i32 = arith.constant 2 : i32
    %c0_i32 = arith.constant 0 : i32
    %2 = arith.cmpi eq, %c2_i32, %c0_i32 : i32
    %c1_i32 = arith.constant 1 : i32
    %3 = arith.select %2, %c1_i32, %c2_i32 : i32
    %4 = vector.broadcast %3 : i32 to vector<16x16xi32>
    %5 = arith.remsi %0, %4 : vector<16x16xi32>
    %c0_i32_0 = arith.constant 0 : i32
    %6 = vector.broadcast %c0_i32_0 : i32 to vector<16x16xi32>
    %7 = arith.cmpi ne, %5, %6 : vector<16x16xi32>
    %c0_i32_1 = arith.constant 0 : i32
    %8 = vector.broadcast %c0_i32_1 : i32 to vector<16x16xi32>
    %9 = arith.cmpi slt, %5, %8 : vector<16x16xi32>
    %c0_i32_2 = arith.constant 0 : i32
    %10 = arith.cmpi slt, %3, %c0_i32_2 : i32
    %11 = vector.broadcast %10 : i1 to vector<16x16xi1>
    %12 = vector.broadcast %11 : vector<16x16xi1> to vector<16x16xi1>
    %13 = arith.xori %9, %12 : vector<16x16xi1>
    %14 = arith.andi %13, %7 : vector<16x16xi1>
    %15 = vector.broadcast %3 : i32 to vector<16x16xi32>
    %16 = arith.addi %5, %15 : vector<16x16xi32>
    %17 = arith.select %14, %16, %5 : vector<16x16xi1>, vector<16x16xi32>
    %c2_i32_3 = arith.constant 2 : i32
    %c0_i32_4 = arith.constant 0 : i32
    %18 = arith.cmpi eq, %c2_i32_3, %c0_i32_4 : i32
    %c1_i32_5 = arith.constant 1 : i32
    %19 = arith.select %18, %c1_i32_5, %c2_i32_3 : i32
    %20 = vector.broadcast %19 : i32 to vector<16x16xi32>
    %21 = arith.remsi %1, %20 : vector<16x16xi32>
    %c0_i32_6 = arith.constant 0 : i32
    %22 = vector.broadcast %c0_i32_6 : i32 to vector<16x16xi32>
    %23 = arith.cmpi ne, %21, %22 : vector<16x16xi32>
    %c0_i32_7 = arith.constant 0 : i32
    %24 = vector.broadcast %c0_i32_7 : i32 to vector<16x16xi32>
    %25 = arith.cmpi slt, %21, %24 : vector<16x16xi32>
    %c0_i32_8 = arith.constant 0 : i32
    %26 = arith.cmpi slt, %19, %c0_i32_8 : i32
    %27 = vector.broadcast %26 : i1 to vector<16x16xi1>
    %28 = vector.broadcast %27 : vector<16x16xi1> to vector<16x16xi1>
    %29 = arith.xori %25, %28 : vector<16x16xi1>
    %30 = arith.andi %29, %23 : vector<16x16xi1>
    %31 = vector.broadcast %19 : i32 to vector<16x16xi32>
    %32 = arith.addi %21, %31 : vector<16x16xi32>
    %33 = arith.select %30, %32, %21 : vector<16x16xi1>, vector<16x16xi32>
    %34 = arith.cmpi eq, %17, %33 : vector<16x16xi32>
    %cst = arith.constant 0.000000e+00 : f32
    %cst_9 = arith.constant -1.000000e+30 : f32
    %35 = vector.broadcast %cst : f32 to vector<16x16xf32>
    %36 = vector.broadcast %cst_9 : f32 to vector<16x16xf32>
    %37 = arith.select %34, %35, %36 : vector<16x16xi1>, vector<16x16xf32>
    %c0 = arith.constant 0 : index
    %c0_10 = arith.constant 0 : index
    %38 = vector.load %arg1[%c0, %c0_10] : memref<16x12xf32, #tpu.memory_space<vmem>>, vector<16x12xf32>
    %c0_11 = arith.constant 0 : index
    %c0_12 = arith.constant 0 : index
    %c0_13 = arith.constant 0 : index
    %39 = vector.load %arg2[%c0_11, %c0_12, %c0_13] : memref<1x976x128xf32, #tpu.memory_space<vmem>>, vector<1x12x16xf32>
    %40 = vector.shape_cast %39 : vector<1x12x16xf32> to vector<12x16xf32>
    %cst_14 = arith.constant dense<0.000000e+00> : vector<16x16xf32>
    %41 = tpu.matmul %38, %40, %cst_14 {dimension_numbers = #tpu.dot_dimension_numbers<[1], [0], [0], [1], [0, 0, 1, 1], [], []>} : vector<16x12xf32>, vector<12x16xf32>, vector<16x16xf32> -> vector<16x16xf32>
    %c0_15 = arith.constant 0 : index
    %c16 = arith.constant 16 : index
    %c0_16 = arith.constant 0 : index
    %42 = vector.load %arg2[%c0_15, %c16, %c0_16] : memref<1x976x128xf32, #tpu.memory_space<vmem>>, vector<1x16x16xf32>
    %43 = vector.shape_cast %42 : vector<1x16x16xf32> to vector<16x16xf32>
    %44 = arith.addf %41, %43 : vector<16x16xf32>
    %c0_17 = arith.constant 0 : index
    %c32 = arith.constant 32 : index
    %c0_18 = arith.constant 0 : index
    %45 = vector.load %arg2[%c0_17, %c32, %c0_18] : memref<1x976x128xf32, #tpu.memory_space<vmem>>, vector<1x48x8xf32>
    %46 = vector.shape_cast %45 : vector<1x48x8xf32> to vector<48x8xf32>
    %c0_19 = arith.constant 0 : index
    %c80 = arith.constant 80 : index
    %c0_20 = arith.constant 0 : index
    %47 = vector.load %arg2[%c0_19, %c80, %c0_20] : memref<1x976x128xf32, #tpu.memory_space<vmem>>, vector<1x1x8xf32>
    %48 = vector.shape_cast %47 : vector<1x1x8xf32> to vector<1x8xf32>
    %cst_21 = arith.constant 0.000000e+00 : f32
    %49 = vector.broadcast %cst_21 : f32 to vector<4x16xf32>
    %50 = vector.extract_strided_slice %44 {offsets = [0, 0], sizes = [12, 16], strides = [1, 1]} : vector<16x16xf32> to vector<12x16xf32>
    %51 = tpu.concatenate %49, %50 in 0 : vector<4x16xf32>, vector<12x16xf32> -> vector<16x16xf32>
    %cst_22 = arith.constant 0.000000e+00 : f32
    %52 = vector.broadcast %cst_22 : f32 to vector<2x16xf32>
    %53 = vector.extract_strided_slice %44 {offsets = [0, 0], sizes = [14, 16], strides = [1, 1]} : vector<16x16xf32> to vector<14x16xf32>
    %54 = tpu.concatenate %52, %53 in 0 : vector<2x16xf32>, vector<14x16xf32> -> vector<16x16xf32>
    %55 = tpu.concatenate %51, %54, %44 in 1 : vector<16x16xf32>, vector<16x16xf32>, vector<16x16xf32> -> vector<16x48xf32>
    %cst_23 = arith.constant dense<0.000000e+00> : vector<16x8xf32>
    %56 = tpu.matmul %55, %46, %cst_23 {dimension_numbers = #tpu.dot_dimension_numbers<[1], [0], [0], [1], [0, 0, 1, 1], [], []>} : vector<16x48xf32>, vector<48x8xf32>, vector<16x8xf32> -> vector<16x8xf32>
    %57 = vector.broadcast %48 : vector<1x8xf32> to vector<16x8xf32>
    %58 = arith.addf %56, %57 : vector<16x8xf32>
    %cst_24 = arith.constant 0.000000e+00 : f32
    %59 = vector.broadcast %cst_24 : f32 to vector<16x8xf32>
    %60 = arith.maximumf %58, %59 : vector<16x8xf32>
    %c0_25 = arith.constant 0 : index
    %c88 = arith.constant 88 : index
    %c0_26 = arith.constant 0 : index
    %61 = vector.load %arg2[%c0_25, %c88, %c0_26] : memref<1x976x128xf32, #tpu.memory_space<vmem>>, vector<1x24x8xf32>
    %62 = vector.shape_cast %61 : vector<1x24x8xf32> to vector<24x8xf32>
    %c0_27 = arith.constant 0 : index
    %c112 = arith.constant 112 : index
    %c0_28 = arith.constant 0 : index
    %63 = vector.load %arg2[%c0_27, %c112, %c0_28] : memref<1x976x128xf32, #tpu.memory_space<vmem>>, vector<1x1x8xf32>
    %64 = vector.shape_cast %63 : vector<1x1x8xf32> to vector<1x8xf32>
    %cst_29 = arith.constant 0.000000e+00 : f32
    %65 = vector.broadcast %cst_29 : f32 to vector<4x8xf32>
    %66 = vector.extract_strided_slice %60 {offsets = [0, 0], sizes = [12, 8], strides = [1, 1]} : vector<16x8xf32> to vector<12x8xf32>
    %67 = tpu.concatenate %65, %66 in 0 : vector<4x8xf32>, vector<12x8xf32> -> vector<16x8xf32>
    %cst_30 = arith.constant 0.000000e+00 : f32
    %68 = vector.broadcast %cst_30 : f32 to vector<2x8xf32>
    %69 = vector.extract_strided_slice %60 {offsets = [0, 0], sizes = [14, 8], strides = [1, 1]} : vector<16x8xf32> to vector<14x8xf32>
    %70 = tpu.concatenate %68, %69 in 0 : vector<2x8xf32>, vector<14x8xf32> -> vector<16x8xf32>
    %71 = tpu.concatenate %67, %70, %60 in 1 : vector<16x8xf32>, vector<16x8xf32>, vector<16x8xf32> -> vector<16x24xf32>
    %cst_31 = arith.constant dense<0.000000e+00> : vector<16x8xf32>
    %72 = tpu.matmul %71, %62, %cst_31 {dimension_numbers = #tpu.dot_dimension_numbers<[1], [0], [0], [1], [0, 0, 1, 1], [], []>} : vector<16x24xf32>, vector<24x8xf32>, vector<16x8xf32> -> vector<16x8xf32>
    %73 = vector.broadcast %64 : vector<1x8xf32> to vector<16x8xf32>
    %74 = arith.addf %72, %73 : vector<16x8xf32>
    %cst_32 = arith.constant 0.000000e+00 : f32
    %75 = vector.broadcast %cst_32 : f32 to vector<16x8xf32>
    %76 = arith.maximumf %74, %75 : vector<16x8xf32>
    %c0_33 = arith.constant 0 : index
    %c120 = arith.constant 120 : index
    %c0_34 = arith.constant 0 : index
    %77 = vector.load %arg2[%c0_33, %c120, %c0_34] : memref<1x976x128xf32, #tpu.memory_space<vmem>>, vector<1x16x8xf32>
    %78 = vector.shape_cast %77 : vector<1x16x8xf32> to vector<16x8xf32>
    %cst_35 = arith.constant dense<0.000000e+00> : vector<16x8xf32>
    %79 = tpu.matmul %44, %78, %cst_35 {dimension_numbers = #tpu.dot_dimension_numbers<[1], [0], [0], [1], [0, 0, 1, 1], [], []>} : vector<16x16xf32>, vector<16x8xf32>, vector<16x8xf32> -> vector<16x8xf32>
    %c0_36 = arith.constant 0 : index
    %c136 = arith.constant 136 : index
    %c0_37 = arith.constant 0 : index
    %80 = vector.load %arg2[%c0_36, %c136, %c0_37] : memref<1x976x128xf32, #tpu.memory_space<vmem>>, vector<1x1x8xf32>
    %81 = vector.shape_cast %80 : vector<1x1x8xf32> to vector<1x8xf32>
    %82 = vector.broadcast %81 : vector<1x8xf32> to vector<16x8xf32>
    %83 = arith.addf %79, %82 : vector<16x8xf32>
    %84 = arith.addf %76, %83 : vector<16x8xf32>
    %cst_38 = arith.constant 0.000000e+00 : f32
    %85 = vector.broadcast %cst_38 : f32 to vector<16x8xf32>
    %86 = arith.maximumf %84, %85 : vector<16x8xf32>
    %c0_39 = arith.constant 0 : index
    %c144 = arith.constant 144 : index
    %c0_40 = arith.constant 0 : index
    %87 = vector.load %arg2[%c0_39, %c144, %c0_40] : memref<1x976x128xf32, #tpu.memory_space<vmem>>, vector<1x24x8xf32>
    %88 = vector.shape_cast %87 : vector<1x24x8xf32> to vector<24x8xf32>
    %c0_41 = arith.constant 0 : index
    %c168 = arith.constant 168 : index
    %c0_42 = arith.constant 0 : index
    %89 = vector.load %arg2[%c0_41, %c168, %c0_42] : memref<1x976x128xf32, #tpu.memory_space<vmem>>, vector<1x1x8xf32>
    %90 = vector.shape_cast %89 : vector<1x1x8xf32> to vector<1x8xf32>
    %cst_43 = arith.constant 0.000000e+00 : f32
    %91 = vector.broadcast %cst_43 : f32 to vector<8x8xf32>
    %92 = vector.extract_strided_slice %86 {offsets = [0, 0], sizes = [8, 8], strides = [1, 1]} : vector<16x8xf32> to vector<8x8xf32>
    %93 = tpu.concatenate %91, %92 in 0 : vector<8x8xf32>, vector<8x8xf32> -> vector<16x8xf32>
    %cst_44 = arith.constant 0.000000e+00 : f32
    %94 = vector.broadcast %cst_44 : f32 to vector<4x8xf32>
    %95 = vector.extract_strided_slice %86 {offsets = [0, 0], sizes = [12, 8], strides = [1, 1]} : vector<16x8xf32> to vector<12x8xf32>
    %96 = tpu.concatenate %94, %95 in 0 : vector<4x8xf32>, vector<12x8xf32> -> vector<16x8xf32>
    %97 = tpu.concatenate %93, %96, %86 in 1 : vector<16x8xf32>, vector<16x8xf32>, vector<16x8xf32> -> vector<16x24xf32>
    %cst_45 = arith.constant dense<0.000000e+00> : vector<16x8xf32>
    %98 = tpu.matmul %97, %88, %cst_45 {dimension_numbers = #tpu.dot_dimension_numbers<[1], [0], [0], [1], [0, 0, 1, 1], [], []>} : vector<16x24xf32>, vector<24x8xf32>, vector<16x8xf32> -> vector<16x8xf32>
    %99 = vector.broadcast %90 : vector<1x8xf32> to vector<16x8xf32>
    %100 = arith.addf %98, %99 : vector<16x8xf32>
    %cst_46 = arith.constant 0.000000e+00 : f32
    %101 = vector.broadcast %cst_46 : f32 to vector<16x8xf32>
    %102 = arith.maximumf %100, %101 : vector<16x8xf32>
    %c0_47 = arith.constant 0 : index
    %c176 = arith.constant 176 : index
    %c0_48 = arith.constant 0 : index
    %103 = vector.load %arg2[%c0_47, %c176, %c0_48] : memref<1x976x128xf32, #tpu.memory_space<vmem>>, vector<1x24x8xf32>
    %104 = vector.shape_cast %103 : vector<1x24x8xf32> to vector<24x8xf32>
    %c0_49 = arith.constant 0 : index
    %c200 = arith.constant 200 : index
    %c0_50 = arith.constant 0 : index
    %105 = vector.load %arg2[%c0_49, %c200, %c0_50] : memref<1x976x128xf32, #tpu.memory_space<vmem>>, vector<1x1x8xf32>
    %106 = vector.shape_cast %105 : vector<1x1x8xf32> to vector<1x8xf32>
    %cst_51 = arith.constant 0.000000e+00 : f32
    %107 = vector.broadcast %cst_51 : f32 to vector<8x8xf32>
    %108 = vector.extract_strided_slice %102 {offsets = [0, 0], sizes = [8, 8], strides = [1, 1]} : vector<16x8xf32> to vector<8x8xf32>
    %109 = tpu.concatenate %107, %108 in 0 : vector<8x8xf32>, vector<8x8xf32> -> vector<16x8xf32>
    %cst_52 = arith.constant 0.000000e+00 : f32
    %110 = vector.broadcast %cst_52 : f32 to vector<4x8xf32>
    %111 = vector.extract_strided_slice %102 {offsets = [0, 0], sizes = [12, 8], strides = [1, 1]} : vector<16x8xf32> to vector<12x8xf32>
    %112 = tpu.concatenate %110, %111 in 0 : vector<4x8xf32>, vector<12x8xf32> -> vector<16x8xf32>
    %113 = tpu.concatenate %109, %112, %102 in 1 : vector<16x8xf32>, vector<16x8xf32>, vector<16x8xf32> -> vector<16x24xf32>
    %cst_53 = arith.constant dense<0.000000e+00> : vector<16x8xf32>
    %114 = tpu.matmul %113, %104, %cst_53 {dimension_numbers = #tpu.dot_dimension_numbers<[1], [0], [0], [1], [0, 0, 1, 1], [], []>} : vector<16x24xf32>, vector<24x8xf32>, vector<16x8xf32> -> vector<16x8xf32>
    %115 = vector.broadcast %106 : vector<1x8xf32> to vector<16x8xf32>
    %116 = arith.addf %114, %115 : vector<16x8xf32>
    %cst_54 = arith.constant 0.000000e+00 : f32
    %117 = vector.broadcast %cst_54 : f32 to vector<16x8xf32>
    %118 = arith.maximumf %116, %117 : vector<16x8xf32>
    %119 = arith.addf %118, %86 : vector<16x8xf32>
    %cst_55 = arith.constant 0.000000e+00 : f32
    %120 = vector.broadcast %cst_55 : f32 to vector<16x8xf32>
    %121 = arith.maximumf %119, %120 : vector<16x8xf32>
    %cst_56 = arith.constant 0.000000e+00 : f32
    %122 = vector.broadcast %cst_56 : f32 to vector<16x16xf32>
    %c0_57 = arith.constant 0 : index
    %c464 = arith.constant 464 : index
    %c0_58 = arith.constant 0 : index
    %123 = vector.load %arg2[%c0_57, %c464, %c0_58] : memref<1x976x128xf32, #tpu.memory_space<vmem>>, vector<1x1x16xf32>
    %124 = vector.shape_cast %123 : vector<1x1x16xf32> to vector<1x16xf32>
    %125 = vector.broadcast %124 : vector<1x16xf32> to vector<16x16xf32>
    %126 = arith.addf %122, %125 : vector<16x16xf32>
    %c0_59 = arith.constant 0 : index
    %c256 = arith.constant 256 : index
    %c0_60 = arith.constant 0 : index
    %127 = vector.load %arg2[%c0_59, %c256, %c0_60] : memref<1x976x128xf32, #tpu.memory_space<vmem>>, vector<1x3x4xf32>
    %128 = vector.shape_cast %127 : vector<1x3x4xf32> to vector<3x4xf32>
    %c0_61 = arith.constant 0 : index
    %c208 = arith.constant 208 : index
    %c0_62 = arith.constant 0 : index
    %129 = vector.load %arg2[%c0_61, %c208, %c0_62] : memref<1x976x128xf32, #tpu.memory_space<vmem>>, vector<1x16x4xf32>
    %130 = vector.shape_cast %129 : vector<1x16x4xf32> to vector<16x4xf32>
    %cst_63 = arith.constant dense<0.000000e+00> : vector<16x4xf32>
    %131 = tpu.matmul %44, %130, %cst_63 {dimension_numbers = #tpu.dot_dimension_numbers<[1], [0], [0], [1], [0, 0, 1, 1], [], []>} : vector<16x16xf32>, vector<16x4xf32>, vector<16x4xf32> -> vector<16x4xf32>
    %132 = vector.extract_strided_slice %128 {offsets = [0, 0], sizes = [1, 4], strides = [1, 1]} : vector<3x4xf32> to vector<1x4xf32>
    %133 = vector.broadcast %132 : vector<1x4xf32> to vector<16x4xf32>
    %134 = arith.addf %131, %133 : vector<16x4xf32>
    %c0_64 = arith.constant 0 : index
    %c224 = arith.constant 224 : index
    %c0_65 = arith.constant 0 : index
    %135 = vector.load %arg2[%c0_64, %c224, %c0_65] : memref<1x976x128xf32, #tpu.memory_space<vmem>>, vector<1x16x4xf32>
    %136 = vector.shape_cast %135 : vector<1x16x4xf32> to vector<16x4xf32>
    %cst_66 = arith.constant dense<0.000000e+00> : vector<16x4xf32>
    %137 = tpu.matmul %44, %136, %cst_66 {dimension_numbers = #tpu.dot_dimension_numbers<[1], [0], [0], [1], [0, 0, 1, 1], [], []>} : vector<16x16xf32>, vector<16x4xf32>, vector<16x4xf32> -> vector<16x4xf32>
    %138 = vector.extract_strided_slice %128 {offsets = [1, 0], sizes = [1, 4], strides = [1, 1]} : vector<3x4xf32> to vector<1x4xf32>
    %139 = vector.broadcast %138 : vector<1x4xf32> to vector<16x4xf32>
    %140 = arith.addf %137, %139 : vector<16x4xf32>
    %c0_67 = arith.constant 0 : index
    %c240 = arith.constant 240 : index
    %c0_68 = arith.constant 0 : index
    %141 = vector.load %arg2[%c0_67, %c240, %c0_68] : memref<1x976x128xf32, #tpu.memory_space<vmem>>, vector<1x16x4xf32>
    %142 = vector.shape_cast %141 : vector<1x16x4xf32> to vector<16x4xf32>
    %cst_69 = arith.constant dense<0.000000e+00> : vector<16x4xf32>
    %143 = tpu.matmul %44, %142, %cst_69 {dimension_numbers = #tpu.dot_dimension_numbers<[1], [0], [0], [1], [0, 0, 1, 1], [], []>} : vector<16x16xf32>, vector<16x4xf32>, vector<16x4xf32> -> vector<16x4xf32>
    %144 = vector.extract_strided_slice %128 {offsets = [2, 0], sizes = [1, 4], strides = [1, 1]} : vector<3x4xf32> to vector<1x4xf32>
    %145 = vector.broadcast %144 : vector<1x4xf32> to vector<16x4xf32>
    %146 = arith.addf %143, %145 : vector<16x4xf32>
    %cst_70 = arith.constant dense<0.000000e+00> : vector<16x16xf32>
    %147 = tpu.matmul %134, %140, %cst_70 {dimension_numbers = #tpu.dot_dimension_numbers<[1], [1], [0], [0], [0, 0, 1, 0], [], []>} : vector<16x4xf32>, vector<16x4xf32>, vector<16x16xf32> -> vector<16x16xf32>
    %148 = arith.addf %147, %37 : vector<16x16xf32>
    %cst_71 = arith.constant dense<0xFF800000> : vector<16xf32>
    %149 = vector.multi_reduction <maximumf>, %148, %cst_71 [1] : vector<16x16xf32> to vector<16xf32>
    %150 = vector.shape_cast %149 : vector<16xf32> to vector<16x1xf32>
    %151 = vector.broadcast %150 : vector<16x1xf32> to vector<16x16xf32>
    %152 = arith.subf %148, %151 : vector<16x16xf32>
    %153 = math.exp %152 : vector<16x16xf32>
    %cst_72 = arith.constant dense<0.000000e+00> : vector<16xf32>
    %154 = vector.multi_reduction <add>, %153, %cst_72 [1] : vector<16x16xf32> to vector<16xf32>
    %155 = vector.shape_cast %154 : vector<16xf32> to vector<16x1xf32>
    %156 = tpu.reciprocal %155 {approx = true} : vector<16x1xf32> -> vector<16x1xf32>
    %157 = vector.broadcast %156 : vector<16x1xf32> to vector<16x16xf32>
    %158 = arith.mulf %153, %157 : vector<16x16xf32>
    %cst_73 = arith.constant dense<0.000000e+00> : vector<16x4xf32>
    %159 = tpu.matmul %158, %146, %cst_73 {dimension_numbers = #tpu.dot_dimension_numbers<[1], [0], [0], [1], [0, 0, 1, 1], [], []>} : vector<16x16xf32>, vector<16x4xf32>, vector<16x4xf32> -> vector<16x4xf32>
    %c0_74 = arith.constant 0 : index
    %c264 = arith.constant 264 : index
    %c0_75 = arith.constant 0 : index
    %160 = vector.load %arg2[%c0_74, %c264, %c0_75] : memref<1x976x128xf32, #tpu.memory_space<vmem>>, vector<1x4x16xf32>
    %161 = vector.shape_cast %160 : vector<1x4x16xf32> to vector<4x16xf32>
    %cst_76 = arith.constant dense<0.000000e+00> : vector<16x16xf32>
    %162 = tpu.matmul %159, %161, %cst_76 {dimension_numbers = #tpu.dot_dimension_numbers<[1], [0], [0], [1], [0, 0, 1, 1], [], []>} : vector<16x4xf32>, vector<4x16xf32>, vector<16x16xf32> -> vector<16x16xf32>
    %163 = arith.addf %126, %162 : vector<16x16xf32>
    %c0_77 = arith.constant 0 : index
    %c320 = arith.constant 320 : index
    %c0_78 = arith.constant 0 : index
    %164 = vector.load %arg2[%c0_77, %c320, %c0_78] : memref<1x976x128xf32, #tpu.memory_space<vmem>>, vector<1x3x4xf32>
    %165 = vector.shape_cast %164 : vector<1x3x4xf32> to vector<3x4xf32>
    %c0_79 = arith.constant 0 : index
    %c272 = arith.constant 272 : index
    %c0_80 = arith.constant 0 : index
    %166 = vector.load %arg2[%c0_79, %c272, %c0_80] : memref<1x976x128xf32, #tpu.memory_space<vmem>>, vector<1x16x4xf32>
    %167 = vector.shape_cast %166 : vector<1x16x4xf32> to vector<16x4xf32>
    %cst_81 = arith.constant dense<0.000000e+00> : vector<16x4xf32>
    %168 = tpu.matmul %44, %167, %cst_81 {dimension_numbers = #tpu.dot_dimension_numbers<[1], [0], [0], [1], [0, 0, 1, 1], [], []>} : vector<16x16xf32>, vector<16x4xf32>, vector<16x4xf32> -> vector<16x4xf32>
    %169 = vector.extract_strided_slice %165 {offsets = [0, 0], sizes = [1, 4], strides = [1, 1]} : vector<3x4xf32> to vector<1x4xf32>
    %170 = vector.broadcast %169 : vector<1x4xf32> to vector<16x4xf32>
    %171 = arith.addf %168, %170 : vector<16x4xf32>
    %c0_82 = arith.constant 0 : index
    %c288 = arith.constant 288 : index
    %c0_83 = arith.constant 0 : index
    %172 = vector.load %arg2[%c0_82, %c288, %c0_83] : memref<1x976x128xf32, #tpu.memory_space<vmem>>, vector<1x16x4xf32>
    %173 = vector.shape_cast %172 : vector<1x16x4xf32> to vector<16x4xf32>
    %cst_84 = arith.constant dense<0.000000e+00> : vector<16x4xf32>
    %174 = tpu.matmul %44, %173, %cst_84 {dimension_numbers = #tpu.dot_dimension_numbers<[1], [0], [0], [1], [0, 0, 1, 1], [], []>} : vector<16x16xf32>, vector<16x4xf32>, vector<16x4xf32> -> vector<16x4xf32>
    %175 = vector.extract_strided_slice %165 {offsets = [1, 0], sizes = [1, 4], strides = [1, 1]} : vector<3x4xf32> to vector<1x4xf32>
    %176 = vector.broadcast %175 : vector<1x4xf32> to vector<16x4xf32>
    %177 = arith.addf %174, %176 : vector<16x4xf32>
    %c0_85 = arith.constant 0 : index
    %c304 = arith.constant 304 : index
    %c0_86 = arith.constant 0 : index
    %178 = vector.load %arg2[%c0_85, %c304, %c0_86] : memref<1x976x128xf32, #tpu.memory_space<vmem>>, vector<1x16x4xf32>
    %179 = vector.shape_cast %178 : vector<1x16x4xf32> to vector<16x4xf32>
    %cst_87 = arith.constant dense<0.000000e+00> : vector<16x4xf32>
    %180 = tpu.matmul %44, %179, %cst_87 {dimension_numbers = #tpu.dot_dimension_numbers<[1], [0], [0], [1], [0, 0, 1, 1], [], []>} : vector<16x16xf32>, vector<16x4xf32>, vector<16x4xf32> -> vector<16x4xf32>
    %181 = vector.extract_strided_slice %165 {offsets = [2, 0], sizes = [1, 4], strides = [1, 1]} : vector<3x4xf32> to vector<1x4xf32>
    %182 = vector.broadcast %181 : vector<1x4xf32> to vector<16x4xf32>
    %183 = arith.addf %180, %182 : vector<16x4xf32>
    %cst_88 = arith.constant dense<0.000000e+00> : vector<16x16xf32>
    %184 = tpu.matmul %171, %177, %cst_88 {dimension_numbers = #tpu.dot_dimension_numbers<[1], [1], [0], [0], [0, 0, 1, 0], [], []>} : vector<16x4xf32>, vector<16x4xf32>, vector<16x16xf32> -> vector<16x16xf32>
    %185 = arith.addf %184, %37 : vector<16x16xf32>
    %cst_89 = arith.constant dense<0xFF800000> : vector<16xf32>
    %186 = vector.multi_reduction <maximumf>, %185, %cst_89 [1] : vector<16x16xf32> to vector<16xf32>
    %187 = vector.shape_cast %186 : vector<16xf32> to vector<16x1xf32>
    %188 = vector.broadcast %187 : vector<16x1xf32> to vector<16x16xf32>
    %189 = arith.subf %185, %188 : vector<16x16xf32>
    %190 = math.exp %189 : vector<16x16xf32>
    %cst_90 = arith.constant dense<0.000000e+00> : vector<16xf32>
    %191 = vector.multi_reduction <add>, %190, %cst_90 [1] : vector<16x16xf32> to vector<16xf32>
    %192 = vector.shape_cast %191 : vector<16xf32> to vector<16x1xf32>
    %193 = tpu.reciprocal %192 {approx = true} : vector<16x1xf32> -> vector<16x1xf32>
    %194 = vector.broadcast %193 : vector<16x1xf32> to vector<16x16xf32>
    %195 = arith.mulf %190, %194 : vector<16x16xf32>
    %cst_91 = arith.constant dense<0.000000e+00> : vector<16x4xf32>
    %196 = tpu.matmul %195, %183, %cst_91 {dimension_numbers = #tpu.dot_dimension_numbers<[1], [0], [0], [1], [0, 0, 1, 1], [], []>} : vector<16x16xf32>, vector<16x4xf32>, vector<16x4xf32> -> vector<16x4xf32>
    %c0_92 = arith.constant 0 : index
    %c328 = arith.constant 328 : index
    %c0_93 = arith.constant 0 : index
    %197 = vector.load %arg2[%c0_92, %c328, %c0_93] : memref<1x976x128xf32, #tpu.memory_space<vmem>>, vector<1x4x16xf32>
    %198 = vector.shape_cast %197 : vector<1x4x16xf32> to vector<4x16xf32>
    %cst_94 = arith.constant dense<0.000000e+00> : vector<16x16xf32>
    %199 = tpu.matmul %196, %198, %cst_94 {dimension_numbers = #tpu.dot_dimension_numbers<[1], [0], [0], [1], [0, 0, 1, 1], [], []>} : vector<16x4xf32>, vector<4x16xf32>, vector<16x16xf32> -> vector<16x16xf32>
    %200 = arith.addf %163, %199 : vector<16x16xf32>
    %c0_95 = arith.constant 0 : index
    %c384 = arith.constant 384 : index
    %c0_96 = arith.constant 0 : index
    %201 = vector.load %arg2[%c0_95, %c384, %c0_96] : memref<1x976x128xf32, #tpu.memory_space<vmem>>, vector<1x3x4xf32>
    %202 = vector.shape_cast %201 : vector<1x3x4xf32> to vector<3x4xf32>
    %c0_97 = arith.constant 0 : index
    %c336 = arith.constant 336 : index
    %c0_98 = arith.constant 0 : index
    %203 = vector.load %arg2[%c0_97, %c336, %c0_98] : memref<1x976x128xf32, #tpu.memory_space<vmem>>, vector<1x16x4xf32>
    %204 = vector.shape_cast %203 : vector<1x16x4xf32> to vector<16x4xf32>
    %cst_99 = arith.constant dense<0.000000e+00> : vector<16x4xf32>
    %205 = tpu.matmul %44, %204, %cst_99 {dimension_numbers = #tpu.dot_dimension_numbers<[1], [0], [0], [1], [0, 0, 1, 1], [], []>} : vector<16x16xf32>, vector<16x4xf32>, vector<16x4xf32> -> vector<16x4xf32>
    %206 = vector.extract_strided_slice %202 {offsets = [0, 0], sizes = [1, 4], strides = [1, 1]} : vector<3x4xf32> to vector<1x4xf32>
    %207 = vector.broadcast %206 : vector<1x4xf32> to vector<16x4xf32>
    %208 = arith.addf %205, %207 : vector<16x4xf32>
    %c0_100 = arith.constant 0 : index
    %c352 = arith.constant 352 : index
    %c0_101 = arith.constant 0 : index
    %209 = vector.load %arg2[%c0_100, %c352, %c0_101] : memref<1x976x128xf32, #tpu.memory_space<vmem>>, vector<1x16x4xf32>
    %210 = vector.shape_cast %209 : vector<1x16x4xf32> to vector<16x4xf32>
    %cst_102 = arith.constant dense<0.000000e+00> : vector<16x4xf32>
    %211 = tpu.matmul %44, %210, %cst_102 {dimension_numbers = #tpu.dot_dimension_numbers<[1], [0], [0], [1], [0, 0, 1, 1], [], []>} : vector<16x16xf32>, vector<16x4xf32>, vector<16x4xf32> -> vector<16x4xf32>
    %212 = vector.extract_strided_slice %202 {offsets = [1, 0], sizes = [1, 4], strides = [1, 1]} : vector<3x4xf32> to vector<1x4xf32>
    %213 = vector.broadcast %212 : vector<1x4xf32> to vector<16x4xf32>
    %214 = arith.addf %211, %213 : vector<16x4xf32>
    %c0_103 = arith.constant 0 : index
    %c368 = arith.constant 368 : index
    %c0_104 = arith.constant 0 : index
    %215 = vector.load %arg2[%c0_103, %c368, %c0_104] : memref<1x976x128xf32, #tpu.memory_space<vmem>>, vector<1x16x4xf32>
    %216 = vector.shape_cast %215 : vector<1x16x4xf32> to vector<16x4xf32>
    %cst_105 = arith.constant dense<0.000000e+00> : vector<16x4xf32>
    %217 = tpu.matmul %44, %216, %cst_105 {dimension_numbers = #tpu.dot_dimension_numbers<[1], [0], [0], [1], [0, 0, 1, 1], [], []>} : vector<16x16xf32>, vector<16x4xf32>, vector<16x4xf32> -> vector<16x4xf32>
    %218 = vector.extract_strided_slice %202 {offsets = [2, 0], sizes = [1, 4], strides = [1, 1]} : vector<3x4xf32> to vector<1x4xf32>
    %219 = vector.broadcast %218 : vector<1x4xf32> to vector<16x4xf32>
    %220 = arith.addf %217, %219 : vector<16x4xf32>
    %cst_106 = arith.constant dense<0.000000e+00> : vector<16x16xf32>
    %221 = tpu.matmul %208, %214, %cst_106 {dimension_numbers = #tpu.dot_dimension_numbers<[1], [1], [0], [0], [0, 0, 1, 0], [], []>} : vector<16x4xf32>, vector<16x4xf32>, vector<16x16xf32> -> vector<16x16xf32>
    %222 = arith.addf %221, %37 : vector<16x16xf32>
    %cst_107 = arith.constant dense<0xFF800000> : vector<16xf32>
    %223 = vector.multi_reduction <maximumf>, %222, %cst_107 [1] : vector<16x16xf32> to vector<16xf32>
    %224 = vector.shape_cast %223 : vector<16xf32> to vector<16x1xf32>
    %225 = vector.broadcast %224 : vector<16x1xf32> to vector<16x16xf32>
    %226 = arith.subf %222, %225 : vector<16x16xf32>
    %227 = math.exp %226 : vector<16x16xf32>
    %cst_108 = arith.constant dense<0.000000e+00> : vector<16xf32>
    %228 = vector.multi_reduction <add>, %227, %cst_108 [1] : vector<16x16xf32> to vector<16xf32>
    %229 = vector.shape_cast %228 : vector<16xf32> to vector<16x1xf32>
    %230 = tpu.reciprocal %229 {approx = true} : vector<16x1xf32> -> vector<16x1xf32>
    %231 = vector.broadcast %230 : vector<16x1xf32> to vector<16x16xf32>
    %232 = arith.mulf %227, %231 : vector<16x16xf32>
    %cst_109 = arith.constant dense<0.000000e+00> : vector<16x4xf32>
    %233 = tpu.matmul %232, %220, %cst_109 {dimension_numbers = #tpu.dot_dimension_numbers<[1], [0], [0], [1], [0, 0, 1, 1], [], []>} : vector<16x16xf32>, vector<16x4xf32>, vector<16x4xf32> -> vector<16x4xf32>
    %c0_110 = arith.constant 0 : index
    %c392 = arith.constant 392 : index
    %c0_111 = arith.constant 0 : index
    %234 = vector.load %arg2[%c0_110, %c392, %c0_111] : memref<1x976x128xf32, #tpu.memory_space<vmem>>, vector<1x4x16xf32>
    %235 = vector.shape_cast %234 : vector<1x4x16xf32> to vector<4x16xf32>
    %cst_112 = arith.constant dense<0.000000e+00> : vector<16x16xf32>
    %236 = tpu.matmul %233, %235, %cst_112 {dimension_numbers = #tpu.dot_dimension_numbers<[1], [0], [0], [1], [0, 0, 1, 1], [], []>} : vector<16x4xf32>, vector<4x16xf32>, vector<16x16xf32> -> vector<16x16xf32>
    %237 = arith.addf %200, %236 : vector<16x16xf32>
    %c0_113 = arith.constant 0 : index
    %c448 = arith.constant 448 : index
    %c0_114 = arith.constant 0 : index
    %238 = vector.load %arg2[%c0_113, %c448, %c0_114] : memref<1x976x128xf32, #tpu.memory_space<vmem>>, vector<1x3x4xf32>
    %239 = vector.shape_cast %238 : vector<1x3x4xf32> to vector<3x4xf32>
    %c0_115 = arith.constant 0 : index
    %c400 = arith.constant 400 : index
    %c0_116 = arith.constant 0 : index
    %240 = vector.load %arg2[%c0_115, %c400, %c0_116] : memref<1x976x128xf32, #tpu.memory_space<vmem>>, vector<1x16x4xf32>
    %241 = vector.shape_cast %240 : vector<1x16x4xf32> to vector<16x4xf32>
    %cst_117 = arith.constant dense<0.000000e+00> : vector<16x4xf32>
    %242 = tpu.matmul %44, %241, %cst_117 {dimension_numbers = #tpu.dot_dimension_numbers<[1], [0], [0], [1], [0, 0, 1, 1], [], []>} : vector<16x16xf32>, vector<16x4xf32>, vector<16x4xf32> -> vector<16x4xf32>
    %243 = vector.extract_strided_slice %239 {offsets = [0, 0], sizes = [1, 4], strides = [1, 1]} : vector<3x4xf32> to vector<1x4xf32>
    %244 = vector.broadcast %243 : vector<1x4xf32> to vector<16x4xf32>
    %245 = arith.addf %242, %244 : vector<16x4xf32>
    %c0_118 = arith.constant 0 : index
    %c416 = arith.constant 416 : index
    %c0_119 = arith.constant 0 : index
    %246 = vector.load %arg2[%c0_118, %c416, %c0_119] : memref<1x976x128xf32, #tpu.memory_space<vmem>>, vector<1x16x4xf32>
    %247 = vector.shape_cast %246 : vector<1x16x4xf32> to vector<16x4xf32>
    %cst_120 = arith.constant dense<0.000000e+00> : vector<16x4xf32>
    %248 = tpu.matmul %44, %247, %cst_120 {dimension_numbers = #tpu.dot_dimension_numbers<[1], [0], [0], [1], [0, 0, 1, 1], [], []>} : vector<16x16xf32>, vector<16x4xf32>, vector<16x4xf32> -> vector<16x4xf32>
    %249 = vector.extract_strided_slice %239 {offsets = [1, 0], sizes = [1, 4], strides = [1, 1]} : vector<3x4xf32> to vector<1x4xf32>
    %250 = vector.broadcast %249 : vector<1x4xf32> to vector<16x4xf32>
    %251 = arith.addf %248, %250 : vector<16x4xf32>
    %c0_121 = arith.constant 0 : index
    %c432 = arith.constant 432 : index
    %c0_122 = arith.constant 0 : index
    %252 = vector.load %arg2[%c0_121, %c432, %c0_122] : memref<1x976x128xf32, #tpu.memory_space<vmem>>, vector<1x16x4xf32>
    %253 = vector.shape_cast %252 : vector<1x16x4xf32> to vector<16x4xf32>
    %cst_123 = arith.constant dense<0.000000e+00> : vector<16x4xf32>
    %254 = tpu.matmul %44, %253, %cst_123 {dimension_numbers = #tpu.dot_dimension_numbers<[1], [0], [0], [1], [0, 0, 1, 1], [], []>} : vector<16x16xf32>, vector<16x4xf32>, vector<16x4xf32> -> vector<16x4xf32>
    %255 = vector.extract_strided_slice %239 {offsets = [2, 0], sizes = [1, 4], strides = [1, 1]} : vector<3x4xf32> to vector<1x4xf32>
    %256 = vector.broadcast %255 : vector<1x4xf32> to vector<16x4xf32>
    %257 = arith.addf %254, %256 : vector<16x4xf32>
    %cst_124 = arith.constant dense<0.000000e+00> : vector<16x16xf32>
    %258 = tpu.matmul %245, %251, %cst_124 {dimension_numbers = #tpu.dot_dimension_numbers<[1], [1], [0], [0], [0, 0, 1, 0], [], []>} : vector<16x4xf32>, vector<16x4xf32>, vector<16x16xf32> -> vector<16x16xf32>
    %259 = arith.addf %258, %37 : vector<16x16xf32>
    %cst_125 = arith.constant dense<0xFF800000> : vector<16xf32>
    %260 = vector.multi_reduction <maximumf>, %259, %cst_125 [1] : vector<16x16xf32> to vector<16xf32>
    %261 = vector.shape_cast %260 : vector<16xf32> to vector<16x1xf32>
    %262 = vector.broadcast %261 : vector<16x1xf32> to vector<16x16xf32>
    %263 = arith.subf %259, %262 : vector<16x16xf32>
    %264 = math.exp %263 : vector<16x16xf32>
    %cst_126 = arith.constant dense<0.000000e+00> : vector<16xf32>
    %265 = vector.multi_reduction <add>, %264, %cst_126 [1] : vector<16x16xf32> to vector<16xf32>
    %266 = vector.shape_cast %265 : vector<16xf32> to vector<16x1xf32>
    %267 = tpu.reciprocal %266 {approx = true} : vector<16x1xf32> -> vector<16x1xf32>
    %268 = vector.broadcast %267 : vector<16x1xf32> to vector<16x16xf32>
    %269 = arith.mulf %264, %268 : vector<16x16xf32>
    %cst_127 = arith.constant dense<0.000000e+00> : vector<16x4xf32>
    %270 = tpu.matmul %269, %257, %cst_127 {dimension_numbers = #tpu.dot_dimension_numbers<[1], [0], [0], [1], [0, 0, 1, 1], [], []>} : vector<16x16xf32>, vector<16x4xf32>, vector<16x4xf32> -> vector<16x4xf32>
    %c0_128 = arith.constant 0 : index
    %c456 = arith.constant 456 : index
    %c0_129 = arith.constant 0 : index
    %271 = vector.load %arg2[%c0_128, %c456, %c0_129] : memref<1x976x128xf32, #tpu.memory_space<vmem>>, vector<1x4x16xf32>
    %272 = vector.shape_cast %271 : vector<1x4x16xf32> to vector<4x16xf32>
    %cst_130 = arith.constant dense<0.000000e+00> : vector<16x16xf32>
    %273 = tpu.matmul %270, %272, %cst_130 {dimension_numbers = #tpu.dot_dimension_numbers<[1], [0], [0], [1], [0, 0, 1, 1], [], []>} : vector<16x4xf32>, vector<4x16xf32>, vector<16x16xf32> -> vector<16x16xf32>
    %274 = arith.addf %237, %273 : vector<16x16xf32>
    %275 = arith.addf %44, %274 : vector<16x16xf32>
    %c0_131 = arith.constant 0 : index
    %c536 = arith.constant 536 : index
    %c0_132 = arith.constant 0 : index
    %276 = vector.load %arg2[%c0_131, %c536, %c0_132] : memref<1x976x128xf32, #tpu.memory_space<vmem>>, vector<1x1x16xf32>
    %277 = vector.shape_cast %276 : vector<1x1x16xf32> to vector<1x16xf32>
    %c0_133 = arith.constant 0 : index
    %c544 = arith.constant 544 : index
    %c0_134 = arith.constant 0 : index
    %278 = vector.load %arg2[%c0_133, %c544, %c0_134] : memref<1x976x128xf32, #tpu.memory_space<vmem>>, vector<1x1x16xf32>
    %279 = vector.shape_cast %278 : vector<1x1x16xf32> to vector<1x16xf32>
    %cst_135 = arith.constant dense<0.000000e+00> : vector<16xf32>
    %280 = vector.multi_reduction <add>, %275, %cst_135 [1] : vector<16x16xf32> to vector<16xf32>
    %281 = vector.shape_cast %280 : vector<16xf32> to vector<16x1xf32>
    %cst_136 = arith.constant 1.600000e+01 : f32
    %282 = vector.broadcast %cst_136 : f32 to vector<16x1xf32>
    %283 = arith.divf %281, %282 : vector<16x1xf32>
    %284 = vector.broadcast %283 : vector<16x1xf32> to vector<16x16xf32>
    %285 = arith.subf %275, %284 : vector<16x16xf32>
    %286 = arith.mulf %285, %285 : vector<16x16xf32>
    %cst_137 = arith.constant dense<0.000000e+00> : vector<16xf32>
    %287 = vector.multi_reduction <add>, %286, %cst_137 [1] : vector<16x16xf32> to vector<16xf32>
    %288 = vector.shape_cast %287 : vector<16xf32> to vector<16x1xf32>
    %cst_138 = arith.constant 1.600000e+01 : f32
    %289 = vector.broadcast %cst_138 : f32 to vector<16x1xf32>
    %290 = arith.divf %288, %289 : vector<16x1xf32>
    %cst_139 = arith.constant 9.99999974E-6 : f32
    %291 = vector.broadcast %cst_139 : f32 to vector<16x1xf32>
    %292 = arith.addf %290, %291 : vector<16x1xf32>
    %293 = math.rsqrt %292 : vector<16x1xf32>
    %294 = vector.broadcast %293 : vector<16x1xf32> to vector<16x16xf32>
    %295 = arith.mulf %285, %294 : vector<16x16xf32>
    %296 = vector.broadcast %277 : vector<1x16xf32> to vector<16x16xf32>
    %297 = arith.mulf %295, %296 : vector<16x16xf32>
    %298 = vector.broadcast %279 : vector<1x16xf32> to vector<16x16xf32>
    %299 = arith.addf %297, %298 : vector<16x16xf32>
    %c0_140 = arith.constant 0 : index
    %c472 = arith.constant 472 : index
    %c0_141 = arith.constant 0 : index
    %300 = vector.load %arg2[%c0_140, %c472, %c0_141] : memref<1x976x128xf32, #tpu.memory_space<vmem>>, vector<1x16x32xf32>
    %301 = vector.shape_cast %300 : vector<1x16x32xf32> to vector<16x32xf32>
    %cst_142 = arith.constant dense<0.000000e+00> : vector<16x32xf32>
    %302 = tpu.matmul %299, %301, %cst_142 {dimension_numbers = #tpu.dot_dimension_numbers<[1], [0], [0], [1], [0, 0, 1, 1], [], []>} : vector<16x16xf32>, vector<16x32xf32>, vector<16x32xf32> -> vector<16x32xf32>
    %c0_143 = arith.constant 0 : index
    %c488 = arith.constant 488 : index
    %c0_144 = arith.constant 0 : index
    %303 = vector.load %arg2[%c0_143, %c488, %c0_144] : memref<1x976x128xf32, #tpu.memory_space<vmem>>, vector<1x1x32xf32>
    %304 = vector.shape_cast %303 : vector<1x1x32xf32> to vector<1x32xf32>
    %305 = vector.broadcast %304 : vector<1x32xf32> to vector<16x32xf32>
    %306 = arith.addf %302, %305 : vector<16x32xf32>
    %cst_145 = arith.constant 0.000000e+00 : f32
    %307 = vector.broadcast %cst_145 : f32 to vector<16x32xf32>
    %308 = arith.maximumf %306, %307 : vector<16x32xf32>
    %c0_146 = arith.constant 0 : index
    %c496 = arith.constant 496 : index
    %c0_147 = arith.constant 0 : index
    %309 = vector.load %arg2[%c0_146, %c496, %c0_147] : memref<1x976x128xf32, #tpu.memory_space<vmem>>, vector<1x32x16xf32>
    %310 = vector.shape_cast %309 : vector<1x32x16xf32> to vector<32x16xf32>
    %cst_148 = arith.constant dense<0.000000e+00> : vector<16x16xf32>
    %311 = tpu.matmul %308, %310, %cst_148 {dimension_numbers = #tpu.dot_dimension_numbers<[1], [0], [0], [1], [0, 0, 1, 1], [], []>} : vector<16x32xf32>, vector<32x16xf32>, vector<16x16xf32> -> vector<16x16xf32>
    %c0_149 = arith.constant 0 : index
    %c528 = arith.constant 528 : index
    %c0_150 = arith.constant 0 : index
    %312 = vector.load %arg2[%c0_149, %c528, %c0_150] : memref<1x976x128xf32, #tpu.memory_space<vmem>>, vector<1x1x16xf32>
    %313 = vector.shape_cast %312 : vector<1x1x16xf32> to vector<1x16xf32>
    %314 = vector.broadcast %313 : vector<1x16xf32> to vector<16x16xf32>
    %315 = arith.addf %311, %314 : vector<16x16xf32>
    %316 = arith.addf %299, %315 : vector<16x16xf32>
    %c0_151 = arith.constant 0 : index
    %c552 = arith.constant 552 : index
    %c0_152 = arith.constant 0 : index
    %317 = vector.load %arg2[%c0_151, %c552, %c0_152] : memref<1x976x128xf32, #tpu.memory_space<vmem>>, vector<1x1x16xf32>
    %318 = vector.shape_cast %317 : vector<1x1x16xf32> to vector<1x16xf32>
    %c0_153 = arith.constant 0 : index
    %c560 = arith.constant 560 : index
    %c0_154 = arith.constant 0 : index
    %319 = vector.load %arg2[%c0_153, %c560, %c0_154] : memref<1x976x128xf32, #tpu.memory_space<vmem>>, vector<1x1x16xf32>
    %320 = vector.shape_cast %319 : vector<1x1x16xf32> to vector<1x16xf32>
    %cst_155 = arith.constant dense<0.000000e+00> : vector<16xf32>
    %321 = vector.multi_reduction <add>, %316, %cst_155 [1] : vector<16x16xf32> to vector<16xf32>
    %322 = vector.shape_cast %321 : vector<16xf32> to vector<16x1xf32>
    %cst_156 = arith.constant 1.600000e+01 : f32
    %323 = vector.broadcast %cst_156 : f32 to vector<16x1xf32>
    %324 = arith.divf %322, %323 : vector<16x1xf32>
    %325 = vector.broadcast %324 : vector<16x1xf32> to vector<16x16xf32>
    %326 = arith.subf %316, %325 : vector<16x16xf32>
    %327 = arith.mulf %326, %326 : vector<16x16xf32>
    %cst_157 = arith.constant dense<0.000000e+00> : vector<16xf32>
    %328 = vector.multi_reduction <add>, %327, %cst_157 [1] : vector<16x16xf32> to vector<16xf32>
    %329 = vector.shape_cast %328 : vector<16xf32> to vector<16x1xf32>
    %cst_158 = arith.constant 1.600000e+01 : f32
    %330 = vector.broadcast %cst_158 : f32 to vector<16x1xf32>
    %331 = arith.divf %329, %330 : vector<16x1xf32>
    %cst_159 = arith.constant 9.99999974E-6 : f32
    %332 = vector.broadcast %cst_159 : f32 to vector<16x1xf32>
    %333 = arith.addf %331, %332 : vector<16x1xf32>
    %334 = math.rsqrt %333 : vector<16x1xf32>
    %335 = vector.broadcast %334 : vector<16x1xf32> to vector<16x16xf32>
    %336 = arith.mulf %326, %335 : vector<16x16xf32>
    %337 = vector.broadcast %318 : vector<1x16xf32> to vector<16x16xf32>
    %338 = arith.mulf %336, %337 : vector<16x16xf32>
    %339 = vector.broadcast %320 : vector<1x16xf32> to vector<16x16xf32>
    %340 = arith.addf %338, %339 : vector<16x16xf32>
    %cst_160 = arith.constant 0.000000e+00 : f32
    %341 = vector.broadcast %cst_160 : f32 to vector<16x16xf32>
    %c0_161 = arith.constant 0 : index
    %c824 = arith.constant 824 : index
    %c0_162 = arith.constant 0 : index
    %342 = vector.load %arg2[%c0_161, %c824, %c0_162] : memref<1x976x128xf32, #tpu.memory_space<vmem>>, vector<1x1x16xf32>
    %343 = vector.shape_cast %342 : vector<1x1x16xf32> to vector<1x16xf32>
    %344 = vector.broadcast %343 : vector<1x16xf32> to vector<16x16xf32>
    %345 = arith.addf %341, %344 : vector<16x16xf32>
    %c0_163 = arith.constant 0 : index
    %c616 = arith.constant 616 : index
    %c0_164 = arith.constant 0 : index
    %346 = vector.load %arg2[%c0_163, %c616, %c0_164] : memref<1x976x128xf32, #tpu.memory_space<vmem>>, vector<1x3x4xf32>
    %347 = vector.shape_cast %346 : vector<1x3x4xf32> to vector<3x4xf32>
    %c0_165 = arith.constant 0 : index
    %c568 = arith.constant 568 : index
    %c0_166 = arith.constant 0 : index
    %348 = vector.load %arg2[%c0_165, %c568, %c0_166] : memref<1x976x128xf32, #tpu.memory_space<vmem>>, vector<1x16x4xf32>
    %349 = vector.shape_cast %348 : vector<1x16x4xf32> to vector<16x4xf32>
    %cst_167 = arith.constant dense<0.000000e+00> : vector<16x4xf32>
    %350 = tpu.matmul %340, %349, %cst_167 {dimension_numbers = #tpu.dot_dimension_numbers<[1], [0], [0], [1], [0, 0, 1, 1], [], []>} : vector<16x16xf32>, vector<16x4xf32>, vector<16x4xf32> -> vector<16x4xf32>
    %351 = vector.extract_strided_slice %347 {offsets = [0, 0], sizes = [1, 4], strides = [1, 1]} : vector<3x4xf32> to vector<1x4xf32>
    %352 = vector.broadcast %351 : vector<1x4xf32> to vector<16x4xf32>
    %353 = arith.addf %350, %352 : vector<16x4xf32>
    %c0_168 = arith.constant 0 : index
    %c584 = arith.constant 584 : index
    %c0_169 = arith.constant 0 : index
    %354 = vector.load %arg2[%c0_168, %c584, %c0_169] : memref<1x976x128xf32, #tpu.memory_space<vmem>>, vector<1x16x4xf32>
    %355 = vector.shape_cast %354 : vector<1x16x4xf32> to vector<16x4xf32>
    %cst_170 = arith.constant dense<0.000000e+00> : vector<16x4xf32>
    %356 = tpu.matmul %340, %355, %cst_170 {dimension_numbers = #tpu.dot_dimension_numbers<[1], [0], [0], [1], [0, 0, 1, 1], [], []>} : vector<16x16xf32>, vector<16x4xf32>, vector<16x4xf32> -> vector<16x4xf32>
    %357 = vector.extract_strided_slice %347 {offsets = [1, 0], sizes = [1, 4], strides = [1, 1]} : vector<3x4xf32> to vector<1x4xf32>
    %358 = vector.broadcast %357 : vector<1x4xf32> to vector<16x4xf32>
    %359 = arith.addf %356, %358 : vector<16x4xf32>
    %c0_171 = arith.constant 0 : index
    %c600 = arith.constant 600 : index
    %c0_172 = arith.constant 0 : index
    %360 = vector.load %arg2[%c0_171, %c600, %c0_172] : memref<1x976x128xf32, #tpu.memory_space<vmem>>, vector<1x16x4xf32>
    %361 = vector.shape_cast %360 : vector<1x16x4xf32> to vector<16x4xf32>
    %cst_173 = arith.constant dense<0.000000e+00> : vector<16x4xf32>
    %362 = tpu.matmul %340, %361, %cst_173 {dimension_numbers = #tpu.dot_dimension_numbers<[1], [0], [0], [1], [0, 0, 1, 1], [], []>} : vector<16x16xf32>, vector<16x4xf32>, vector<16x4xf32> -> vector<16x4xf32>
    %363 = vector.extract_strided_slice %347 {offsets = [2, 0], sizes = [1, 4], strides = [1, 1]} : vector<3x4xf32> to vector<1x4xf32>
    %364 = vector.broadcast %363 : vector<1x4xf32> to vector<16x4xf32>
    %365 = arith.addf %362, %364 : vector<16x4xf32>
    %cst_174 = arith.constant dense<0.000000e+00> : vector<16x16xf32>
    %366 = tpu.matmul %353, %359, %cst_174 {dimension_numbers = #tpu.dot_dimension_numbers<[1], [1], [0], [0], [0, 0, 1, 0], [], []>} : vector<16x4xf32>, vector<16x4xf32>, vector<16x16xf32> -> vector<16x16xf32>
    %367 = arith.addf %366, %37 : vector<16x16xf32>
    %cst_175 = arith.constant dense<0xFF800000> : vector<16xf32>
    %368 = vector.multi_reduction <maximumf>, %367, %cst_175 [1] : vector<16x16xf32> to vector<16xf32>
    %369 = vector.shape_cast %368 : vector<16xf32> to vector<16x1xf32>
    %370 = vector.broadcast %369 : vector<16x1xf32> to vector<16x16xf32>
    %371 = arith.subf %367, %370 : vector<16x16xf32>
    %372 = math.exp %371 : vector<16x16xf32>
    %cst_176 = arith.constant dense<0.000000e+00> : vector<16xf32>
    %373 = vector.multi_reduction <add>, %372, %cst_176 [1] : vector<16x16xf32> to vector<16xf32>
    %374 = vector.shape_cast %373 : vector<16xf32> to vector<16x1xf32>
    %375 = tpu.reciprocal %374 {approx = true} : vector<16x1xf32> -> vector<16x1xf32>
    %376 = vector.broadcast %375 : vector<16x1xf32> to vector<16x16xf32>
    %377 = arith.mulf %372, %376 : vector<16x16xf32>
    %cst_177 = arith.constant dense<0.000000e+00> : vector<16x4xf32>
    %378 = tpu.matmul %377, %365, %cst_177 {dimension_numbers = #tpu.dot_dimension_numbers<[1], [0], [0], [1], [0, 0, 1, 1], [], []>} : vector<16x16xf32>, vector<16x4xf32>, vector<16x4xf32> -> vector<16x4xf32>
    %c0_178 = arith.constant 0 : index
    %c624 = arith.constant 624 : index
    %c0_179 = arith.constant 0 : index
    %379 = vector.load %arg2[%c0_178, %c624, %c0_179] : memref<1x976x128xf32, #tpu.memory_space<vmem>>, vector<1x4x16xf32>
    %380 = vector.shape_cast %379 : vector<1x4x16xf32> to vector<4x16xf32>
    %cst_180 = arith.constant dense<0.000000e+00> : vector<16x16xf32>
    %381 = tpu.matmul %378, %380, %cst_180 {dimension_numbers = #tpu.dot_dimension_numbers<[1], [0], [0], [1], [0, 0, 1, 1], [], []>} : vector<16x4xf32>, vector<4x16xf32>, vector<16x16xf32> -> vector<16x16xf32>
    %382 = arith.addf %345, %381 : vector<16x16xf32>
    %c0_181 = arith.constant 0 : index
    %c680 = arith.constant 680 : index
    %c0_182 = arith.constant 0 : index
    %383 = vector.load %arg2[%c0_181, %c680, %c0_182] : memref<1x976x128xf32, #tpu.memory_space<vmem>>, vector<1x3x4xf32>
    %384 = vector.shape_cast %383 : vector<1x3x4xf32> to vector<3x4xf32>
    %c0_183 = arith.constant 0 : index
    %c632 = arith.constant 632 : index
    %c0_184 = arith.constant 0 : index
    %385 = vector.load %arg2[%c0_183, %c632, %c0_184] : memref<1x976x128xf32, #tpu.memory_space<vmem>>, vector<1x16x4xf32>
    %386 = vector.shape_cast %385 : vector<1x16x4xf32> to vector<16x4xf32>
    %cst_185 = arith.constant dense<0.000000e+00> : vector<16x4xf32>
    %387 = tpu.matmul %340, %386, %cst_185 {dimension_numbers = #tpu.dot_dimension_numbers<[1], [0], [0], [1], [0, 0, 1, 1], [], []>} : vector<16x16xf32>, vector<16x4xf32>, vector<16x4xf32> -> vector<16x4xf32>
    %388 = vector.extract_strided_slice %384 {offsets = [0, 0], sizes = [1, 4], strides = [1, 1]} : vector<3x4xf32> to vector<1x4xf32>
    %389 = vector.broadcast %388 : vector<1x4xf32> to vector<16x4xf32>
    %390 = arith.addf %387, %389 : vector<16x4xf32>
    %c0_186 = arith.constant 0 : index
    %c648 = arith.constant 648 : index
    %c0_187 = arith.constant 0 : index
    %391 = vector.load %arg2[%c0_186, %c648, %c0_187] : memref<1x976x128xf32, #tpu.memory_space<vmem>>, vector<1x16x4xf32>
    %392 = vector.shape_cast %391 : vector<1x16x4xf32> to vector<16x4xf32>
    %cst_188 = arith.constant dense<0.000000e+00> : vector<16x4xf32>
    %393 = tpu.matmul %340, %392, %cst_188 {dimension_numbers = #tpu.dot_dimension_numbers<[1], [0], [0], [1], [0, 0, 1, 1], [], []>} : vector<16x16xf32>, vector<16x4xf32>, vector<16x4xf32> -> vector<16x4xf32>
    %394 = vector.extract_strided_slice %384 {offsets = [1, 0], sizes = [1, 4], strides = [1, 1]} : vector<3x4xf32> to vector<1x4xf32>
    %395 = vector.broadcast %394 : vector<1x4xf32> to vector<16x4xf32>
    %396 = arith.addf %393, %395 : vector<16x4xf32>
    %c0_189 = arith.constant 0 : index
    %c664 = arith.constant 664 : index
    %c0_190 = arith.constant 0 : index
    %397 = vector.load %arg2[%c0_189, %c664, %c0_190] : memref<1x976x128xf32, #tpu.memory_space<vmem>>, vector<1x16x4xf32>
    %398 = vector.shape_cast %397 : vector<1x16x4xf32> to vector<16x4xf32>
    %cst_191 = arith.constant dense<0.000000e+00> : vector<16x4xf32>
    %399 = tpu.matmul %340, %398, %cst_191 {dimension_numbers = #tpu.dot_dimension_numbers<[1], [0], [0], [1], [0, 0, 1, 1], [], []>} : vector<16x16xf32>, vector<16x4xf32>, vector<16x4xf32> -> vector<16x4xf32>
    %400 = vector.extract_strided_slice %384 {offsets = [2, 0], sizes = [1, 4], strides = [1, 1]} : vector<3x4xf32> to vector<1x4xf32>
    %401 = vector.broadcast %400 : vector<1x4xf32> to vector<16x4xf32>
    %402 = arith.addf %399, %401 : vector<16x4xf32>
    %cst_192 = arith.constant dense<0.000000e+00> : vector<16x16xf32>
    %403 = tpu.matmul %390, %396, %cst_192 {dimension_numbers = #tpu.dot_dimension_numbers<[1], [1], [0], [0], [0, 0, 1, 0], [], []>} : vector<16x4xf32>, vector<16x4xf32>, vector<16x16xf32> -> vector<16x16xf32>
    %404 = arith.addf %403, %37 : vector<16x16xf32>
    %cst_193 = arith.constant dense<0xFF800000> : vector<16xf32>
    %405 = vector.multi_reduction <maximumf>, %404, %cst_193 [1] : vector<16x16xf32> to vector<16xf32>
    %406 = vector.shape_cast %405 : vector<16xf32> to vector<16x1xf32>
    %407 = vector.broadcast %406 : vector<16x1xf32> to vector<16x16xf32>
    %408 = arith.subf %404, %407 : vector<16x16xf32>
    %409 = math.exp %408 : vector<16x16xf32>
    %cst_194 = arith.constant dense<0.000000e+00> : vector<16xf32>
    %410 = vector.multi_reduction <add>, %409, %cst_194 [1] : vector<16x16xf32> to vector<16xf32>
    %411 = vector.shape_cast %410 : vector<16xf32> to vector<16x1xf32>
    %412 = tpu.reciprocal %411 {approx = true} : vector<16x1xf32> -> vector<16x1xf32>
    %413 = vector.broadcast %412 : vector<16x1xf32> to vector<16x16xf32>
    %414 = arith.mulf %409, %413 : vector<16x16xf32>
    %cst_195 = arith.constant dense<0.000000e+00> : vector<16x4xf32>
    %415 = tpu.matmul %414, %402, %cst_195 {dimension_numbers = #tpu.dot_dimension_numbers<[1], [0], [0], [1], [0, 0, 1, 1], [], []>} : vector<16x16xf32>, vector<16x4xf32>, vector<16x4xf32> -> vector<16x4xf32>
    %c0_196 = arith.constant 0 : index
    %c688 = arith.constant 688 : index
    %c0_197 = arith.constant 0 : index
    %416 = vector.load %arg2[%c0_196, %c688, %c0_197] : memref<1x976x128xf32, #tpu.memory_space<vmem>>, vector<1x4x16xf32>
    %417 = vector.shape_cast %416 : vector<1x4x16xf32> to vector<4x16xf32>
    %cst_198 = arith.constant dense<0.000000e+00> : vector<16x16xf32>
    %418 = tpu.matmul %415, %417, %cst_198 {dimension_numbers = #tpu.dot_dimension_numbers<[1], [0], [0], [1], [0, 0, 1, 1], [], []>} : vector<16x4xf32>, vector<4x16xf32>, vector<16x16xf32> -> vector<16x16xf32>
    %419 = arith.addf %382, %418 : vector<16x16xf32>
    %c0_199 = arith.constant 0 : index
    %c744 = arith.constant 744 : index
    %c0_200 = arith.constant 0 : index
    %420 = vector.load %arg2[%c0_199, %c744, %c0_200] : memref<1x976x128xf32, #tpu.memory_space<vmem>>, vector<1x3x4xf32>
    %421 = vector.shape_cast %420 : vector<1x3x4xf32> to vector<3x4xf32>
    %c0_201 = arith.constant 0 : index
    %c696 = arith.constant 696 : index
    %c0_202 = arith.constant 0 : index
    %422 = vector.load %arg2[%c0_201, %c696, %c0_202] : memref<1x976x128xf32, #tpu.memory_space<vmem>>, vector<1x16x4xf32>
    %423 = vector.shape_cast %422 : vector<1x16x4xf32> to vector<16x4xf32>
    %cst_203 = arith.constant dense<0.000000e+00> : vector<16x4xf32>
    %424 = tpu.matmul %340, %423, %cst_203 {dimension_numbers = #tpu.dot_dimension_numbers<[1], [0], [0], [1], [0, 0, 1, 1], [], []>} : vector<16x16xf32>, vector<16x4xf32>, vector<16x4xf32> -> vector<16x4xf32>
    %425 = vector.extract_strided_slice %421 {offsets = [0, 0], sizes = [1, 4], strides = [1, 1]} : vector<3x4xf32> to vector<1x4xf32>
    %426 = vector.broadcast %425 : vector<1x4xf32> to vector<16x4xf32>
    %427 = arith.addf %424, %426 : vector<16x4xf32>
    %c0_204 = arith.constant 0 : index
    %c712 = arith.constant 712 : index
    %c0_205 = arith.constant 0 : index
    %428 = vector.load %arg2[%c0_204, %c712, %c0_205] : memref<1x976x128xf32, #tpu.memory_space<vmem>>, vector<1x16x4xf32>
    %429 = vector.shape_cast %428 : vector<1x16x4xf32> to vector<16x4xf32>
    %cst_206 = arith.constant dense<0.000000e+00> : vector<16x4xf32>
    %430 = tpu.matmul %340, %429, %cst_206 {dimension_numbers = #tpu.dot_dimension_numbers<[1], [0], [0], [1], [0, 0, 1, 1], [], []>} : vector<16x16xf32>, vector<16x4xf32>, vector<16x4xf32> -> vector<16x4xf32>
    %431 = vector.extract_strided_slice %421 {offsets = [1, 0], sizes = [1, 4], strides = [1, 1]} : vector<3x4xf32> to vector<1x4xf32>
    %432 = vector.broadcast %431 : vector<1x4xf32> to vector<16x4xf32>
    %433 = arith.addf %430, %432 : vector<16x4xf32>
    %c0_207 = arith.constant 0 : index
    %c728 = arith.constant 728 : index
    %c0_208 = arith.constant 0 : index
    %434 = vector.load %arg2[%c0_207, %c728, %c0_208] : memref<1x976x128xf32, #tpu.memory_space<vmem>>, vector<1x16x4xf32>
    %435 = vector.shape_cast %434 : vector<1x16x4xf32> to vector<16x4xf32>
    %cst_209 = arith.constant dense<0.000000e+00> : vector<16x4xf32>
    %436 = tpu.matmul %340, %435, %cst_209 {dimension_numbers = #tpu.dot_dimension_numbers<[1], [0], [0], [1], [0, 0, 1, 1], [], []>} : vector<16x16xf32>, vector<16x4xf32>, vector<16x4xf32> -> vector<16x4xf32>
    %437 = vector.extract_strided_slice %421 {offsets = [2, 0], sizes = [1, 4], strides = [1, 1]} : vector<3x4xf32> to vector<1x4xf32>
    %438 = vector.broadcast %437 : vector<1x4xf32> to vector<16x4xf32>
    %439 = arith.addf %436, %438 : vector<16x4xf32>
    %cst_210 = arith.constant dense<0.000000e+00> : vector<16x16xf32>
    %440 = tpu.matmul %427, %433, %cst_210 {dimension_numbers = #tpu.dot_dimension_numbers<[1], [1], [0], [0], [0, 0, 1, 0], [], []>} : vector<16x4xf32>, vector<16x4xf32>, vector<16x16xf32> -> vector<16x16xf32>
    %441 = arith.addf %440, %37 : vector<16x16xf32>
    %cst_211 = arith.constant dense<0xFF800000> : vector<16xf32>
    %442 = vector.multi_reduction <maximumf>, %441, %cst_211 [1] : vector<16x16xf32> to vector<16xf32>
    %443 = vector.shape_cast %442 : vector<16xf32> to vector<16x1xf32>
    %444 = vector.broadcast %443 : vector<16x1xf32> to vector<16x16xf32>
    %445 = arith.subf %441, %444 : vector<16x16xf32>
    %446 = math.exp %445 : vector<16x16xf32>
    %cst_212 = arith.constant dense<0.000000e+00> : vector<16xf32>
    %447 = vector.multi_reduction <add>, %446, %cst_212 [1] : vector<16x16xf32> to vector<16xf32>
    %448 = vector.shape_cast %447 : vector<16xf32> to vector<16x1xf32>
    %449 = tpu.reciprocal %448 {approx = true} : vector<16x1xf32> -> vector<16x1xf32>
    %450 = vector.broadcast %449 : vector<16x1xf32> to vector<16x16xf32>
    %451 = arith.mulf %446, %450 : vector<16x16xf32>
    %cst_213 = arith.constant dense<0.000000e+00> : vector<16x4xf32>
    %452 = tpu.matmul %451, %439, %cst_213 {dimension_numbers = #tpu.dot_dimension_numbers<[1], [0], [0], [1], [0, 0, 1, 1], [], []>} : vector<16x16xf32>, vector<16x4xf32>, vector<16x4xf32> -> vector<16x4xf32>
    %c0_214 = arith.constant 0 : index
    %c752 = arith.constant 752 : index
    %c0_215 = arith.constant 0 : index
    %453 = vector.load %arg2[%c0_214, %c752, %c0_215] : memref<1x976x128xf32, #tpu.memory_space<vmem>>, vector<1x4x16xf32>
    %454 = vector.shape_cast %453 : vector<1x4x16xf32> to vector<4x16xf32>
    %cst_216 = arith.constant dense<0.000000e+00> : vector<16x16xf32>
    %455 = tpu.matmul %452, %454, %cst_216 {dimension_numbers = #tpu.dot_dimension_numbers<[1], [0], [0], [1], [0, 0, 1, 1], [], []>} : vector<16x4xf32>, vector<4x16xf32>, vector<16x16xf32> -> vector<16x16xf32>
    %456 = arith.addf %419, %455 : vector<16x16xf32>
    %c0_217 = arith.constant 0 : index
    %c808 = arith.constant 808 : index
    %c0_218 = arith.constant 0 : index
    %457 = vector.load %arg2[%c0_217, %c808, %c0_218] : memref<1x976x128xf32, #tpu.memory_space<vmem>>, vector<1x3x4xf32>
    %458 = vector.shape_cast %457 : vector<1x3x4xf32> to vector<3x4xf32>
    %c0_219 = arith.constant 0 : index
    %c760 = arith.constant 760 : index
    %c0_220 = arith.constant 0 : index
    %459 = vector.load %arg2[%c0_219, %c760, %c0_220] : memref<1x976x128xf32, #tpu.memory_space<vmem>>, vector<1x16x4xf32>
    %460 = vector.shape_cast %459 : vector<1x16x4xf32> to vector<16x4xf32>
    %cst_221 = arith.constant dense<0.000000e+00> : vector<16x4xf32>
    %461 = tpu.matmul %340, %460, %cst_221 {dimension_numbers = #tpu.dot_dimension_numbers<[1], [0], [0], [1], [0, 0, 1, 1], [], []>} : vector<16x16xf32>, vector<16x4xf32>, vector<16x4xf32> -> vector<16x4xf32>
    %462 = vector.extract_strided_slice %458 {offsets = [0, 0], sizes = [1, 4], strides = [1, 1]} : vector<3x4xf32> to vector<1x4xf32>
    %463 = vector.broadcast %462 : vector<1x4xf32> to vector<16x4xf32>
    %464 = arith.addf %461, %463 : vector<16x4xf32>
    %c0_222 = arith.constant 0 : index
    %c776 = arith.constant 776 : index
    %c0_223 = arith.constant 0 : index
    %465 = vector.load %arg2[%c0_222, %c776, %c0_223] : memref<1x976x128xf32, #tpu.memory_space<vmem>>, vector<1x16x4xf32>
    %466 = vector.shape_cast %465 : vector<1x16x4xf32> to vector<16x4xf32>
    %cst_224 = arith.constant dense<0.000000e+00> : vector<16x4xf32>
    %467 = tpu.matmul %340, %466, %cst_224 {dimension_numbers = #tpu.dot_dimension_numbers<[1], [0], [0], [1], [0, 0, 1, 1], [], []>} : vector<16x16xf32>, vector<16x4xf32>, vector<16x4xf32> -> vector<16x4xf32>
    %468 = vector.extract_strided_slice %458 {offsets = [1, 0], sizes = [1, 4], strides = [1, 1]} : vector<3x4xf32> to vector<1x4xf32>
    %469 = vector.broadcast %468 : vector<1x4xf32> to vector<16x4xf32>
    %470 = arith.addf %467, %469 : vector<16x4xf32>
    %c0_225 = arith.constant 0 : index
    %c792 = arith.constant 792 : index
    %c0_226 = arith.constant 0 : index
    %471 = vector.load %arg2[%c0_225, %c792, %c0_226] : memref<1x976x128xf32, #tpu.memory_space<vmem>>, vector<1x16x4xf32>
    %472 = vector.shape_cast %471 : vector<1x16x4xf32> to vector<16x4xf32>
    %cst_227 = arith.constant dense<0.000000e+00> : vector<16x4xf32>
    %473 = tpu.matmul %340, %472, %cst_227 {dimension_numbers = #tpu.dot_dimension_numbers<[1], [0], [0], [1], [0, 0, 1, 1], [], []>} : vector<16x16xf32>, vector<16x4xf32>, vector<16x4xf32> -> vector<16x4xf32>
    %474 = vector.extract_strided_slice %458 {offsets = [2, 0], sizes = [1, 4], strides = [1, 1]} : vector<3x4xf32> to vector<1x4xf32>
    %475 = vector.broadcast %474 : vector<1x4xf32> to vector<16x4xf32>
    %476 = arith.addf %473, %475 : vector<16x4xf32>
    %cst_228 = arith.constant dense<0.000000e+00> : vector<16x16xf32>
    %477 = tpu.matmul %464, %470, %cst_228 {dimension_numbers = #tpu.dot_dimension_numbers<[1], [1], [0], [0], [0, 0, 1, 0], [], []>} : vector<16x4xf32>, vector<16x4xf32>, vector<16x16xf32> -> vector<16x16xf32>
    %478 = arith.addf %477, %37 : vector<16x16xf32>
    %cst_229 = arith.constant dense<0xFF800000> : vector<16xf32>
    %479 = vector.multi_reduction <maximumf>, %478, %cst_229 [1] : vector<16x16xf32> to vector<16xf32>
    %480 = vector.shape_cast %479 : vector<16xf32> to vector<16x1xf32>
    %481 = vector.broadcast %480 : vector<16x1xf32> to vector<16x16xf32>
    %482 = arith.subf %478, %481 : vector<16x16xf32>
    %483 = math.exp %482 : vector<16x16xf32>
    %cst_230 = arith.constant dense<0.000000e+00> : vector<16xf32>
    %484 = vector.multi_reduction <add>, %483, %cst_230 [1] : vector<16x16xf32> to vector<16xf32>
    %485 = vector.shape_cast %484 : vector<16xf32> to vector<16x1xf32>
    %486 = tpu.reciprocal %485 {approx = true} : vector<16x1xf32> -> vector<16x1xf32>
    %487 = vector.broadcast %486 : vector<16x1xf32> to vector<16x16xf32>
    %488 = arith.mulf %483, %487 : vector<16x16xf32>
    %cst_231 = arith.constant dense<0.000000e+00> : vector<16x4xf32>
    %489 = tpu.matmul %488, %476, %cst_231 {dimension_numbers = #tpu.dot_dimension_numbers<[1], [0], [0], [1], [0, 0, 1, 1], [], []>} : vector<16x16xf32>, vector<16x4xf32>, vector<16x4xf32> -> vector<16x4xf32>
    %c0_232 = arith.constant 0 : index
    %c816 = arith.constant 816 : index
    %c0_233 = arith.constant 0 : index
    %490 = vector.load %arg2[%c0_232, %c816, %c0_233] : memref<1x976x128xf32, #tpu.memory_space<vmem>>, vector<1x4x16xf32>
    %491 = vector.shape_cast %490 : vector<1x4x16xf32> to vector<4x16xf32>
    %cst_234 = arith.constant dense<0.000000e+00> : vector<16x16xf32>
    %492 = tpu.matmul %489, %491, %cst_234 {dimension_numbers = #tpu.dot_dimension_numbers<[1], [0], [0], [1], [0, 0, 1, 1], [], []>} : vector<16x4xf32>, vector<4x16xf32>, vector<16x16xf32> -> vector<16x16xf32>
    %493 = arith.addf %456, %492 : vector<16x16xf32>
    %494 = arith.addf %340, %493 : vector<16x16xf32>
    %c0_235 = arith.constant 0 : index
    %c896 = arith.constant 896 : index
    %c0_236 = arith.constant 0 : index
    %495 = vector.load %arg2[%c0_235, %c896, %c0_236] : memref<1x976x128xf32, #tpu.memory_space<vmem>>, vector<1x1x16xf32>
    %496 = vector.shape_cast %495 : vector<1x1x16xf32> to vector<1x16xf32>
    %c0_237 = arith.constant 0 : index
    %c904 = arith.constant 904 : index
    %c0_238 = arith.constant 0 : index
    %497 = vector.load %arg2[%c0_237, %c904, %c0_238] : memref<1x976x128xf32, #tpu.memory_space<vmem>>, vector<1x1x16xf32>
    %498 = vector.shape_cast %497 : vector<1x1x16xf32> to vector<1x16xf32>
    %cst_239 = arith.constant dense<0.000000e+00> : vector<16xf32>
    %499 = vector.multi_reduction <add>, %494, %cst_239 [1] : vector<16x16xf32> to vector<16xf32>
    %500 = vector.shape_cast %499 : vector<16xf32> to vector<16x1xf32>
    %cst_240 = arith.constant 1.600000e+01 : f32
    %501 = vector.broadcast %cst_240 : f32 to vector<16x1xf32>
    %502 = arith.divf %500, %501 : vector<16x1xf32>
    %503 = vector.broadcast %502 : vector<16x1xf32> to vector<16x16xf32>
    %504 = arith.subf %494, %503 : vector<16x16xf32>
    %505 = arith.mulf %504, %504 : vector<16x16xf32>
    %cst_241 = arith.constant dense<0.000000e+00> : vector<16xf32>
    %506 = vector.multi_reduction <add>, %505, %cst_241 [1] : vector<16x16xf32> to vector<16xf32>
    %507 = vector.shape_cast %506 : vector<16xf32> to vector<16x1xf32>
    %cst_242 = arith.constant 1.600000e+01 : f32
    %508 = vector.broadcast %cst_242 : f32 to vector<16x1xf32>
    %509 = arith.divf %507, %508 : vector<16x1xf32>
    %cst_243 = arith.constant 9.99999974E-6 : f32
    %510 = vector.broadcast %cst_243 : f32 to vector<16x1xf32>
    %511 = arith.addf %509, %510 : vector<16x1xf32>
    %512 = math.rsqrt %511 : vector<16x1xf32>
    %513 = vector.broadcast %512 : vector<16x1xf32> to vector<16x16xf32>
    %514 = arith.mulf %504, %513 : vector<16x16xf32>
    %515 = vector.broadcast %496 : vector<1x16xf32> to vector<16x16xf32>
    %516 = arith.mulf %514, %515 : vector<16x16xf32>
    %517 = vector.broadcast %498 : vector<1x16xf32> to vector<16x16xf32>
    %518 = arith.addf %516, %517 : vector<16x16xf32>
    %c0_244 = arith.constant 0 : index
    %c832 = arith.constant 832 : index
    %c0_245 = arith.constant 0 : index
    %519 = vector.load %arg2[%c0_244, %c832, %c0_245] : memref<1x976x128xf32, #tpu.memory_space<vmem>>, vector<1x16x32xf32>
    %520 = vector.shape_cast %519 : vector<1x16x32xf32> to vector<16x32xf32>
    %cst_246 = arith.constant dense<0.000000e+00> : vector<16x32xf32>
    %521 = tpu.matmul %518, %520, %cst_246 {dimension_numbers = #tpu.dot_dimension_numbers<[1], [0], [0], [1], [0, 0, 1, 1], [], []>} : vector<16x16xf32>, vector<16x32xf32>, vector<16x32xf32> -> vector<16x32xf32>
    %c0_247 = arith.constant 0 : index
    %c848 = arith.constant 848 : index
    %c0_248 = arith.constant 0 : index
    %522 = vector.load %arg2[%c0_247, %c848, %c0_248] : memref<1x976x128xf32, #tpu.memory_space<vmem>>, vector<1x1x32xf32>
    %523 = vector.shape_cast %522 : vector<1x1x32xf32> to vector<1x32xf32>
    %524 = vector.broadcast %523 : vector<1x32xf32> to vector<16x32xf32>
    %525 = arith.addf %521, %524 : vector<16x32xf32>
    %cst_249 = arith.constant 0.000000e+00 : f32
    %526 = vector.broadcast %cst_249 : f32 to vector<16x32xf32>
    %527 = arith.maximumf %525, %526 : vector<16x32xf32>
    %c0_250 = arith.constant 0 : index
    %c856 = arith.constant 856 : index
    %c0_251 = arith.constant 0 : index
    %528 = vector.load %arg2[%c0_250, %c856, %c0_251] : memref<1x976x128xf32, #tpu.memory_space<vmem>>, vector<1x32x16xf32>
    %529 = vector.shape_cast %528 : vector<1x32x16xf32> to vector<32x16xf32>
    %cst_252 = arith.constant dense<0.000000e+00> : vector<16x16xf32>
    %530 = tpu.matmul %527, %529, %cst_252 {dimension_numbers = #tpu.dot_dimension_numbers<[1], [0], [0], [1], [0, 0, 1, 1], [], []>} : vector<16x32xf32>, vector<32x16xf32>, vector<16x16xf32> -> vector<16x16xf32>
    %c0_253 = arith.constant 0 : index
    %c888 = arith.constant 888 : index
    %c0_254 = arith.constant 0 : index
    %531 = vector.load %arg2[%c0_253, %c888, %c0_254] : memref<1x976x128xf32, #tpu.memory_space<vmem>>, vector<1x1x16xf32>
    %532 = vector.shape_cast %531 : vector<1x1x16xf32> to vector<1x16xf32>
    %533 = vector.broadcast %532 : vector<1x16xf32> to vector<16x16xf32>
    %534 = arith.addf %530, %533 : vector<16x16xf32>
    %535 = arith.addf %518, %534 : vector<16x16xf32>
    %c0_255 = arith.constant 0 : index
    %c912 = arith.constant 912 : index
    %c0_256 = arith.constant 0 : index
    %536 = vector.load %arg2[%c0_255, %c912, %c0_256] : memref<1x976x128xf32, #tpu.memory_space<vmem>>, vector<1x1x16xf32>
    %537 = vector.shape_cast %536 : vector<1x1x16xf32> to vector<1x16xf32>
    %c0_257 = arith.constant 0 : index
    %c920 = arith.constant 920 : index
    %c0_258 = arith.constant 0 : index
    %538 = vector.load %arg2[%c0_257, %c920, %c0_258] : memref<1x976x128xf32, #tpu.memory_space<vmem>>, vector<1x1x16xf32>
    %539 = vector.shape_cast %538 : vector<1x1x16xf32> to vector<1x16xf32>
    %cst_259 = arith.constant dense<0.000000e+00> : vector<16xf32>
    %540 = vector.multi_reduction <add>, %535, %cst_259 [1] : vector<16x16xf32> to vector<16xf32>
    %541 = vector.shape_cast %540 : vector<16xf32> to vector<16x1xf32>
    %cst_260 = arith.constant 1.600000e+01 : f32
    %542 = vector.broadcast %cst_260 : f32 to vector<16x1xf32>
    %543 = arith.divf %541, %542 : vector<16x1xf32>
    %544 = vector.broadcast %543 : vector<16x1xf32> to vector<16x16xf32>
    %545 = arith.subf %535, %544 : vector<16x16xf32>
    %546 = arith.mulf %545, %545 : vector<16x16xf32>
    %cst_261 = arith.constant dense<0.000000e+00> : vector<16xf32>
    %547 = vector.multi_reduction <add>, %546, %cst_261 [1] : vector<16x16xf32> to vector<16xf32>
    %548 = vector.shape_cast %547 : vector<16xf32> to vector<16x1xf32>
    %cst_262 = arith.constant 1.600000e+01 : f32
    %549 = vector.broadcast %cst_262 : f32 to vector<16x1xf32>
    %550 = arith.divf %548, %549 : vector<16x1xf32>
    %cst_263 = arith.constant 9.99999974E-6 : f32
    %551 = vector.broadcast %cst_263 : f32 to vector<16x1xf32>
    %552 = arith.addf %550, %551 : vector<16x1xf32>
    %553 = math.rsqrt %552 : vector<16x1xf32>
    %554 = vector.broadcast %553 : vector<16x1xf32> to vector<16x16xf32>
    %555 = arith.mulf %545, %554 : vector<16x16xf32>
    %556 = vector.broadcast %537 : vector<1x16xf32> to vector<16x16xf32>
    %557 = arith.mulf %555, %556 : vector<16x16xf32>
    %558 = vector.broadcast %539 : vector<1x16xf32> to vector<16x16xf32>
    %559 = arith.addf %557, %558 : vector<16x16xf32>
    %c0_264 = arith.constant 0 : index
    %c928 = arith.constant 928 : index
    %c0_265 = arith.constant 0 : index
    %560 = vector.load %arg2[%c0_264, %c928, %c0_265] : memref<1x976x128xf32, #tpu.memory_space<vmem>>, vector<1x16x8xf32>
    %561 = vector.shape_cast %560 : vector<1x16x8xf32> to vector<16x8xf32>
    %cst_266 = arith.constant dense<0.000000e+00> : vector<16x8xf32>
    %562 = tpu.matmul %559, %561, %cst_266 {dimension_numbers = #tpu.dot_dimension_numbers<[1], [0], [0], [1], [0, 0, 1, 1], [], []>} : vector<16x16xf32>, vector<16x8xf32>, vector<16x8xf32> -> vector<16x8xf32>
    %c0_267 = arith.constant 0 : index
    %c944 = arith.constant 944 : index
    %c0_268 = arith.constant 0 : index
    %563 = vector.load %arg2[%c0_267, %c944, %c0_268] : memref<1x976x128xf32, #tpu.memory_space<vmem>>, vector<1x1x8xf32>
    %564 = vector.shape_cast %563 : vector<1x1x8xf32> to vector<1x8xf32>
    %565 = vector.broadcast %564 : vector<1x8xf32> to vector<16x8xf32>
    %566 = arith.addf %562, %565 : vector<16x8xf32>
    %c0_269 = arith.constant 0 : index
    %c952 = arith.constant 952 : index
    %c0_270 = arith.constant 0 : index
    %567 = vector.load %arg2[%c0_269, %c952, %c0_270] : memref<1x976x128xf32, #tpu.memory_space<vmem>>, vector<1x8x8xf32>
    %568 = vector.shape_cast %567 : vector<1x8x8xf32> to vector<8x8xf32>
    %cst_271 = arith.constant dense<0.000000e+00> : vector<16x8xf32>
    %569 = tpu.matmul %121, %568, %cst_271 {dimension_numbers = #tpu.dot_dimension_numbers<[1], [0], [0], [1], [0, 0, 1, 1], [], []>} : vector<16x8xf32>, vector<8x8xf32>, vector<16x8xf32> -> vector<16x8xf32>
    %c0_272 = arith.constant 0 : index
    %c960 = arith.constant 960 : index
    %c0_273 = arith.constant 0 : index
    %570 = vector.load %arg2[%c0_272, %c960, %c0_273] : memref<1x976x128xf32, #tpu.memory_space<vmem>>, vector<1x8x8xf32>
    %571 = vector.shape_cast %570 : vector<1x8x8xf32> to vector<8x8xf32>
    %cst_274 = arith.constant dense<0.000000e+00> : vector<16x8xf32>
    %572 = tpu.matmul %566, %571, %cst_274 {dimension_numbers = #tpu.dot_dimension_numbers<[1], [0], [0], [1], [0, 0, 1, 1], [], []>} : vector<16x8xf32>, vector<8x8xf32>, vector<16x8xf32> -> vector<16x8xf32>
    %573 = arith.addf %569, %572 : vector<16x8xf32>
    %c0_275 = arith.constant 0 : index
    %c968 = arith.constant 968 : index
    %c0_276 = arith.constant 0 : index
    %574 = vector.load %arg2[%c0_275, %c968, %c0_276] : memref<1x976x128xf32, #tpu.memory_space<vmem>>, vector<1x1x8xf32>
    %575 = vector.shape_cast %574 : vector<1x1x8xf32> to vector<1x8xf32>
    %576 = vector.broadcast %575 : vector<1x8xf32> to vector<16x8xf32>
    %577 = arith.addf %573, %576 : vector<16x8xf32>
    %c0_277 = arith.constant 0 : index
    %c0_278 = arith.constant 0 : index
    %c0_279 = arith.constant 0 : index
    %578 = vector.load %arg3[%c0_277, %c0_278, %c0_279] : memref<1x16x8xf32, #tpu.memory_space<vmem>>, vector<1x16x8xf32>
    %579 = vector.shape_cast %578 : vector<1x16x8xf32> to vector<16x8xf32>
    %580 = vector.shape_cast %577 : vector<16x8xf32> to vector<1x16x8xf32>
    tpu.vector_store %arg3[%c0_277, %c0_278, %c0_279], %580 {strides = array<i32>} : memref<1x16x8xf32, #tpu.memory_space<vmem>>, vector<1x16x8xf32>,
    return
  }
  func.func @transform_0(%arg0: i32) -> (i32, i32) {
    %c0_i32 = arith.constant 0 : i32
    %c0_i32_0 = arith.constant 0 : i32
    %c0_i32_1 = arith.constant 0 : i32
    return %c0_i32, %c0_i32_0 : i32, i32
  }
  func.func @transform_1(%arg0: i32) -> (i32, i32, i32) {
    %c0_i32 = arith.constant 0 : i32
    %c0_i32_0 = arith.constant 0 : i32
    %c0_i32_1 = arith.constant 0 : i32
    return %arg0, %c0_i32, %c0_i32_0 : i32, i32, i32
  }
  func.func @transform_2(%arg0: i32) -> (i32, i32, i32) {
    %c0_i32 = arith.constant 0 : i32
    %c0_i32_0 = arith.constant 0 : i32
    %c0_i32_1 = arith.constant 0 : i32
    return %arg0, %c0_i32, %c0_i32_0 : i32, i32, i32
  }
}

</mosaic_0001>

<llo_original>
// kernel: multi_tbert_forward.1
$region0: #{multi_tbert_forward.1}
  #allocation0 [shape = 'u32[]', space=smem, size = 0x4, offset = 0x4, fixed_abs, tag = 'smem constant byte address 0x4 - core index']
  #allocation1 [shape = 'u32[144,128]{1,0:T(1,128)}', space=vmem, size = 0x12000, scoped, tag = 'internal scratch']
  %s0 = inlined_call_operand.hbm [shape: f32[16,12], index: 0, kind: input, shape index: {}]
  %s1 = inlined_call_operand.hbm [shape: f32[2,976,128], index: 1, kind: input, shape index: {}]
  %s2 = inlined_call_operand.vmem [shape: f32[2,16,8], index: 2, kind: output, shape index: {}]
  %s3 = sld [smem:[#allocation0]]
  $region49: #{multi_tbert_forward.1} parent=0
    _
  %s5 = ssub.s32 1, %s3
  %s6 = scalar_select 0, %s5, %s3
  $region1: #{multi_tbert_forward.1} parent=0
    #allocation2 [shape = 'u8[8192]{0}', space=vmem, size = 0x2000, scoped, tag = 'input window, operand 0, single buffered']
    #allocation3 [shape = 's32[2]{0}', space=sflag, size = 0x8, scoped, tag = 'scoped memory for multi_tbert_forward.1']
    #allocation4 [shape = 'u8[999424]{0}', space=vmem, size = 0xf4000, scoped, tag = 'input window, operand 1']
    #allocation5 [shape = 's32[2]{0}', space=sflag, size = 0x8, scoped, tag = 'scoped memory for multi_tbert_forward.1']
    %7 = vsyncpa [#allocation3], 0
    %8 = vsyncpa [#allocation5], 0
    %s9 = scalar_lea.sflag [#allocation5], 1
    %10 = vsyncpa %s9, 0
    loop: start=0, step=1, limit=4
    $region2: #{multi_tbert_forward.1} parent=1 // loop_pre_header
      _
    $region3: #{multi_tbert_forward.1} parent=1 // loop_header
      %s12 = sphi 0, %s16
      %p13 = scmp.ge.s32.totalorder %s12, 4
      %s20 = sphi 0, %s20
      %s22 = sphi 0, %s20
      %s23 = sphi 0, %s22
      %s37 = sphi 0, %s23
      %s43 = sphi 0, %s45
      %s46 = sphi 0, %s43
      %s47 = sphi 0, %s46
      %s63 = sphi 0, %s47
      %s69 = sphi 0, %s71
      %s72 = sphi 0, %s69
      %s73 = sphi 0, %s72
      %s89 = sphi 0, %s73
    $region4: #{multi_tbert_forward.1} parent=1 // loop_header_branch
      %15 = sbr.rel (%p13) target = $region8
    $region5: #{multi_tbert_forward.1} parent=1 // loop_body
      %s17 = ssub.s32 %s12, 1
      %s18 = ssub.s32 %s12, 2
      %s19 = sadd.s32 %s12, 1
      %s21 = sadd.s32 %s20, 1
      %p24 = scmp.eq.s32.totalorder %s12, 1
      %p25 = scmp.ne.s32.totalorder %s20, %s22
      %p26 = scmp.eq.s32.totalorder %s12, 0
      %p27 = por %p25, %p26
      %p28 = scmp.ne.s32.totalorder %s20, %s22
      %p29 = scmp.eq.s32.totalorder %s17, 1
      %p30 = por %p28, %p29
      %p31 = scmp.ne.s32.totalorder %s22, %s23
      %p32 = scmp.eq.s32.totalorder %s17, 0
      %p33 = por %p31, %p32
      %p34 = scmp.ne.s32.totalorder %s22, %s23
      %p35 = scmp.eq.s32.totalorder %s18, 1
      %p36 = por %p34, %p35
      %p38 = scmp.ne.s32.totalorder %s23, %s37
      %p39 = scmp.eq.s32.totalorder %s18, 0
      %p40 = por %p38, %p39
      %s41 = ssub.s32 %s12, %s19
      %p42 = scmp.eq.s32.totalorder %s41, 0
      %s44 = sadd.s32 %s43, 1
      %s45 = scalar_select %p42, %s43, %s44
      %p48 = pneg %p42
      %p49 = scmp.eq.s32.totalorder %s12, 1
      %p50 = por %p48, %p49
      %p51 = scmp.ne.s32.totalorder %s43, %s46
      %p52 = scmp.eq.s32.totalorder %s12, 0
      %p53 = por %p51, %p52
      %p54 = scmp.ne.s32.totalorder %s43, %s46
      %p55 = scmp.eq.s32.totalorder %s17, 1
      %p56 = por %p54, %p55
      %p57 = scmp.ne.s32.totalorder %s46, %s47
      %p58 = scmp.eq.s32.totalorder %s17, 0
      %p59 = por %p57, %p58
      %p60 = scmp.ne.s32.totalorder %s46, %s47
      %p61 = scmp.eq.s32.totalorder %s18, 1
      %p62 = por %p60, %p61
      %p64 = scmp.ne.s32.totalorder %s47, %s63
      %p65 = scmp.eq.s32.totalorder %s18, 0
      %p66 = por %p64, %p65
      %s67 = ssub.s32 %s12, %s19
      %p68 = scmp.eq.s32.totalorder %s67, 0
      %s70 = sadd.s32 %s69, 1
      %s71 = scalar_select %p68, %s69, %s70
      %p74 = pneg %p68
      %p75 = scmp.eq.s32.totalorder %s12, 1
      %p76 = por %p74, %p75
      %p77 = scmp.ne.s32.totalorder %s69, %s72
      %p78 = scmp.eq.s32.totalorder %s12, 0
      %p79 = por %p77, %p78
      %p80 = scmp.ne.s32.totalorder %s69, %s72
      %p81 = scmp.eq.s32.totalorder %s17, 1
      %p82 = por %p80, %p81
      %p83 = scmp.ne.s32.totalorder %s72, %s73
      %p84 = scmp.eq.s32.totalorder %s17, 0
      %p85 = por %p83, %p84
      %p86 = scmp.ne.s32.totalorder %s72, %s73
      %p87 = scmp.eq.s32.totalorder %s18, 1
      %p88 = por %p86, %p87
      %p90 = scmp.ne.s32.totalorder %s73, %s89
      %p91 = scmp.eq.s32.totalorder %s18, 0
      %p92 = por %p90, %p91
      %p93 = scmp.le.s32.totalorder 1, %s12
      %p94 = scmp.lt.s32.totalorder %s12, 3
      %p95 = pnand %p93, %p94
      %p96 = pneg %p95
      // Predicated region
      $region9: #{multi_tbert_forward.1} parent=5 // pred_check
        _
      $region10: #{multi_tbert_forward.1} parent=5 // pred_check_branch
        %98 = sbr.rel (%p95) target = $region12
      $region11: #{multi_tbert_forward.1} parent=5 // pred_region
        %s99 = ssub.s32 %s12, 1
        // Predicated region
        $region13: #{multi_tbert_forward.1} parent=11 // pred_check
          %p100 = pneg %p33
        $region14: #{multi_tbert_forward.1} parent=11 // pred_check_branch
          %102 = sbr.rel (%p100) target = $region16
        $region15: #{multi_tbert_forward.1} parent=11 // pred_region
          %s104 = ssub.s32 256, 256
          %105 = vsyncadd [#allocation3], %s104
          %s106 = sshll.u32 [#allocation2], 4
          %s107 = int_to_ptr.vmem [resolvable:$true] %s106
          %112 = dma.hbm_to_vmem [thread:$0]  %s0, 256, %s107, [#allocation3], 128, 128, 8
        $region16: #{multi_tbert_forward.1} parent=11 // pred_fallthru
          _
      $region12: #{multi_tbert_forward.1} parent=5 // pred_fallthru
        _
      %p113 = scmp.lt.s32.totalorder %s12, 2
      // Predicated region
      $region17: #{multi_tbert_forward.1} parent=5 // pred_check
        %p114 = pneg %p113
      $region18: #{multi_tbert_forward.1} parent=5 // pred_check_branch
        %116 = sbr.rel (%p114) target = $region20
      $region19: #{multi_tbert_forward.1} parent=5 // pred_region
        // Predicated region
        $region21: #{multi_tbert_forward.1} parent=19 // pred_check
          %p117 = pneg %p53
        $region22: #{multi_tbert_forward.1} parent=19 // pred_check_branch
          %119 = sbr.rel (%p117) target = $region24
        $region23: #{multi_tbert_forward.1} parent=19 // pred_region
          %s120 = sand.u32 %s43, 1
          %s121 = scalar_lea.sflag [#allocation5], %s120
          %s122 = sand.u32 %s43, 1
          %s123 = smul.addr %s122, 976
          %s124 = scalar_lea.vmem [#allocation4], %s123
          %s126 = ssub.s32 15616, 15616
          %127 = vsyncadd %s121, %s126
          %s128 = smul.addr %s12, 122
          %s129 = smul.addr %s128, 128
          %s130 = scalar_lea.hbm %s1, %s129
          %s131 = sshll.u32 %s124, 4
          %s132 = int_to_ptr.vmem [resolvable:$true] %s131
          %137 = dma.hbm_to_vmem [thread:$0]  %s130, 15616, %s132, %s121, 128, 128, 8
        $region24: #{multi_tbert_forward.1} parent=19 // pred_fallthru
          _
      $region20: #{multi_tbert_forward.1} parent=5 // pred_fallthru
        _
      %p138 = scmp.le.s32.totalorder 1, %s12
      %p139 = scmp.lt.s32.totalorder %s12, 3
      %p140 = pnand %p138, %p139
      %p141 = pneg %p140
      // Predicated region
      $region25: #{multi_tbert_forward.1} parent=5 // pred_check
        _
      $region26: #{multi_tbert_forward.1} parent=5 // pred_check_branch
        %143 = sbr.rel (%p140) target = $region28
      $region27: #{multi_tbert_forward.1} parent=5 // pred_region
        %s144 = ssub.s32 %s12, 1
        // Predicated region
        $region29: #{multi_tbert_forward.1} parent=27 // pred_check
          %p145 = pneg %p33
        $region30: #{multi_tbert_forward.1} parent=27 // pred_check_branch
          %147 = sbr.rel (%p145) target = $region32
        $region31: #{multi_tbert_forward.1} parent=27 // pred_region
          %148 = dma.done [#allocation3], 256
        $region32: #{multi_tbert_forward.1} parent=27 // pred_fallthru
          _
        %s149 = sand.u32 %s46, 1
        %s150 = scalar_lea.sflag [#allocation5], %s149
        %s151 = sand.u32 %s46, 1
        %s152 = smul.addr %s151, 976
        %s153 = scalar_lea.vmem [#allocation4], %s152
        // Predicated region
        $region33: #{multi_tbert_forward.1} parent=27 // pred_check
          %p154 = pneg %p59
        $region34: #{multi_tbert_forward.1} parent=27 // pred_check_branch
          %156 = sbr.rel (%p154) target = $region36
        $region35: #{multi_tbert_forward.1} parent=27 // pred_region
          %157 = dma.done %s150, 15616
        $region36: #{multi_tbert_forward.1} parent=27 // pred_fallthru
          _
        %p158 = pneg %p33
        %p159 = pneg %p30
        %s160 = sand.u32 %s46, 1
        %s161 = scalar_lea.sflag [#allocation5], %s160
        %s162 = sand.u32 %s46, 1
        %s163 = smul.addr %s162, 976
        %s164 = scalar_lea.vmem [#allocation4], %s163
        %p165 = pneg %p59
        %p166 = pneg %p56
        %p167 = pneg %p85
        %p168 = pneg %p82
        %p169 = scmp.lt.s32.totalorder %s17, 1
        %s170 = scalar_select %p169, %s17, 1
        %s171 = smul.addr %s170, 2
        %s172 = smul.addr %s171, 8
        %s173 = scalar_lea.vmem %s2, %s172
        %p174 = scmp.lt.s32.totalorder %s17, 1
        %s175 = scalar_select %p174, %s17, 1
        %s176 = smul.addr %s175, 2
        %s177 = smul.addr %s176, 8
        %s178 = scalar_lea.vmem %s2, %s177
        %v179 = vlaneseq
        %v180 = vshrl.u32 %v179, 7
        %v181 = vadd.s32 %v180, 8
        %v182 = vlaneseq
        %v183 = vand.u32 %v182, 127
        %vm184 = vcmp.lt.s32.totalorder %v180, 0
        %v185 = vsub.s32 0, %v180
        %v186 = vsel %vm184, %v185, %v180
        %v187 = vshrl.u32 %v186, 1
        %v188 = vand.u32 %v186, 1
        %v189 = vsub.s32 0, %v188
        %v190 = vsel %vm184, %v189, %v188
        %vm191 = vcmp.lt.s32.totalorder %v181, 0
        %v192 = vsub.s32 0, %v181
        %v193 = vsel %vm191, %v192, %v181
        %v194 = vshrl.u32 %v193, 1
        %v195 = vand.u32 %v193, 1
        %v196 = vsub.s32 0, %v195
        %v197 = vsel %vm191, %v196, %v195
        %vm198 = vcmp.ne.s32.totalorder %v190, 0
        %vm199 = vcmp.ne.s32.totalorder %v197, 0
        %vm200 = vcmp.lt.s32.totalorder %v190, 0
        %vm201 = vcmp.lt.s32.totalorder %v197, 0
        %vm202 = vmand %vm200, %vm198
        %vm203 = vmand %vm201, %vm199
        %v204 = vadd.s32 %v190, 2
        %v205 = vadd.s32 %v197, 2
        %v206 = vsel %vm202, %v204, %v190
        %v207 = vsel %vm203, %v205, %v197
        %vm208 = vcmp.lt.s32.totalorder %v183, 0
        %v209 = vsub.s32 0, %v183
        %v210 = vsel %vm208, %v209, %v183
        %v211 = vshrl.u32 %v210, 1
        %v212 = vand.u32 %v210, 1
        %v213 = vsub.s32 0, %v212
        %v214 = vsel %vm208, %v213, %v212
        %vm215 = vcmp.ne.s32.totalorder %v214, 0
        %vm216 = vcmp.lt.s32.totalorder %v214, 0
        %vm217 = vmand %vm216, %vm215
        %v218 = vadd.s32 %v214, 2
        %v219 = vsel %vm217, %v218, %v214
        %vm220 = vcmp.eq.s32.totalorder %v206, %v219
        %vm221 = vcmp.eq.s32.totalorder %v207, %v219
        %v222 = vsel %vm220, 0.0, -1e+30
        %v223 = vsel %vm221, 0.0, -1e+30
        %v224 = vld [vmem:[#allocation2] sm:$0xff]
        %v225 = vld [vmem:[#allocation2 + $0x8] sm:$0xff]
        %v226 = vld [vmem:[%s153] sm:$0xff]
        %v227 = vld [vmem:[%s153 + $0x8] sm:$0xf]
        %v228 = vld [vmem:[%s153 + $0x10] sm:$0xff]
        %v229 = vld [vmem:[%s153 + $0x18] sm:$0xff]
        %vm230 = vcmask 97280
        %v232 = vsel %vm230, %v224, 0
        %v235 = vsel %vm230, %v225, 0
        %vm237 = vcmask 1043456
        %v239 = vsel %vm237, %v227, 0
        %241 = vmatprep.subr.mxu0 0.0
        %242 = vmatpush1.msra.mxu0 %v226
        %243 = vmatprep.subr.mxu0 0.0
        %244 = vmatpush1.msra.mxu0 %v239
        %245 = vmatprep.subr.mxu0 0.0
        %246 = vmatpush1.msra.mxu0 0.0
        %247 = vmatprep.subr.mxu0 0.0
        %248 = vmatpush1.msra.mxu0 0.0
        %249 = vmatprep.subr.mxu0 0.0
        %250 = vmatpush1.msra.mxu0 0.0
        %251 = vmatprep.subr.mxu0 0.0
        %252 = vmatpush1.msra.mxu0 0.0
        %253 = vmatprep.subr.mxu0 0.0
        %254 = vmatpush1.msra.mxu0 0.0
        %255 = vmatprep.subr.mxu0 0.0
        %256 = vmatpush1.msra.mxu0 0.0
        %257 = vmatprep.subr.mxu0 0.0
        %258 = vmatpush1.msra.mxu0 0.0
        %259 = vmatprep.subr.mxu0 0.0
        %260 = vmatpush1.msra.mxu0 0.0
        %261 = vmatprep.subr.mxu0 0.0
        %262 = vmatpush1.msra.mxu0 0.0
        %263 = vmatprep.subr.mxu0 0.0
        %264 = vmatpush1.msra.mxu0 0.0
        %265 = vmatprep.subr.mxu0 0.0
        %266 = vmatpush1.msra.mxu0 0.0
        %267 = vmatprep.subr.mxu0 0.0
        %268 = vmatpush1.msra.mxu0 0.0
        %269 = vmatprep.subr.mxu0 0.0
        %270 = vmatpush1.msra.mxu0 0.0
        %271 = vmatprep.subr.mxu0 0.0
        %272 = vmatpush1.msra.mxu0 0.0
        %273 = vmatprep.subr.mxu0 0.0
        %274 = vmatpush1.msra.mxu0 0.0
        %275 = vmatprep.subr.mxu0 0.0
        %276 = vmatpush1.msra.mxu0 0.0
        %277 = vmatprep.subr.mxu0 0.0
        %278 = vmatpush1.msra.mxu0 0.0
        %279 = vmatprep.subr.mxu0 0.0
        %280 = vmatpush1.msra.mxu0 0.0
        %281 = vmatprep.subr.mxu0 0.0
        %282 = vmatpush1.msra.mxu0 0.0
        %283 = vmatprep.subr.mxu0 0.0
        %284 = vmatpush1.msra.mxu0 0.0
        %285 = vmatprep.subr.mxu0 0.0
        %286 = vmatpush1.msra.mxu0 0.0
        %287 = vmatprep.subr.mxu0 0.0
        %288 = vmatpush1.msra.mxu0 0.0
        %289 = vmatprep.subr.mxu0 0.0
        %290 = vmatpush1.msra.mxu0 0.0
        %291 = vmatprep.subr.mxu0 0.0
        %292 = vmatpush1.msra.mxu0 0.0
        %293 = vmatprep.subr.mxu0 0.0
        %294 = vmatpush1.msra.mxu0 0.0
        %295 = vmatprep.subr.mxu0 0.0
        %296 = vmatpush1.msra.mxu0 0.0
        %297 = vmatprep.subr.mxu0 0.0
        %298 = vmatpush1.msra.mxu0 0.0
        %299 = vmatprep.subr.mxu0 0.0
        %300 = vmatpush1.msra.mxu0 0.0
        %301 = vmatprep.subr.mxu0 0.0
        %302 = vmatpush1.msra.mxu0 0.0
        %303 = vmatprep.subr.mxu0 0.0
        %304 = vmatpush1.msra.mxu0 0.0
        %305 = vmatprep.mubr.f32.mxu0 0.0
        %306 = vmatmul.mubr.f32.gmra.mrb[0].mxu0 %v232
        %v307 = vpop.f32.mrb[0].mxu0
        %v308 = vadd.f32 %v228, %v307
        %v309 = vpop.f32.mrb[0].mxu0
        %310 = vmatprep.mubr.f32.mxu0 0.0
        %311 = vmatmul.mubr.f32.gmra.mrb[0].mxu0 %v235
        %v312 = vpop.f32.mrb[0].mxu0
        %v313 = vadd.f32 %v229, %v312
        %v314 = vpop.f32.mrb[0].mxu0
        %315 = vdwg.mxu0
        %v316 = vld [vmem:[%s153 + $0x20] sm:$0xff]
        %v317 = vld [vmem:[%s153 + $0x28] sm:$0xff]
        %v318 = vld [vmem:[%s153 + $0x30] sm:$0xff]
        %v319 = vld [vmem:[%s153 + $0x38] sm:$0xff]
        %v320 = vld [vmem:[%s153 + $0x40] sm:$0xff]
        %v321 = vld [vmem:[%s153 + $0x48] sm:$0xff]
        %v322 = vld [vmem:[%s153 + $0x50] sm:$0x1]
        %v325 = vrot.slane %v308, 4
        %v326 = vrot.slane %v313, 4
        %v327 = vsel %vm237, %v325, %v326
        %v330 = vsel %vm237, 0.0, %v325
        %vm331 = vcmask 1041408
        %v332 = vrot.slane %v308, 6
        %v333 = vrot.slane %v313, 6
        %v334 = vsel %vm331, %v332, %v333
        %v336 = vsel %vm331, 0.0, %v332
        %338 = vrot.lane.b32.xlu0 %v336, 16
        %v339 = vpop.permute.xlu0 %338
        %340 = vrot.lane.b32.xlu0 %v334, 16
        %v341 = vpop.permute.xlu0 %340
        %344 = vrot.lane.b32.xlu0 %v308, 32
        %v345 = vpop.permute.xlu0 %344
        %346 = vrot.lane.b32.xlu0 %v313, 32
        %v347 = vpop.permute.xlu0 %346
        %vm350 = vcmask 130048
        %v351 = vsel %vm350, %v330, %v339
        %v352 = vsel %vm350, %v327, %v341
        %vm353 = vcmask 261120
        %v354 = vsel %vm353, %v351, %v345
        %v355 = vsel %vm353, %v352, %v347
        %v356 = vlaneseq
        %v357 = vshrl.u32 %v356, 7
        %v358 = vsub.s32 0, %v357
        %v359 = vrot.slane %v322, %v358
        %vm360 = vcmask 392192
        %v362 = vsel %vm360, %v354, 0
        %v365 = vsel %vm360, %v355, 0
        %367 = vmatprep.subr.mxu0 0.0
        %368 = vmatpush1.msra.mxu0 %v316
        %369 = vmatprep.subr.mxu0 0.0
        %370 = vmatpush1.msra.mxu0 %v317
        %371 = vmatprep.subr.mxu0 0.0
        %372 = vmatpush1.msra.mxu0 %v318
        %373 = vmatprep.subr.mxu0 0.0
        %374 = vmatpush1.msra.mxu0 %v319
        %375 = vmatprep.subr.mxu0 0.0
        %376 = vmatpush1.msra.mxu0 %v320
        %377 = vmatprep.subr.mxu0 0.0
        %378 = vmatpush1.msra.mxu0 %v321
        %379 = vmatprep.subr.mxu0 0.0
        %380 = vmatpush1.msra.mxu0 0.0
        %381 = vmatprep.subr.mxu0 0.0
        %382 = vmatpush1.msra.mxu0 0.0
        %383 = vmatprep.subr.mxu0 0.0
        %384 = vmatpush1.msra.mxu0 0.0
        %385 = vmatprep.subr.mxu0 0.0
        %386 = vmatpush1.msra.mxu0 0.0
        %387 = vmatprep.subr.mxu0 0.0
        %388 = vmatpush1.msra.mxu0 0.0
        %389 = vmatprep.subr.mxu0 0.0
        %390 = vmatpush1.msra.mxu0 0.0
        %391 = vmatprep.subr.mxu0 0.0
        %392 = vmatpush1.msra.mxu0 0.0
        %393 = vmatprep.subr.mxu0 0.0
        %394 = vmatpush1.msra.mxu0 0.0
        %395 = vmatprep.subr.mxu0 0.0
        %396 = vmatpush1.msra.mxu0 0.0
        %397 = vmatprep.subr.mxu0 0.0
        %398 = vmatpush1.msra.mxu0 0.0
        %399 = vmatprep.subr.mxu0 0.0
        %400 = vmatpush1.msra.mxu0 0.0
        %401 = vmatprep.subr.mxu0 0.0
        %402 = vmatpush1.msra.mxu0 0.0
        %403 = vmatprep.subr.mxu0 0.0
        %404 = vmatpush1.msra.mxu0 0.0
        %405 = vmatprep.subr.mxu0 0.0
        %406 = vmatpush1.msra.mxu0 0.0
        %407 = vmatprep.subr.mxu0 0.0
        %408 = vmatpush1.msra.mxu0 0.0
        %409 = vmatprep.subr.mxu0 0.0
        %410 = vmatpush1.msra.mxu0 0.0
        %411 = vmatprep.subr.mxu0 0.0
        %412 = vmatpush1.msra.mxu0 0.0
        %413 = vmatprep.subr.mxu0 0.0
        %414 = vmatpush1.msra.mxu0 0.0
        %415 = vmatprep.subr.mxu0 0.0
        %416 = vmatpush1.msra.mxu0 0.0
        %417 = vmatprep.subr.mxu0 0.0
        %418 = vmatpush1.msra.mxu0 0.0
        %419 = vmatprep.subr.mxu0 0.0
        %420 = vmatpush1.msra.mxu0 0.0
        %421 = vmatprep.subr.mxu0 0.0
        %422 = vmatpush1.msra.mxu0 0.0
        %423 = vmatprep.subr.mxu0 0.0
        %424 = vmatpush1.msra.mxu0 0.0
        %425 = vmatprep.subr.mxu0 0.0
        %426 = vmatpush1.msra.mxu0 0.0
        %427 = vmatprep.subr.mxu0 0.0
        %428 = vmatpush1.msra.mxu0 0.0
        %429 = vmatprep.subr.mxu0 0.0
        %430 = vmatpush1.msra.mxu0 0.0
        %431 = vmatprep.mubr.f32.mxu0 0.0
        %432 = vmatmul.mubr.f32.gmra.mrb[0].mxu0 %v362
        %v433 = vpop.f32.mrb[0].mxu0
        %v434 = vadd.f32 %v359, %v433
        %v435 = vpop.f32.mrb[0].mxu0
        %436 = vmatprep.mubr.f32.mxu0 0.0
        %437 = vmatmul.mubr.f32.gmra.mrb[0].mxu0 %v365
        %v438 = vpop.f32.mrb[0].mxu0
        %v439 = vadd.f32 %v359, %v438
        %v440 = vpop.f32.mrb[0].mxu0
        %441 = vdwg.mxu0
        %v442 = vmax.f32 %v434, 0.0
        %v443 = vmax.f32 %v439, 0.0
        %v444 = vld [vmem:[%s153 + $0x58] sm:$0xff]
        %v445 = vld [vmem:[%s153 + $0x60] sm:$0xff]
        %v446 = vld [vmem:[%s153 + $0x68] sm:$0xff]
        %v447 = vld [vmem:[%s153 + $0x70] sm:$0x1]
        %v450 = vrot.slane %v442, 4
        %v451 = vrot.slane %v443, 4
        %v452 = vsel %vm237, %v450, %v451
        %v455 = vsel %vm237, 0.0, %v450
        %v456 = vrot.slane %v442, 6
        %v457 = vrot.slane %v443, 6
        %v458 = vsel %vm331, %v456, %v457
        %v460 = vsel %vm331, 0.0, %v456
        %462 = vrot.lane.b32.xlu0 %v460, 8
        %v463 = vpop.permute.xlu0 %462
        %464 = vrot.lane.b32.xlu0 %v458, 8
        %v465 = vpop.permute.xlu0 %464
        %468 = vrot.lane.b32.xlu0 %v442, 16
        %v469 = vpop.permute.xlu0 %468
        %470 = vrot.lane.b32.xlu0 %v443, 16
        %v471 = vpop.permute.xlu0 %470
        %vm474 = vcmask 64512
        %v475 = vsel %vm474, %v455, %v463
        %v476 = vsel %vm474, %v452, %v465
        %v477 = vsel %vm350, %v475, %v469
        %v478 = vsel %vm350, %v476, %v471
        %v479 = vlaneseq
        %v480 = vshrl.u32 %v479, 7
        %v481 = vsub.s32 0, %v480
        %v482 = vrot.slane %v447, %v481
        %vm483 = vcmask 195584
        %v485 = vsel %vm483, %v477, 0
        %v488 = vsel %vm483, %v478, 0
        %490 = vmatprep.subr.mxu0 0.0
        %491 = vmatpush1.msra.mxu0 %v444
        %492 = vmatprep.subr.mxu0 0.0
        %493 = vmatpush1.msra.mxu0 %v445
        %494 = vmatprep.subr.mxu0 0.0
        %495 = vmatpush1.msra.mxu0 %v446
        %496 = vmatprep.subr.mxu0 0.0
        %497 = vmatpush1.msra.mxu0 0.0
        %498 = vmatprep.subr.mxu0 0.0
        %499 = vmatpush1.msra.mxu0 0.0
        %500 = vmatprep.subr.mxu0 0.0
        %501 = vmatpush1.msra.mxu0 0.0
        %502 = vmatprep.subr.mxu0 0.0
        %503 = vmatpush1.msra.mxu0 0.0
        %504 = vmatprep.subr.mxu0 0.0
        %505 = vmatpush1.msra.mxu0 0.0
        %506 = vmatprep.subr.mxu0 0.0
        %507 = vmatpush1.msra.mxu0 0.0
        %508 = vmatprep.subr.mxu0 0.0
        %509 = vmatpush1.msra.mxu0 0.0
        %510 = vmatprep.subr.mxu0 0.0
        %511 = vmatpush1.msra.mxu0 0.0
        %512 = vmatprep.subr.mxu0 0.0
        %513 = vmatpush1.msra.mxu0 0.0
        %514 = vmatprep.subr.mxu0 0.0
        %515 = vmatpush1.msra.mxu0 0.0
        %516 = vmatprep.subr.mxu0 0.0
        %517 = vmatpush1.msra.mxu0 0.0
        %518 = vmatprep.subr.mxu0 0.0
        %519 = vmatpush1.msra.mxu0 0.0
        %520 = vmatprep.subr.mxu0 0.0
        %521 = vmatpush1.msra.mxu0 0.0
        %522 = vmatprep.subr.mxu0 0.0
        %523 = vmatpush1.msra.mxu0 0.0
        %524 = vmatprep.subr.mxu0 0.0
        %525 = vmatpush1.msra.mxu0 0.0
        %526 = vmatprep.subr.mxu0 0.0
        %527 = vmatpush1.msra.mxu0 0.0
        %528 = vmatprep.subr.mxu0 0.0
        %529 = vmatpush1.msra.mxu0 0.0
        %530 = vmatprep.subr.mxu0 0.0
        %531 = vmatpush1.msra.mxu0 0.0
        %532 = vmatprep.subr.mxu0 0.0
        %533 = vmatpush1.msra.mxu0 0.0
        %534 = vmatprep.subr.mxu0 0.0
        %535 = vmatpush1.msra.mxu0 0.0
        %536 = vmatprep.subr.mxu0 0.0
        %537 = vmatpush1.msra.mxu0 0.0
        %538 = vmatprep.subr.mxu0 0.0
        %539 = vmatpush1.msra.mxu0 0.0
        %540 = vmatprep.subr.mxu0 0.0
        %541 = vmatpush1.msra.mxu0 0.0
        %542 = vmatprep.subr.mxu0 0.0
        %543 = vmatpush1.msra.mxu0 0.0
        %544 = vmatprep.subr.mxu0 0.0
        %545 = vmatpush1.msra.mxu0 0.0
        %546 = vmatprep.subr.mxu0 0.0
        %547 = vmatpush1.msra.mxu0 0.0
        %548 = vmatprep.subr.mxu0 0.0
        %549 = vmatpush1.msra.mxu0 0.0
        %550 = vmatprep.subr.mxu0 0.0
        %551 = vmatpush1.msra.mxu0 0.0
        %552 = vmatprep.subr.mxu0 0.0
        %553 = vmatpush1.msra.mxu0 0.0
        %554 = vmatprep.mubr.f32.mxu0 0.0
        %555 = vmatmul.mubr.f32.gmra.mrb[0].mxu0 %v485
        %v556 = vpop.f32.mrb[0].mxu0
        %v557 = vadd.f32 %v482, %v556
        %v558 = vpop.f32.mrb[0].mxu0
        %559 = vmatprep.mubr.f32.mxu0 0.0
        %560 = vmatmul.mubr.f32.gmra.mrb[0].mxu0 %v488
        %v561 = vpop.f32.mrb[0].mxu0
        %v562 = vadd.f32 %v482, %v561
        %v563 = vpop.f32.mrb[0].mxu0
        %564 = vdwg.mxu0
        %v565 = vmax.f32 %v557, 0.0
        %v566 = vmax.f32 %v562, 0.0
        %v567 = vld [vmem:[%s153 + $0x78] sm:$0xff]
        %v568 = vld [vmem:[%s153 + $0x80] sm:$0xff]
        %v569 = vld [vmem:[%s153 + $0x88] sm:$0x1]
        %v570 = vlaneseq
        %v571 = vshrl.u32 %v570, 7
        %v572 = vsub.s32 0, %v571
        %v573 = vrot.slane %v569, %v572
        %v574 = vsel %vm350, %v308, 0
        %v576 = vsel %vm350, %v313, 0
        %578 = vmatprep.subr.mxu0 0.0
        %579 = vmatpush1.msra.mxu0 %v567
        %580 = vmatprep.subr.mxu0 0.0
        %581 = vmatpush1.msra.mxu0 %v568
        %582 = vmatprep.subr.mxu0 0.0
        %583 = vmatpush1.msra.mxu0 0.0
        %584 = vmatprep.subr.mxu0 0.0
        %585 = vmatpush1.msra.mxu0 0.0
        %586 = vmatprep.subr.mxu0 0.0
        %587 = vmatpush1.msra.mxu0 0.0
        %588 = vmatprep.subr.mxu0 0.0
        %589 = vmatpush1.msra.mxu0 0.0
        %590 = vmatprep.subr.mxu0 0.0
        %591 = vmatpush1.msra.mxu0 0.0
        %592 = vmatprep.subr.mxu0 0.0
        %593 = vmatpush1.msra.mxu0 0.0
        %594 = vmatprep.subr.mxu0 0.0
        %595 = vmatpush1.msra.mxu0 0.0
        %596 = vmatprep.subr.mxu0 0.0
        %597 = vmatpush1.msra.mxu0 0.0
        %598 = vmatprep.subr.mxu0 0.0
        %599 = vmatpush1.msra.mxu0 0.0
        %600 = vmatprep.subr.mxu0 0.0
        %601 = vmatpush1.msra.mxu0 0.0
        %602 = vmatprep.subr.mxu0 0.0
        %603 = vmatpush1.msra.mxu0 0.0
        %604 = vmatprep.subr.mxu0 0.0
        %605 = vmatpush1.msra.mxu0 0.0
        %606 = vmatprep.subr.mxu0 0.0
        %607 = vmatpush1.msra.mxu0 0.0
        %608 = vmatprep.subr.mxu0 0.0
        %609 = vmatpush1.msra.mxu0 0.0
        %610 = vmatprep.subr.mxu0 0.0
        %611 = vmatpush1.msra.mxu0 0.0
        %612 = vmatprep.subr.mxu0 0.0
        %613 = vmatpush1.msra.mxu0 0.0
        %614 = vmatprep.subr.mxu0 0.0
        %615 = vmatpush1.msra.mxu0 0.0
        %616 = vmatprep.subr.mxu0 0.0
        %617 = vmatpush1.msra.mxu0 0.0
        %618 = vmatprep.subr.mxu0 0.0
        %619 = vmatpush1.msra.mxu0 0.0
        %620 = vmatprep.subr.mxu0 0.0
        %621 = vmatpush1.msra.mxu0 0.0
        %622 = vmatprep.subr.mxu0 0.0
        %623 = vmatpush1.msra.mxu0 0.0
        %624 = vmatprep.subr.mxu0 0.0
        %625 = vmatpush1.msra.mxu0 0.0
        %626 = vmatprep.subr.mxu0 0.0
        %627 = vmatpush1.msra.mxu0 0.0
        %628 = vmatprep.subr.mxu0 0.0
        %629 = vmatpush1.msra.mxu0 0.0
        %630 = vmatprep.subr.mxu0 0.0
        %631 = vmatpush1.msra.mxu0 0.0
        %632 = vmatprep.subr.mxu0 0.0
        %633 = vmatpush1.msra.mxu0 0.0
        %634 = vmatprep.subr.mxu0 0.0
        %635 = vmatpush1.msra.mxu0 0.0
        %636 = vmatprep.subr.mxu0 0.0
        %637 = vmatpush1.msra.mxu0 0.0
        %638 = vmatprep.subr.mxu0 0.0
        %639 = vmatpush1.msra.mxu0 0.0
        %640 = vmatprep.subr.mxu0 0.0
        %641 = vmatpush1.msra.mxu0 0.0
        %642 = vmatprep.mubr.f32.mxu0 0.0
        %643 = vmatmul.mubr.f32.gmra.mrb[0].mxu0 %v574
        %v644 = vpop.f32.mrb[0].mxu0
        %v645 = vadd.f32 %v573, %v644
        %v646 = vpop.f32.mrb[0].mxu0
        %647 = vmatprep.mubr.f32.mxu0 0.0
        %648 = vmatmul.mubr.f32.gmra.mrb[0].mxu0 %v576
        %v649 = vpop.f32.mrb[0].mxu0
        %v650 = vadd.f32 %v573, %v649
        %v651 = vpop.f32.mrb[0].mxu0
        %652 = vdwg.mxu0
        %v653 = vadd.f32 %v565, %v645
        %v654 = vadd.f32 %v566, %v650
        %v655 = vmax.f32 %v653, 0.0
        %v656 = vmax.f32 %v654, 0.0
        %v657 = vld [vmem:[%s153 + $0x90] sm:$0xff]
        %v658 = vld [vmem:[%s153 + $0x98] sm:$0xff]
        %v659 = vld [vmem:[%s153 + $0xa0] sm:$0xff]
        %v660 = vld [vmem:[%s153 + $0xa8] sm:$0x1]
        %v663 = vrot.slane %v655, 4
        %v664 = vrot.slane %v656, 4
        %v665 = vsel %vm237, %v663, %v664
        %v667 = vsel %vm237, 0.0, %v663
        %669 = vrot.lane.b32.xlu0 %v667, 8
        %v670 = vpop.permute.xlu0 %669
        %671 = vrot.lane.b32.xlu0 %v665, 8
        %v672 = vpop.permute.xlu0 %671
        %675 = vrot.lane.b32.xlu0 %v655, 16
        %v676 = vpop.permute.xlu0 %675
        %677 = vrot.lane.b32.xlu0 %v656, 16
        %v678 = vpop.permute.xlu0 %677
        %v681 = vsel %vm474, 0.0, %v670
        %v682 = vsel %vm474, %v655, %v672
        %v683 = vsel %vm350, %v681, %v676
        %v684 = vsel %vm350, %v682, %v678
        %v685 = vlaneseq
        %v686 = vshrl.u32 %v685, 7
        %v687 = vsub.s32 0, %v686
        %v688 = vrot.slane %v660, %v687
        %v690 = vsel %vm483, %v683, 0
        %v693 = vsel %vm483, %v684, 0
        %695 = vmatprep.subr.mxu0 0.0
        %696 = vmatpush1.msra.mxu0 %v657
        %697 = vmatprep.subr.mxu0 0.0
        %698 = vmatpush1.msra.mxu0 %v658
        %699 = vmatprep.subr.mxu0 0.0
        %700 = vmatpush1.msra.mxu0 %v659
        %701 = vmatprep.subr.mxu0 0.0
        %702 = vmatpush1.msra.mxu0 0.0
        %703 = vmatprep.subr.mxu0 0.0
        %704 = vmatpush1.msra.mxu0 0.0
        %705 = vmatprep.subr.mxu0 0.0
        %706 = vmatpush1.msra.mxu0 0.0
        %707 = vmatprep.subr.mxu0 0.0
        %708 = vmatpush1.msra.mxu0 0.0
        %709 = vmatprep.subr.mxu0 0.0
        %710 = vmatpush1.msra.mxu0 0.0
        %711 = vmatprep.subr.mxu0 0.0
        %712 = vmatpush1.msra.mxu0 0.0
        %713 = vmatprep.subr.mxu0 0.0
        %714 = vmatpush1.msra.mxu0 0.0
        %715 = vmatprep.subr.mxu0 0.0
        %716 = vmatpush1.msra.mxu0 0.0
        %717 = vmatprep.subr.mxu0 0.0
        %718 = vmatpush1.msra.mxu0 0.0
        %719 = vmatprep.subr.mxu0 0.0
        %720 = vmatpush1.msra.mxu0 0.0
        %721 = vmatprep.subr.mxu0 0.0
        %722 = vmatpush1.msra.mxu0 0.0
        %723 = vmatprep.subr.mxu0 0.0
        %724 = vmatpush1.msra.mxu0 0.0
        %725 = vmatprep.subr.mxu0 0.0
        %726 = vmatpush1.msra.mxu0 0.0
        %727 = vmatprep.subr.mxu0 0.0
        %728 = vmatpush1.msra.mxu0 0.0
        %729 = vmatprep.subr.mxu0 0.0
        %730 = vmatpush1.msra.mxu0 0.0
        %731 = vmatprep.subr.mxu0 0.0
        %732 = vmatpush1.msra.mxu0 0.0
        %733 = vmatprep.subr.mxu0 0.0
        %734 = vmatpush1.msra.mxu0 0.0
        %735 = vmatprep.subr.mxu0 0.0
        %736 = vmatpush1.msra.mxu0 0.0
        %737 = vmatprep.subr.mxu0 0.0
        %738 = vmatpush1.msra.mxu0 0.0
        %739 = vmatprep.subr.mxu0 0.0
        %740 = vmatpush1.msra.mxu0 0.0
        %741 = vmatprep.subr.mxu0 0.0
        %742 = vmatpush1.msra.mxu0 0.0
        %743 = vmatprep.subr.mxu0 0.0
        %744 = vmatpush1.msra.mxu0 0.0
        %745 = vmatprep.subr.mxu0 0.0
        %746 = vmatpush1.msra.mxu0 0.0
        %747 = vmatprep.subr.mxu0 0.0
        %748 = vmatpush1.msra.mxu0 0.0
        %749 = vmatprep.subr.mxu0 0.0
        %750 = vmatpush1.msra.mxu0 0.0
        %751 = vmatprep.subr.mxu0 0.0
        %752 = vmatpush1.msra.mxu0 0.0
        %753 = vmatprep.subr.mxu0 0.0
        %754 = vmatpush1.msra.mxu0 0.0
        %755 = vmatprep.subr.mxu0 0.0
        %756 = vmatpush1.msra.mxu0 0.0
        %757 = vmatprep.subr.mxu0 0.0
        %758 = vmatpush1.msra.mxu0 0.0
        %759 = vmatprep.mubr.f32.mxu0 0.0
        %760 = vmatmul.mubr.f32.gmra.mrb[0].mxu0 %v690
        %v761 = vpop.f32.mrb[0].mxu0
        %v762 = vadd.f32 %v688, %v761
        %v763 = vpop.f32.mrb[0].mxu0
        %764 = vmatprep.mubr.f32.mxu0 0.0
        %765 = vmatmul.mubr.f32.gmra.mrb[0].mxu0 %v693
        %v766 = vpop.f32.mrb[0].mxu0
        %v767 = vadd.f32 %v688, %v766
        %v768 = vpop.f32.mrb[0].mxu0
        %769 = vdwg.mxu0
        %v770 = vmax.f32 %v762, 0.0
        %v771 = vmax.f32 %v767, 0.0
        %v772 = vld [vmem:[%s153 + $0xb0] sm:$0xff]
        %v773 = vld [vmem:[%s153 + $0xb8] sm:$0xff]
        %v774 = vld [vmem:[%s153 + $0xc0] sm:$0xff]
        %v775 = vld [vmem:[%s153 + $0xc8] sm:$0x1]
        %v778 = vrot.slane %v770, 4
        %v779 = vrot.slane %v771, 4
        %v780 = vsel %vm237, %v778, %v779
        %v782 = vsel %vm237, 0.0, %v778
        %784 = vrot.lane.b32.xlu0 %v782, 8
        %v785 = vpop.permute.xlu0 %784
        %786 = vrot.lane.b32.xlu0 %v780, 8
        %v787 = vpop.permute.xlu0 %786
        %790 = vrot.lane.b32.xlu0 %v770, 16
        %v791 = vpop.permute.xlu0 %790
        %792 = vrot.lane.b32.xlu0 %v771, 16
        %v793 = vpop.permute.xlu0 %792
        %v796 = vsel %vm474, 0.0, %v785
        %v797 = vsel %vm474, %v770, %v787
        %v798 = vsel %vm350, %v796, %v791
        %v799 = vsel %vm350, %v797, %v793
        %v800 = vlaneseq
        %v801 = vshrl.u32 %v800, 7
        %v802 = vsub.s32 0, %v801
        %v803 = vrot.slane %v775, %v802
        %v805 = vsel %vm483, %v798, 0
        %v808 = vsel %vm483, %v799, 0
        %810 = vmatprep.subr.mxu0 0.0
        %811 = vmatpush1.msra.mxu0 %v772
        %812 = vmatprep.subr.mxu0 0.0
        %813 = vmatpush1.msra.mxu0 %v773
        %814 = vmatprep.subr.mxu0 0.0
        %815 = vmatpush1.msra.mxu0 %v774
        %816 = vmatprep.subr.mxu0 0.0
        %817 = vmatpush1.msra.mxu0 0.0
        %818 = vmatprep.subr.mxu0 0.0
        %819 = vmatpush1.msra.mxu0 0.0
        %820 = vmatprep.subr.mxu0 0.0
        %821 = vmatpush1.msra.mxu0 0.0
        %822 = vmatprep.subr.mxu0 0.0
        %823 = vmatpush1.msra.mxu0 0.0
        %824 = vmatprep.subr.mxu0 0.0
        %825 = vmatpush1.msra.mxu0 0.0
        %826 = vmatprep.subr.mxu0 0.0
        %827 = vmatpush1.msra.mxu0 0.0
        %828 = vmatprep.subr.mxu0 0.0
        %829 = vmatpush1.msra.mxu0 0.0
        %830 = vmatprep.subr.mxu0 0.0
        %831 = vmatpush1.msra.mxu0 0.0
        %832 = vmatprep.subr.mxu0 0.0
        %833 = vmatpush1.msra.mxu0 0.0
        %834 = vmatprep.subr.mxu0 0.0
        %835 = vmatpush1.msra.mxu0 0.0
        %836 = vmatprep.subr.mxu0 0.0
        %837 = vmatpush1.msra.mxu0 0.0
        %838 = vmatprep.subr.mxu0 0.0
        %839 = vmatpush1.msra.mxu0 0.0
        %840 = vmatprep.subr.mxu0 0.0
        %841 = vmatpush1.msra.mxu0 0.0
        %842 = vmatprep.subr.mxu0 0.0
        %843 = vmatpush1.msra.mxu0 0.0
        %844 = vmatprep.subr.mxu0 0.0
        %845 = vmatpush1.msra.mxu0 0.0
        %846 = vmatprep.subr.mxu0 0.0
        %847 = vmatpush1.msra.mxu0 0.0
        %848 = vmatprep.subr.mxu0 0.0
        %849 = vmatpush1.msra.mxu0 0.0
        %850 = vmatprep.subr.mxu0 0.0
        %851 = vmatpush1.msra.mxu0 0.0
        %852 = vmatprep.subr.mxu0 0.0
        %853 = vmatpush1.msra.mxu0 0.0
        %854 = vmatprep.subr.mxu0 0.0
        %855 = vmatpush1.msra.mxu0 0.0
        %856 = vmatprep.subr.mxu0 0.0
        %857 = vmatpush1.msra.mxu0 0.0
        %858 = vmatprep.subr.mxu0 0.0
        %859 = vmatpush1.msra.mxu0 0.0
        %860 = vmatprep.subr.mxu0 0.0
        %861 = vmatpush1.msra.mxu0 0.0
        %862 = vmatprep.subr.mxu0 0.0
        %863 = vmatpush1.msra.mxu0 0.0
        %864 = vmatprep.subr.mxu0 0.0
        %865 = vmatpush1.msra.mxu0 0.0
        %866 = vmatprep.subr.mxu0 0.0
        %867 = vmatpush1.msra.mxu0 0.0
        %868 = vmatprep.subr.mxu0 0.0
        %869 = vmatpush1.msra.mxu0 0.0
        %870 = vmatprep.subr.mxu0 0.0
        %871 = vmatpush1.msra.mxu0 0.0
        %872 = vmatprep.subr.mxu0 0.0
        %873 = vmatpush1.msra.mxu0 0.0
        %874 = vmatprep.mubr.f32.mxu0 0.0
        %875 = vmatmul.mubr.f32.gmra.mrb[0].mxu0 %v805
        %v876 = vpop.f32.mrb[0].mxu0
        %v877 = vadd.f32 %v803, %v876
        %v878 = vpop.f32.mrb[0].mxu0
        %879 = vmatprep.mubr.f32.mxu0 0.0
        %880 = vmatmul.mubr.f32.gmra.mrb[0].mxu0 %v808
        %v881 = vpop.f32.mrb[0].mxu0
        %v882 = vadd.f32 %v803, %v881
        %v883 = vpop.f32.mrb[0].mxu0
        %884 = vdwg.mxu0
        %v885 = vmax.f32 %v877, 0.0
        %v886 = vmax.f32 %v882, 0.0
        %v887 = vadd.f32 %v885, %v655
        %v888 = vadd.f32 %v886, %v656
        %v889 = vmax.f32 %v887, 0.0
        %v890 = vmax.f32 %v888, 0.0
        %v891 = vld [vmem:[%s153 + $0x1d0] sm:$0x1]
        %v892 = vlaneseq
        %v893 = vshrl.u32 %v892, 7
        %v894 = vsub.s32 0, %v893
        %v895 = vrot.slane %v891, %v894
        %v896 = vadd.f32 %v895, 0.0
        %v897 = vld [vmem:[%s153 + $0x100] sm:$0x7]
        %v898 = vld [vmem:[%s153 + $0xd0] sm:$0xff]
        %v899 = vld [vmem:[%s153 + $0xd8] sm:$0xff]
        %v900 = vlaneseq
        %v901 = vshrl.u32 %v900, 7
        %v902 = vsub.s32 0, %v901
        %v903 = vrot.slane %v897, %v902
        %904 = vmatprep.subr.mxu0 0.0
        %905 = vmatpush1.msra.mxu0 %v898
        %906 = vmatprep.subr.mxu0 0.0
        %907 = vmatpush1.msra.mxu0 %v899
        %908 = vmatprep.subr.mxu0 0.0
        %909 = vmatpush1.msra.mxu0 0.0
        %910 = vmatprep.subr.mxu0 0.0
        %911 = vmatpush1.msra.mxu0 0.0
        %912 = vmatprep.subr.mxu0 0.0
        %913 = vmatpush1.msra.mxu0 0.0
        %914 = vmatprep.subr.mxu0 0.0
        %915 = vmatpush1.msra.mxu0 0.0
        %916 = vmatprep.subr.mxu0 0.0
        %917 = vmatpush1.msra.mxu0 0.0
        %918 = vmatprep.subr.mxu0 0.0
        %919 = vmatpush1.msra.mxu0 0.0
        %920 = vmatprep.subr.mxu0 0.0
        %921 = vmatpush1.msra.mxu0 0.0
        %922 = vmatprep.subr.mxu0 0.0
        %923 = vmatpush1.msra.mxu0 0.0
        %924 = vmatprep.subr.mxu0 0.0
        %925 = vmatpush1.msra.mxu0 0.0
        %926 = vmatprep.subr.mxu0 0.0
        %927 = vmatpush1.msra.mxu0 0.0
        %928 = vmatprep.subr.mxu0 0.0
        %929 = vmatpush1.msra.mxu0 0.0
        %930 = vmatprep.subr.mxu0 0.0
        %931 = vmatpush1.msra.mxu0 0.0
        %932 = vmatprep.subr.mxu0 0.0
        %933 = vmatpush1.msra.mxu0 0.0
        %934 = vmatprep.subr.mxu0 0.0
        %935 = vmatpush1.msra.mxu0 0.0
        %936 = vmatprep.subr.mxu0 0.0
        %937 = vmatpush1.msra.mxu0 0.0
        %938 = vmatprep.subr.mxu0 0.0
        %939 = vmatpush1.msra.mxu0 0.0
        %940 = vmatprep.subr.mxu0 0.0
        %941 = vmatpush1.msra.mxu0 0.0
        %942 = vmatprep.subr.mxu0 0.0
        %943 = vmatpush1.msra.mxu0 0.0
        %944 = vmatprep.subr.mxu0 0.0
        %945 = vmatpush1.msra.mxu0 0.0
        %946 = vmatprep.subr.mxu0 0.0
        %947 = vmatpush1.msra.mxu0 0.0
        %948 = vmatprep.subr.mxu0 0.0
        %949 = vmatpush1.msra.mxu0 0.0
        %950 = vmatprep.subr.mxu0 0.0
        %951 = vmatpush1.msra.mxu0 0.0
        %952 = vmatprep.subr.mxu0 0.0
        %953 = vmatpush1.msra.mxu0 0.0
        %954 = vmatprep.subr.mxu0 0.0
        %955 = vmatpush1.msra.mxu0 0.0
        %956 = vmatprep.subr.mxu0 0.0
        %957 = vmatpush1.msra.mxu0 0.0
        %958 = vmatprep.subr.mxu0 0.0
        %959 = vmatpush1.msra.mxu0 0.0
        %960 = vmatprep.subr.mxu0 0.0
        %961 = vmatpush1.msra.mxu0 0.0
        %962 = vmatprep.subr.mxu0 0.0
        %963 = vmatpush1.msra.mxu0 0.0
        %964 = vmatprep.subr.mxu0 0.0
        %965 = vmatpush1.msra.mxu0 0.0
        %966 = vmatprep.subr.mxu0 0.0
        %967 = vmatpush1.msra.mxu0 0.0
        %968 = vmatprep.mubr.f32.mxu0 0.0
        %969 = vmatmul.mubr.f32.gmra.mrb[0].mxu0 %v574
        %v970 = vpop.f32.mrb[0].mxu0
        %v971 = vadd.f32 %v903, %v970
        %v972 = vpop.f32.mrb[0].mxu0
        %973 = vmatprep.mubr.f32.mxu0 0.0
        %974 = vmatmul.mubr.f32.gmra.mrb[0].mxu0 %v576
        %v975 = vpop.f32.mrb[0].mxu0
        %v976 = vadd.f32 %v903, %v975
        %v977 = vpop.f32.mrb[0].mxu0
        %978 = vdwg.mxu0
        %v979 = vld [vmem:[%s153 + $0xe0] sm:$0xff]
        %v980 = vld [vmem:[%s153 + $0xe8] sm:$0xff]
        %v981 = vlaneseq
        %v982 = vshrl.u32 %v981, 7
        %v983 = vsub.s32 1, %v982
        %v984 = vrot.slane %v897, %v983
        %985 = vmatprep.subr.mxu0 0.0
        %986 = vmatpush1.msra.mxu0 %v979
        %987 = vmatprep.subr.mxu0 0.0
        %988 = vmatpush1.msra.mxu0 %v980
        %989 = vmatprep.subr.mxu0 0.0
        %990 = vmatpush1.msra.mxu0 0.0
        %991 = vmatprep.subr.mxu0 0.0
        %992 = vmatpush1.msra.mxu0 0.0
        %993 = vmatprep.subr.mxu0 0.0
        %994 = vmatpush1.msra.mxu0 0.0
        %995 = vmatprep.subr.mxu0 0.0
        %996 = vmatpush1.msra.mxu0 0.0
        %997 = vmatprep.subr.mxu0 0.0
        %998 = vmatpush1.msra.mxu0 0.0
        %999 = vmatprep.subr.mxu0 0.0
        %1000 = vmatpush1.msra.mxu0 0.0
        %1001 = vmatprep.subr.mxu0 0.0
        %1002 = vmatpush1.msra.mxu0 0.0
        %1003 = vmatprep.subr.mxu0 0.0
        %1004 = vmatpush1.msra.mxu0 0.0
        %1005 = vmatprep.subr.mxu0 0.0
        %1006 = vmatpush1.msra.mxu0 0.0
        %1007 = vmatprep.subr.mxu0 0.0
        %1008 = vmatpush1.msra.mxu0 0.0
        %1009 = vmatprep.subr.mxu0 0.0
        %1010 = vmatpush1.msra.mxu0 0.0
        %1011 = vmatprep.subr.mxu0 0.0
        %1012 = vmatpush1.msra.mxu0 0.0
        %1013 = vmatprep.subr.mxu0 0.0
        %1014 = vmatpush1.msra.mxu0 0.0
        %1015 = vmatprep.subr.mxu0 0.0
        %1016 = vmatpush1.msra.mxu0 0.0
        %1017 = vmatprep.subr.mxu0 0.0
        %1018 = vmatpush1.msra.mxu0 0.0
        %1019 = vmatprep.subr.mxu0 0.0
        %1020 = vmatpush1.msra.mxu0 0.0
        %1021 = vmatprep.subr.mxu0 0.0
        %1022 = vmatpush1.msra.mxu0 0.0
        %1023 = vmatprep.subr.mxu0 0.0
        %1024 = vmatpush1.msra.mxu0 0.0
        %1025 = vmatprep.subr.mxu0 0.0
        %1026 = vmatpush1.msra.mxu0 0.0
        %1027 = vmatprep.subr.mxu0 0.0
        %1028 = vmatpush1.msra.mxu0 0.0
        %1029 = vmatprep.subr.mxu0 0.0
        %1030 = vmatpush1.msra.mxu0 0.0
        %1031 = vmatprep.subr.mxu0 0.0
        %1032 = vmatpush1.msra.mxu0 0.0
        %1033 = vmatprep.subr.mxu0 0.0
        %1034 = vmatpush1.msra.mxu0 0.0
        %1035 = vmatprep.subr.mxu0 0.0
        %1036 = vmatpush1.msra.mxu0 0.0
        %1037 = vmatprep.subr.mxu0 0.0
        %1038 = vmatpush1.msra.mxu0 0.0
        %1039 = vmatprep.subr.mxu0 0.0
        %1040 = vmatpush1.msra.mxu0 0.0
        %1041 = vmatprep.subr.mxu0 0.0
        %1042 = vmatpush1.msra.mxu0 0.0
        %1043 = vmatprep.subr.mxu0 0.0
        %1044 = vmatpush1.msra.mxu0 0.0
        %1045 = vmatprep.subr.mxu0 0.0
        %1046 = vmatpush1.msra.mxu0 0.0
        %1047 = vmatprep.subr.mxu0 0.0
        %1048 = vmatpush1.msra.mxu0 0.0
        %1049 = vmatprep.mubr.f32.mxu0 0.0
        %1050 = vmatmul.mubr.f32.gmra.mrb[0].mxu0 %v574
        %v1051 = vpop.f32.mrb[0].mxu0
        %v1052 = vadd.f32 %v984, %v1051
        %v1053 = vpop.f32.mrb[0].mxu0
        %1054 = vmatprep.mubr.f32.mxu0 0.0
        %1055 = vmatmul.mubr.f32.gmra.mrb[0].mxu0 %v576
        %v1056 = vpop.f32.mrb[0].mxu0
        %v1057 = vadd.f32 %v984, %v1056
        %v1058 = vpop.f32.mrb[0].mxu0
        %1059 = vdwg.mxu0
        %v1060 = vld [vmem:[%s153 + $0xf0] sm:$0xff]
        %v1061 = vld [vmem:[%s153 + $0xf8] sm:$0xff]
        %v1062 = vlaneseq
        %v1063 = vshrl.u32 %v1062, 7
        %v1064 = vsub.s32 2, %v1063
        %v1065 = vrot.slane %v897, %v1064
        %1066 = vmatprep.subr.mxu0 0.0
        %1067 = vmatpush1.msra.mxu0 %v1060
        %1068 = vmatprep.subr.mxu0 0.0
        %1069 = vmatpush1.msra.mxu0 %v1061
        %1070 = vmatprep.subr.mxu0 0.0
        %1071 = vmatpush1.msra.mxu0 0.0
        %1072 = vmatprep.subr.mxu0 0.0
        %1073 = vmatpush1.msra.mxu0 0.0
        %1074 = vmatprep.subr.mxu0 0.0
        %1075 = vmatpush1.msra.mxu0 0.0
        %1076 = vmatprep.subr.mxu0 0.0
        %1077 = vmatpush1.msra.mxu0 0.0
        %1078 = vmatprep.subr.mxu0 0.0
        %1079 = vmatpush1.msra.mxu0 0.0
        %1080 = vmatprep.subr.mxu0 0.0
        %1081 = vmatpush1.msra.mxu0 0.0
        %1082 = vmatprep.subr.mxu0 0.0
        %1083 = vmatpush1.msra.mxu0 0.0
        %1084 = vmatprep.subr.mxu0 0.0
        %1085 = vmatpush1.msra.mxu0 0.0
        %1086 = vmatprep.subr.mxu0 0.0
        %1087 = vmatpush1.msra.mxu0 0.0
        %1088 = vmatprep.subr.mxu0 0.0
        %1089 = vmatpush1.msra.mxu0 0.0
        %1090 = vmatprep.subr.mxu0 0.0
        %1091 = vmatpush1.msra.mxu0 0.0
        %1092 = vmatprep.subr.mxu0 0.0
        %1093 = vmatpush1.msra.mxu0 0.0
        %1094 = vmatprep.subr.mxu0 0.0
        %1095 = vmatpush1.msra.mxu0 0.0
        %1096 = vmatprep.subr.mxu0 0.0
        %1097 = vmatpush1.msra.mxu0 0.0
        %1098 = vmatprep.subr.mxu0 0.0
        %1099 = vmatpush1.msra.mxu0 0.0
        %1100 = vmatprep.subr.mxu0 0.0
        %1101 = vmatpush1.msra.mxu0 0.0
        %1102 = vmatprep.subr.mxu0 0.0
        %1103 = vmatpush1.msra.mxu0 0.0
        %1104 = vmatprep.subr.mxu0 0.0
        %1105 = vmatpush1.msra.mxu0 0.0
        %1106 = vmatprep.subr.mxu0 0.0
        %1107 = vmatpush1.msra.mxu0 0.0
        %1108 = vmatprep.subr.mxu0 0.0
        %1109 = vmatpush1.msra.mxu0 0.0
        %1110 = vmatprep.subr.mxu0 0.0
        %1111 = vmatpush1.msra.mxu0 0.0
        %1112 = vmatprep.subr.mxu0 0.0
        %1113 = vmatpush1.msra.mxu0 0.0
        %1114 = vmatprep.subr.mxu0 0.0
        %1115 = vmatpush1.msra.mxu0 0.0
        %1116 = vmatprep.subr.mxu0 0.0
        %1117 = vmatpush1.msra.mxu0 0.0
        %1118 = vmatprep.subr.mxu0 0.0
        %1119 = vmatpush1.msra.mxu0 0.0
        %1120 = vmatprep.subr.mxu0 0.0
        %1121 = vmatpush1.msra.mxu0 0.0
        %1122 = vmatprep.subr.mxu0 0.0
        %1123 = vmatpush1.msra.mxu0 0.0
        %1124 = vmatprep.subr.mxu0 0.0
        %1125 = vmatpush1.msra.mxu0 0.0
        %1126 = vmatprep.subr.mxu0 0.0
        %1127 = vmatpush1.msra.mxu0 0.0
        %1128 = vmatprep.subr.mxu0 0.0
        %1129 = vmatpush1.msra.mxu0 0.0
        %1130 = vmatprep.mubr.f32.mxu0 0.0
        %1131 = vmatmul.mubr.f32.gmra.mrb[0].mxu0 %v574
        %v1132 = vpop.f32.mrb[0].mxu0
        %v1133 = vadd.f32 %v1065, %v1132
        %v1134 = vpop.f32.mrb[0].mxu0
        %1135 = vmatprep.mubr.f32.mxu0 0.0
        %1136 = vmatmul.mubr.f32.gmra.mrb[0].mxu0 %v576
        %v1137 = vpop.f32.mrb[0].mxu0
        %v1138 = vadd.f32 %v1065, %v1137
        %v1139 = vpop.f32.mrb[0].mxu0
        %1140 = vdwg.mxu0
        %vm1141 = vcmask 31744
        %v1143 = vsel %vm1141, %v971, 0
        %v1146 = vsel %vm1141, %v976, 0
        %v1149 = vsel %vm1141, %v1052, 0
        %v1152 = vsel %vm1141, %v1057, 0
        %1154 = vmatprep.subr.mxu0 0.0
        %1155 = vmatpush1.xpose.msra.mxu0 %v1149
        %1156 = vmatprep.subr.mxu0 0.0
        %1157 = vmatpush1.xpose.msra.mxu0 %v1152
        %1158 = vmatprep.subr.mxu0 0.0
        %1159 = vmatpush1.xpose.msra.mxu0 0.0
        %1160 = vmatprep.subr.mxu0 0.0
        %1161 = vmatpush1.xpose.msra.mxu0 0.0
        %1162 = vmatprep.subr.mxu0 0.0
        %1163 = vmatpush1.xpose.msra.mxu0 0.0
        %1164 = vmatprep.subr.mxu0 0.0
        %1165 = vmatpush1.xpose.msra.mxu0 0.0
        %1166 = vmatprep.subr.mxu0 0.0
        %1167 = vmatpush1.xpose.msra.mxu0 0.0
        %1168 = vmatprep.subr.mxu0 0.0
        %1169 = vmatpush1.xpose.msra.mxu0 0.0
        %1170 = vmatprep.subr.mxu0 0.0
        %1171 = vmatpush1.xpose.msra.mxu0 0.0
        %1172 = vmatprep.subr.mxu0 0.0
        %1173 = vmatpush1.xpose.msra.mxu0 0.0
        %1174 = vmatprep.subr.mxu0 0.0
        %1175 = vmatpush1.xpose.msra.mxu0 0.0
        %1176 = vmatprep.subr.mxu0 0.0
        %1177 = vmatpush1.xpose.msra.mxu0 0.0
        %1178 = vmatprep.subr.mxu0 0.0
        %1179 = vmatpush1.xpose.msra.mxu0 0.0
        %1180 = vmatprep.subr.mxu0 0.0
        %1181 = vmatpush1.xpose.msra.mxu0 0.0
        %1182 = vmatprep.subr.mxu0 0.0
        %1183 = vmatpush1.xpose.msra.mxu0 0.0
        %1184 = vmatprep.subr.mxu0 0.0
        %1185 = vmatpush1.xpose.msra.mxu0 0.0
        %1186 = vmatprep.subr.mxu0 0.0
        %1187 = vmatpush1.xpose.msra.mxu0 0.0
        %1188 = vmatprep.subr.mxu0 0.0
        %1189 = vmatpush1.xpose.msra.mxu0 0.0
        %1190 = vmatprep.subr.mxu0 0.0
        %1191 = vmatpush1.xpose.msra.mxu0 0.0
        %1192 = vmatprep.subr.mxu0 0.0
        %1193 = vmatpush1.xpose.msra.mxu0 0.0
        %1194 = vmatprep.subr.mxu0 0.0
        %1195 = vmatpush1.xpose.msra.mxu0 0.0
        %1196 = vmatprep.subr.mxu0 0.0
        %1197 = vmatpush1.xpose.msra.mxu0 0.0
        %1198 = vmatprep.subr.mxu0 0.0
        %1199 = vmatpush1.xpose.msra.mxu0 0.0
        %1200 = vmatprep.subr.mxu0 0.0
        %1201 = vmatpush1.xpose.msra.mxu0 0.0
        %1202 = vmatprep.subr.mxu0 0.0
        %1203 = vmatpush1.xpose.msra.mxu0 0.0
        %1204 = vmatprep.subr.mxu0 0.0
        %1205 = vmatpush1.xpose.msra.mxu0 0.0
        %1206 = vmatprep.subr.mxu0 0.0
        %1207 = vmatpush1.xpose.msra.mxu0 0.0
        %1208 = vmatprep.subr.mxu0 0.0
        %1209 = vmatpush1.xpose.msra.mxu0 0.0
        %1210 = vmatprep.subr.mxu0 0.0
        %1211 = vmatpush1.xpose.msra.mxu0 0.0
        %1212 = vmatprep.subr.mxu0 0.0
        %1213 = vmatpush1.xpose.msra.mxu0 0.0
        %1214 = vmatprep.subr.mxu0 0.0
        %1215 = vmatpush1.xpose.msra.mxu0 0.0
        %1216 = vmatprep.subr.mxu0 0.0
        %1217 = vmatpush1.xpose.msra.mxu0 0.0
        %1218 = vmatprep.mubr.f32.mxu0 0.0
        %1219 = vmatmul.mubr.f32.gmra.mrb[0].mxu0 %v1143
        %v1220 = vpop.f32.mrb[0].mxu0
        %v1221 = vadd.f32 %v222, %v1220
        %v1222 = vpop.f32.mrb[0].mxu0
        %1223 = vmatprep.mubr.f32.mxu0 0.0
        %1224 = vmatmul.mubr.f32.gmra.mrb[0].mxu0 %v1146
        %v1225 = vpop.f32.mrb[0].mxu0
        %v1226 = vadd.f32 %v223, %v1225
        %v1227 = vpop.f32.mrb[0].mxu0
        %1228 = vdwg.mxu0
        %v1229 = vsel %vm350, %v1221, -inf
        %1230 = vmax.xlane.f32.xlu0 %v1229
        %v1231 = vpop.xlane.xlu0 %1230
        %v1232 = vsel %vm350, %v1226, -inf
        %1233 = vmax.xlane.f32.xlu0 %v1232
        %v1234 = vpop.xlane.xlu0 %1233
        %v1235 = vsub.f32 %v1221, %v1231
        %v1236 = vsub.f32 %v1226, %v1234
        %v1237 = vmul.f32 %v1235, 1.442695
        %v1238 = vpow.pop %v1237
        %v1239 = vmul.f32 %v1236, 1.442695
        %v1240 = vpow.pop %v1239
        %v1241 = vsel %vm350, %v1238, 0.0
        %1242 = vadd.xlane.f32.xlu0 %v1241
        %v1243 = vpop.xlane.xlu0 %1242
        %v1244 = vsel %vm350, %v1240, 0.0
        %1245 = vadd.xlane.f32.xlu0 %v1244
        %v1246 = vpop.xlane.xlu0 %1245
        %v1247 = vrcp.pop %v1243
        %v1248 = vrcp.pop %v1246
        %v1249 = vmul.f32 %v1238, %v1247
        %v1250 = vmul.f32 %v1240, %v1248
        %v1252 = vsel %vm350, %v1249, 0
        %v1255 = vsel %vm350, %v1250, 0
        %1257 = vmatprep.subr.mxu0 0.0
        %1258 = vmatpush1.msra.mxu0 %v1133
        %1259 = vmatprep.subr.mxu0 0.0
        %1260 = vmatpush1.msra.mxu0 %v1138
        %1261 = vmatprep.subr.mxu0 0.0
        %1262 = vmatpush1.msra.mxu0 0.0
        %1263 = vmatprep.subr.mxu0 0.0
        %1264 = vmatpush1.msra.mxu0 0.0
        %1265 = vmatprep.subr.mxu0 0.0
        %1266 = vmatpush1.msra.mxu0 0.0
        %1267 = vmatprep.subr.mxu0 0.0
        %1268 = vmatpush1.msra.mxu0 0.0
        %1269 = vmatprep.subr.mxu0 0.0
        %1270 = vmatpush1.msra.mxu0 0.0
        %1271 = vmatprep.subr.mxu0 0.0
        %1272 = vmatpush1.msra.mxu0 0.0
        %1273 = vmatprep.subr.mxu0 0.0
        %1274 = vmatpush1.msra.mxu0 0.0
        %1275 = vmatprep.subr.mxu0 0.0
        %1276 = vmatpush1.msra.mxu0 0.0
        %1277 = vmatprep.subr.mxu0 0.0
        %1278 = vmatpush1.msra.mxu0 0.0
        %1279 = vmatprep.subr.mxu0 0.0
        %1280 = vmatpush1.msra.mxu0 0.0
        %1281 = vmatprep.subr.mxu0 0.0
        %1282 = vmatpush1.msra.mxu0 0.0
        %1283 = vmatprep.subr.mxu0 0.0
        %1284 = vmatpush1.msra.mxu0 0.0
        %1285 = vmatprep.subr.mxu0 0.0
        %1286 = vmatpush1.msra.mxu0 0.0
        %1287 = vmatprep.subr.mxu0 0.0
        %1288 = vmatpush1.msra.mxu0 0.0
        %1289 = vmatprep.subr.mxu0 0.0
        %1290 = vmatpush1.msra.mxu0 0.0
        %1291 = vmatprep.subr.mxu0 0.0
        %1292 = vmatpush1.msra.mxu0 0.0
        %1293 = vmatprep.subr.mxu0 0.0
        %1294 = vmatpush1.msra.mxu0 0.0
        %1295 = vmatprep.subr.mxu0 0.0
        %1296 = vmatpush1.msra.mxu0 0.0
        %1297 = vmatprep.subr.mxu0 0.0
        %1298 = vmatpush1.msra.mxu0 0.0
        %1299 = vmatprep.subr.mxu0 0.0
        %1300 = vmatpush1.msra.mxu0 0.0
        %1301 = vmatprep.subr.mxu0 0.0
        %1302 = vmatpush1.msra.mxu0 0.0
        %1303 = vmatprep.subr.mxu0 0.0
        %1304 = vmatpush1.msra.mxu0 0.0
        %1305 = vmatprep.subr.mxu0 0.0
        %1306 = vmatpush1.msra.mxu0 0.0
        %1307 = vmatprep.subr.mxu0 0.0
        %1308 = vmatpush1.msra.mxu0 0.0
        %1309 = vmatprep.subr.mxu0 0.0
        %1310 = vmatpush1.msra.mxu0 0.0
        %1311 = vmatprep.subr.mxu0 0.0
        %1312 = vmatpush1.msra.mxu0 0.0
        %1313 = vmatprep.subr.mxu0 0.0
        %1314 = vmatpush1.msra.mxu0 0.0
        %1315 = vmatprep.subr.mxu0 0.0
        %1316 = vmatpush1.msra.mxu0 0.0
        %1317 = vmatprep.subr.mxu0 0.0
        %1318 = vmatpush1.msra.mxu0 0.0
        %1319 = vmatprep.subr.mxu0 0.0
        %1320 = vmatpush1.msra.mxu0 0.0
        %1321 = vmatprep.mubr.f32.mxu0 0.0
        %1322 = vmatmul.mubr.f32.gmra.mrb[0].mxu0 %v1252
        %v1323 = vpop.f32.mrb[0].mxu0
        %v1324 = vadd.f32 0.0, %v1323
        %v1325 = vpop.f32.mrb[0].mxu0
        %1326 = vmatprep.mubr.f32.mxu0 0.0
        %1327 = vmatmul.mubr.f32.gmra.mrb[0].mxu0 %v1255
        %v1328 = vpop.f32.mrb[0].mxu0
        %v1329 = vadd.f32 0.0, %v1328
        %v1330 = vpop.f32.mrb[0].mxu0
        %1331 = vdwg.mxu0
        %v1332 = vld [vmem:[%s153 + $0x108] sm:$0xf]
        %v1334 = vsel %vm1141, %v1324, 0
        %v1337 = vsel %vm1141, %v1329, 0
        %v1340 = vsel %vm237, %v1332, 0
        %1342 = vmatprep.subr.mxu0 0.0
        %1343 = vmatpush1.msra.mxu0 %v1340
        %1344 = vmatprep.subr.mxu0 0.0
        %1345 = vmatpush1.msra.mxu0 0.0
        %1346 = vmatprep.subr.mxu0 0.0
        %1347 = vmatpush1.msra.mxu0 0.0
        %1348 = vmatprep.subr.mxu0 0.0
        %1349 = vmatpush1.msra.mxu0 0.0
        %1350 = vmatprep.subr.mxu0 0.0
        %1351 = vmatpush1.msra.mxu0 0.0
        %1352 = vmatprep.subr.mxu0 0.0
        %1353 = vmatpush1.msra.mxu0 0.0
        %1354 = vmatprep.subr.mxu0 0.0
        %1355 = vmatpush1.msra.mxu0 0.0
        %1356 = vmatprep.subr.mxu0 0.0
        %1357 = vmatpush1.msra.mxu0 0.0
        %1358 = vmatprep.subr.mxu0 0.0
        %1359 = vmatpush1.msra.mxu0 0.0
        %1360 = vmatprep.subr.mxu0 0.0
        %1361 = vmatpush1.msra.mxu0 0.0
        %1362 = vmatprep.subr.mxu0 0.0
        %1363 = vmatpush1.msra.mxu0 0.0
        %1364 = vmatprep.subr.mxu0 0.0
        %1365 = vmatpush1.msra.mxu0 0.0
        %1366 = vmatprep.subr.mxu0 0.0
        %1367 = vmatpush1.msra.mxu0 0.0
        %1368 = vmatprep.subr.mxu0 0.0
        %1369 = vmatpush1.msra.mxu0 0.0
        %1370 = vmatprep.subr.mxu0 0.0
        %1371 = vmatpush1.msra.mxu0 0.0
        %1372 = vmatprep.subr.mxu0 0.0
        %1373 = vmatpush1.msra.mxu0 0.0
        %1374 = vmatprep.subr.mxu0 0.0
        %1375 = vmatpush1.msra.mxu0 0.0
        %1376 = vmatprep.subr.mxu0 0.0
        %1377 = vmatpush1.msra.mxu0 0.0
        %1378 = vmatprep.subr.mxu0 0.0
        %1379 = vmatpush1.msra.mxu0 0.0
        %1380 = vmatprep.subr.mxu0 0.0
        %1381 = vmatpush1.msra.mxu0 0.0
        %1382 = vmatprep.subr.mxu0 0.0
        %1383 = vmatpush1.msra.mxu0 0.0
        %1384 = vmatprep.subr.mxu0 0.0
        %1385 = vmatpush1.msra.mxu0 0.0
        %1386 = vmatprep.subr.mxu0 0.0
        %1387 = vmatpush1.msra.mxu0 0.0
        %1388 = vmatprep.subr.mxu0 0.0
        %1389 = vmatpush1.msra.mxu0 0.0
        %1390 = vmatprep.subr.mxu0 0.0
        %1391 = vmatpush1.msra.mxu0 0.0
        %1392 = vmatprep.subr.mxu0 0.0
        %1393 = vmatpush1.msra.mxu0 0.0
        %1394 = vmatprep.subr.mxu0 0.0
        %1395 = vmatpush1.msra.mxu0 0.0
        %1396 = vmatprep.subr.mxu0 0.0
        %1397 = vmatpush1.msra.mxu0 0.0
        %1398 = vmatprep.subr.mxu0 0.0
        %1399 = vmatpush1.msra.mxu0 0.0
        %1400 = vmatprep.subr.mxu0 0.0
        %1401 = vmatpush1.msra.mxu0 0.0
        %1402 = vmatprep.subr.mxu0 0.0
        %1403 = vmatpush1.msra.mxu0 0.0
        %1404 = vmatprep.subr.mxu0 0.0
        %1405 = vmatpush1.msra.mxu0 0.0
        %1406 = vmatprep.mubr.f32.mxu0 0.0
        %1407 = vmatmul.mubr.f32.gmra.mrb[0].mxu0 %v1334
        %v1408 = vpop.f32.mrb[0].mxu0
        %v1409 = vadd.f32 0.0, %v1408
        %v1410 = vpop.f32.mrb[0].mxu0
        %1411 = vmatprep.mubr.f32.mxu0 0.0
        %1412 = vmatmul.mubr.f32.gmra.mrb[0].mxu0 %v1337
        %v1413 = vpop.f32.mrb[0].mxu0
        %v1414 = vadd.f32 0.0, %v1413
        %v1415 = vpop.f32.mrb[0].mxu0
        %1416 = vdwg.mxu0
        %v1417 = vadd.f32 %v896, %v1409
        %v1418 = vadd.f32 %v896, %v1414
        %v1419 = vld [vmem:[%s153 + $0x140] sm:$0x7]
        %v1420 = vld [vmem:[%s153 + $0x110] sm:$0xff]
        %v1421 = vld [vmem:[%s153 + $0x118] sm:$0xff]
        %v1422 = vlaneseq
        %v1423 = vshrl.u32 %v1422, 7
        %v1424 = vsub.s32 0, %v1423
        %v1425 = vrot.slane %v1419, %v1424
        %1426 = vmatprep.subr.mxu0 0.0
        %1427 = vmatpush1.msra.mxu0 %v1420
        %1428 = vmatprep.subr.mxu0 0.0
        %1429 = vmatpush1.msra.mxu0 %v1421
        %1430 = vmatprep.subr.mxu0 0.0
        %1431 = vmatpush1.msra.mxu0 0.0
        %1432 = vmatprep.subr.mxu0 0.0
        %1433 = vmatpush1.msra.mxu0 0.0
        %1434 = vmatprep.subr.mxu0 0.0
        %1435 = vmatpush1.msra.mxu0 0.0
        %1436 = vmatprep.subr.mxu0 0.0
        %1437 = vmatpush1.msra.mxu0 0.0
        %1438 = vmatprep.subr.mxu0 0.0
        %1439 = vmatpush1.msra.mxu0 0.0
        %1440 = vmatprep.subr.mxu0 0.0
        %1441 = vmatpush1.msra.mxu0 0.0
        %1442 = vmatprep.subr.mxu0 0.0
        %1443 = vmatpush1.msra.mxu0 0.0
        %1444 = vmatprep.subr.mxu0 0.0
        %1445 = vmatpush1.msra.mxu0 0.0
        %1446 = vmatprep.subr.mxu0 0.0
        %1447 = vmatpush1.msra.mxu0 0.0
        %1448 = vmatprep.subr.mxu0 0.0
        %1449 = vmatpush1.msra.mxu0 0.0
        %1450 = vmatprep.subr.mxu0 0.0
        %1451 = vmatpush1.msra.mxu0 0.0
        %1452 = vmatprep.subr.mxu0 0.0
        %1453 = vmatpush1.msra.mxu0 0.0
        %1454 = vmatprep.subr.mxu0 0.0
        %1455 = vmatpush1.msra.mxu0 0.0
        %1456 = vmatprep.subr.mxu0 0.0
        %1457 = vmatpush1.msra.mxu0 0.0
        %1458 = vmatprep.subr.mxu0 0.0
        %1459 = vmatpush1.msra.mxu0 0.0
        %1460 = vmatprep.subr.mxu0 0.0
        %1461 = vmatpush1.msra.mxu0 0.0
        %1462 = vmatprep.subr.mxu0 0.0
        %1463 = vmatpush1.msra.mxu0 0.0
        %1464 = vmatprep.subr.mxu0 0.0
        %1465 = vmatpush1.msra.mxu0 0.0
        %1466 = vmatprep.subr.mxu0 0.0
        %1467 = vmatpush1.msra.mxu0 0.0
        %1468 = vmatprep.subr.mxu0 0.0
        %1469 = vmatpush1.msra.mxu0 0.0
        %1470 = vmatprep.subr.mxu0 0.0
        %1471 = vmatpush1.msra.mxu0 0.0
        %1472 = vmatprep.subr.mxu0 0.0
        %1473 = vmatpush1.msra.mxu0 0.0
        %1474 = vmatprep.subr.mxu0 0.0
        %1475 = vmatpush1.msra.mxu0 0.0
        %1476 = vmatprep.subr.mxu0 0.0
        %1477 = vmatpush1.msra.mxu0 0.0
        %1478 = vmatprep.subr.mxu0 0.0
        %1479 = vmatpush1.msra.mxu0 0.0
        %1480 = vmatprep.subr.mxu0 0.0
        %1481 = vmatpush1.msra.mxu0 0.0
        %1482 = vmatprep.subr.mxu0 0.0
        %1483 = vmatpush1.msra.mxu0 0.0
        %1484 = vmatprep.subr.mxu0 0.0
        %1485 = vmatpush1.msra.mxu0 0.0
        %1486 = vmatprep.subr.mxu0 0.0
        %1487 = vmatpush1.msra.mxu0 0.0
        %1488 = vmatprep.subr.mxu0 0.0
        %1489 = vmatpush1.msra.mxu0 0.0
        %1490 = vmatprep.mubr.f32.mxu0 0.0
        %1491 = vmatmul.mubr.f32.gmra.mrb[0].mxu0 %v574
        %v1492 = vpop.f32.mrb[0].mxu0
        %v1493 = vadd.f32 %v1425, %v1492
        %v1494 = vpop.f32.mrb[0].mxu0
        %1495 = vmatprep.mubr.f32.mxu0 0.0
        %1496 = vmatmul.mubr.f32.gmra.mrb[0].mxu0 %v576
        %v1497 = vpop.f32.mrb[0].mxu0
        %v1498 = vadd.f32 %v1425, %v1497
        %v1499 = vpop.f32.mrb[0].mxu0
        %1500 = vdwg.mxu0
        %v1501 = vld [vmem:[%s153 + $0x120] sm:$0xff]
        %v1502 = vld [vmem:[%s153 + $0x128] sm:$0xff]
        %v1503 = vlaneseq
        %v1504 = vshrl.u32 %v1503, 7
        %v1505 = vsub.s32 1, %v1504
        %v1506 = vrot.slane %v1419, %v1505
        %1507 = vmatprep.subr.mxu0 0.0
        %1508 = vmatpush1.msra.mxu0 %v1501
        %1509 = vmatprep.subr.mxu0 0.0
        %1510 = vmatpush1.msra.mxu0 %v1502
        %1511 = vmatprep.subr.mxu0 0.0
        %1512 = vmatpush1.msra.mxu0 0.0
        %1513 = vmatprep.subr.mxu0 0.0
        %1514 = vmatpush1.msra.mxu0 0.0
        %1515 = vmatprep.subr.mxu0 0.0
        %1516 = vmatpush1.msra.mxu0 0.0
        %1517 = vmatprep.subr.mxu0 0.0
        %1518 = vmatpush1.msra.mxu0 0.0
        %1519 = vmatprep.subr.mxu0 0.0
        %1520 = vmatpush1.msra.mxu0 0.0
        %1521 = vmatprep.subr.mxu0 0.0
        %1522 = vmatpush1.msra.mxu0 0.0
        %1523 = vmatprep.subr.mxu0 0.0
        %1524 = vmatpush1.msra.mxu0 0.0
        %1525 = vmatprep.subr.mxu0 0.0
        %1526 = vmatpush1.msra.mxu0 0.0
        %1527 = vmatprep.subr.mxu0 0.0
        %1528 = vmatpush1.msra.mxu0 0.0
        %1529 = vmatprep.subr.mxu0 0.0
        %1530 = vmatpush1.msra.mxu0 0.0
        %1531 = vmatprep.subr.mxu0 0.0
        %1532 = vmatpush1.msra.mxu0 0.0
        %1533 = vmatprep.subr.mxu0 0.0
        %1534 = vmatpush1.msra.mxu0 0.0
        %1535 = vmatprep.subr.mxu0 0.0
        %1536 = vmatpush1.msra.mxu0 0.0
        %1537 = vmatprep.subr.mxu0 0.0
        %1538 = vmatpush1.msra.mxu0 0.0
        %1539 = vmatprep.subr.mxu0 0.0
        %1540 = vmatpush1.msra.mxu0 0.0
        %1541 = vmatprep.subr.mxu0 0.0
        %1542 = vmatpush1.msra.mxu0 0.0
        %1543 = vmatprep.subr.mxu0 0.0
        %1544 = vmatpush1.msra.mxu0 0.0
        %1545 = vmatprep.subr.mxu0 0.0
        %1546 = vmatpush1.msra.mxu0 0.0
        %1547 = vmatprep.subr.mxu0 0.0
        %1548 = vmatpush1.msra.mxu0 0.0
        %1549 = vmatprep.subr.mxu0 0.0
        %1550 = vmatpush1.msra.mxu0 0.0
        %1551 = vmatprep.subr.mxu0 0.0
        %1552 = vmatpush1.msra.mxu0 0.0
        %1553 = vmatprep.subr.mxu0 0.0
        %1554 = vmatpush1.msra.mxu0 0.0
        %1555 = vmatprep.subr.mxu0 0.0
        %1556 = vmatpush1.msra.mxu0 0.0
        %1557 = vmatprep.subr.mxu0 0.0
        %1558 = vmatpush1.msra.mxu0 0.0
        %1559 = vmatprep.subr.mxu0 0.0
        %1560 = vmatpush1.msra.mxu0 0.0
        %1561 = vmatprep.subr.mxu0 0.0
        %1562 = vmatpush1.msra.mxu0 0.0
        %1563 = vmatprep.subr.mxu0 0.0
        %1564 = vmatpush1.msra.mxu0 0.0
        %1565 = vmatprep.subr.mxu0 0.0
        %1566 = vmatpush1.msra.mxu0 0.0
        %1567 = vmatprep.subr.mxu0 0.0
        %1568 = vmatpush1.msra.mxu0 0.0
        %1569 = vmatprep.subr.mxu0 0.0
        %1570 = vmatpush1.msra.mxu0 0.0
        %1571 = vmatprep.mubr.f32.mxu0 0.0
        %1572 = vmatmul.mubr.f32.gmra.mrb[0].mxu0 %v574
        %v1573 = vpop.f32.mrb[0].mxu0
        %v1574 = vadd.f32 %v1506, %v1573
        %v1575 = vpop.f32.mrb[0].mxu0
        %1576 = vmatprep.mubr.f32.mxu0 0.0
        %1577 = vmatmul.mubr.f32.gmra.mrb[0].mxu0 %v576
        %v1578 = vpop.f32.mrb[0].mxu0
        %v1579 = vadd.f32 %v1506, %v1578
        %v1580 = vpop.f32.mrb[0].mxu0
        %1581 = vdwg.mxu0
        %v1582 = vld [vmem:[%s153 + $0x130] sm:$0xff]
        %v1583 = vld [vmem:[%s153 + $0x138] sm:$0xff]
        %v1584 = vlaneseq
        %v1585 = vshrl.u32 %v1584, 7
        %v1586 = vsub.s32 2, %v1585
        %v1587 = vrot.slane %v1419, %v1586
        %1588 = vmatprep.subr.mxu0 0.0
        %1589 = vmatpush1.msra.mxu0 %v1582
        %1590 = vmatprep.subr.mxu0 0.0
        %1591 = vmatpush1.msra.mxu0 %v1583
        %1592 = vmatprep.subr.mxu0 0.0
        %1593 = vmatpush1.msra.mxu0 0.0
        %1594 = vmatprep.subr.mxu0 0.0
        %1595 = vmatpush1.msra.mxu0 0.0
        %1596 = vmatprep.subr.mxu0 0.0
        %1597 = vmatpush1.msra.mxu0 0.0
        %1598 = vmatprep.subr.mxu0 0.0
        %1599 = vmatpush1.msra.mxu0 0.0
        %1600 = vmatprep.subr.mxu0 0.0
        %1601 = vmatpush1.msra.mxu0 0.0
        %1602 = vmatprep.subr.mxu0 0.0
        %1603 = vmatpush1.msra.mxu0 0.0
        %1604 = vmatprep.subr.mxu0 0.0
        %1605 = vmatpush1.msra.mxu0 0.0
        %1606 = vmatprep.subr.mxu0 0.0
        %1607 = vmatpush1.msra.mxu0 0.0
        %1608 = vmatprep.subr.mxu0 0.0
        %1609 = vmatpush1.msra.mxu0 0.0
        %1610 = vmatprep.subr.mxu0 0.0
        %1611 = vmatpush1.msra.mxu0 0.0
        %1612 = vmatprep.subr.mxu0 0.0
        %1613 = vmatpush1.msra.mxu0 0.0
        %1614 = vmatprep.subr.mxu0 0.0
        %1615 = vmatpush1.msra.mxu0 0.0
        %1616 = vmatprep.subr.mxu0 0.0
        %1617 = vmatpush1.msra.mxu0 0.0
        %1618 = vmatprep.subr.mxu0 0.0
        %1619 = vmatpush1.msra.mxu0 0.0
        %1620 = vmatprep.subr.mxu0 0.0
        %1621 = vmatpush1.msra.mxu0 0.0
        %1622 = vmatprep.subr.mxu0 0.0
        %1623 = vmatpush1.msra.mxu0 0.0
        %1624 = vmatprep.subr.mxu0 0.0
        %1625 = vmatpush1.msra.mxu0 0.0
        %1626 = vmatprep.subr.mxu0 0.0
        %1627 = vmatpush1.msra.mxu0 0.0
        %1628 = vmatprep.subr.mxu0 0.0
        %1629 = vmatpush1.msra.mxu0 0.0
        %1630 = vmatprep.subr.mxu0 0.0
        %1631 = vmatpush1.msra.mxu0 0.0
        %1632 = vmatprep.subr.mxu0 0.0
        %1633 = vmatpush1.msra.mxu0 0.0
        %1634 = vmatprep.subr.mxu0 0.0
        %1635 = vmatpush1.msra.mxu0 0.0
        %1636 = vmatprep.subr.mxu0 0.0
        %1637 = vmatpush1.msra.mxu0 0.0
        %1638 = vmatprep.subr.mxu0 0.0
        %1639 = vmatpush1.msra.mxu0 0.0
        %1640 = vmatprep.subr.mxu0 0.0
        %1641 = vmatpush1.msra.mxu0 0.0
        %1642 = vmatprep.subr.mxu0 0.0
        %1643 = vmatpush1.msra.mxu0 0.0
        %1644 = vmatprep.subr.mxu0 0.0
        %1645 = vmatpush1.msra.mxu0 0.0
        %1646 = vmatprep.subr.mxu0 0.0
        %1647 = vmatpush1.msra.mxu0 0.0
        %1648 = vmatprep.subr.mxu0 0.0
        %1649 = vmatpush1.msra.mxu0 0.0
        %1650 = vmatprep.subr.mxu0 0.0
        %1651 = vmatpush1.msra.mxu0 0.0
        %1652 = vmatprep.mubr.f32.mxu0 0.0
        %1653 = vmatmul.mubr.f32.gmra.mrb[0].mxu0 %v574
        %v1654 = vpop.f32.mrb[0].mxu0
        %v1655 = vadd.f32 %v1587, %v1654
        %v1656 = vpop.f32.mrb[0].mxu0
        %1657 = vmatprep.mubr.f32.mxu0 0.0
        %1658 = vmatmul.mubr.f32.gmra.mrb[0].mxu0 %v576
        %v1659 = vpop.f32.mrb[0].mxu0
        %v1660 = vadd.f32 %v1587, %v1659
        %v1661 = vpop.f32.mrb[0].mxu0
        %1662 = vdwg.mxu0
        %v1664 = vsel %vm1141, %v1493, 0
        %v1667 = vsel %vm1141, %v1498, 0
        %v1670 = vsel %vm1141, %v1574, 0
        %v1673 = vsel %vm1141, %v1579, 0
        %1675 = vmatprep.subr.mxu0 0.0
        %1676 = vmatpush1.xpose.msra.mxu0 %v1670
        %1677 = vmatprep.subr.mxu0 0.0
        %1678 = vmatpush1.xpose.msra.mxu0 %v1673
        %1679 = vmatprep.subr.mxu0 0.0
        %1680 = vmatpush1.xpose.msra.mxu0 0.0
        %1681 = vmatprep.subr.mxu0 0.0
        %1682 = vmatpush1.xpose.msra.mxu0 0.0
        %1683 = vmatprep.subr.mxu0 0.0
        %1684 = vmatpush1.xpose.msra.mxu0 0.0
        %1685 = vmatprep.subr.mxu0 0.0
        %1686 = vmatpush1.xpose.msra.mxu0 0.0
        %1687 = vmatprep.subr.mxu0 0.0
        %1688 = vmatpush1.xpose.msra.mxu0 0.0
        %1689 = vmatprep.subr.mxu0 0.0
        %1690 = vmatpush1.xpose.msra.mxu0 0.0
        %1691 = vmatprep.subr.mxu0 0.0
        %1692 = vmatpush1.xpose.msra.mxu0 0.0
        %1693 = vmatprep.subr.mxu0 0.0
        %1694 = vmatpush1.xpose.msra.mxu0 0.0
        %1695 = vmatprep.subr.mxu0 0.0
        %1696 = vmatpush1.xpose.msra.mxu0 0.0
        %1697 = vmatprep.subr.mxu0 0.0
        %1698 = vmatpush1.xpose.msra.mxu0 0.0
        %1699 = vmatprep.subr.mxu0 0.0
        %1700 = vmatpush1.xpose.msra.mxu0 0.0
        %1701 = vmatprep.subr.mxu0 0.0
        %1702 = vmatpush1.xpose.msra.mxu0 0.0
        %1703 = vmatprep.subr.mxu0 0.0
        %1704 = vmatpush1.xpose.msra.mxu0 0.0
        %1705 = vmatprep.subr.mxu0 0.0
        %1706 = vmatpush1.xpose.msra.mxu0 0.0
        %1707 = vmatprep.subr.mxu0 0.0
        %1708 = vmatpush1.xpose.msra.mxu0 0.0
        %1709 = vmatprep.subr.mxu0 0.0
        %1710 = vmatpush1.xpose.msra.mxu0 0.0
        %1711 = vmatprep.subr.mxu0 0.0
        %1712 = vmatpush1.xpose.msra.mxu0 0.0
        %1713 = vmatprep.subr.mxu0 0.0
        %1714 = vmatpush1.xpose.msra.mxu0 0.0
        %1715 = vmatprep.subr.mxu0 0.0
        %1716 = vmatpush1.xpose.msra.mxu0 0.0
        %1717 = vmatprep.subr.mxu0 0.0
        %1718 = vmatpush1.xpose.msra.mxu0 0.0
        %1719 = vmatprep.subr.mxu0 0.0
        %1720 = vmatpush1.xpose.msra.mxu0 0.0
        %1721 = vmatprep.subr.mxu0 0.0
        %1722 = vmatpush1.xpose.msra.mxu0 0.0
        %1723 = vmatprep.subr.mxu0 0.0
        %1724 = vmatpush1.xpose.msra.mxu0 0.0
        %1725 = vmatprep.subr.mxu0 0.0
        %1726 = vmatpush1.xpose.msra.mxu0 0.0
        %1727 = vmatprep.subr.mxu0 0.0
        %1728 = vmatpush1.xpose.msra.mxu0 0.0
        %1729 = vmatprep.subr.mxu0 0.0
        %1730 = vmatpush1.xpose.msra.mxu0 0.0
        %1731 = vmatprep.subr.mxu0 0.0
        %1732 = vmatpush1.xpose.msra.mxu0 0.0
        %1733 = vmatprep.subr.mxu0 0.0
        %1734 = vmatpush1.xpose.msra.mxu0 0.0
        %1735 = vmatprep.subr.mxu0 0.0
        %1736 = vmatpush1.xpose.msra.mxu0 0.0
        %1737 = vmatprep.subr.mxu0 0.0
        %1738 = vmatpush1.xpose.msra.mxu0 0.0
        %1739 = vmatprep.mubr.f32.mxu0 0.0
        %1740 = vmatmul.mubr.f32.gmra.mrb[0].mxu0 %v1664
        %v1741 = vpop.f32.mrb[0].mxu0
        %v1742 = vadd.f32 %v222, %v1741
        %v1743 = vpop.f32.mrb[0].mxu0
        %1744 = vmatprep.mubr.f32.mxu0 0.0
        %1745 = vmatmul.mubr.f32.gmra.mrb[0].mxu0 %v1667
        %v1746 = vpop.f32.mrb[0].mxu0
        %v1747 = vadd.f32 %v223, %v1746
        %v1748 = vpop.f32.mrb[0].mxu0
        %1749 = vdwg.mxu0
        %v1750 = vsel %vm350, %v1742, -inf
        %1751 = vmax.xlane.f32.xlu0 %v1750
        %v1752 = vpop.xlane.xlu0 %1751
        %v1753 = vsel %vm350, %v1747, -inf
        %1754 = vmax.xlane.f32.xlu0 %v1753
        %v1755 = vpop.xlane.xlu0 %1754
        %v1756 = vsub.f32 %v1742, %v1752
        %v1757 = vsub.f32 %v1747, %v1755
        %v1758 = vmul.f32 %v1756, 1.442695
        %v1759 = vpow.pop %v1758
        %v1760 = vmul.f32 %v1757, 1.442695
        %v1761 = vpow.pop %v1760
        %v1762 = vsel %vm350, %v1759, 0.0
        %1763 = vadd.xlane.f32.xlu0 %v1762
        %v1764 = vpop.xlane.xlu0 %1763
        %v1765 = vsel %vm350, %v1761, 0.0
        %1766 = vadd.xlane.f32.xlu0 %v1765
        %v1767 = vpop.xlane.xlu0 %1766
        %v1768 = vrcp.pop %v1764
        %v1769 = vrcp.pop %v1767
        %v1770 = vmul.f32 %v1759, %v1768
        %v1771 = vmul.f32 %v1761, %v1769
        %v1773 = vsel %vm350, %v1770, 0
        %v1776 = vsel %vm350, %v1771, 0
        %1778 = vmatprep.subr.mxu0 0.0
        %1779 = vmatpush1.msra.mxu0 %v1655
        %1780 = vmatprep.subr.mxu0 0.0
        %1781 = vmatpush1.msra.mxu0 %v1660
        %1782 = vmatprep.subr.mxu0 0.0
        %1783 = vmatpush1.msra.mxu0 0.0
        %1784 = vmatprep.subr.mxu0 0.0
        %1785 = vmatpush1.msra.mxu0 0.0
        %1786 = vmatprep.subr.mxu0 0.0
        %1787 = vmatpush1.msra.mxu0 0.0
        %1788 = vmatprep.subr.mxu0 0.0
        %1789 = vmatpush1.msra.mxu0 0.0
        %1790 = vmatprep.subr.mxu0 0.0
        %1791 = vmatpush1.msra.mxu0 0.0
        %1792 = vmatprep.subr.mxu0 0.0
        %1793 = vmatpush1.msra.mxu0 0.0
        %1794 = vmatprep.subr.mxu0 0.0
        %1795 = vmatpush1.msra.mxu0 0.0
        %1796 = vmatprep.subr.mxu0 0.0
        %1797 = vmatpush1.msra.mxu0 0.0
        %1798 = vmatprep.subr.mxu0 0.0
        %1799 = vmatpush1.msra.mxu0 0.0
        %1800 = vmatprep.subr.mxu0 0.0
        %1801 = vmatpush1.msra.mxu0 0.0
        %1802 = vmatprep.subr.mxu0 0.0
        %1803 = vmatpush1.msra.mxu0 0.0
        %1804 = vmatprep.subr.mxu0 0.0
        %1805 = vmatpush1.msra.mxu0 0.0
        %1806 = vmatprep.subr.mxu0 0.0
        %1807 = vmatpush1.msra.mxu0 0.0
        %1808 = vmatprep.subr.mxu0 0.0
        %1809 = vmatpush1.msra.mxu0 0.0
        %1810 = vmatprep.subr.mxu0 0.0
        %1811 = vmatpush1.msra.mxu0 0.0
        %1812 = vmatprep.subr.mxu0 0.0
        %1813 = vmatpush1.msra.mxu0 0.0
        %1814 = vmatprep.subr.mxu0 0.0
        %1815 = vmatpush1.msra.mxu0 0.0
        %1816 = vmatprep.subr.mxu0 0.0
        %1817 = vmatpush1.msra.mxu0 0.0
        %1818 = vmatprep.subr.mxu0 0.0
        %1819 = vmatpush1.msra.mxu0 0.0
        %1820 = vmatprep.subr.mxu0 0.0
        %1821 = vmatpush1.msra.mxu0 0.0
        %1822 = vmatprep.subr.mxu0 0.0
        %1823 = vmatpush1.msra.mxu0 0.0
        %1824 = vmatprep.subr.mxu0 0.0
        %1825 = vmatpush1.msra.mxu0 0.0
        %1826 = vmatprep.subr.mxu0 0.0
        %1827 = vmatpush1.msra.mxu0 0.0
        %1828 = vmatprep.subr.mxu0 0.0
        %1829 = vmatpush1.msra.mxu0 0.0
        %1830 = vmatprep.subr.mxu0 0.0
        %1831 = vmatpush1.msra.mxu0 0.0
        %1832 = vmatprep.subr.mxu0 0.0
        %1833 = vmatpush1.msra.mxu0 0.0
        %1834 = vmatprep.subr.mxu0 0.0
        %1835 = vmatpush1.msra.mxu0 0.0
        %1836 = vmatprep.subr.mxu0 0.0
        %1837 = vmatpush1.msra.mxu0 0.0
        %1838 = vmatprep.subr.mxu0 0.0
        %1839 = vmatpush1.msra.mxu0 0.0
        %1840 = vmatprep.subr.mxu0 0.0
        %1841 = vmatpush1.msra.mxu0 0.0
        %1842 = vmatprep.mubr.f32.mxu0 0.0
        %1843 = vmatmul.mubr.f32.gmra.mrb[0].mxu0 %v1773
        %v1844 = vpop.f32.mrb[0].mxu0
        %v1845 = vadd.f32 0.0, %v1844
        %v1846 = vpop.f32.mrb[0].mxu0
        %1847 = vmatprep.mubr.f32.mxu0 0.0
        %1848 = vmatmul.mubr.f32.gmra.mrb[0].mxu0 %v1776
        %v1849 = vpop.f32.mrb[0].mxu0
        %v1850 = vadd.f32 0.0, %v1849
        %v1851 = vpop.f32.mrb[0].mxu0
        %1852 = vdwg.mxu0
        %v1853 = vld [vmem:[%s153 + $0x148] sm:$0xf]
        %v1855 = vsel %vm1141, %v1845, 0
        %v1858 = vsel %vm1141, %v1850, 0
        %v1861 = vsel %vm237, %v1853, 0
        %1863 = vmatprep.subr.mxu0 0.0
        %1864 = vmatpush1.msra.mxu0 %v1861
        %1865 = vmatprep.subr.mxu0 0.0
        %1866 = vmatpush1.msra.mxu0 0.0
        %1867 = vmatprep.subr.mxu0 0.0
        %1868 = vmatpush1.msra.mxu0 0.0
        %1869 = vmatprep.subr.mxu0 0.0
        %1870 = vmatpush1.msra.mxu0 0.0
        %1871 = vmatprep.subr.mxu0 0.0
        %1872 = vmatpush1.msra.mxu0 0.0
        %1873 = vmatprep.subr.mxu0 0.0
        %1874 = vmatpush1.msra.mxu0 0.0
        %1875 = vmatprep.subr.mxu0 0.0
        %1876 = vmatpush1.msra.mxu0 0.0
        %1877 = vmatprep.subr.mxu0 0.0
        %1878 = vmatpush1.msra.mxu0 0.0
        %1879 = vmatprep.subr.mxu0 0.0
        %1880 = vmatpush1.msra.mxu0 0.0
        %1881 = vmatprep.subr.mxu0 0.0
        %1882 = vmatpush1.msra.mxu0 0.0
        %1883 = vmatprep.subr.mxu0 0.0
        %1884 = vmatpush1.msra.mxu0 0.0
        %1885 = vmatprep.subr.mxu0 0.0
        %1886 = vmatpush1.msra.mxu0 0.0
        %1887 = vmatprep.subr.mxu0 0.0
        %1888 = vmatpush1.msra.mxu0 0.0
        %1889 = vmatprep.subr.mxu0 0.0
        %1890 = vmatpush1.msra.mxu0 0.0
        %1891 = vmatprep.subr.mxu0 0.0
        %1892 = vmatpush1.msra.mxu0 0.0
        %1893 = vmatprep.subr.mxu0 0.0
        %1894 = vmatpush1.msra.mxu0 0.0
        %1895 = vmatprep.subr.mxu0 0.0
        %1896 = vmatpush1.msra.mxu0 0.0
        %1897 = vmatprep.subr.mxu0 0.0
        %1898 = vmatpush1.msra.mxu0 0.0
        %1899 = vmatprep.subr.mxu0 0.0
        %1900 = vmatpush1.msra.mxu0 0.0
        %1901 = vmatprep.subr.mxu0 0.0
        %1902 = vmatpush1.msra.mxu0 0.0
        %1903 = vmatprep.subr.mxu0 0.0
        %1904 = vmatpush1.msra.mxu0 0.0
        %1905 = vmatprep.subr.mxu0 0.0
        %1906 = vmatpush1.msra.mxu0 0.0
        %1907 = vmatprep.subr.mxu0 0.0
        %1908 = vmatpush1.msra.mxu0 0.0
        %1909 = vmatprep.subr.mxu0 0.0
        %1910 = vmatpush1.msra.mxu0 0.0
        %1911 = vmatprep.subr.mxu0 0.0
        %1912 = vmatpush1.msra.mxu0 0.0
        %1913 = vmatprep.subr.mxu0 0.0
        %1914 = vmatpush1.msra.mxu0 0.0
        %1915 = vmatprep.subr.mxu0 0.0
        %1916 = vmatpush1.msra.mxu0 0.0
        %1917 = vmatprep.subr.mxu0 0.0
        %1918 = vmatpush1.msra.mxu0 0.0
        %1919 = vmatprep.subr.mxu0 0.0
        %1920 = vmatpush1.msra.mxu0 0.0
        %1921 = vmatprep.subr.mxu0 0.0
        %1922 = vmatpush1.msra.mxu0 0.0
        %1923 = vmatprep.subr.mxu0 0.0
        %1924 = vmatpush1.msra.mxu0 0.0
        %1925 = vmatprep.subr.mxu0 0.0
        %1926 = vmatpush1.msra.mxu0 0.0
        %1927 = vmatprep.mubr.f32.mxu0 0.0
        %1928 = vmatmul.mubr.f32.gmra.mrb[0].mxu0 %v1855
        %v1929 = vpop.f32.mrb[0].mxu0
        %v1930 = vadd.f32 0.0, %v1929
        %v1931 = vpop.f32.mrb[0].mxu0
        %1932 = vmatprep.mubr.f32.mxu0 0.0
        %1933 = vmatmul.mubr.f32.gmra.mrb[0].mxu0 %v1858
        %v1934 = vpop.f32.mrb[0].mxu0
        %v1935 = vadd.f32 0.0, %v1934
        %v1936 = vpop.f32.mrb[0].mxu0
        %1937 = vdwg.mxu0
        %v1938 = vadd.f32 %v1417, %v1930
        %v1939 = vadd.f32 %v1418, %v1935
        %v1940 = vld [vmem:[%s153 + $0x180] sm:$0x7]
        %v1941 = vld [vmem:[%s153 + $0x150] sm:$0xff]
        %v1942 = vld [vmem:[%s153 + $0x158] sm:$0xff]
        %v1943 = vlaneseq
        %v1944 = vshrl.u32 %v1943, 7
        %v1945 = vsub.s32 0, %v1944
        %v1946 = vrot.slane %v1940, %v1945
        %1947 = vmatprep.subr.mxu0 0.0
        %1948 = vmatpush1.msra.mxu0 %v1941
        %1949 = vmatprep.subr.mxu0 0.0
        %1950 = vmatpush1.msra.mxu0 %v1942
        %1951 = vmatprep.subr.mxu0 0.0
        %1952 = vmatpush1.msra.mxu0 0.0
        %1953 = vmatprep.subr.mxu0 0.0
        %1954 = vmatpush1.msra.mxu0 0.0
        %1955 = vmatprep.subr.mxu0 0.0
        %1956 = vmatpush1.msra.mxu0 0.0
        %1957 = vmatprep.subr.mxu0 0.0
        %1958 = vmatpush1.msra.mxu0 0.0
        %1959 = vmatprep.subr.mxu0 0.0
        %1960 = vmatpush1.msra.mxu0 0.0
        %1961 = vmatprep.subr.mxu0 0.0
        %1962 = vmatpush1.msra.mxu0 0.0
        %1963 = vmatprep.subr.mxu0 0.0
        %1964 = vmatpush1.msra.mxu0 0.0
        %1965 = vmatprep.subr.mxu0 0.0
        %1966 = vmatpush1.msra.mxu0 0.0
        %1967 = vmatprep.subr.mxu0 0.0
        %1968 = vmatpush1.msra.mxu0 0.0
        %1969 = vmatprep.subr.mxu0 0.0
        %1970 = vmatpush1.msra.mxu0 0.0
        %1971 = vmatprep.subr.mxu0 0.0
        %1972 = vmatpush1.msra.mxu0 0.0
        %1973 = vmatprep.subr.mxu0 0.0
        %1974 = vmatpush1.msra.mxu0 0.0
        %1975 = vmatprep.subr.mxu0 0.0
        %1976 = vmatpush1.msra.mxu0 0.0
        %1977 = vmatprep.subr.mxu0 0.0
        %1978 = vmatpush1.msra.mxu0 0.0
        %1979 = vmatprep.subr.mxu0 0.0
        %1980 = vmatpush1.msra.mxu0 0.0
        %1981 = vmatprep.subr.mxu0 0.0
        %1982 = vmatpush1.msra.mxu0 0.0
        %1983 = vmatprep.subr.mxu0 0.0
        %1984 = vmatpush1.msra.mxu0 0.0
        %1985 = vmatprep.subr.mxu0 0.0
        %1986 = vmatpush1.msra.mxu0 0.0
        %1987 = vmatprep.subr.mxu0 0.0
        %1988 = vmatpush1.msra.mxu0 0.0
        %1989 = vmatprep.subr.mxu0 0.0
        %1990 = vmatpush1.msra.mxu0 0.0
        %1991 = vmatprep.subr.mxu0 0.0
        %1992 = vmatpush1.msra.mxu0 0.0
        %1993 = vmatprep.subr.mxu0 0.0
        %1994 = vmatpush1.msra.mxu0 0.0
        %1995 = vmatprep.subr.mxu0 0.0
        %1996 = vmatpush1.msra.mxu0 0.0
        %1997 = vmatprep.subr.mxu0 0.0
        %1998 = vmatpush1.msra.mxu0 0.0
        %1999 = vmatprep.subr.mxu0 0.0
        %2000 = vmatpush1.msra.mxu0 0.0
        %2001 = vmatprep.subr.mxu0 0.0
        %2002 = vmatpush1.msra.mxu0 0.0
        %2003 = vmatprep.subr.mxu0 0.0
        %2004 = vmatpush1.msra.mxu0 0.0
        %2005 = vmatprep.subr.mxu0 0.0
        %2006 = vmatpush1.msra.mxu0 0.0
        %2007 = vmatprep.subr.mxu0 0.0
        %2008 = vmatpush1.msra.mxu0 0.0
        %2009 = vmatprep.subr.mxu0 0.0
        %2010 = vmatpush1.msra.mxu0 0.0
        %2011 = vmatprep.mubr.f32.mxu0 0.0
        %2012 = vmatmul.mubr.f32.gmra.mrb[0].mxu0 %v574
        %v2013 = vpop.f32.mrb[0].mxu0
        %v2014 = vadd.f32 %v1946, %v2013
        %v2015 = vpop.f32.mrb[0].mxu0
        %2016 = vmatprep.mubr.f32.mxu0 0.0
        %2017 = vmatmul.mubr.f32.gmra.mrb[0].mxu0 %v576
        %v2018 = vpop.f32.mrb[0].mxu0
        %v2019 = vadd.f32 %v1946, %v2018
        %v2020 = vpop.f32.mrb[0].mxu0
        %2021 = vdwg.mxu0
        %v2022 = vld [vmem:[%s153 + $0x160] sm:$0xff]
        %v2023 = vld [vmem:[%s153 + $0x168] sm:$0xff]
        %v2024 = vlaneseq
        %v2025 = vshrl.u32 %v2024, 7
        %v2026 = vsub.s32 1, %v2025
        %v2027 = vrot.slane %v1940, %v2026
        %2028 = vmatprep.subr.mxu0 0.0
        %2029 = vmatpush1.msra.mxu0 %v2022
        %2030 = vmatprep.subr.mxu0 0.0
        %2031 = vmatpush1.msra.mxu0 %v2023
        %2032 = vmatprep.subr.mxu0 0.0
        %2033 = vmatpush1.msra.mxu0 0.0
        %2034 = vmatprep.subr.mxu0 0.0
        %2035 = vmatpush1.msra.mxu0 0.0
        %2036 = vmatprep.subr.mxu0 0.0
        %2037 = vmatpush1.msra.mxu0 0.0
        %2038 = vmatprep.subr.mxu0 0.0
        %2039 = vmatpush1.msra.mxu0 0.0
        %2040 = vmatprep.subr.mxu0 0.0
        %2041 = vmatpush1.msra.mxu0 0.0
        %2042 = vmatprep.subr.mxu0 0.0
        %2043 = vmatpush1.msra.mxu0 0.0
        %2044 = vmatprep.subr.mxu0 0.0
        %2045 = vmatpush1.msra.mxu0 0.0
        %2046 = vmatprep.subr.mxu0 0.0
        %2047 = vmatpush1.msra.mxu0 0.0
        %2048 = vmatprep.subr.mxu0 0.0
        %2049 = vmatpush1.msra.mxu0 0.0
        %2050 = vmatprep.subr.mxu0 0.0
        %2051 = vmatpush1.msra.mxu0 0.0
        %2052 = vmatprep.subr.mxu0 0.0
        %2053 = vmatpush1.msra.mxu0 0.0
        %2054 = vmatprep.subr.mxu0 0.0
        %2055 = vmatpush1.msra.mxu0 0.0
        %2056 = vmatprep.subr.mxu0 0.0
        %2057 = vmatpush1.msra.mxu0 0.0
        %2058 = vmatprep.subr.mxu0 0.0
        %2059 = vmatpush1.msra.mxu0 0.0
        %2060 = vmatprep.subr.mxu0 0.0
        %2061 = vmatpush1.msra.mxu0 0.0
        %2062 = vmatprep.subr.mxu0 0.0
        %2063 = vmatpush1.msra.mxu0 0.0
        %2064 = vmatprep.subr.mxu0 0.0
        %2065 = vmatpush1.msra.mxu0 0.0
        %2066 = vmatprep.subr.mxu0 0.0
        %2067 = vmatpush1.msra.mxu0 0.0
        %2068 = vmatprep.subr.mxu0 0.0
        %2069 = vmatpush1.msra.mxu0 0.0
        %2070 = vmatprep.subr.mxu0 0.0
        %2071 = vmatpush1.msra.mxu0 0.0
        %2072 = vmatprep.subr.mxu0 0.0
        %2073 = vmatpush1.msra.mxu0 0.0
        %2074 = vmatprep.subr.mxu0 0.0
        %2075 = vmatpush1.msra.mxu0 0.0
        %2076 = vmatprep.subr.mxu0 0.0
        %2077 = vmatpush1.msra.mxu0 0.0
        %2078 = vmatprep.subr.mxu0 0.0
        %2079 = vmatpush1.msra.mxu0 0.0
        %2080 = vmatprep.subr.mxu0 0.0
        %2081 = vmatpush1.msra.mxu0 0.0
        %2082 = vmatprep.subr.mxu0 0.0
        %2083 = vmatpush1.msra.mxu0 0.0
        %2084 = vmatprep.subr.mxu0 0.0
        %2085 = vmatpush1.msra.mxu0 0.0
        %2086 = vmatprep.subr.mxu0 0.0
        %2087 = vmatpush1.msra.mxu0 0.0
        %2088 = vmatprep.subr.mxu0 0.0
        %2089 = vmatpush1.msra.mxu0 0.0
        %2090 = vmatprep.subr.mxu0 0.0
        %2091 = vmatpush1.msra.mxu0 0.0
        %2092 = vmatprep.mubr.f32.mxu0 0.0
        %2093 = vmatmul.mubr.f32.gmra.mrb[0].mxu0 %v574
        %v2094 = vpop.f32.mrb[0].mxu0
        %v2095 = vadd.f32 %v2027, %v2094
        %v2096 = vpop.f32.mrb[0].mxu0
        %2097 = vmatprep.mubr.f32.mxu0 0.0
        %2098 = vmatmul.mubr.f32.gmra.mrb[0].mxu0 %v576
        %v2099 = vpop.f32.mrb[0].mxu0
        %v2100 = vadd.f32 %v2027, %v2099
        %v2101 = vpop.f32.mrb[0].mxu0
        %2102 = vdwg.mxu0
        %v2103 = vld [vmem:[%s153 + $0x170] sm:$0xff]
        %v2104 = vld [vmem:[%s153 + $0x178] sm:$0xff]
        %v2105 = vlaneseq
        %v2106 = vshrl.u32 %v2105, 7
        %v2107 = vsub.s32 2, %v2106
        %v2108 = vrot.slane %v1940, %v2107
        %2109 = vmatprep.subr.mxu0 0.0
        %2110 = vmatpush1.msra.mxu0 %v2103
        %2111 = vmatprep.subr.mxu0 0.0
        %2112 = vmatpush1.msra.mxu0 %v2104
        %2113 = vmatprep.subr.mxu0 0.0
        %2114 = vmatpush1.msra.mxu0 0.0
        %2115 = vmatprep.subr.mxu0 0.0
        %2116 = vmatpush1.msra.mxu0 0.0
        %2117 = vmatprep.subr.mxu0 0.0
        %2118 = vmatpush1.msra.mxu0 0.0
        %2119 = vmatprep.subr.mxu0 0.0
        %2120 = vmatpush1.msra.mxu0 0.0
        %2121 = vmatprep.subr.mxu0 0.0
        %2122 = vmatpush1.msra.mxu0 0.0
        %2123 = vmatprep.subr.mxu0 0.0
        %2124 = vmatpush1.msra.mxu0 0.0
        %2125 = vmatprep.subr.mxu0 0.0
        %2126 = vmatpush1.msra.mxu0 0.0
        %2127 = vmatprep.subr.mxu0 0.0
        %2128 = vmatpush1.msra.mxu0 0.0
        %2129 = vmatprep.subr.mxu0 0.0
        %2130 = vmatpush1.msra.mxu0 0.0
        %2131 = vmatprep.subr.mxu0 0.0
        %2132 = vmatpush1.msra.mxu0 0.0
        %2133 = vmatprep.subr.mxu0 0.0
        %2134 = vmatpush1.msra.mxu0 0.0
        %2135 = vmatprep.subr.mxu0 0.0
        %2136 = vmatpush1.msra.mxu0 0.0
        %2137 = vmatprep.subr.mxu0 0.0
        %2138 = vmatpush1.msra.mxu0 0.0
        %2139 = vmatprep.subr.mxu0 0.0
        %2140 = vmatpush1.msra.mxu0 0.0
        %2141 = vmatprep.subr.mxu0 0.0
        %2142 = vmatpush1.msra.mxu0 0.0
        %2143 = vmatprep.subr.mxu0 0.0
        %2144 = vmatpush1.msra.mxu0 0.0
        %2145 = vmatprep.subr.mxu0 0.0
        %2146 = vmatpush1.msra.mxu0 0.0
        %2147 = vmatprep.subr.mxu0 0.0
        %2148 = vmatpush1.msra.mxu0 0.0
        %2149 = vmatprep.subr.mxu0 0.0
        %2150 = vmatpush1.msra.mxu0 0.0
        %2151 = vmatprep.subr.mxu0 0.0
        %2152 = vmatpush1.msra.mxu0 0.0
        %2153 = vmatprep.subr.mxu0 0.0
        %2154 = vmatpush1.msra.mxu0 0.0
        %2155 = vmatprep.subr.mxu0 0.0
        %2156 = vmatpush1.msra.mxu0 0.0
        %2157 = vmatprep.subr.mxu0 0.0
        %2158 = vmatpush1.msra.mxu0 0.0
        %2159 = vmatprep.subr.mxu0 0.0
        %2160 = vmatpush1.msra.mxu0 0.0
        %2161 = vmatprep.subr.mxu0 0.0
        %2162 = vmatpush1.msra.mxu0 0.0
        %2163 = vmatprep.subr.mxu0 0.0
        %2164 = vmatpush1.msra.mxu0 0.0
        %2165 = vmatprep.subr.mxu0 0.0
        %2166 = vmatpush1.msra.mxu0 0.0
        %2167 = vmatprep.subr.mxu0 0.0
        %2168 = vmatpush1.msra.mxu0 0.0
        %2169 = vmatprep.subr.mxu0 0.0
        %2170 = vmatpush1.msra.mxu0 0.0
        %2171 = vmatprep.subr.mxu0 0.0
        %2172 = vmatpush1.msra.mxu0 0.0
        %2173 = vmatprep.mubr.f32.mxu0 0.0
        %2174 = vmatmul.mubr.f32.gmra.mrb[0].mxu0 %v574
        %v2175 = vpop.f32.mrb[0].mxu0
        %v2176 = vadd.f32 %v2108, %v2175
        %v2177 = vpop.f32.mrb[0].mxu0
        %2178 = vmatprep.mubr.f32.mxu0 0.0
        %2179 = vmatmul.mubr.f32.gmra.mrb[0].mxu0 %v576
        %v2180 = vpop.f32.mrb[0].mxu0
        %v2181 = vadd.f32 %v2108, %v2180
        %v2182 = vpop.f32.mrb[0].mxu0
        %2183 = vdwg.mxu0
        %v2185 = vsel %vm1141, %v2014, 0
        %v2188 = vsel %vm1141, %v2019, 0
        %v2191 = vsel %vm1141, %v2095, 0
        %v2194 = vsel %vm1141, %v2100, 0
        %2196 = vmatprep.subr.mxu0 0.0
        %2197 = vmatpush1.xpose.msra.mxu0 %v2191
        %2198 = vmatprep.subr.mxu0 0.0
        %2199 = vmatpush1.xpose.msra.mxu0 %v2194
        %2200 = vmatprep.subr.mxu0 0.0
        %2201 = vmatpush1.xpose.msra.mxu0 0.0
        %2202 = vmatprep.subr.mxu0 0.0
        %2203 = vmatpush1.xpose.msra.mxu0 0.0
        %2204 = vmatprep.subr.mxu0 0.0
        %2205 = vmatpush1.xpose.msra.mxu0 0.0
        %2206 = vmatprep.subr.mxu0 0.0
        %2207 = vmatpush1.xpose.msra.mxu0 0.0
        %2208 = vmatprep.subr.mxu0 0.0
        %2209 = vmatpush1.xpose.msra.mxu0 0.0
        %2210 = vmatprep.subr.mxu0 0.0
        %2211 = vmatpush1.xpose.msra.mxu0 0.0
        %2212 = vmatprep.subr.mxu0 0.0
        %2213 = vmatpush1.xpose.msra.mxu0 0.0
        %2214 = vmatprep.subr.mxu0 0.0
        %2215 = vmatpush1.xpose.msra.mxu0 0.0
        %2216 = vmatprep.subr.mxu0 0.0
        %2217 = vmatpush1.xpose.msra.mxu0 0.0
        %2218 = vmatprep.subr.mxu0 0.0
        %2219 = vmatpush1.xpose.msra.mxu0 0.0
        %2220 = vmatprep.subr.mxu0 0.0
        %2221 = vmatpush1.xpose.msra.mxu0 0.0
        %2222 = vmatprep.subr.mxu0 0.0
        %2223 = vmatpush1.xpose.msra.mxu0 0.0
        %2224 = vmatprep.subr.mxu0 0.0
        %2225 = vmatpush1.xpose.msra.mxu0 0.0
        %2226 = vmatprep.subr.mxu0 0.0
        %2227 = vmatpush1.xpose.msra.mxu0 0.0
        %2228 = vmatprep.subr.mxu0 0.0
        %2229 = vmatpush1.xpose.msra.mxu0 0.0
        %2230 = vmatprep.subr.mxu0 0.0
        %2231 = vmatpush1.xpose.msra.mxu0 0.0
        %2232 = vmatprep.subr.mxu0 0.0
        %2233 = vmatpush1.xpose.msra.mxu0 0.0
        %2234 = vmatprep.subr.mxu0 0.0
        %2235 = vmatpush1.xpose.msra.mxu0 0.0
        %2236 = vmatprep.subr.mxu0 0.0
        %2237 = vmatpush1.xpose.msra.mxu0 0.0
        %2238 = vmatprep.subr.mxu0 0.0
        %2239 = vmatpush1.xpose.msra.mxu0 0.0
        %2240 = vmatprep.subr.mxu0 0.0
        %2241 = vmatpush1.xpose.msra.mxu0 0.0
        %2242 = vmatprep.subr.mxu0 0.0
        %2243 = vmatpush1.xpose.msra.mxu0 0.0
        %2244 = vmatprep.subr.mxu0 0.0
        %2245 = vmatpush1.xpose.msra.mxu0 0.0
        %2246 = vmatprep.subr.mxu0 0.0
        %2247 = vmatpush1.xpose.msra.mxu0 0.0
        %2248 = vmatprep.subr.mxu0 0.0
        %2249 = vmatpush1.xpose.msra.mxu0 0.0
        %2250 = vmatprep.subr.mxu0 0.0
        %2251 = vmatpush1.xpose.msra.mxu0 0.0
        %2252 = vmatprep.subr.mxu0 0.0
        %2253 = vmatpush1.xpose.msra.mxu0 0.0
        %2254 = vmatprep.subr.mxu0 0.0
        %2255 = vmatpush1.xpose.msra.mxu0 0.0
        %2256 = vmatprep.subr.mxu0 0.0
        %2257 = vmatpush1.xpose.msra.mxu0 0.0
        %2258 = vmatprep.subr.mxu0 0.0
        %2259 = vmatpush1.xpose.msra.mxu0 0.0
        %2260 = vmatprep.mubr.f32.mxu0 0.0
        %2261 = vmatmul.mubr.f32.gmra.mrb[0].mxu0 %v2185
        %v2262 = vpop.f32.mrb[0].mxu0
        %v2263 = vadd.f32 %v222, %v2262
        %v2264 = vpop.f32.mrb[0].mxu0
        %2265 = vmatprep.mubr.f32.mxu0 0.0
        %2266 = vmatmul.mubr.f32.gmra.mrb[0].mxu0 %v2188
        %v2267 = vpop.f32.mrb[0].mxu0
        %v2268 = vadd.f32 %v223, %v2267
        %v2269 = vpop.f32.mrb[0].mxu0
        %2270 = vdwg.mxu0
        %v2271 = vsel %vm350, %v2263, -inf
        %2272 = vmax.xlane.f32.xlu0 %v2271
        %v2273 = vpop.xlane.xlu0 %2272
        %v2274 = vsel %vm350, %v2268, -inf
        %2275 = vmax.xlane.f32.xlu0 %v2274
        %v2276 = vpop.xlane.xlu0 %2275
        %v2277 = vsub.f32 %v2263, %v2273
        %v2278 = vsub.f32 %v2268, %v2276
        %v2279 = vmul.f32 %v2277, 1.442695
        %v2280 = vpow.pop %v2279
        %v2281 = vmul.f32 %v2278, 1.442695
        %v2282 = vpow.pop %v2281
        %v2283 = vsel %vm350, %v2280, 0.0
        %2284 = vadd.xlane.f32.xlu0 %v2283
        %v2285 = vpop.xlane.xlu0 %2284
        %v2286 = vsel %vm350, %v2282, 0.0
        %2287 = vadd.xlane.f32.xlu0 %v2286
        %v2288 = vpop.xlane.xlu0 %2287
        %v2289 = vrcp.pop %v2285
        %v2290 = vrcp.pop %v2288
        %v2291 = vmul.f32 %v2280, %v2289
        %v2292 = vmul.f32 %v2282, %v2290
        %v2294 = vsel %vm350, %v2291, 0
        %v2297 = vsel %vm350, %v2292, 0
        %2299 = vmatprep.subr.mxu0 0.0
        %2300 = vmatpush1.msra.mxu0 %v2176
        %2301 = vmatprep.subr.mxu0 0.0
        %2302 = vmatpush1.msra.mxu0 %v2181
        %2303 = vmatprep.subr.mxu0 0.0
        %2304 = vmatpush1.msra.mxu0 0.0
        %2305 = vmatprep.subr.mxu0 0.0
        %2306 = vmatpush1.msra.mxu0 0.0
        %2307 = vmatprep.subr.mxu0 0.0
        %2308 = vmatpush1.msra.mxu0 0.0
        %2309 = vmatprep.subr.mxu0 0.0
        %2310 = vmatpush1.msra.mxu0 0.0
        %2311 = vmatprep.subr.mxu0 0.0
        %2312 = vmatpush1.msra.mxu0 0.0
        %2313 = vmatprep.subr.mxu0 0.0
        %2314 = vmatpush1.msra.mxu0 0.0
        %2315 = vmatprep.subr.mxu0 0.0
        %2316 = vmatpush1.msra.mxu0 0.0
        %2317 = vmatprep.subr.mxu0 0.0
        %2318 = vmatpush1.msra.mxu0 0.0
        %2319 = vmatprep.subr.mxu0 0.0
        %2320 = vmatpush1.msra.mxu0 0.0
        %2321 = vmatprep.subr.mxu0 0.0
        %2322 = vmatpush1.msra.mxu0 0.0
        %2323 = vmatprep.subr.mxu0 0.0
        %2324 = vmatpush1.msra.mxu0 0.0
        %2325 = vmatprep.subr.mxu0 0.0
        %2326 = vmatpush1.msra.mxu0 0.0
        %2327 = vmatprep.subr.mxu0 0.0
        %2328 = vmatpush1.msra.mxu0 0.0
        %2329 = vmatprep.subr.mxu0 0.0
        %2330 = vmatpush1.msra.mxu0 0.0
        %2331 = vmatprep.subr.mxu0 0.0
        %2332 = vmatpush1.msra.mxu0 0.0
        %2333 = vmatprep.subr.mxu0 0.0
        %2334 = vmatpush1.msra.mxu0 0.0
        %2335 = vmatprep.subr.mxu0 0.0
        %2336 = vmatpush1.msra.mxu0 0.0
        %2337 = vmatprep.subr.mxu0 0.0
        %2338 = vmatpush1.msra.mxu0 0.0
        %2339 = vmatprep.subr.mxu0 0.0
        %2340 = vmatpush1.msra.mxu0 0.0
        %2341 = vmatprep.subr.mxu0 0.0
        %2342 = vmatpush1.msra.mxu0 0.0
        %2343 = vmatprep.subr.mxu0 0.0
        %2344 = vmatpush1.msra.mxu0 0.0
        %2345 = vmatprep.subr.mxu0 0.0
        %2346 = vmatpush1.msra.mxu0 0.0
        %2347 = vmatprep.subr.mxu0 0.0
        %2348 = vmatpush1.msra.mxu0 0.0
        %2349 = vmatprep.subr.mxu0 0.0
        %2350 = vmatpush1.msra.mxu0 0.0
        %2351 = vmatprep.subr.mxu0 0.0
        %2352 = vmatpush1.msra.mxu0 0.0
        %2353 = vmatprep.subr.mxu0 0.0
        %2354 = vmatpush1.msra.mxu0 0.0
        %2355 = vmatprep.subr.mxu0 0.0
        %2356 = vmatpush1.msra.mxu0 0.0
        %2357 = vmatprep.subr.mxu0 0.0
        %2358 = vmatpush1.msra.mxu0 0.0
        %2359 = vmatprep.subr.mxu0 0.0
        %2360 = vmatpush1.msra.mxu0 0.0
        %2361 = vmatprep.subr.mxu0 0.0
        %2362 = vmatpush1.msra.mxu0 0.0
        %2363 = vmatprep.mubr.f32.mxu0 0.0
        %2364 = vmatmul.mubr.f32.gmra.mrb[0].mxu0 %v2294
        %v2365 = vpop.f32.mrb[0].mxu0
        %v2366 = vadd.f32 0.0, %v2365
        %v2367 = vpop.f32.mrb[0].mxu0
        %2368 = vmatprep.mubr.f32.mxu0 0.0
        %2369 = vmatmul.mubr.f32.gmra.mrb[0].mxu0 %v2297
        %v2370 = vpop.f32.mrb[0].mxu0
        %v2371 = vadd.f32 0.0, %v2370
        %v2372 = vpop.f32.mrb[0].mxu0
        %2373 = vdwg.mxu0
        %v2374 = vld [vmem:[%s153 + $0x188] sm:$0xf]
        %v2376 = vsel %vm1141, %v2366, 0
        %v2379 = vsel %vm1141, %v2371, 0
        %v2382 = vsel %vm237, %v2374, 0
        %2384 = vmatprep.subr.mxu0 0.0
        %2385 = vmatpush1.msra.mxu0 %v2382
        %2386 = vmatprep.subr.mxu0 0.0
        %2387 = vmatpush1.msra.mxu0 0.0
        %2388 = vmatprep.subr.mxu0 0.0
        %2389 = vmatpush1.msra.mxu0 0.0
        %2390 = vmatprep.subr.mxu0 0.0
        %2391 = vmatpush1.msra.mxu0 0.0
        %2392 = vmatprep.subr.mxu0 0.0
        %2393 = vmatpush1.msra.mxu0 0.0
        %2394 = vmatprep.subr.mxu0 0.0
        %2395 = vmatpush1.msra.mxu0 0.0
        %2396 = vmatprep.subr.mxu0 0.0
        %2397 = vmatpush1.msra.mxu0 0.0
        %2398 = vmatprep.subr.mxu0 0.0
        %2399 = vmatpush1.msra.mxu0 0.0
        %2400 = vmatprep.subr.mxu0 0.0
        %2401 = vmatpush1.msra.mxu0 0.0
        %2402 = vmatprep.subr.mxu0 0.0
        %2403 = vmatpush1.msra.mxu0 0.0
        %2404 = vmatprep.subr.mxu0 0.0
        %2405 = vmatpush1.msra.mxu0 0.0
        %2406 = vmatprep.subr.mxu0 0.0
        %2407 = vmatpush1.msra.mxu0 0.0
        %2408 = vmatprep.subr.mxu0 0.0
        %2409 = vmatpush1.msra.mxu0 0.0
        %2410 = vmatprep.subr.mxu0 0.0
        %2411 = vmatpush1.msra.mxu0 0.0
        %2412 = vmatprep.subr.mxu0 0.0
        %2413 = vmatpush1.msra.mxu0 0.0
        %2414 = vmatprep.subr.mxu0 0.0
        %2415 = vmatpush1.msra.mxu0 0.0
        %2416 = vmatprep.subr.mxu0 0.0
        %2417 = vmatpush1.msra.mxu0 0.0
        %2418 = vmatprep.subr.mxu0 0.0
        %2419 = vmatpush1.msra.mxu0 0.0
        %2420 = vmatprep.subr.mxu0 0.0
        %2421 = vmatpush1.msra.mxu0 0.0
        %2422 = vmatprep.subr.mxu0 0.0
        %2423 = vmatpush1.msra.mxu0 0.0
        %2424 = vmatprep.subr.mxu0 0.0
        %2425 = vmatpush1.msra.mxu0 0.0
        %2426 = vmatprep.subr.mxu0 0.0
        %2427 = vmatpush1.msra.mxu0 0.0
        %2428 = vmatprep.subr.mxu0 0.0
        %2429 = vmatpush1.msra.mxu0 0.0
        %2430 = vmatprep.subr.mxu0 0.0
        %2431 = vmatpush1.msra.mxu0 0.0
        %2432 = vmatprep.subr.mxu0 0.0
        %2433 = vmatpush1.msra.mxu0 0.0
        %2434 = vmatprep.subr.mxu0 0.0
        %2435 = vmatpush1.msra.mxu0 0.0
        %2436 = vmatprep.subr.mxu0 0.0
        %2437 = vmatpush1.msra.mxu0 0.0
        %2438 = vmatprep.subr.mxu0 0.0
        %2439 = vmatpush1.msra.mxu0 0.0
        %2440 = vmatprep.subr.mxu0 0.0
        %2441 = vmatpush1.msra.mxu0 0.0
        %2442 = vmatprep.subr.mxu0 0.0
        %2443 = vmatpush1.msra.mxu0 0.0
        %2444 = vmatprep.subr.mxu0 0.0
        %2445 = vmatpush1.msra.mxu0 0.0
        %2446 = vmatprep.subr.mxu0 0.0
        %2447 = vmatpush1.msra.mxu0 0.0
        %2448 = vmatprep.mubr.f32.mxu0 0.0
        %2449 = vmatmul.mubr.f32.gmra.mrb[0].mxu0 %v2376
        %v2450 = vpop.f32.mrb[0].mxu0
        %v2451 = vadd.f32 0.0, %v2450
        %v2452 = vpop.f32.mrb[0].mxu0
        %2453 = vmatprep.mubr.f32.mxu0 0.0
        %2454 = vmatmul.mubr.f32.gmra.mrb[0].mxu0 %v2379
        %v2455 = vpop.f32.mrb[0].mxu0
        %v2456 = vadd.f32 0.0, %v2455
        %v2457 = vpop.f32.mrb[0].mxu0
        %2458 = vdwg.mxu0
        %v2459 = vadd.f32 %v1938, %v2451
        %v2460 = vadd.f32 %v1939, %v2456
        %v2461 = vld [vmem:[%s153 + $0x1c0] sm:$0x7]
        %v2462 = vld [vmem:[%s153 + $0x190] sm:$0xff]
        %v2463 = vld [vmem:[%s153 + $0x198] sm:$0xff]
        %v2464 = vlaneseq
        %v2465 = vshrl.u32 %v2464, 7
        %v2466 = vsub.s32 0, %v2465
        %v2467 = vrot.slane %v2461, %v2466
        %2468 = vmatprep.subr.mxu0 0.0
        %2469 = vmatpush1.msra.mxu0 %v2462
        %2470 = vmatprep.subr.mxu0 0.0
        %2471 = vmatpush1.msra.mxu0 %v2463
        %2472 = vmatprep.subr.mxu0 0.0
        %2473 = vmatpush1.msra.mxu0 0.0
        %2474 = vmatprep.subr.mxu0 0.0
        %2475 = vmatpush1.msra.mxu0 0.0
        %2476 = vmatprep.subr.mxu0 0.0
        %2477 = vmatpush1.msra.mxu0 0.0
        %2478 = vmatprep.subr.mxu0 0.0
        %2479 = vmatpush1.msra.mxu0 0.0
        %2480 = vmatprep.subr.mxu0 0.0
        %2481 = vmatpush1.msra.mxu0 0.0
        %2482 = vmatprep.subr.mxu0 0.0
        %2483 = vmatpush1.msra.mxu0 0.0
        %2484 = vmatprep.subr.mxu0 0.0
        %2485 = vmatpush1.msra.mxu0 0.0
        %2486 = vmatprep.subr.mxu0 0.0
        %2487 = vmatpush1.msra.mxu0 0.0
        %2488 = vmatprep.subr.mxu0 0.0
        %2489 = vmatpush1.msra.mxu0 0.0
        %2490 = vmatprep.subr.mxu0 0.0
        %2491 = vmatpush1.msra.mxu0 0.0
        %2492 = vmatprep.subr.mxu0 0.0
        %2493 = vmatpush1.msra.mxu0 0.0
        %2494 = vmatprep.subr.mxu0 0.0
        %2495 = vmatpush1.msra.mxu0 0.0
        %2496 = vmatprep.subr.mxu0 0.0
        %2497 = vmatpush1.msra.mxu0 0.0
        %2498 = vmatprep.subr.mxu0 0.0
        %2499 = vmatpush1.msra.mxu0 0.0
        %2500 = vmatprep.subr.mxu0 0.0
        %2501 = vmatpush1.msra.mxu0 0.0
        %2502 = vmatprep.subr.mxu0 0.0
        %2503 = vmatpush1.msra.mxu0 0.0
        %2504 = vmatprep.subr.mxu0 0.0
        %2505 = vmatpush1.msra.mxu0 0.0
        %2506 = vmatprep.subr.mxu0 0.0
        %2507 = vmatpush1.msra.mxu0 0.0
        %2508 = vmatprep.subr.mxu0 0.0
        %2509 = vmatpush1.msra.mxu0 0.0
        %2510 = vmatprep.subr.mxu0 0.0
        %2511 = vmatpush1.msra.mxu0 0.0
        %2512 = vmatprep.subr.mxu0 0.0
        %2513 = vmatpush1.msra.mxu0 0.0
        %2514 = vmatprep.subr.mxu0 0.0
        %2515 = vmatpush1.msra.mxu0 0.0
        %2516 = vmatprep.subr.mxu0 0.0
        %2517 = vmatpush1.msra.mxu0 0.0
        %2518 = vmatprep.subr.mxu0 0.0
        %2519 = vmatpush1.msra.mxu0 0.0
        %2520 = vmatprep.subr.mxu0 0.0
        %2521 = vmatpush1.msra.mxu0 0.0
        %2522 = vmatprep.subr.mxu0 0.0
        %2523 = vmatpush1.msra.mxu0 0.0
        %2524 = vmatprep.subr.mxu0 0.0
        %2525 = vmatpush1.msra.mxu0 0.0
        %2526 = vmatprep.subr.mxu0 0.0
        %2527 = vmatpush1.msra.mxu0 0.0
        %2528 = vmatprep.subr.mxu0 0.0
        %2529 = vmatpush1.msra.mxu0 0.0
        %2530 = vmatprep.subr.mxu0 0.0
        %2531 = vmatpush1.msra.mxu0 0.0
        %2532 = vmatprep.mubr.f32.mxu0 0.0
        %2533 = vmatmul.mubr.f32.gmra.mrb[0].mxu0 %v574
        %v2534 = vpop.f32.mrb[0].mxu0
        %v2535 = vadd.f32 %v2467, %v2534
        %v2536 = vpop.f32.mrb[0].mxu0
        %2537 = vmatprep.mubr.f32.mxu0 0.0
        %2538 = vmatmul.mubr.f32.gmra.mrb[0].mxu0 %v576
        %v2539 = vpop.f32.mrb[0].mxu0
        %v2540 = vadd.f32 %v2467, %v2539
        %v2541 = vpop.f32.mrb[0].mxu0
        %2542 = vdwg.mxu0
        %v2543 = vld [vmem:[%s153 + $0x1a0] sm:$0xff]
        %v2544 = vld [vmem:[%s153 + $0x1a8] sm:$0xff]
        %v2545 = vlaneseq
        %v2546 = vshrl.u32 %v2545, 7
        %v2547 = vsub.s32 1, %v2546
        %v2548 = vrot.slane %v2461, %v2547
        %2549 = vmatprep.subr.mxu0 0.0
        %2550 = vmatpush1.msra.mxu0 %v2543
        %2551 = vmatprep.subr.mxu0 0.0
        %2552 = vmatpush1.msra.mxu0 %v2544
        %2553 = vmatprep.subr.mxu0 0.0
        %2554 = vmatpush1.msra.mxu0 0.0
        %2555 = vmatprep.subr.mxu0 0.0
        %2556 = vmatpush1.msra.mxu0 0.0
        %2557 = vmatprep.subr.mxu0 0.0
        %2558 = vmatpush1.msra.mxu0 0.0
        %2559 = vmatprep.subr.mxu0 0.0
        %2560 = vmatpush1.msra.mxu0 0.0
        %2561 = vmatprep.subr.mxu0 0.0
        %2562 = vmatpush1.msra.mxu0 0.0
        %2563 = vmatprep.subr.mxu0 0.0
        %2564 = vmatpush1.msra.mxu0 0.0
        %2565 = vmatprep.subr.mxu0 0.0
        %2566 = vmatpush1.msra.mxu0 0.0
        %2567 = vmatprep.subr.mxu0 0.0
        %2568 = vmatpush1.msra.mxu0 0.0
        %2569 = vmatprep.subr.mxu0 0.0
        %2570 = vmatpush1.msra.mxu0 0.0
        %2571 = vmatprep.subr.mxu0 0.0
        %2572 = vmatpush1.msra.mxu0 0.0
        %2573 = vmatprep.subr.mxu0 0.0
        %2574 = vmatpush1.msra.mxu0 0.0
        %2575 = vmatprep.subr.mxu0 0.0
        %2576 = vmatpush1.msra.mxu0 0.0
        %2577 = vmatprep.subr.mxu0 0.0
        %2578 = vmatpush1.msra.mxu0 0.0
        %2579 = vmatprep.subr.mxu0 0.0
        %2580 = vmatpush1.msra.mxu0 0.0
        %2581 = vmatprep.subr.mxu0 0.0
        %2582 = vmatpush1.msra.mxu0 0.0
        %2583 = vmatprep.subr.mxu0 0.0
        %2584 = vmatpush1.msra.mxu0 0.0
        %2585 = vmatprep.subr.mxu0 0.0
        %2586 = vmatpush1.msra.mxu0 0.0
        %2587 = vmatprep.subr.mxu0 0.0
        %2588 = vmatpush1.msra.mxu0 0.0
        %2589 = vmatprep.subr.mxu0 0.0
        %2590 = vmatpush1.msra.mxu0 0.0
        %2591 = vmatprep.subr.mxu0 0.0
        %2592 = vmatpush1.msra.mxu0 0.0
        %2593 = vmatprep.subr.mxu0 0.0
        %2594 = vmatpush1.msra.mxu0 0.0
        %2595 = vmatprep.subr.mxu0 0.0
        %2596 = vmatpush1.msra.mxu0 0.0
        %2597 = vmatprep.subr.mxu0 0.0
        %2598 = vmatpush1.msra.mxu0 0.0
        %2599 = vmatprep.subr.mxu0 0.0
        %2600 = vmatpush1.msra.mxu0 0.0
        %2601 = vmatprep.subr.mxu0 0.0
        %2602 = vmatpush1.msra.mxu0 0.0
        %2603 = vmatprep.subr.mxu0 0.0
        %2604 = vmatpush1.msra.mxu0 0.0
        %2605 = vmatprep.subr.mxu0 0.0
        %2606 = vmatpush1.msra.mxu0 0.0
        %2607 = vmatprep.subr.mxu0 0.0
        %2608 = vmatpush1.msra.mxu0 0.0
        %2609 = vmatprep.subr.mxu0 0.0
        %2610 = vmatpush1.msra.mxu0 0.0
        %2611 = vmatprep.subr.mxu0 0.0
        %2612 = vmatpush1.msra.mxu0 0.0
        %2613 = vmatprep.mubr.f32.mxu0 0.0
        %2614 = vmatmul.mubr.f32.gmra.mrb[0].mxu0 %v574
        %v2615 = vpop.f32.mrb[0].mxu0
        %v2616 = vadd.f32 %v2548, %v2615
        %v2617 = vpop.f32.mrb[0].mxu0
        %2618 = vmatprep.mubr.f32.mxu0 0.0
        %2619 = vmatmul.mubr.f32.gmra.mrb[0].mxu0 %v576
        %v2620 = vpop.f32.mrb[0].mxu0
        %v2621 = vadd.f32 %v2548, %v2620
        %v2622 = vpop.f32.mrb[0].mxu0
        %2623 = vdwg.mxu0
        %v2624 = vld [vmem:[%s153 + $0x1b0] sm:$0xff]
        %v2625 = vld [vmem:[%s153 + $0x1b8] sm:$0xff]
        %v2626 = vlaneseq
        %v2627 = vshrl.u32 %v2626, 7
        %v2628 = vsub.s32 2, %v2627
        %v2629 = vrot.slane %v2461, %v2628
        %2630 = vmatprep.subr.mxu0 0.0
        %2631 = vmatpush1.msra.mxu0 %v2624
        %2632 = vmatprep.subr.mxu0 0.0
        %2633 = vmatpush1.msra.mxu0 %v2625
        %2634 = vmatprep.subr.mxu0 0.0
        %2635 = vmatpush1.msra.mxu0 0.0
        %2636 = vmatprep.subr.mxu0 0.0
        %2637 = vmatpush1.msra.mxu0 0.0
        %2638 = vmatprep.subr.mxu0 0.0
        %2639 = vmatpush1.msra.mxu0 0.0
        %2640 = vmatprep.subr.mxu0 0.0
        %2641 = vmatpush1.msra.mxu0 0.0
        %2642 = vmatprep.subr.mxu0 0.0
        %2643 = vmatpush1.msra.mxu0 0.0
        %2644 = vmatprep.subr.mxu0 0.0
        %2645 = vmatpush1.msra.mxu0 0.0
        %2646 = vmatprep.subr.mxu0 0.0
        %2647 = vmatpush1.msra.mxu0 0.0
        %2648 = vmatprep.subr.mxu0 0.0
        %2649 = vmatpush1.msra.mxu0 0.0
        %2650 = vmatprep.subr.mxu0 0.0
        %2651 = vmatpush1.msra.mxu0 0.0
        %2652 = vmatprep.subr.mxu0 0.0
        %2653 = vmatpush1.msra.mxu0 0.0
        %2654 = vmatprep.subr.mxu0 0.0
        %2655 = vmatpush1.msra.mxu0 0.0
        %2656 = vmatprep.subr.mxu0 0.0
        %2657 = vmatpush1.msra.mxu0 0.0
        %2658 = vmatprep.subr.mxu0 0.0
        %2659 = vmatpush1.msra.mxu0 0.0
        %2660 = vmatprep.subr.mxu0 0.0
        %2661 = vmatpush1.msra.mxu0 0.0
        %2662 = vmatprep.subr.mxu0 0.0
        %2663 = vmatpush1.msra.mxu0 0.0
        %2664 = vmatprep.subr.mxu0 0.0
        %2665 = vmatpush1.msra.mxu0 0.0
        %2666 = vmatprep.subr.mxu0 0.0
        %2667 = vmatpush1.msra.mxu0 0.0
        %2668 = vmatprep.subr.mxu0 0.0
        %2669 = vmatpush1.msra.mxu0 0.0
        %2670 = vmatprep.subr.mxu0 0.0
        %2671 = vmatpush1.msra.mxu0 0.0
        %2672 = vmatprep.subr.mxu0 0.0
        %2673 = vmatpush1.msra.mxu0 0.0
        %2674 = vmatprep.subr.mxu0 0.0
        %2675 = vmatpush1.msra.mxu0 0.0
        %2676 = vmatprep.subr.mxu0 0.0
        %2677 = vmatpush1.msra.mxu0 0.0
        %2678 = vmatprep.subr.mxu0 0.0
        %2679 = vmatpush1.msra.mxu0 0.0
        %2680 = vmatprep.subr.mxu0 0.0
        %2681 = vmatpush1.msra.mxu0 0.0
        %2682 = vmatprep.subr.mxu0 0.0
        %2683 = vmatpush1.msra.mxu0 0.0
        %2684 = vmatprep.subr.mxu0 0.0
        %2685 = vmatpush1.msra.mxu0 0.0
        %2686 = vmatprep.subr.mxu0 0.0
        %2687 = vmatpush1.msra.mxu0 0.0
        %2688 = vmatprep.subr.mxu0 0.0
        %2689 = vmatpush1.msra.mxu0 0.0
        %2690 = vmatprep.subr.mxu0 0.0
        %2691 = vmatpush1.msra.mxu0 0.0
        %2692 = vmatprep.subr.mxu0 0.0
        %2693 = vmatpush1.msra.mxu0 0.0
        %2694 = vmatprep.mubr.f32.mxu0 0.0
        %2695 = vmatmul.mubr.f32.gmra.mrb[0].mxu0 %v574
        %v2696 = vpop.f32.mrb[0].mxu0
        %v2697 = vadd.f32 %v2629, %v2696
        %v2698 = vpop.f32.mrb[0].mxu0
        %2699 = vmatprep.mubr.f32.mxu0 0.0
        %2700 = vmatmul.mubr.f32.gmra.mrb[0].mxu0 %v576
        %v2701 = vpop.f32.mrb[0].mxu0
        %v2702 = vadd.f32 %v2629, %v2701
        %v2703 = vpop.f32.mrb[0].mxu0
        %2704 = vdwg.mxu0
        %v2706 = vsel %vm1141, %v2535, 0
        %v2709 = vsel %vm1141, %v2540, 0
        %v2712 = vsel %vm1141, %v2616, 0
        %v2715 = vsel %vm1141, %v2621, 0
        %2717 = vmatprep.subr.mxu0 0.0
        %2718 = vmatpush1.xpose.msra.mxu0 %v2712
        %2719 = vmatprep.subr.mxu0 0.0
        %2720 = vmatpush1.xpose.msra.mxu0 %v2715
        %2721 = vmatprep.subr.mxu0 0.0
        %2722 = vmatpush1.xpose.msra.mxu0 0.0
        %2723 = vmatprep.subr.mxu0 0.0
        %2724 = vmatpush1.xpose.msra.mxu0 0.0
        %2725 = vmatprep.subr.mxu0 0.0
        %2726 = vmatpush1.xpose.msra.mxu0 0.0
        %2727 = vmatprep.subr.mxu0 0.0
        %2728 = vmatpush1.xpose.msra.mxu0 0.0
        %2729 = vmatprep.subr.mxu0 0.0
        %2730 = vmatpush1.xpose.msra.mxu0 0.0
        %2731 = vmatprep.subr.mxu0 0.0
        %2732 = vmatpush1.xpose.msra.mxu0 0.0
        %2733 = vmatprep.subr.mxu0 0.0
        %2734 = vmatpush1.xpose.msra.mxu0 0.0
        %2735 = vmatprep.subr.mxu0 0.0
        %2736 = vmatpush1.xpose.msra.mxu0 0.0
        %2737 = vmatprep.subr.mxu0 0.0
        %2738 = vmatpush1.xpose.msra.mxu0 0.0
        %2739 = vmatprep.subr.mxu0 0.0
        %2740 = vmatpush1.xpose.msra.mxu0 0.0
        %2741 = vmatprep.subr.mxu0 0.0
        %2742 = vmatpush1.xpose.msra.mxu0 0.0
        %2743 = vmatprep.subr.mxu0 0.0
        %2744 = vmatpush1.xpose.msra.mxu0 0.0
        %2745 = vmatprep.subr.mxu0 0.0
        %2746 = vmatpush1.xpose.msra.mxu0 0.0
        %2747 = vmatprep.subr.mxu0 0.0
        %2748 = vmatpush1.xpose.msra.mxu0 0.0
        %2749 = vmatprep.subr.mxu0 0.0
        %2750 = vmatpush1.xpose.msra.mxu0 0.0
        %2751 = vmatprep.subr.mxu0 0.0
        %2752 = vmatpush1.xpose.msra.mxu0 0.0
        %2753 = vmatprep.subr.mxu0 0.0
        %2754 = vmatpush1.xpose.msra.mxu0 0.0
        %2755 = vmatprep.subr.mxu0 0.0
        %2756 = vmatpush1.xpose.msra.mxu0 0.0
        %2757 = vmatprep.subr.mxu0 0.0
        %2758 = vmatpush1.xpose.msra.mxu0 0.0
        %2759 = vmatprep.subr.mxu0 0.0
        %2760 = vmatpush1.xpose.msra.mxu0 0.0
        %2761 = vmatprep.subr.mxu0 0.0
        %2762 = vmatpush1.xpose.msra.mxu0 0.0
        %2763 = vmatprep.subr.mxu0 0.0
        %2764 = vmatpush1.xpose.msra.mxu0 0.0
        %2765 = vmatprep.subr.mxu0 0.0
        %2766 = vmatpush1.xpose.msra.mxu0 0.0
        %2767 = vmatprep.subr.mxu0 0.0
        %2768 = vmatpush1.xpose.msra.mxu0 0.0
        %2769 = vmatprep.subr.mxu0 0.0
        %2770 = vmatpush1.xpose.msra.mxu0 0.0
        %2771 = vmatprep.subr.mxu0 0.0
        %2772 = vmatpush1.xpose.msra.mxu0 0.0
        %2773 = vmatprep.subr.mxu0 0.0
        %2774 = vmatpush1.xpose.msra.mxu0 0.0
        %2775 = vmatprep.subr.mxu0 0.0
        %2776 = vmatpush1.xpose.msra.mxu0 0.0
        %2777 = vmatprep.subr.mxu0 0.0
        %2778 = vmatpush1.xpose.msra.mxu0 0.0
        %2779 = vmatprep.subr.mxu0 0.0
        %2780 = vmatpush1.xpose.msra.mxu0 0.0
        %2781 = vmatprep.mubr.f32.mxu0 0.0
        %2782 = vmatmul.mubr.f32.gmra.mrb[0].mxu0 %v2706
        %v2783 = vpop.f32.mrb[0].mxu0
        %v2784 = vadd.f32 %v222, %v2783
        %v2785 = vpop.f32.mrb[0].mxu0
        %2786 = vmatprep.mubr.f32.mxu0 0.0
        %2787 = vmatmul.mubr.f32.gmra.mrb[0].mxu0 %v2709
        %v2788 = vpop.f32.mrb[0].mxu0
        %v2789 = vadd.f32 %v223, %v2788
        %v2790 = vpop.f32.mrb[0].mxu0
        %2791 = vdwg.mxu0
        %v2792 = vsel %vm350, %v2784, -inf
        %2793 = vmax.xlane.f32.xlu0 %v2792
        %v2794 = vpop.xlane.xlu0 %2793
        %v2795 = vsel %vm350, %v2789, -inf
        %2796 = vmax.xlane.f32.xlu0 %v2795
        %v2797 = vpop.xlane.xlu0 %2796
        %v2798 = vsub.f32 %v2784, %v2794
        %v2799 = vsub.f32 %v2789, %v2797
        %v2800 = vmul.f32 %v2798, 1.442695
        %v2801 = vpow.pop %v2800
        %v2802 = vmul.f32 %v2799, 1.442695
        %v2803 = vpow.pop %v2802
        %v2804 = vsel %vm350, %v2801, 0.0
        %2805 = vadd.xlane.f32.xlu0 %v2804
        %v2806 = vpop.xlane.xlu0 %2805
        %v2807 = vsel %vm350, %v2803, 0.0
        %2808 = vadd.xlane.f32.xlu0 %v2807
        %v2809 = vpop.xlane.xlu0 %2808
        %v2810 = vrcp.pop %v2806
        %v2811 = vrcp.pop %v2809
        %v2812 = vmul.f32 %v2801, %v2810
        %v2813 = vmul.f32 %v2803, %v2811
        %v2815 = vsel %vm350, %v2812, 0
        %v2818 = vsel %vm350, %v2813, 0
        %2820 = vmatprep.subr.mxu0 0.0
        %2821 = vmatpush1.msra.mxu0 %v2697
        %2822 = vmatprep.subr.mxu0 0.0
        %2823 = vmatpush1.msra.mxu0 %v2702
        %2824 = vmatprep.subr.mxu0 0.0
        %2825 = vmatpush1.msra.mxu0 0.0
        %2826 = vmatprep.subr.mxu0 0.0
        %2827 = vmatpush1.msra.mxu0 0.0
        %2828 = vmatprep.subr.mxu0 0.0
        %2829 = vmatpush1.msra.mxu0 0.0
        %2830 = vmatprep.subr.mxu0 0.0
        %2831 = vmatpush1.msra.mxu0 0.0
        %2832 = vmatprep.subr.mxu0 0.0
        %2833 = vmatpush1.msra.mxu0 0.0
        %2834 = vmatprep.subr.mxu0 0.0
        %2835 = vmatpush1.msra.mxu0 0.0
        %2836 = vmatprep.subr.mxu0 0.0
        %2837 = vmatpush1.msra.mxu0 0.0
        %2838 = vmatprep.subr.mxu0 0.0
        %2839 = vmatpush1.msra.mxu0 0.0
        %2840 = vmatprep.subr.mxu0 0.0
        %2841 = vmatpush1.msra.mxu0 0.0
        %2842 = vmatprep.subr.mxu0 0.0
        %2843 = vmatpush1.msra.mxu0 0.0
        %2844 = vmatprep.subr.mxu0 0.0
        %2845 = vmatpush1.msra.mxu0 0.0
        %2846 = vmatprep.subr.mxu0 0.0
        %2847 = vmatpush1.msra.mxu0 0.0
        %2848 = vmatprep.subr.mxu0 0.0
        %2849 = vmatpush1.msra.mxu0 0.0
        %2850 = vmatprep.subr.mxu0 0.0
        %2851 = vmatpush1.msra.mxu0 0.0
        %2852 = vmatprep.subr.mxu0 0.0
        %2853 = vmatpush1.msra.mxu0 0.0
        %2854 = vmatprep.subr.mxu0 0.0
        %2855 = vmatpush1.msra.mxu0 0.0
        %2856 = vmatprep.subr.mxu0 0.0
        %2857 = vmatpush1.msra.mxu0 0.0
        %2858 = vmatprep.subr.mxu0 0.0
        %2859 = vmatpush1.msra.mxu0 0.0
        %2860 = vmatprep.subr.mxu0 0.0
        %2861 = vmatpush1.msra.mxu0 0.0
        %2862 = vmatprep.subr.mxu0 0.0
        %2863 = vmatpush1.msra.mxu0 0.0
        %2864 = vmatprep.subr.mxu0 0.0
        %2865 = vmatpush1.msra.mxu0 0.0
        %2866 = vmatprep.subr.mxu0 0.0
        %2867 = vmatpush1.msra.mxu0 0.0
        %2868 = vmatprep.subr.mxu0 0.0
        %2869 = vmatpush1.msra.mxu0 0.0
        %2870 = vmatprep.subr.mxu0 0.0
        %2871 = vmatpush1.msra.mxu0 0.0
        %2872 = vmatprep.subr.mxu0 0.0
        %2873 = vmatpush1.msra.mxu0 0.0
        %2874 = vmatprep.subr.mxu0 0.0
        %2875 = vmatpush1.msra.mxu0 0.0
        %2876 = vmatprep.subr.mxu0 0.0
        %2877 = vmatpush1.msra.mxu0 0.0
        %2878 = vmatprep.subr.mxu0 0.0
        %2879 = vmatpush1.msra.mxu0 0.0
        %2880 = vmatprep.subr.mxu0 0.0
        %2881 = vmatpush1.msra.mxu0 0.0
        %2882 = vmatprep.subr.mxu0 0.0
        %2883 = vmatpush1.msra.mxu0 0.0
        %2884 = vmatprep.mubr.f32.mxu0 0.0
        %2885 = vmatmul.mubr.f32.gmra.mrb[0].mxu0 %v2815
        %v2886 = vpop.f32.mrb[0].mxu0
        %v2887 = vadd.f32 0.0, %v2886
        %v2888 = vpop.f32.mrb[0].mxu0
        %2889 = vmatprep.mubr.f32.mxu0 0.0
        %2890 = vmatmul.mubr.f32.gmra.mrb[0].mxu0 %v2818
        %v2891 = vpop.f32.mrb[0].mxu0
        %v2892 = vadd.f32 0.0, %v2891
        %v2893 = vpop.f32.mrb[0].mxu0
        %2894 = vdwg.mxu0
        %v2895 = vld [vmem:[%s153 + $0x1c8] sm:$0xf]
        %v2897 = vsel %vm1141, %v2887, 0
        %v2900 = vsel %vm1141, %v2892, 0
        %v2903 = vsel %vm237, %v2895, 0
        %2905 = vmatprep.subr.mxu0 0.0
        %2906 = vmatpush1.msra.mxu0 %v2903
        %2907 = vmatprep.subr.mxu0 0.0
        %2908 = vmatpush1.msra.mxu0 0.0
        %2909 = vmatprep.subr.mxu0 0.0
        %2910 = vmatpush1.msra.mxu0 0.0
        %2911 = vmatprep.subr.mxu0 0.0
        %2912 = vmatpush1.msra.mxu0 0.0
        %2913 = vmatprep.subr.mxu0 0.0
        %2914 = vmatpush1.msra.mxu0 0.0
        %2915 = vmatprep.subr.mxu0 0.0
        %2916 = vmatpush1.msra.mxu0 0.0
        %2917 = vmatprep.subr.mxu0 0.0
        %2918 = vmatpush1.msra.mxu0 0.0
        %2919 = vmatprep.subr.mxu0 0.0
        %2920 = vmatpush1.msra.mxu0 0.0
        %2921 = vmatprep.subr.mxu0 0.0
        %2922 = vmatpush1.msra.mxu0 0.0
        %2923 = vmatprep.subr.mxu0 0.0
        %2924 = vmatpush1.msra.mxu0 0.0
        %2925 = vmatprep.subr.mxu0 0.0
        %2926 = vmatpush1.msra.mxu0 0.0
        %2927 = vmatprep.subr.mxu0 0.0
        %2928 = vmatpush1.msra.mxu0 0.0
        %2929 = vmatprep.subr.mxu0 0.0
        %2930 = vmatpush1.msra.mxu0 0.0
        %2931 = vmatprep.subr.mxu0 0.0
        %2932 = vmatpush1.msra.mxu0 0.0
        %2933 = vmatprep.subr.mxu0 0.0
        %2934 = vmatpush1.msra.mxu0 0.0
        %2935 = vmatprep.subr.mxu0 0.0
        %2936 = vmatpush1.msra.mxu0 0.0
        %2937 = vmatprep.subr.mxu0 0.0
        %2938 = vmatpush1.msra.mxu0 0.0
        %2939 = vmatprep.subr.mxu0 0.0
        %2940 = vmatpush1.msra.mxu0 0.0
        %2941 = vmatprep.subr.mxu0 0.0
        %2942 = vmatpush1.msra.mxu0 0.0
        %2943 = vmatprep.subr.mxu0 0.0
        %2944 = vmatpush1.msra.mxu0 0.0
        %2945 = vmatprep.subr.mxu0 0.0
        %2946 = vmatpush1.msra.mxu0 0.0
        %2947 = vmatprep.subr.mxu0 0.0
        %2948 = vmatpush1.msra.mxu0 0.0
        %2949 = vmatprep.subr.mxu0 0.0
        %2950 = vmatpush1.msra.mxu0 0.0
        %2951 = vmatprep.subr.mxu0 0.0
        %2952 = vmatpush1.msra.mxu0 0.0
        %2953 = vmatprep.subr.mxu0 0.0
        %2954 = vmatpush1.msra.mxu0 0.0
        %2955 = vmatprep.subr.mxu0 0.0
        %2956 = vmatpush1.msra.mxu0 0.0
        %2957 = vmatprep.subr.mxu0 0.0
        %2958 = vmatpush1.msra.mxu0 0.0
        %2959 = vmatprep.subr.mxu0 0.0
        %2960 = vmatpush1.msra.mxu0 0.0
        %2961 = vmatprep.subr.mxu0 0.0
        %2962 = vmatpush1.msra.mxu0 0.0
        %2963 = vmatprep.subr.mxu0 0.0
        %2964 = vmatpush1.msra.mxu0 0.0
        %2965 = vmatprep.subr.mxu0 0.0
        %2966 = vmatpush1.msra.mxu0 0.0
        %2967 = vmatprep.subr.mxu0 0.0
        %2968 = vmatpush1.msra.mxu0 0.0
        %2969 = vmatprep.mubr.f32.mxu0 0.0
        %2970 = vmatmul.mubr.f32.gmra.mrb[0].mxu0 %v2897
        %v2971 = vpop.f32.mrb[0].mxu0
        %v2972 = vadd.f32 0.0, %v2971
        %v2973 = vpop.f32.mrb[0].mxu0
        %2974 = vmatprep.mubr.f32.mxu0 0.0
        %2975 = vmatmul.mubr.f32.gmra.mrb[0].mxu0 %v2900
        %v2976 = vpop.f32.mrb[0].mxu0
        %v2977 = vadd.f32 0.0, %v2976
        %v2978 = vpop.f32.mrb[0].mxu0
        %2979 = vdwg.mxu0
        %v2980 = vadd.f32 %v2459, %v2972
        %v2981 = vadd.f32 %v2460, %v2977
        %v2982 = vadd.f32 %v308, %v2980
        %v2983 = vadd.f32 %v313, %v2981
        %v2984 = vld [vmem:[%s153 + $0x218] sm:$0x1]
        %v2985 = vld [vmem:[%s153 + $0x220] sm:$0x1]
        %v2986 = vsel %vm350, %v2982, 0.0
        %2987 = vadd.xlane.f32.xlu0 %v2986
        %v2988 = vpop.xlane.xlu0 %2987
        %v2989 = vsel %vm350, %v2983, 0.0
        %2990 = vadd.xlane.f32.xlu0 %v2989
        %v2991 = vpop.xlane.xlu0 %2990
        %v2992 = vrcp.pop 16.0
        %v2993 = vmul.f32 %v2988, %v2992
        %v2994 = vmul.f32 %v2991, %v2992
        %v2995 = vsub.f32 %v2982, %v2993
        %v2996 = vsub.f32 %v2983, %v2994
        %v2997 = vmul.f32 %v2995, %v2995
        %v2998 = vmul.f32 %v2996, %v2996
        %v2999 = vsel %vm350, %v2997, 0.0
        %3000 = vadd.xlane.f32.xlu0 %v2999
        %v3001 = vpop.xlane.xlu0 %3000
        %v3002 = vsel %vm350, %v2998, 0.0
        %3003 = vadd.xlane.f32.xlu0 %v3002
        %v3004 = vpop.xlane.xlu0 %3003
        %v3005 = vmul.f32 %v3001, %v2992
        %v3006 = vmul.f32 %v3004, %v2992
        %v3007 = vadd.f32 %v3005, 1e-05
        %v3008 = vadd.f32 %v3006, 1e-05
        %v3009 = vrsqrt.pop %v3007
        %v3010 = vrsqrt.pop %v3008
        %v3011 = vmul.f32 %v2995, %v3009
        %v3012 = vmul.f32 %v2996, %v3010
        %v3013 = vlaneseq
        %v3014 = vshrl.u32 %v3013, 7
        %v3015 = vsub.s32 0, %v3014
        %v3016 = vrot.slane %v2984, %v3015
        %v3017 = vmul.f32 %v3011, %v3016
        %v3018 = vmul.f32 %v3012, %v3016
        %v3019 = vlaneseq
        %v3020 = vshrl.u32 %v3019, 7
        %v3021 = vsub.s32 0, %v3020
        %v3022 = vrot.slane %v2985, %v3021
        %v3023 = vadd.f32 %v3017, %v3022
        %v3024 = vadd.f32 %v3018, %v3022
        %v3025 = vld [vmem:[%s153 + $0x1d8] sm:$0xff]
        %v3026 = vld [vmem:[%s153 + $0x1e0] sm:$0xff]
        %v3027 = vld [vmem:[%s153 + $0x1e8] sm:$0x1]
        %v3028 = vlaneseq
        %v3029 = vshrl.u32 %v3028, 7
        %v3030 = vsub.s32 0, %v3029
        %v3031 = vrot.slane %v3027, %v3030
        %v3033 = vsel %vm350, %v3023, 0
        %v3036 = vsel %vm350, %v3024, 0
        %3038 = vmatprep.subr.mxu0 0.0
        %3039 = vmatpush1.msra.mxu0 %v3025
        %3040 = vmatprep.subr.mxu0 0.0
        %3041 = vmatpush1.msra.mxu0 %v3026
        %3042 = vmatprep.subr.mxu0 0.0
        %3043 = vmatpush1.msra.mxu0 0.0
        %3044 = vmatprep.subr.mxu0 0.0
        %3045 = vmatpush1.msra.mxu0 0.0
        %3046 = vmatprep.subr.mxu0 0.0
        %3047 = vmatpush1.msra.mxu0 0.0
        %3048 = vmatprep.subr.mxu0 0.0
        %3049 = vmatpush1.msra.mxu0 0.0
        %3050 = vmatprep.subr.mxu0 0.0
        %3051 = vmatpush1.msra.mxu0 0.0
        %3052 = vmatprep.subr.mxu0 0.0
        %3053 = vmatpush1.msra.mxu0 0.0
        %3054 = vmatprep.subr.mxu0 0.0
        %3055 = vmatpush1.msra.mxu0 0.0
        %3056 = vmatprep.subr.mxu0 0.0
        %3057 = vmatpush1.msra.mxu0 0.0
        %3058 = vmatprep.subr.mxu0 0.0
        %3059 = vmatpush1.msra.mxu0 0.0
        %3060 = vmatprep.subr.mxu0 0.0
        %3061 = vmatpush1.msra.mxu0 0.0
        %3062 = vmatprep.subr.mxu0 0.0
        %3063 = vmatpush1.msra.mxu0 0.0
        %3064 = vmatprep.subr.mxu0 0.0
        %3065 = vmatpush1.msra.mxu0 0.0
        %3066 = vmatprep.subr.mxu0 0.0
        %3067 = vmatpush1.msra.mxu0 0.0
        %3068 = vmatprep.subr.mxu0 0.0
        %3069 = vmatpush1.msra.mxu0 0.0
        %3070 = vmatprep.subr.mxu0 0.0
        %3071 = vmatpush1.msra.mxu0 0.0
        %3072 = vmatprep.subr.mxu0 0.0
        %3073 = vmatpush1.msra.mxu0 0.0
        %3074 = vmatprep.subr.mxu0 0.0
        %3075 = vmatpush1.msra.mxu0 0.0
        %3076 = vmatprep.subr.mxu0 0.0
        %3077 = vmatpush1.msra.mxu0 0.0
        %3078 = vmatprep.subr.mxu0 0.0
        %3079 = vmatpush1.msra.mxu0 0.0
        %3080 = vmatprep.subr.mxu0 0.0
        %3081 = vmatpush1.msra.mxu0 0.0
        %3082 = vmatprep.subr.mxu0 0.0
        %3083 = vmatpush1.msra.mxu0 0.0
        %3084 = vmatprep.subr.mxu0 0.0
        %3085 = vmatpush1.msra.mxu0 0.0
        %3086 = vmatprep.subr.mxu0 0.0
        %3087 = vmatpush1.msra.mxu0 0.0
        %3088 = vmatprep.subr.mxu0 0.0
        %3089 = vmatpush1.msra.mxu0 0.0
        %3090 = vmatprep.subr.mxu0 0.0
        %3091 = vmatpush1.msra.mxu0 0.0
        %3092 = vmatprep.subr.mxu0 0.0
        %3093 = vmatpush1.msra.mxu0 0.0
        %3094 = vmatprep.subr.mxu0 0.0
        %3095 = vmatpush1.msra.mxu0 0.0
        %3096 = vmatprep.subr.mxu0 0.0
        %3097 = vmatpush1.msra.mxu0 0.0
        %3098 = vmatprep.subr.mxu0 0.0
        %3099 = vmatpush1.msra.mxu0 0.0
        %3100 = vmatprep.subr.mxu0 0.0
        %3101 = vmatpush1.msra.mxu0 0.0
        %3102 = vmatprep.mubr.f32.mxu0 0.0
        %3103 = vmatmul.mubr.f32.gmra.mrb[0].mxu0 %v3033
        %v3104 = vpop.f32.mrb[0].mxu0
        %v3105 = vadd.f32 %v3031, %v3104
        %v3106 = vpop.f32.mrb[0].mxu0
        %3107 = vmatprep.mubr.f32.mxu0 0.0
        %3108 = vmatmul.mubr.f32.gmra.mrb[0].mxu0 %v3036
        %v3109 = vpop.f32.mrb[0].mxu0
        %v3110 = vadd.f32 %v3031, %v3109
        %v3111 = vpop.f32.mrb[0].mxu0
        %3112 = vdwg.mxu0
        %v3113 = vmax.f32 %v3105, 0.0
        %v3114 = vmax.f32 %v3110, 0.0
        %v3115 = vld [vmem:[%s153 + $0x1f0] sm:$0xff]
        %v3116 = vld [vmem:[%s153 + $0x1f8] sm:$0xff]
        %v3117 = vld [vmem:[%s153 + $0x200] sm:$0xff]
        %v3118 = vld [vmem:[%s153 + $0x208] sm:$0xff]
        %v3119 = vld [vmem:[%s153 + $0x210] sm:$0x1]
        %v3120 = vlaneseq
        %v3121 = vshrl.u32 %v3120, 7
        %v3122 = vsub.s32 0, %v3121
        %v3123 = vrot.slane %v3119, %v3122
        %v3125 = vsel %vm353, %v3113, 0
        %v3128 = vsel %vm353, %v3114, 0
        %3130 = vmatprep.subr.mxu0 0.0
        %3131 = vmatpush1.msra.mxu0 %v3115
        %3132 = vmatprep.subr.mxu0 0.0
        %3133 = vmatpush1.msra.mxu0 %v3116
        %3134 = vmatprep.subr.mxu0 0.0
        %3135 = vmatpush1.msra.mxu0 %v3117
        %3136 = vmatprep.subr.mxu0 0.0
        %3137 = vmatpush1.msra.mxu0 %v3118
        %3138 = vmatprep.subr.mxu0 0.0
        %3139 = vmatpush1.msra.mxu0 0.0
        %3140 = vmatprep.subr.mxu0 0.0
        %3141 = vmatpush1.msra.mxu0 0.0
        %3142 = vmatprep.subr.mxu0 0.0
        %3143 = vmatpush1.msra.mxu0 0.0
        %3144 = vmatprep.subr.mxu0 0.0
        %3145 = vmatpush1.msra.mxu0 0.0
        %3146 = vmatprep.subr.mxu0 0.0
        %3147 = vmatpush1.msra.mxu0 0.0
        %3148 = vmatprep.subr.mxu0 0.0
        %3149 = vmatpush1.msra.mxu0 0.0
        %3150 = vmatprep.subr.mxu0 0.0
        %3151 = vmatpush1.msra.mxu0 0.0
        %3152 = vmatprep.subr.mxu0 0.0
        %3153 = vmatpush1.msra.mxu0 0.0
        %3154 = vmatprep.subr.mxu0 0.0
        %3155 = vmatpush1.msra.mxu0 0.0
        %3156 = vmatprep.subr.mxu0 0.0
        %3157 = vmatpush1.msra.mxu0 0.0
        %3158 = vmatprep.subr.mxu0 0.0
        %3159 = vmatpush1.msra.mxu0 0.0
        %3160 = vmatprep.subr.mxu0 0.0
        %3161 = vmatpush1.msra.mxu0 0.0
        %3162 = vmatprep.subr.mxu0 0.0
        %3163 = vmatpush1.msra.mxu0 0.0
        %3164 = vmatprep.subr.mxu0 0.0
        %3165 = vmatpush1.msra.mxu0 0.0
        %3166 = vmatprep.subr.mxu0 0.0
        %3167 = vmatpush1.msra.mxu0 0.0
        %3168 = vmatprep.subr.mxu0 0.0
        %3169 = vmatpush1.msra.mxu0 0.0
        %3170 = vmatprep.subr.mxu0 0.0
        %3171 = vmatpush1.msra.mxu0 0.0
        %3172 = vmatprep.subr.mxu0 0.0
        %3173 = vmatpush1.msra.mxu0 0.0
        %3174 = vmatprep.subr.mxu0 0.0
        %3175 = vmatpush1.msra.mxu0 0.0
        %3176 = vmatprep.subr.mxu0 0.0
        %3177 = vmatpush1.msra.mxu0 0.0
        %3178 = vmatprep.subr.mxu0 0.0
        %3179 = vmatpush1.msra.mxu0 0.0
        %3180 = vmatprep.subr.mxu0 0.0
        %3181 = vmatpush1.msra.mxu0 0.0
        %3182 = vmatprep.subr.mxu0 0.0
        %3183 = vmatpush1.msra.mxu0 0.0
        %3184 = vmatprep.subr.mxu0 0.0
        %3185 = vmatpush1.msra.mxu0 0.0
        %3186 = vmatprep.subr.mxu0 0.0
        %3187 = vmatpush1.msra.mxu0 0.0
        %3188 = vmatprep.subr.mxu0 0.0
        %3189 = vmatpush1.msra.mxu0 0.0
        %3190 = vmatprep.subr.mxu0 0.0
        %3191 = vmatpush1.msra.mxu0 0.0
        %3192 = vmatprep.subr.mxu0 0.0
        %3193 = vmatpush1.msra.mxu0 0.0
        %3194 = vmatprep.mubr.f32.mxu0 0.0
        %3195 = vmatmul.mubr.f32.gmra.mrb[0].mxu0 %v3125
        %v3196 = vpop.f32.mrb[0].mxu0
        %v3197 = vadd.f32 %v3123, %v3196
        %v3198 = vpop.f32.mrb[0].mxu0
        %3199 = vmatprep.mubr.f32.mxu0 0.0
        %3200 = vmatmul.mubr.f32.gmra.mrb[0].mxu0 %v3128
        %v3201 = vpop.f32.mrb[0].mxu0
        %v3202 = vadd.f32 %v3123, %v3201
        %v3203 = vpop.f32.mrb[0].mxu0
        %3204 = vdwg.mxu0
        %v3205 = vadd.f32 %v3023, %v3197
        %v3206 = vadd.f32 %v3024, %v3202
        %v3207 = vld [vmem:[%s153 + $0x228] sm:$0x1]
        %v3208 = vld [vmem:[%s153 + $0x230] sm:$0x1]
        %v3209 = vsel %vm350, %v3205, 0.0
        %3210 = vadd.xlane.f32.xlu0 %v3209
        %v3211 = vpop.xlane.xlu0 %3210
        %v3212 = vsel %vm350, %v3206, 0.0
        %3213 = vadd.xlane.f32.xlu0 %v3212
        %v3214 = vpop.xlane.xlu0 %3213
        %v3215 = vmul.f32 %v3211, %v2992
        %v3216 = vmul.f32 %v3214, %v2992
        %v3217 = vsub.f32 %v3205, %v3215
        %v3218 = vsub.f32 %v3206, %v3216
        %v3219 = vmul.f32 %v3217, %v3217
        %v3220 = vmul.f32 %v3218, %v3218
        %v3221 = vsel %vm350, %v3219, 0.0
        %3222 = vadd.xlane.f32.xlu0 %v3221
        %v3223 = vpop.xlane.xlu0 %3222
        %v3224 = vsel %vm350, %v3220, 0.0
        %3225 = vadd.xlane.f32.xlu0 %v3224
        %v3226 = vpop.xlane.xlu0 %3225
        %v3227 = vmul.f32 %v3223, %v2992
        %v3228 = vmul.f32 %v3226, %v2992
        %v3229 = vadd.f32 %v3227, 1e-05
        %v3230 = vadd.f32 %v3228, 1e-05
        %v3231 = vrsqrt.pop %v3229
        %v3232 = vrsqrt.pop %v3230
        %v3233 = vmul.f32 %v3217, %v3231
        %v3234 = vmul.f32 %v3218, %v3232
        %v3235 = vlaneseq
        %v3236 = vshrl.u32 %v3235, 7
        %v3237 = vsub.s32 0, %v3236
        %v3238 = vrot.slane %v3207, %v3237
        %v3239 = vmul.f32 %v3233, %v3238
        %v3240 = vmul.f32 %v3234, %v3238
        %v3241 = vlaneseq
        %v3242 = vshrl.u32 %v3241, 7
        %v3243 = vsub.s32 0, %v3242
        %v3244 = vrot.slane %v3208, %v3243
        %v3245 = vadd.f32 %v3239, %v3244
        %v3246 = vadd.f32 %v3240, %v3244
        %v3247 = vld [vmem:[%s153 + $0x338] sm:$0x1]
        %v3248 = vlaneseq
        %v3249 = vshrl.u32 %v3248, 7
        %v3250 = vsub.s32 0, %v3249
        %v3251 = vrot.slane %v3247, %v3250
        %v3252 = vadd.f32 %v3251, 0.0
        %v3253 = vld [vmem:[%s153 + $0x268] sm:$0x7]
        %v3254 = vld [vmem:[%s153 + $0x238] sm:$0xff]
        %v3255 = vld [vmem:[%s153 + $0x240] sm:$0xff]
        %v3256 = vlaneseq
        %v3257 = vshrl.u32 %v3256, 7
        %v3258 = vsub.s32 0, %v3257
        %v3259 = vrot.slane %v3253, %v3258
        %v3261 = vsel %vm350, %v3245, 0
        %v3264 = vsel %vm350, %v3246, 0
        %3266 = vmatprep.subr.mxu0 0.0
        %3267 = vmatpush1.msra.mxu0 %v3254
        %3268 = vmatprep.subr.mxu0 0.0
        %3269 = vmatpush1.msra.mxu0 %v3255
        %3270 = vmatprep.subr.mxu0 0.0
        %3271 = vmatpush1.msra.mxu0 0.0
        %3272 = vmatprep.subr.mxu0 0.0
        %3273 = vmatpush1.msra.mxu0 0.0
        %3274 = vmatprep.subr.mxu0 0.0
        %3275 = vmatpush1.msra.mxu0 0.0
        %3276 = vmatprep.subr.mxu0 0.0
        %3277 = vmatpush1.msra.mxu0 0.0
        %3278 = vmatprep.subr.mxu0 0.0
        %3279 = vmatpush1.msra.mxu0 0.0
        %3280 = vmatprep.subr.mxu0 0.0
        %3281 = vmatpush1.msra.mxu0 0.0
        %3282 = vmatprep.subr.mxu0 0.0
        %3283 = vmatpush1.msra.mxu0 0.0
        %3284 = vmatprep.subr.mxu0 0.0
        %3285 = vmatpush1.msra.mxu0 0.0
        %3286 = vmatprep.subr.mxu0 0.0
        %3287 = vmatpush1.msra.mxu0 0.0
        %3288 = vmatprep.subr.mxu0 0.0
        %3289 = vmatpush1.msra.mxu0 0.0
        %3290 = vmatprep.subr.mxu0 0.0
        %3291 = vmatpush1.msra.mxu0 0.0
        %3292 = vmatprep.subr.mxu0 0.0
        %3293 = vmatpush1.msra.mxu0 0.0
        %3294 = vmatprep.subr.mxu0 0.0
        %3295 = vmatpush1.msra.mxu0 0.0
        %3296 = vmatprep.subr.mxu0 0.0
        %3297 = vmatpush1.msra.mxu0 0.0
        %3298 = vmatprep.subr.mxu0 0.0
        %3299 = vmatpush1.msra.mxu0 0.0
        %3300 = vmatprep.subr.mxu0 0.0
        %3301 = vmatpush1.msra.mxu0 0.0
        %3302 = vmatprep.subr.mxu0 0.0
        %3303 = vmatpush1.msra.mxu0 0.0
        %3304 = vmatprep.subr.mxu0 0.0
        %3305 = vmatpush1.msra.mxu0 0.0
        %3306 = vmatprep.subr.mxu0 0.0
        %3307 = vmatpush1.msra.mxu0 0.0
        %3308 = vmatprep.subr.mxu0 0.0
        %3309 = vmatpush1.msra.mxu0 0.0
        %3310 = vmatprep.subr.mxu0 0.0
        %3311 = vmatpush1.msra.mxu0 0.0
        %3312 = vmatprep.subr.mxu0 0.0
        %3313 = vmatpush1.msra.mxu0 0.0
        %3314 = vmatprep.subr.mxu0 0.0
        %3315 = vmatpush1.msra.mxu0 0.0
        %3316 = vmatprep.subr.mxu0 0.0
        %3317 = vmatpush1.msra.mxu0 0.0
        %3318 = vmatprep.subr.mxu0 0.0
        %3319 = vmatpush1.msra.mxu0 0.0
        %3320 = vmatprep.subr.mxu0 0.0
        %3321 = vmatpush1.msra.mxu0 0.0
        %3322 = vmatprep.subr.mxu0 0.0
        %3323 = vmatpush1.msra.mxu0 0.0
        %3324 = vmatprep.subr.mxu0 0.0
        %3325 = vmatpush1.msra.mxu0 0.0
        %3326 = vmatprep.subr.mxu0 0.0
        %3327 = vmatpush1.msra.mxu0 0.0
        %3328 = vmatprep.subr.mxu0 0.0
        %3329 = vmatpush1.msra.mxu0 0.0
        %3330 = vmatprep.mubr.f32.mxu0 0.0
        %3331 = vmatmul.mubr.f32.gmra.mrb[0].mxu0 %v3261
        %v3332 = vpop.f32.mrb[0].mxu0
        %v3333 = vadd.f32 %v3259, %v3332
        %v3334 = vpop.f32.mrb[0].mxu0
        %3335 = vmatprep.mubr.f32.mxu0 0.0
        %3336 = vmatmul.mubr.f32.gmra.mrb[0].mxu0 %v3264
        %v3337 = vpop.f32.mrb[0].mxu0
        %v3338 = vadd.f32 %v3259, %v3337
        %v3339 = vpop.f32.mrb[0].mxu0
        %3340 = vdwg.mxu0
        %v3341 = vld [vmem:[%s153 + $0x248] sm:$0xff]
        %v3342 = vld [vmem:[%s153 + $0x250] sm:$0xff]
        %v3343 = vlaneseq
        %v3344 = vshrl.u32 %v3343, 7
        %v3345 = vsub.s32 1, %v3344
        %v3346 = vrot.slane %v3253, %v3345
        %3347 = vmatprep.subr.mxu0 0.0
        %3348 = vmatpush1.msra.mxu0 %v3341
        %3349 = vmatprep.subr.mxu0 0.0
        %3350 = vmatpush1.msra.mxu0 %v3342
        %3351 = vmatprep.subr.mxu0 0.0
        %3352 = vmatpush1.msra.mxu0 0.0
        %3353 = vmatprep.subr.mxu0 0.0
        %3354 = vmatpush1.msra.mxu0 0.0
        %3355 = vmatprep.subr.mxu0 0.0
        %3356 = vmatpush1.msra.mxu0 0.0
        %3357 = vmatprep.subr.mxu0 0.0
        %3358 = vmatpush1.msra.mxu0 0.0
        %3359 = vmatprep.subr.mxu0 0.0
        %3360 = vmatpush1.msra.mxu0 0.0
        %3361 = vmatprep.subr.mxu0 0.0
        %3362 = vmatpush1.msra.mxu0 0.0
        %3363 = vmatprep.subr.mxu0 0.0
        %3364 = vmatpush1.msra.mxu0 0.0
        %3365 = vmatprep.subr.mxu0 0.0
        %3366 = vmatpush1.msra.mxu0 0.0
        %3367 = vmatprep.subr.mxu0 0.0
        %3368 = vmatpush1.msra.mxu0 0.0
        %3369 = vmatprep.subr.mxu0 0.0
        %3370 = vmatpush1.msra.mxu0 0.0
        %3371 = vmatprep.subr.mxu0 0.0
        %3372 = vmatpush1.msra.mxu0 0.0
        %3373 = vmatprep.subr.mxu0 0.0
        %3374 = vmatpush1.msra.mxu0 0.0
        %3375 = vmatprep.subr.mxu0 0.0
        %3376 = vmatpush1.msra.mxu0 0.0
        %3377 = vmatprep.subr.mxu0 0.0
        %3378 = vmatpush1.msra.mxu0 0.0
        %3379 = vmatprep.subr.mxu0 0.0
        %3380 = vmatpush1.msra.mxu0 0.0
        %3381 = vmatprep.subr.mxu0 0.0
        %3382 = vmatpush1.msra.mxu0 0.0
        %3383 = vmatprep.subr.mxu0 0.0
        %3384 = vmatpush1.msra.mxu0 0.0
        %3385 = vmatprep.subr.mxu0 0.0
        %3386 = vmatpush1.msra.mxu0 0.0
        %3387 = vmatprep.subr.mxu0 0.0
        %3388 = vmatpush1.msra.mxu0 0.0
        %3389 = vmatprep.subr.mxu0 0.0
        %3390 = vmatpush1.msra.mxu0 0.0
        %3391 = vmatprep.subr.mxu0 0.0
        %3392 = vmatpush1.msra.mxu0 0.0
        %3393 = vmatprep.subr.mxu0 0.0
        %3394 = vmatpush1.msra.mxu0 0.0
        %3395 = vmatprep.subr.mxu0 0.0
        %3396 = vmatpush1.msra.mxu0 0.0
        %3397 = vmatprep.subr.mxu0 0.0
        %3398 = vmatpush1.msra.mxu0 0.0
        %3399 = vmatprep.subr.mxu0 0.0
        %3400 = vmatpush1.msra.mxu0 0.0
        %3401 = vmatprep.subr.mxu0 0.0
        %3402 = vmatpush1.msra.mxu0 0.0
        %3403 = vmatprep.subr.mxu0 0.0
        %3404 = vmatpush1.msra.mxu0 0.0
        %3405 = vmatprep.subr.mxu0 0.0
        %3406 = vmatpush1.msra.mxu0 0.0
        %3407 = vmatprep.subr.mxu0 0.0
        %3408 = vmatpush1.msra.mxu0 0.0
        %3409 = vmatprep.subr.mxu0 0.0
        %3410 = vmatpush1.msra.mxu0 0.0
        %3411 = vmatprep.mubr.f32.mxu0 0.0
        %3412 = vmatmul.mubr.f32.gmra.mrb[0].mxu0 %v3261
        %v3413 = vpop.f32.mrb[0].mxu0
        %v3414 = vadd.f32 %v3346, %v3413
        %v3415 = vpop.f32.mrb[0].mxu0
        %3416 = vmatprep.mubr.f32.mxu0 0.0
        %3417 = vmatmul.mubr.f32.gmra.mrb[0].mxu0 %v3264
        %v3418 = vpop.f32.mrb[0].mxu0
        %v3419 = vadd.f32 %v3346, %v3418
        %v3420 = vpop.f32.mrb[0].mxu0
        %3421 = vdwg.mxu0
        %v3422 = vld [vmem:[%s153 + $0x258] sm:$0xff]
        %v3423 = vld [vmem:[%s153 + $0x260] sm:$0xff]
        %v3424 = vlaneseq
        %v3425 = vshrl.u32 %v3424, 7
        %v3426 = vsub.s32 2, %v3425
        %v3427 = vrot.slane %v3253, %v3426
        %3428 = vmatprep.subr.mxu0 0.0
        %3429 = vmatpush1.msra.mxu0 %v3422
        %3430 = vmatprep.subr.mxu0 0.0
        %3431 = vmatpush1.msra.mxu0 %v3423
        %3432 = vmatprep.subr.mxu0 0.0
        %3433 = vmatpush1.msra.mxu0 0.0
        %3434 = vmatprep.subr.mxu0 0.0
        %3435 = vmatpush1.msra.mxu0 0.0
        %3436 = vmatprep.subr.mxu0 0.0
        %3437 = vmatpush1.msra.mxu0 0.0
        %3438 = vmatprep.subr.mxu0 0.0
        %3439 = vmatpush1.msra.mxu0 0.0
        %3440 = vmatprep.subr.mxu0 0.0
        %3441 = vmatpush1.msra.mxu0 0.0
        %3442 = vmatprep.subr.mxu0 0.0
        %3443 = vmatpush1.msra.mxu0 0.0
        %3444 = vmatprep.subr.mxu0 0.0
        %3445 = vmatpush1.msra.mxu0 0.0
        %3446 = vmatprep.subr.mxu0 0.0
        %3447 = vmatpush1.msra.mxu0 0.0
        %3448 = vmatprep.subr.mxu0 0.0
        %3449 = vmatpush1.msra.mxu0 0.0
        %3450 = vmatprep.subr.mxu0 0.0
        %3451 = vmatpush1.msra.mxu0 0.0
        %3452 = vmatprep.subr.mxu0 0.0
        %3453 = vmatpush1.msra.mxu0 0.0
        %3454 = vmatprep.subr.mxu0 0.0
        %3455 = vmatpush1.msra.mxu0 0.0
        %3456 = vmatprep.subr.mxu0 0.0
        %3457 = vmatpush1.msra.mxu0 0.0
        %3458 = vmatprep.subr.mxu0 0.0
        %3459 = vmatpush1.msra.mxu0 0.0
        %3460 = vmatprep.subr.mxu0 0.0
        %3461 = vmatpush1.msra.mxu0 0.0
        %3462 = vmatprep.subr.mxu0 0.0
        %3463 = vmatpush1.msra.mxu0 0.0
        %3464 = vmatprep.subr.mxu0 0.0
        %3465 = vmatpush1.msra.mxu0 0.0
        %3466 = vmatprep.subr.mxu0 0.0
        %3467 = vmatpush1.msra.mxu0 0.0
        %3468 = vmatprep.subr.mxu0 0.0
        %3469 = vmatpush1.msra.mxu0 0.0
        %3470 = vmatprep.subr.mxu0 0.0
        %3471 = vmatpush1.msra.mxu0 0.0
        %3472 = vmatprep.subr.mxu0 0.0
        %3473 = vmatpush1.msra.mxu0 0.0
        %3474 = vmatprep.subr.mxu0 0.0
        %3475 = vmatpush1.msra.mxu0 0.0
        %3476 = vmatprep.subr.mxu0 0.0
        %3477 = vmatpush1.msra.mxu0 0.0
        %3478 = vmatprep.subr.mxu0 0.0
        %3479 = vmatpush1.msra.mxu0 0.0
        %3480 = vmatprep.subr.mxu0 0.0
        %3481 = vmatpush1.msra.mxu0 0.0
        %3482 = vmatprep.subr.mxu0 0.0
        %3483 = vmatpush1.msra.mxu0 0.0
        %3484 = vmatprep.subr.mxu0 0.0
        %3485 = vmatpush1.msra.mxu0 0.0
        %3486 = vmatprep.subr.mxu0 0.0
        %3487 = vmatpush1.msra.mxu0 0.0
        %3488 = vmatprep.subr.mxu0 0.0
        %3489 = vmatpush1.msra.mxu0 0.0
        %3490 = vmatprep.subr.mxu0 0.0
        %3491 = vmatpush1.msra.mxu0 0.0
        %3492 = vmatprep.mubr.f32.mxu0 0.0
        %3493 = vmatmul.mubr.f32.gmra.mrb[0].mxu0 %v3261
        %v3494 = vpop.f32.mrb[0].mxu0
        %v3495 = vadd.f32 %v3427, %v3494
        %v3496 = vpop.f32.mrb[0].mxu0
        %3497 = vmatprep.mubr.f32.mxu0 0.0
        %3498 = vmatmul.mubr.f32.gmra.mrb[0].mxu0 %v3264
        %v3499 = vpop.f32.mrb[0].mxu0
        %v3500 = vadd.f32 %v3427, %v3499
        %v3501 = vpop.f32.mrb[0].mxu0
        %3502 = vdwg.mxu0
        %v3504 = vsel %vm1141, %v3333, 0
        %v3507 = vsel %vm1141, %v3338, 0
        %v3510 = vsel %vm1141, %v3414, 0
        %v3513 = vsel %vm1141, %v3419, 0
        %3515 = vmatprep.subr.mxu0 0.0
        %3516 = vmatpush1.xpose.msra.mxu0 %v3510
        %3517 = vmatprep.subr.mxu0 0.0
        %3518 = vmatpush1.xpose.msra.mxu0 %v3513
        %3519 = vmatprep.subr.mxu0 0.0
        %3520 = vmatpush1.xpose.msra.mxu0 0.0
        %3521 = vmatprep.subr.mxu0 0.0
        %3522 = vmatpush1.xpose.msra.mxu0 0.0
        %3523 = vmatprep.subr.mxu0 0.0
        %3524 = vmatpush1.xpose.msra.mxu0 0.0
        %3525 = vmatprep.subr.mxu0 0.0
        %3526 = vmatpush1.xpose.msra.mxu0 0.0
        %3527 = vmatprep.subr.mxu0 0.0
        %3528 = vmatpush1.xpose.msra.mxu0 0.0
        %3529 = vmatprep.subr.mxu0 0.0
        %3530 = vmatpush1.xpose.msra.mxu0 0.0
        %3531 = vmatprep.subr.mxu0 0.0
        %3532 = vmatpush1.xpose.msra.mxu0 0.0
        %3533 = vmatprep.subr.mxu0 0.0
        %3534 = vmatpush1.xpose.msra.mxu0 0.0
        %3535 = vmatprep.subr.mxu0 0.0
        %3536 = vmatpush1.xpose.msra.mxu0 0.0
        %3537 = vmatprep.subr.mxu0 0.0
        %3538 = vmatpush1.xpose.msra.mxu0 0.0
        %3539 = vmatprep.subr.mxu0 0.0
        %3540 = vmatpush1.xpose.msra.mxu0 0.0
        %3541 = vmatprep.subr.mxu0 0.0
        %3542 = vmatpush1.xpose.msra.mxu0 0.0
        %3543 = vmatprep.subr.mxu0 0.0
        %3544 = vmatpush1.xpose.msra.mxu0 0.0
        %3545 = vmatprep.subr.mxu0 0.0
        %3546 = vmatpush1.xpose.msra.mxu0 0.0
        %3547 = vmatprep.subr.mxu0 0.0
        %3548 = vmatpush1.xpose.msra.mxu0 0.0
        %3549 = vmatprep.subr.mxu0 0.0
        %3550 = vmatpush1.xpose.msra.mxu0 0.0
        %3551 = vmatprep.subr.mxu0 0.0
        %3552 = vmatpush1.xpose.msra.mxu0 0.0
        %3553 = vmatprep.subr.mxu0 0.0
        %3554 = vmatpush1.xpose.msra.mxu0 0.0
        %3555 = vmatprep.subr.mxu0 0.0
        %3556 = vmatpush1.xpose.msra.mxu0 0.0
        %3557 = vmatprep.subr.mxu0 0.0
        %3558 = vmatpush1.xpose.msra.mxu0 0.0
        %3559 = vmatprep.subr.mxu0 0.0
        %3560 = vmatpush1.xpose.msra.mxu0 0.0
        %3561 = vmatprep.subr.mxu0 0.0
        %3562 = vmatpush1.xpose.msra.mxu0 0.0
        %3563 = vmatprep.subr.mxu0 0.0
        %3564 = vmatpush1.xpose.msra.mxu0 0.0
        %3565 = vmatprep.subr.mxu0 0.0
        %3566 = vmatpush1.xpose.msra.mxu0 0.0
        %3567 = vmatprep.subr.mxu0 0.0
        %3568 = vmatpush1.xpose.msra.mxu0 0.0
        %3569 = vmatprep.subr.mxu0 0.0
        %3570 = vmatpush1.xpose.msra.mxu0 0.0
        %3571 = vmatprep.subr.mxu0 0.0
        %3572 = vmatpush1.xpose.msra.mxu0 0.0
        %3573 = vmatprep.subr.mxu0 0.0
        %3574 = vmatpush1.xpose.msra.mxu0 0.0
        %3575 = vmatprep.subr.mxu0 0.0
        %3576 = vmatpush1.xpose.msra.mxu0 0.0
        %3577 = vmatprep.subr.mxu0 0.0
        %3578 = vmatpush1.xpose.msra.mxu0 0.0
        %3579 = vmatprep.mubr.f32.mxu0 0.0
        %3580 = vmatmul.mubr.f32.gmra.mrb[0].mxu0 %v3504
        %v3581 = vpop.f32.mrb[0].mxu0
        %v3582 = vadd.f32 %v222, %v3581
        %v3583 = vpop.f32.mrb[0].mxu0
        %3584 = vmatprep.mubr.f32.mxu0 0.0
        %3585 = vmatmul.mubr.f32.gmra.mrb[0].mxu0 %v3507
        %v3586 = vpop.f32.mrb[0].mxu0
        %v3587 = vadd.f32 %v223, %v3586
        %v3588 = vpop.f32.mrb[0].mxu0
        %3589 = vdwg.mxu0
        %v3590 = vsel %vm350, %v3582, -inf
        %3591 = vmax.xlane.f32.xlu0 %v3590
        %v3592 = vpop.xlane.xlu0 %3591
        %v3593 = vsel %vm350, %v3587, -inf
        %3594 = vmax.xlane.f32.xlu0 %v3593
        %v3595 = vpop.xlane.xlu0 %3594
        %v3596 = vsub.f32 %v3582, %v3592
        %v3597 = vsub.f32 %v3587, %v3595
        %v3598 = vmul.f32 %v3596, 1.442695
        %v3599 = vpow.pop %v3598
        %v3600 = vmul.f32 %v3597, 1.442695
        %v3601 = vpow.pop %v3600
        %v3602 = vsel %vm350, %v3599, 0.0
        %3603 = vadd.xlane.f32.xlu0 %v3602
        %v3604 = vpop.xlane.xlu0 %3603
        %v3605 = vsel %vm350, %v3601, 0.0
        %3606 = vadd.xlane.f32.xlu0 %v3605
        %v3607 = vpop.xlane.xlu0 %3606
        %v3608 = vrcp.pop %v3604
        %v3609 = vrcp.pop %v3607
        %v3610 = vmul.f32 %v3599, %v3608
        %v3611 = vmul.f32 %v3601, %v3609
        %v3613 = vsel %vm350, %v3610, 0
        %v3616 = vsel %vm350, %v3611, 0
        %3618 = vmatprep.subr.mxu0 0.0
        %3619 = vmatpush1.msra.mxu0 %v3495
        %3620 = vmatprep.subr.mxu0 0.0
        %3621 = vmatpush1.msra.mxu0 %v3500
        %3622 = vmatprep.subr.mxu0 0.0
        %3623 = vmatpush1.msra.mxu0 0.0
        %3624 = vmatprep.subr.mxu0 0.0
        %3625 = vmatpush1.msra.mxu0 0.0
        %3626 = vmatprep.subr.mxu0 0.0
        %3627 = vmatpush1.msra.mxu0 0.0
        %3628 = vmatprep.subr.mxu0 0.0
        %3629 = vmatpush1.msra.mxu0 0.0
        %3630 = vmatprep.subr.mxu0 0.0
        %3631 = vmatpush1.msra.mxu0 0.0
        %3632 = vmatprep.subr.mxu0 0.0
        %3633 = vmatpush1.msra.mxu0 0.0
        %3634 = vmatprep.subr.mxu0 0.0
        %3635 = vmatpush1.msra.mxu0 0.0
        %3636 = vmatprep.subr.mxu0 0.0
        %3637 = vmatpush1.msra.mxu0 0.0
        %3638 = vmatprep.subr.mxu0 0.0
        %3639 = vmatpush1.msra.mxu0 0.0
        %3640 = vmatprep.subr.mxu0 0.0
        %3641 = vmatpush1.msra.mxu0 0.0
        %3642 = vmatprep.subr.mxu0 0.0
        %3643 = vmatpush1.msra.mxu0 0.0
        %3644 = vmatprep.subr.mxu0 0.0
        %3645 = vmatpush1.msra.mxu0 0.0
        %3646 = vmatprep.subr.mxu0 0.0
        %3647 = vmatpush1.msra.mxu0 0.0
        %3648 = vmatprep.subr.mxu0 0.0
        %3649 = vmatpush1.msra.mxu0 0.0
        %3650 = vmatprep.subr.mxu0 0.0
        %3651 = vmatpush1.msra.mxu0 0.0
        %3652 = vmatprep.subr.mxu0 0.0
        %3653 = vmatpush1.msra.mxu0 0.0
        %3654 = vmatprep.subr.mxu0 0.0
        %3655 = vmatpush1.msra.mxu0 0.0
        %3656 = vmatprep.subr.mxu0 0.0
        %3657 = vmatpush1.msra.mxu0 0.0
        %3658 = vmatprep.subr.mxu0 0.0
        %3659 = vmatpush1.msra.mxu0 0.0
        %3660 = vmatprep.subr.mxu0 0.0
        %3661 = vmatpush1.msra.mxu0 0.0
        %3662 = vmatprep.subr.mxu0 0.0
        %3663 = vmatpush1.msra.mxu0 0.0
        %3664 = vmatprep.subr.mxu0 0.0
        %3665 = vmatpush1.msra.mxu0 0.0
        %3666 = vmatprep.subr.mxu0 0.0
        %3667 = vmatpush1.msra.mxu0 0.0
        %3668 = vmatprep.subr.mxu0 0.0
        %3669 = vmatpush1.msra.mxu0 0.0
        %3670 = vmatprep.subr.mxu0 0.0
        %3671 = vmatpush1.msra.mxu0 0.0
        %3672 = vmatprep.subr.mxu0 0.0
        %3673 = vmatpush1.msra.mxu0 0.0
        %3674 = vmatprep.subr.mxu0 0.0
        %3675 = vmatpush1.msra.mxu0 0.0
        %3676 = vmatprep.subr.mxu0 0.0
        %3677 = vmatpush1.msra.mxu0 0.0
        %3678 = vmatprep.subr.mxu0 0.0
        %3679 = vmatpush1.msra.mxu0 0.0
        %3680 = vmatprep.subr.mxu0 0.0
        %3681 = vmatpush1.msra.mxu0 0.0
        %3682 = vmatprep.mubr.f32.mxu0 0.0
        %3683 = vmatmul.mubr.f32.gmra.mrb[0].mxu0 %v3613
        %v3684 = vpop.f32.mrb[0].mxu0
        %v3685 = vadd.f32 0.0, %v3684
        %v3686 = vpop.f32.mrb[0].mxu0
        %3687 = vmatprep.mubr.f32.mxu0 0.0
        %3688 = vmatmul.mubr.f32.gmra.mrb[0].mxu0 %v3616
        %v3689 = vpop.f32.mrb[0].mxu0
        %v3690 = vadd.f32 0.0, %v3689
        %v3691 = vpop.f32.mrb[0].mxu0
        %3692 = vdwg.mxu0
        %v3693 = vld [vmem:[%s153 + $0x270] sm:$0xf]
        %v3695 = vsel %vm1141, %v3685, 0
        %v3698 = vsel %vm1141, %v3690, 0
        %v3701 = vsel %vm237, %v3693, 0
        %3703 = vmatprep.subr.mxu0 0.0
        %3704 = vmatpush1.msra.mxu0 %v3701
        %3705 = vmatprep.subr.mxu0 0.0
        %3706 = vmatpush1.msra.mxu0 0.0
        %3707 = vmatprep.subr.mxu0 0.0
        %3708 = vmatpush1.msra.mxu0 0.0
        %3709 = vmatprep.subr.mxu0 0.0
        %3710 = vmatpush1.msra.mxu0 0.0
        %3711 = vmatprep.subr.mxu0 0.0
        %3712 = vmatpush1.msra.mxu0 0.0
        %3713 = vmatprep.subr.mxu0 0.0
        %3714 = vmatpush1.msra.mxu0 0.0
        %3715 = vmatprep.subr.mxu0 0.0
        %3716 = vmatpush1.msra.mxu0 0.0
        %3717 = vmatprep.subr.mxu0 0.0
        %3718 = vmatpush1.msra.mxu0 0.0
        %3719 = vmatprep.subr.mxu0 0.0
        %3720 = vmatpush1.msra.mxu0 0.0
        %3721 = vmatprep.subr.mxu0 0.0
        %3722 = vmatpush1.msra.mxu0 0.0
        %3723 = vmatprep.subr.mxu0 0.0
        %3724 = vmatpush1.msra.mxu0 0.0
        %3725 = vmatprep.subr.mxu0 0.0
        %3726 = vmatpush1.msra.mxu0 0.0
        %3727 = vmatprep.subr.mxu0 0.0
        %3728 = vmatpush1.msra.mxu0 0.0
        %3729 = vmatprep.subr.mxu0 0.0
        %3730 = vmatpush1.msra.mxu0 0.0
        %3731 = vmatprep.subr.mxu0 0.0
        %3732 = vmatpush1.msra.mxu0 0.0
        %3733 = vmatprep.subr.mxu0 0.0
        %3734 = vmatpush1.msra.mxu0 0.0
        %3735 = vmatprep.subr.mxu0 0.0
        %3736 = vmatpush1.msra.mxu0 0.0
        %3737 = vmatprep.subr.mxu0 0.0
        %3738 = vmatpush1.msra.mxu0 0.0
        %3739 = vmatprep.subr.mxu0 0.0
        %3740 = vmatpush1.msra.mxu0 0.0
        %3741 = vmatprep.subr.mxu0 0.0
        %3742 = vmatpush1.msra.mxu0 0.0
        %3743 = vmatprep.subr.mxu0 0.0
        %3744 = vmatpush1.msra.mxu0 0.0
        %3745 = vmatprep.subr.mxu0 0.0
        %3746 = vmatpush1.msra.mxu0 0.0
        %3747 = vmatprep.subr.mxu0 0.0
        %3748 = vmatpush1.msra.mxu0 0.0
        %3749 = vmatprep.subr.mxu0 0.0
        %3750 = vmatpush1.msra.mxu0 0.0
        %3751 = vmatprep.subr.mxu0 0.0
        %3752 = vmatpush1.msra.mxu0 0.0
        %3753 = vmatprep.subr.mxu0 0.0
        %3754 = vmatpush1.msra.mxu0 0.0
        %3755 = vmatprep.subr.mxu0 0.0
        %3756 = vmatpush1.msra.mxu0 0.0
        %3757 = vmatprep.subr.mxu0 0.0
        %3758 = vmatpush1.msra.mxu0 0.0
        %3759 = vmatprep.subr.mxu0 0.0
        %3760 = vmatpush1.msra.mxu0 0.0
        %3761 = vmatprep.subr.mxu0 0.0
        %3762 = vmatpush1.msra.mxu0 0.0
        %3763 = vmatprep.subr.mxu0 0.0
        %3764 = vmatpush1.msra.mxu0 0.0
        %3765 = vmatprep.subr.mxu0 0.0
        %3766 = vmatpush1.msra.mxu0 0.0
        %3767 = vmatprep.mubr.f32.mxu0 0.0
        %3768 = vmatmul.mubr.f32.gmra.mrb[0].mxu0 %v3695
        %v3769 = vpop.f32.mrb[0].mxu0
        %v3770 = vadd.f32 0.0, %v3769
        %v3771 = vpop.f32.mrb[0].mxu0
        %3772 = vmatprep.mubr.f32.mxu0 0.0
        %3773 = vmatmul.mubr.f32.gmra.mrb[0].mxu0 %v3698
        %v3774 = vpop.f32.mrb[0].mxu0
        %v3775 = vadd.f32 0.0, %v3774
        %v3776 = vpop.f32.mrb[0].mxu0
        %3777 = vdwg.mxu0
        %v3778 = vadd.f32 %v3252, %v3770
        %v3779 = vadd.f32 %v3252, %v3775
        %v3780 = vld [vmem:[%s153 + $0x2a8] sm:$0x7]
        %v3781 = vld [vmem:[%s153 + $0x278] sm:$0xff]
        %v3782 = vld [vmem:[%s153 + $0x280] sm:$0xff]
        %v3783 = vlaneseq
        %v3784 = vshrl.u32 %v3783, 7
        %v3785 = vsub.s32 0, %v3784
        %v3786 = vrot.slane %v3780, %v3785
        %3787 = vmatprep.subr.mxu0 0.0
        %3788 = vmatpush1.msra.mxu0 %v3781
        %3789 = vmatprep.subr.mxu0 0.0
        %3790 = vmatpush1.msra.mxu0 %v3782
        %3791 = vmatprep.subr.mxu0 0.0
        %3792 = vmatpush1.msra.mxu0 0.0
        %3793 = vmatprep.subr.mxu0 0.0
        %3794 = vmatpush1.msra.mxu0 0.0
        %3795 = vmatprep.subr.mxu0 0.0
        %3796 = vmatpush1.msra.mxu0 0.0
        %3797 = vmatprep.subr.mxu0 0.0
        %3798 = vmatpush1.msra.mxu0 0.0
        %3799 = vmatprep.subr.mxu0 0.0
        %3800 = vmatpush1.msra.mxu0 0.0
        %3801 = vmatprep.subr.mxu0 0.0
        %3802 = vmatpush1.msra.mxu0 0.0
        %3803 = vmatprep.subr.mxu0 0.0
        %3804 = vmatpush1.msra.mxu0 0.0
        %3805 = vmatprep.subr.mxu0 0.0
        %3806 = vmatpush1.msra.mxu0 0.0
        %3807 = vmatprep.subr.mxu0 0.0
        %3808 = vmatpush1.msra.mxu0 0.0
        %3809 = vmatprep.subr.mxu0 0.0
        %3810 = vmatpush1.msra.mxu0 0.0
        %3811 = vmatprep.subr.mxu0 0.0
        %3812 = vmatpush1.msra.mxu0 0.0
        %3813 = vmatprep.subr.mxu0 0.0
        %3814 = vmatpush1.msra.mxu0 0.0
        %3815 = vmatprep.subr.mxu0 0.0
        %3816 = vmatpush1.msra.mxu0 0.0
        %3817 = vmatprep.subr.mxu0 0.0
        %3818 = vmatpush1.msra.mxu0 0.0
        %3819 = vmatprep.subr.mxu0 0.0
        %3820 = vmatpush1.msra.mxu0 0.0
        %3821 = vmatprep.subr.mxu0 0.0
        %3822 = vmatpush1.msra.mxu0 0.0
        %3823 = vmatprep.subr.mxu0 0.0
        %3824 = vmatpush1.msra.mxu0 0.0
        %3825 = vmatprep.subr.mxu0 0.0
        %3826 = vmatpush1.msra.mxu0 0.0
        %3827 = vmatprep.subr.mxu0 0.0
        %3828 = vmatpush1.msra.mxu0 0.0
        %3829 = vmatprep.subr.mxu0 0.0
        %3830 = vmatpush1.msra.mxu0 0.0
        %3831 = vmatprep.subr.mxu0 0.0
        %3832 = vmatpush1.msra.mxu0 0.0
        %3833 = vmatprep.subr.mxu0 0.0
        %3834 = vmatpush1.msra.mxu0 0.0
        %3835 = vmatprep.subr.mxu0 0.0
        %3836 = vmatpush1.msra.mxu0 0.0
        %3837 = vmatprep.subr.mxu0 0.0
        %3838 = vmatpush1.msra.mxu0 0.0
        %3839 = vmatprep.subr.mxu0 0.0
        %3840 = vmatpush1.msra.mxu0 0.0
        %3841 = vmatprep.subr.mxu0 0.0
        %3842 = vmatpush1.msra.mxu0 0.0
        %3843 = vmatprep.subr.mxu0 0.0
        %3844 = vmatpush1.msra.mxu0 0.0
        %3845 = vmatprep.subr.mxu0 0.0
        %3846 = vmatpush1.msra.mxu0 0.0
        %3847 = vmatprep.subr.mxu0 0.0
        %3848 = vmatpush1.msra.mxu0 0.0
        %3849 = vmatprep.subr.mxu0 0.0
        %3850 = vmatpush1.msra.mxu0 0.0
        %3851 = vmatprep.mubr.f32.mxu0 0.0
        %3852 = vmatmul.mubr.f32.gmra.mrb[0].mxu0 %v3261
        %v3853 = vpop.f32.mrb[0].mxu0
        %v3854 = vadd.f32 %v3786, %v3853
        %v3855 = vpop.f32.mrb[0].mxu0
        %3856 = vmatprep.mubr.f32.mxu0 0.0
        %3857 = vmatmul.mubr.f32.gmra.mrb[0].mxu0 %v3264
        %v3858 = vpop.f32.mrb[0].mxu0
        %v3859 = vadd.f32 %v3786, %v3858
        %v3860 = vpop.f32.mrb[0].mxu0
        %3861 = vdwg.mxu0
        %v3862 = vld [vmem:[%s153 + $0x288] sm:$0xff]
        %v3863 = vld [vmem:[%s153 + $0x290] sm:$0xff]
        %v3864 = vlaneseq
        %v3865 = vshrl.u32 %v3864, 7
        %v3866 = vsub.s32 1, %v3865
        %v3867 = vrot.slane %v3780, %v3866
        %3868 = vmatprep.subr.mxu0 0.0
        %3869 = vmatpush1.msra.mxu0 %v3862
        %3870 = vmatprep.subr.mxu0 0.0
        %3871 = vmatpush1.msra.mxu0 %v3863
        %3872 = vmatprep.subr.mxu0 0.0
        %3873 = vmatpush1.msra.mxu0 0.0
        %3874 = vmatprep.subr.mxu0 0.0
        %3875 = vmatpush1.msra.mxu0 0.0
        %3876 = vmatprep.subr.mxu0 0.0
        %3877 = vmatpush1.msra.mxu0 0.0
        %3878 = vmatprep.subr.mxu0 0.0
        %3879 = vmatpush1.msra.mxu0 0.0
        %3880 = vmatprep.subr.mxu0 0.0
        %3881 = vmatpush1.msra.mxu0 0.0
        %3882 = vmatprep.subr.mxu0 0.0
        %3883 = vmatpush1.msra.mxu0 0.0
        %3884 = vmatprep.subr.mxu0 0.0
        %3885 = vmatpush1.msra.mxu0 0.0
        %3886 = vmatprep.subr.mxu0 0.0
        %3887 = vmatpush1.msra.mxu0 0.0
        %3888 = vmatprep.subr.mxu0 0.0
        %3889 = vmatpush1.msra.mxu0 0.0
        %3890 = vmatprep.subr.mxu0 0.0
        %3891 = vmatpush1.msra.mxu0 0.0
        %3892 = vmatprep.subr.mxu0 0.0
        %3893 = vmatpush1.msra.mxu0 0.0
        %3894 = vmatprep.subr.mxu0 0.0
        %3895 = vmatpush1.msra.mxu0 0.0
        %3896 = vmatprep.subr.mxu0 0.0
        %3897 = vmatpush1.msra.mxu0 0.0
        %3898 = vmatprep.subr.mxu0 0.0
        %3899 = vmatpush1.msra.mxu0 0.0
        %3900 = vmatprep.subr.mxu0 0.0
        %3901 = vmatpush1.msra.mxu0 0.0
        %3902 = vmatprep.subr.mxu0 0.0
        %3903 = vmatpush1.msra.mxu0 0.0
        %3904 = vmatprep.subr.mxu0 0.0
        %3905 = vmatpush1.msra.mxu0 0.0
        %3906 = vmatprep.subr.mxu0 0.0
        %3907 = vmatpush1.msra.mxu0 0.0
        %3908 = vmatprep.subr.mxu0 0.0
        %3909 = vmatpush1.msra.mxu0 0.0
        %3910 = vmatprep.subr.mxu0 0.0
        %3911 = vmatpush1.msra.mxu0 0.0
        %3912 = vmatprep.subr.mxu0 0.0
        %3913 = vmatpush1.msra.mxu0 0.0
        %3914 = vmatprep.subr.mxu0 0.0
        %3915 = vmatpush1.msra.mxu0 0.0
        %3916 = vmatprep.subr.mxu0 0.0
        %3917 = vmatpush1.msra.mxu0 0.0
        %3918 = vmatprep.subr.mxu0 0.0
        %3919 = vmatpush1.msra.mxu0 0.0
        %3920 = vmatprep.subr.mxu0 0.0
        %3921 = vmatpush1.msra.mxu0 0.0
        %3922 = vmatprep.subr.mxu0 0.0
        %3923 = vmatpush1.msra.mxu0 0.0
        %3924 = vmatprep.subr.mxu0 0.0
        %3925 = vmatpush1.msra.mxu0 0.0
        %3926 = vmatprep.subr.mxu0 0.0
        %3927 = vmatpush1.msra.mxu0 0.0
        %3928 = vmatprep.subr.mxu0 0.0
        %3929 = vmatpush1.msra.mxu0 0.0
        %3930 = vmatprep.subr.mxu0 0.0
        %3931 = vmatpush1.msra.mxu0 0.0
        %3932 = vmatprep.mubr.f32.mxu0 0.0
        %3933 = vmatmul.mubr.f32.gmra.mrb[0].mxu0 %v3261
        %v3934 = vpop.f32.mrb[0].mxu0
        %v3935 = vadd.f32 %v3867, %v3934
        %v3936 = vpop.f32.mrb[0].mxu0
        %3937 = vmatprep.mubr.f32.mxu0 0.0
        %3938 = vmatmul.mubr.f32.gmra.mrb[0].mxu0 %v3264
        %v3939 = vpop.f32.mrb[0].mxu0
        %v3940 = vadd.f32 %v3867, %v3939
        %v3941 = vpop.f32.mrb[0].mxu0
        %3942 = vdwg.mxu0
        %v3943 = vld [vmem:[%s153 + $0x298] sm:$0xff]
        %v3944 = vld [vmem:[%s153 + $0x2a0] sm:$0xff]
        %v3945 = vlaneseq
        %v3946 = vshrl.u32 %v3945, 7
        %v3947 = vsub.s32 2, %v3946
        %v3948 = vrot.slane %v3780, %v3947
        %3949 = vmatprep.subr.mxu0 0.0
        %3950 = vmatpush1.msra.mxu0 %v3943
        %3951 = vmatprep.subr.mxu0 0.0
        %3952 = vmatpush1.msra.mxu0 %v3944
        %3953 = vmatprep.subr.mxu0 0.0
        %3954 = vmatpush1.msra.mxu0 0.0
        %3955 = vmatprep.subr.mxu0 0.0
        %3956 = vmatpush1.msra.mxu0 0.0
        %3957 = vmatprep.subr.mxu0 0.0
        %3958 = vmatpush1.msra.mxu0 0.0
        %3959 = vmatprep.subr.mxu0 0.0
        %3960 = vmatpush1.msra.mxu0 0.0
        %3961 = vmatprep.subr.mxu0 0.0
        %3962 = vmatpush1.msra.mxu0 0.0
        %3963 = vmatprep.subr.mxu0 0.0
        %3964 = vmatpush1.msra.mxu0 0.0
        %3965 = vmatprep.subr.mxu0 0.0
        %3966 = vmatpush1.msra.mxu0 0.0
        %3967 = vmatprep.subr.mxu0 0.0
        %3968 = vmatpush1.msra.mxu0 0.0
        %3969 = vmatprep.subr.mxu0 0.0
        %3970 = vmatpush1.msra.mxu0 0.0
        %3971 = vmatprep.subr.mxu0 0.0
        %3972 = vmatpush1.msra.mxu0 0.0
        %3973 = vmatprep.subr.mxu0 0.0
        %3974 = vmatpush1.msra.mxu0 0.0
        %3975 = vmatprep.subr.mxu0 0.0
        %3976 = vmatpush1.msra.mxu0 0.0
        %3977 = vmatprep.subr.mxu0 0.0
        %3978 = vmatpush1.msra.mxu0 0.0
        %3979 = vmatprep.subr.mxu0 0.0
        %3980 = vmatpush1.msra.mxu0 0.0
        %3981 = vmatprep.subr.mxu0 0.0
        %3982 = vmatpush1.msra.mxu0 0.0
        %3983 = vmatprep.subr.mxu0 0.0
        %3984 = vmatpush1.msra.mxu0 0.0
        %3985 = vmatprep.subr.mxu0 0.0
        %3986 = vmatpush1.msra.mxu0 0.0
        %3987 = vmatprep.subr.mxu0 0.0
        %3988 = vmatpush1.msra.mxu0 0.0
        %3989 = vmatprep.subr.mxu0 0.0
        %3990 = vmatpush1.msra.mxu0 0.0
        %3991 = vmatprep.subr.mxu0 0.0
        %3992 = vmatpush1.msra.mxu0 0.0
        %3993 = vmatprep.subr.mxu0 0.0
        %3994 = vmatpush1.msra.mxu0 0.0
        %3995 = vmatprep.subr.mxu0 0.0
        %3996 = vmatpush1.msra.mxu0 0.0
        %3997 = vmatprep.subr.mxu0 0.0
        %3998 = vmatpush1.msra.mxu0 0.0
        %3999 = vmatprep.subr.mxu0 0.0
        %4000 = vmatpush1.msra.mxu0 0.0
        %4001 = vmatprep.subr.mxu0 0.0
        %4002 = vmatpush1.msra.mxu0 0.0
        %4003 = vmatprep.subr.mxu0 0.0
        %4004 = vmatpush1.msra.mxu0 0.0
        %4005 = vmatprep.subr.mxu0 0.0
        %4006 = vmatpush1.msra.mxu0 0.0
        %4007 = vmatprep.subr.mxu0 0.0
        %4008 = vmatpush1.msra.mxu0 0.0
        %4009 = vmatprep.subr.mxu0 0.0
        %4010 = vmatpush1.msra.mxu0 0.0
        %4011 = vmatprep.subr.mxu0 0.0
        %4012 = vmatpush1.msra.mxu0 0.0
        %4013 = vmatprep.mubr.f32.mxu0 0.0
        %4014 = vmatmul.mubr.f32.gmra.mrb[0].mxu0 %v3261
        %v4015 = vpop.f32.mrb[0].mxu0
        %v4016 = vadd.f32 %v3948, %v4015
        %v4017 = vpop.f32.mrb[0].mxu0
        %4018 = vmatprep.mubr.f32.mxu0 0.0
        %4019 = vmatmul.mubr.f32.gmra.mrb[0].mxu0 %v3264
        %v4020 = vpop.f32.mrb[0].mxu0
        %v4021 = vadd.f32 %v3948, %v4020
        %v4022 = vpop.f32.mrb[0].mxu0
        %4023 = vdwg.mxu0
        %v4025 = vsel %vm1141, %v3854, 0
        %v4028 = vsel %vm1141, %v3859, 0
        %v4031 = vsel %vm1141, %v3935, 0
        %v4034 = vsel %vm1141, %v3940, 0
        %4036 = vmatprep.subr.mxu0 0.0
        %4037 = vmatpush1.xpose.msra.mxu0 %v4031
        %4038 = vmatprep.subr.mxu0 0.0
        %4039 = vmatpush1.xpose.msra.mxu0 %v4034
        %4040 = vmatprep.subr.mxu0 0.0
        %4041 = vmatpush1.xpose.msra.mxu0 0.0
        %4042 = vmatprep.subr.mxu0 0.0
        %4043 = vmatpush1.xpose.msra.mxu0 0.0
        %4044 = vmatprep.subr.mxu0 0.0
        %4045 = vmatpush1.xpose.msra.mxu0 0.0
        %4046 = vmatprep.subr.mxu0 0.0
        %4047 = vmatpush1.xpose.msra.mxu0 0.0
        %4048 = vmatprep.subr.mxu0 0.0
        %4049 = vmatpush1.xpose.msra.mxu0 0.0
        %4050 = vmatprep.subr.mxu0 0.0
        %4051 = vmatpush1.xpose.msra.mxu0 0.0
        %4052 = vmatprep.subr.mxu0 0.0
        %4053 = vmatpush1.xpose.msra.mxu0 0.0
        %4054 = vmatprep.subr.mxu0 0.0
        %4055 = vmatpush1.xpose.msra.mxu0 0.0
        %4056 = vmatprep.subr.mxu0 0.0
        %4057 = vmatpush1.xpose.msra.mxu0 0.0
        %4058 = vmatprep.subr.mxu0 0.0
        %4059 = vmatpush1.xpose.msra.mxu0 0.0
        %4060 = vmatprep.subr.mxu0 0.0
        %4061 = vmatpush1.xpose.msra.mxu0 0.0
        %4062 = vmatprep.subr.mxu0 0.0
        %4063 = vmatpush1.xpose.msra.mxu0 0.0
        %4064 = vmatprep.subr.mxu0 0.0
        %4065 = vmatpush1.xpose.msra.mxu0 0.0
        %4066 = vmatprep.subr.mxu0 0.0
        %4067 = vmatpush1.xpose.msra.mxu0 0.0
        %4068 = vmatprep.subr.mxu0 0.0
        %4069 = vmatpush1.xpose.msra.mxu0 0.0
        %4070 = vmatprep.subr.mxu0 0.0
        %4071 = vmatpush1.xpose.msra.mxu0 0.0
        %4072 = vmatprep.subr.mxu0 0.0
        %4073 = vmatpush1.xpose.msra.mxu0 0.0
        %4074 = vmatprep.subr.mxu0 0.0
        %4075 = vmatpush1.xpose.msra.mxu0 0.0
        %4076 = vmatprep.subr.mxu0 0.0
        %4077 = vmatpush1.xpose.msra.mxu0 0.0
        %4078 = vmatprep.subr.mxu0 0.0
        %4079 = vmatpush1.xpose.msra.mxu0 0.0
        %4080 = vmatprep.subr.mxu0 0.0
        %4081 = vmatpush1.xpose.msra.mxu0 0.0
        %4082 = vmatprep.subr.mxu0 0.0
        %4083 = vmatpush1.xpose.msra.mxu0 0.0
        %4084 = vmatprep.subr.mxu0 0.0
        %4085 = vmatpush1.xpose.msra.mxu0 0.0
        %4086 = vmatprep.subr.mxu0 0.0
        %4087 = vmatpush1.xpose.msra.mxu0 0.0
        %4088 = vmatprep.subr.mxu0 0.0
        %4089 = vmatpush1.xpose.msra.mxu0 0.0
        %4090 = vmatprep.subr.mxu0 0.0
        %4091 = vmatpush1.xpose.msra.mxu0 0.0
        %4092 = vmatprep.subr.mxu0 0.0
        %4093 = vmatpush1.xpose.msra.mxu0 0.0
        %4094 = vmatprep.subr.mxu0 0.0
        %4095 = vmatpush1.xpose.msra.mxu0 0.0
        %4096 = vmatprep.subr.mxu0 0.0
        %4097 = vmatpush1.xpose.msra.mxu0 0.0
        %4098 = vmatprep.subr.mxu0 0.0
        %4099 = vmatpush1.xpose.msra.mxu0 0.0
        %4100 = vmatprep.mubr.f32.mxu0 0.0
        %4101 = vmatmul.mubr.f32.gmra.mrb[0].mxu0 %v4025
        %v4102 = vpop.f32.mrb[0].mxu0
        %v4103 = vadd.f32 %v222, %v4102
        %v4104 = vpop.f32.mrb[0].mxu0
        %4105 = vmatprep.mubr.f32.mxu0 0.0
        %4106 = vmatmul.mubr.f32.gmra.mrb[0].mxu0 %v4028
        %v4107 = vpop.f32.mrb[0].mxu0
        %v4108 = vadd.f32 %v223, %v4107
        %v4109 = vpop.f32.mrb[0].mxu0
        %4110 = vdwg.mxu0
        %v4111 = vsel %vm350, %v4103, -inf
        %4112 = vmax.xlane.f32.xlu0 %v4111
        %v4113 = vpop.xlane.xlu0 %4112
        %v4114 = vsel %vm350, %v4108, -inf
        %4115 = vmax.xlane.f32.xlu0 %v4114
        %v4116 = vpop.xlane.xlu0 %4115
        %v4117 = vsub.f32 %v4103, %v4113
        %v4118 = vsub.f32 %v4108, %v4116
        %v4119 = vmul.f32 %v4117, 1.442695
        %v4120 = vpow.pop %v4119
        %v4121 = vmul.f32 %v4118, 1.442695
        %v4122 = vpow.pop %v4121
        %v4123 = vsel %vm350, %v4120, 0.0
        %4124 = vadd.xlane.f32.xlu0 %v4123
        %v4125 = vpop.xlane.xlu0 %4124
        %v4126 = vsel %vm350, %v4122, 0.0
        %4127 = vadd.xlane.f32.xlu0 %v4126
        %v4128 = vpop.xlane.xlu0 %4127
        %v4129 = vrcp.pop %v4125
        %v4130 = vrcp.pop %v4128
        %v4131 = vmul.f32 %v4120, %v4129
        %v4132 = vmul.f32 %v4122, %v4130
        %v4134 = vsel %vm350, %v4131, 0
        %v4137 = vsel %vm350, %v4132, 0
        %4139 = vmatprep.subr.mxu0 0.0
        %4140 = vmatpush1.msra.mxu0 %v4016
        %4141 = vmatprep.subr.mxu0 0.0
        %4142 = vmatpush1.msra.mxu0 %v4021
        %4143 = vmatprep.subr.mxu0 0.0
        %4144 = vmatpush1.msra.mxu0 0.0
        %4145 = vmatprep.subr.mxu0 0.0
        %4146 = vmatpush1.msra.mxu0 0.0
        %4147 = vmatprep.subr.mxu0 0.0
        %4148 = vmatpush1.msra.mxu0 0.0
        %4149 = vmatprep.subr.mxu0 0.0
        %4150 = vmatpush1.msra.mxu0 0.0
        %4151 = vmatprep.subr.mxu0 0.0
        %4152 = vmatpush1.msra.mxu0 0.0
        %4153 = vmatprep.subr.mxu0 0.0
        %4154 = vmatpush1.msra.mxu0 0.0
        %4155 = vmatprep.subr.mxu0 0.0
        %4156 = vmatpush1.msra.mxu0 0.0
        %4157 = vmatprep.subr.mxu0 0.0
        %4158 = vmatpush1.msra.mxu0 0.0
        %4159 = vmatprep.subr.mxu0 0.0
        %4160 = vmatpush1.msra.mxu0 0.0
        %4161 = vmatprep.subr.mxu0 0.0
        %4162 = vmatpush1.msra.mxu0 0.0
        %4163 = vmatprep.subr.mxu0 0.0
        %4164 = vmatpush1.msra.mxu0 0.0
        %4165 = vmatprep.subr.mxu0 0.0
        %4166 = vmatpush1.msra.mxu0 0.0
        %4167 = vmatprep.subr.mxu0 0.0
        %4168 = vmatpush1.msra.mxu0 0.0
        %4169 = vmatprep.subr.mxu0 0.0
        %4170 = vmatpush1.msra.mxu0 0.0
        %4171 = vmatprep.subr.mxu0 0.0
        %4172 = vmatpush1.msra.mxu0 0.0
        %4173 = vmatprep.subr.mxu0 0.0
        %4174 = vmatpush1.msra.mxu0 0.0
        %4175 = vmatprep.subr.mxu0 0.0
        %4176 = vmatpush1.msra.mxu0 0.0
        %4177 = vmatprep.subr.mxu0 0.0
        %4178 = vmatpush1.msra.mxu0 0.0
        %4179 = vmatprep.subr.mxu0 0.0
        %4180 = vmatpush1.msra.mxu0 0.0
        %4181 = vmatprep.subr.mxu0 0.0
        %4182 = vmatpush1.msra.mxu0 0.0
        %4183 = vmatprep.subr.mxu0 0.0
        %4184 = vmatpush1.msra.mxu0 0.0
        %4185 = vmatprep.subr.mxu0 0.0
        %4186 = vmatpush1.msra.mxu0 0.0
        %4187 = vmatprep.subr.mxu0 0.0
        %4188 = vmatpush1.msra.mxu0 0.0
        %4189 = vmatprep.subr.mxu0 0.0
        %4190 = vmatpush1.msra.mxu0 0.0
        %4191 = vmatprep.subr.mxu0 0.0
        %4192 = vmatpush1.msra.mxu0 0.0
        %4193 = vmatprep.subr.mxu0 0.0
        %4194 = vmatpush1.msra.mxu0 0.0
        %4195 = vmatprep.subr.mxu0 0.0
        %4196 = vmatpush1.msra.mxu0 0.0
        %4197 = vmatprep.subr.mxu0 0.0
        %4198 = vmatpush1.msra.mxu0 0.0
        %4199 = vmatprep.subr.mxu0 0.0
        %4200 = vmatpush1.msra.mxu0 0.0
        %4201 = vmatprep.subr.mxu0 0.0
        %4202 = vmatpush1.msra.mxu0 0.0
        %4203 = vmatprep.mubr.f32.mxu0 0.0
        %4204 = vmatmul.mubr.f32.gmra.mrb[0].mxu0 %v4134
        %v4205 = vpop.f32.mrb[0].mxu0
        %v4206 = vadd.f32 0.0, %v4205
        %v4207 = vpop.f32.mrb[0].mxu0
        %4208 = vmatprep.mubr.f32.mxu0 0.0
        %4209 = vmatmul.mubr.f32.gmra.mrb[0].mxu0 %v4137
        %v4210 = vpop.f32.mrb[0].mxu0
        %v4211 = vadd.f32 0.0, %v4210
        %v4212 = vpop.f32.mrb[0].mxu0
        %4213 = vdwg.mxu0
        %v4214 = vld [vmem:[%s153 + $0x2b0] sm:$0xf]
        %v4216 = vsel %vm1141, %v4206, 0
        %v4219 = vsel %vm1141, %v4211, 0
        %v4222 = vsel %vm237, %v4214, 0
        %4224 = vmatprep.subr.mxu0 0.0
        %4225 = vmatpush1.msra.mxu0 %v4222
        %4226 = vmatprep.subr.mxu0 0.0
        %4227 = vmatpush1.msra.mxu0 0.0
        %4228 = vmatprep.subr.mxu0 0.0
        %4229 = vmatpush1.msra.mxu0 0.0
        %4230 = vmatprep.subr.mxu0 0.0
        %4231 = vmatpush1.msra.mxu0 0.0
        %4232 = vmatprep.subr.mxu0 0.0
        %4233 = vmatpush1.msra.mxu0 0.0
        %4234 = vmatprep.subr.mxu0 0.0
        %4235 = vmatpush1.msra.mxu0 0.0
        %4236 = vmatprep.subr.mxu0 0.0
        %4237 = vmatpush1.msra.mxu0 0.0
        %4238 = vmatprep.subr.mxu0 0.0
        %4239 = vmatpush1.msra.mxu0 0.0
        %4240 = vmatprep.subr.mxu0 0.0
        %4241 = vmatpush1.msra.mxu0 0.0
        %4242 = vmatprep.subr.mxu0 0.0
        %4243 = vmatpush1.msra.mxu0 0.0
        %4244 = vmatprep.subr.mxu0 0.0
        %4245 = vmatpush1.msra.mxu0 0.0
        %4246 = vmatprep.subr.mxu0 0.0
        %4247 = vmatpush1.msra.mxu0 0.0
        %4248 = vmatprep.subr.mxu0 0.0
        %4249 = vmatpush1.msra.mxu0 0.0
        %4250 = vmatprep.subr.mxu0 0.0
        %4251 = vmatpush1.msra.mxu0 0.0
        %4252 = vmatprep.subr.mxu0 0.0
        %4253 = vmatpush1.msra.mxu0 0.0
        %4254 = vmatprep.subr.mxu0 0.0
        %4255 = vmatpush1.msra.mxu0 0.0
        %4256 = vmatprep.subr.mxu0 0.0
        %4257 = vmatpush1.msra.mxu0 0.0
        %4258 = vmatprep.subr.mxu0 0.0
        %4259 = vmatpush1.msra.mxu0 0.0
        %4260 = vmatprep.subr.mxu0 0.0
        %4261 = vmatpush1.msra.mxu0 0.0
        %4262 = vmatprep.subr.mxu0 0.0
        %4263 = vmatpush1.msra.mxu0 0.0
        %4264 = vmatprep.subr.mxu0 0.0
        %4265 = vmatpush1.msra.mxu0 0.0
        %4266 = vmatprep.subr.mxu0 0.0
        %4267 = vmatpush1.msra.mxu0 0.0
        %4268 = vmatprep.subr.mxu0 0.0
        %4269 = vmatpush1.msra.mxu0 0.0
        %4270 = vmatprep.subr.mxu0 0.0
        %4271 = vmatpush1.msra.mxu0 0.0
        %4272 = vmatprep.subr.mxu0 0.0
        %4273 = vmatpush1.msra.mxu0 0.0
        %4274 = vmatprep.subr.mxu0 0.0
        %4275 = vmatpush1.msra.mxu0 0.0
        %4276 = vmatprep.subr.mxu0 0.0
        %4277 = vmatpush1.msra.mxu0 0.0
        %4278 = vmatprep.subr.mxu0 0.0
        %4279 = vmatpush1.msra.mxu0 0.0
        %4280 = vmatprep.subr.mxu0 0.0
        %4281 = vmatpush1.msra.mxu0 0.0
        %4282 = vmatprep.subr.mxu0 0.0
        %4283 = vmatpush1.msra.mxu0 0.0
        %4284 = vmatprep.subr.mxu0 0.0
        %4285 = vmatpush1.msra.mxu0 0.0
        %4286 = vmatprep.subr.mxu0 0.0
        %4287 = vmatpush1.msra.mxu0 0.0
        %4288 = vmatprep.mubr.f32.mxu0 0.0
        %4289 = vmatmul.mubr.f32.gmra.mrb[0].mxu0 %v4216
        %v4290 = vpop.f32.mrb[0].mxu0
        %v4291 = vadd.f32 0.0, %v4290
        %v4292 = vpop.f32.mrb[0].mxu0
        %4293 = vmatprep.mubr.f32.mxu0 0.0
        %4294 = vmatmul.mubr.f32.gmra.mrb[0].mxu0 %v4219
        %v4295 = vpop.f32.mrb[0].mxu0
        %v4296 = vadd.f32 0.0, %v4295
        %v4297 = vpop.f32.mrb[0].mxu0
        %4298 = vdwg.mxu0
        %v4299 = vadd.f32 %v3778, %v4291
        %v4300 = vadd.f32 %v3779, %v4296
        %v4301 = vld [vmem:[%s153 + $0x2e8] sm:$0x7]
        %v4302 = vld [vmem:[%s153 + $0x2b8] sm:$0xff]
        %v4303 = vld [vmem:[%s153 + $0x2c0] sm:$0xff]
        %v4304 = vlaneseq
        %v4305 = vshrl.u32 %v4304, 7
        %v4306 = vsub.s32 0, %v4305
        %v4307 = vrot.slane %v4301, %v4306
        %4308 = vmatprep.subr.mxu0 0.0
        %4309 = vmatpush1.msra.mxu0 %v4302
        %4310 = vmatprep.subr.mxu0 0.0
        %4311 = vmatpush1.msra.mxu0 %v4303
        %4312 = vmatprep.subr.mxu0 0.0
        %4313 = vmatpush1.msra.mxu0 0.0
        %4314 = vmatprep.subr.mxu0 0.0
        %4315 = vmatpush1.msra.mxu0 0.0
        %4316 = vmatprep.subr.mxu0 0.0
        %4317 = vmatpush1.msra.mxu0 0.0
        %4318 = vmatprep.subr.mxu0 0.0
        %4319 = vmatpush1.msra.mxu0 0.0
        %4320 = vmatprep.subr.mxu0 0.0
        %4321 = vmatpush1.msra.mxu0 0.0
        %4322 = vmatprep.subr.mxu0 0.0
        %4323 = vmatpush1.msra.mxu0 0.0
        %4324 = vmatprep.subr.mxu0 0.0
        %4325 = vmatpush1.msra.mxu0 0.0
        %4326 = vmatprep.subr.mxu0 0.0
        %4327 = vmatpush1.msra.mxu0 0.0
        %4328 = vmatprep.subr.mxu0 0.0
        %4329 = vmatpush1.msra.mxu0 0.0
        %4330 = vmatprep.subr.mxu0 0.0
        %4331 = vmatpush1.msra.mxu0 0.0
        %4332 = vmatprep.subr.mxu0 0.0
        %4333 = vmatpush1.msra.mxu0 0.0
        %4334 = vmatprep.subr.mxu0 0.0
        %4335 = vmatpush1.msra.mxu0 0.0
        %4336 = vmatprep.subr.mxu0 0.0
        %4337 = vmatpush1.msra.mxu0 0.0
        %4338 = vmatprep.subr.mxu0 0.0
        %4339 = vmatpush1.msra.mxu0 0.0
        %4340 = vmatprep.subr.mxu0 0.0
        %4341 = vmatpush1.msra.mxu0 0.0
        %4342 = vmatprep.subr.mxu0 0.0
        %4343 = vmatpush1.msra.mxu0 0.0
        %4344 = vmatprep.subr.mxu0 0.0
        %4345 = vmatpush1.msra.mxu0 0.0
        %4346 = vmatprep.subr.mxu0 0.0
        %4347 = vmatpush1.msra.mxu0 0.0
        %4348 = vmatprep.subr.mxu0 0.0
        %4349 = vmatpush1.msra.mxu0 0.0
        %4350 = vmatprep.subr.mxu0 0.0
        %4351 = vmatpush1.msra.mxu0 0.0
        %4352 = vmatprep.subr.mxu0 0.0
        %4353 = vmatpush1.msra.mxu0 0.0
        %4354 = vmatprep.subr.mxu0 0.0
        %4355 = vmatpush1.msra.mxu0 0.0
        %4356 = vmatprep.subr.mxu0 0.0
        %4357 = vmatpush1.msra.mxu0 0.0
        %4358 = vmatprep.subr.mxu0 0.0
        %4359 = vmatpush1.msra.mxu0 0.0
        %4360 = vmatprep.subr.mxu0 0.0
        %4361 = vmatpush1.msra.mxu0 0.0
        %4362 = vmatprep.subr.mxu0 0.0
        %4363 = vmatpush1.msra.mxu0 0.0
        %4364 = vmatprep.subr.mxu0 0.0
        %4365 = vmatpush1.msra.mxu0 0.0
        %4366 = vmatprep.subr.mxu0 0.0
        %4367 = vmatpush1.msra.mxu0 0.0
        %4368 = vmatprep.subr.mxu0 0.0
        %4369 = vmatpush1.msra.mxu0 0.0
        %4370 = vmatprep.subr.mxu0 0.0
        %4371 = vmatpush1.msra.mxu0 0.0
        %4372 = vmatprep.mubr.f32.mxu0 0.0
        %4373 = vmatmul.mubr.f32.gmra.mrb[0].mxu0 %v3261
        %v4374 = vpop.f32.mrb[0].mxu0
        %v4375 = vadd.f32 %v4307, %v4374
        %v4376 = vpop.f32.mrb[0].mxu0
        %4377 = vmatprep.mubr.f32.mxu0 0.0
        %4378 = vmatmul.mubr.f32.gmra.mrb[0].mxu0 %v3264
        %v4379 = vpop.f32.mrb[0].mxu0
        %v4380 = vadd.f32 %v4307, %v4379
        %v4381 = vpop.f32.mrb[0].mxu0
        %4382 = vdwg.mxu0
        %v4383 = vld [vmem:[%s153 + $0x2c8] sm:$0xff]
        %v4384 = vld [vmem:[%s153 + $0x2d0] sm:$0xff]
        %v4385 = vlaneseq
        %v4386 = vshrl.u32 %v4385, 7
        %v4387 = vsub.s32 1, %v4386
        %v4388 = vrot.slane %v4301, %v4387
        %4389 = vmatprep.subr.mxu0 0.0
        %4390 = vmatpush1.msra.mxu0 %v4383
        %4391 = vmatprep.subr.mxu0 0.0
        %4392 = vmatpush1.msra.mxu0 %v4384
        %4393 = vmatprep.subr.mxu0 0.0
        %4394 = vmatpush1.msra.mxu0 0.0
        %4395 = vmatprep.subr.mxu0 0.0
        %4396 = vmatpush1.msra.mxu0 0.0
        %4397 = vmatprep.subr.mxu0 0.0
        %4398 = vmatpush1.msra.mxu0 0.0
        %4399 = vmatprep.subr.mxu0 0.0
        %4400 = vmatpush1.msra.mxu0 0.0
        %4401 = vmatprep.subr.mxu0 0.0
        %4402 = vmatpush1.msra.mxu0 0.0
        %4403 = vmatprep.subr.mxu0 0.0
        %4404 = vmatpush1.msra.mxu0 0.0
        %4405 = vmatprep.subr.mxu0 0.0
        %4406 = vmatpush1.msra.mxu0 0.0
        %4407 = vmatprep.subr.mxu0 0.0
        %4408 = vmatpush1.msra.mxu0 0.0
        %4409 = vmatprep.subr.mxu0 0.0
        %4410 = vmatpush1.msra.mxu0 0.0
        %4411 = vmatprep.subr.mxu0 0.0
        %4412 = vmatpush1.msra.mxu0 0.0
        %4413 = vmatprep.subr.mxu0 0.0
        %4414 = vmatpush1.msra.mxu0 0.0
        %4415 = vmatprep.subr.mxu0 0.0
        %4416 = vmatpush1.msra.mxu0 0.0
        %4417 = vmatprep.subr.mxu0 0.0
        %4418 = vmatpush1.msra.mxu0 0.0
        %4419 = vmatprep.subr.mxu0 0.0
        %4420 = vmatpush1.msra.mxu0 0.0
        %4421 = vmatprep.subr.mxu0 0.0
        %4422 = vmatpush1.msra.mxu0 0.0
        %4423 = vmatprep.subr.mxu0 0.0
        %4424 = vmatpush1.msra.mxu0 0.0
        %4425 = vmatprep.subr.mxu0 0.0
        %4426 = vmatpush1.msra.mxu0 0.0
        %4427 = vmatprep.subr.mxu0 0.0
        %4428 = vmatpush1.msra.mxu0 0.0
        %4429 = vmatprep.subr.mxu0 0.0
        %4430 = vmatpush1.msra.mxu0 0.0
        %4431 = vmatprep.subr.mxu0 0.0
        %4432 = vmatpush1.msra.mxu0 0.0
        %4433 = vmatprep.subr.mxu0 0.0
        %4434 = vmatpush1.msra.mxu0 0.0
        %4435 = vmatprep.subr.mxu0 0.0
        %4436 = vmatpush1.msra.mxu0 0.0
        %4437 = vmatprep.subr.mxu0 0.0
        %4438 = vmatpush1.msra.mxu0 0.0
        %4439 = vmatprep.subr.mxu0 0.0
        %4440 = vmatpush1.msra.mxu0 0.0
        %4441 = vmatprep.subr.mxu0 0.0
        %4442 = vmatpush1.msra.mxu0 0.0
        %4443 = vmatprep.subr.mxu0 0.0
        %4444 = vmatpush1.msra.mxu0 0.0
        %4445 = vmatprep.subr.mxu0 0.0
        %4446 = vmatpush1.msra.mxu0 0.0
        %4447 = vmatprep.subr.mxu0 0.0
        %4448 = vmatpush1.msra.mxu0 0.0
        %4449 = vmatprep.subr.mxu0 0.0
        %4450 = vmatpush1.msra.mxu0 0.0
        %4451 = vmatprep.subr.mxu0 0.0
        %4452 = vmatpush1.msra.mxu0 0.0
        %4453 = vmatprep.mubr.f32.mxu0 0.0
        %4454 = vmatmul.mubr.f32.gmra.mrb[0].mxu0 %v3261
        %v4455 = vpop.f32.mrb[0].mxu0
        %v4456 = vadd.f32 %v4388, %v4455
        %v4457 = vpop.f32.mrb[0].mxu0
        %4458 = vmatprep.mubr.f32.mxu0 0.0
        %4459 = vmatmul.mubr.f32.gmra.mrb[0].mxu0 %v3264
        %v4460 = vpop.f32.mrb[0].mxu0
        %v4461 = vadd.f32 %v4388, %v4460
        %v4462 = vpop.f32.mrb[0].mxu0
        %4463 = vdwg.mxu0
        %v4464 = vld [vmem:[%s153 + $0x2d8] sm:$0xff]
        %v4465 = vld [vmem:[%s153 + $0x2e0] sm:$0xff]
        %v4466 = vlaneseq
        %v4467 = vshrl.u32 %v4466, 7
        %v4468 = vsub.s32 2, %v4467
        %v4469 = vrot.slane %v4301, %v4468
        %4470 = vmatprep.subr.mxu0 0.0
        %4471 = vmatpush1.msra.mxu0 %v4464
        %4472 = vmatprep.subr.mxu0 0.0
        %4473 = vmatpush1.msra.mxu0 %v4465
        %4474 = vmatprep.subr.mxu0 0.0
        %4475 = vmatpush1.msra.mxu0 0.0
        %4476 = vmatprep.subr.mxu0 0.0
        %4477 = vmatpush1.msra.mxu0 0.0
        %4478 = vmatprep.subr.mxu0 0.0
        %4479 = vmatpush1.msra.mxu0 0.0
        %4480 = vmatprep.subr.mxu0 0.0
        %4481 = vmatpush1.msra.mxu0 0.0
        %4482 = vmatprep.subr.mxu0 0.0
        %4483 = vmatpush1.msra.mxu0 0.0
        %4484 = vmatprep.subr.mxu0 0.0
        %4485 = vmatpush1.msra.mxu0 0.0
        %4486 = vmatprep.subr.mxu0 0.0
        %4487 = vmatpush1.msra.mxu0 0.0
        %4488 = vmatprep.subr.mxu0 0.0
        %4489 = vmatpush1.msra.mxu0 0.0
        %4490 = vmatprep.subr.mxu0 0.0
        %4491 = vmatpush1.msra.mxu0 0.0
        %4492 = vmatprep.subr.mxu0 0.0
        %4493 = vmatpush1.msra.mxu0 0.0
        %4494 = vmatprep.subr.mxu0 0.0
        %4495 = vmatpush1.msra.mxu0 0.0
        %4496 = vmatprep.subr.mxu0 0.0
        %4497 = vmatpush1.msra.mxu0 0.0
        %4498 = vmatprep.subr.mxu0 0.0
        %4499 = vmatpush1.msra.mxu0 0.0
        %4500 = vmatprep.subr.mxu0 0.0
        %4501 = vmatpush1.msra.mxu0 0.0
        %4502 = vmatprep.subr.mxu0 0.0
        %4503 = vmatpush1.msra.mxu0 0.0
        %4504 = vmatprep.subr.mxu0 0.0
        %4505 = vmatpush1.msra.mxu0 0.0
        %4506 = vmatprep.subr.mxu0 0.0
        %4507 = vmatpush1.msra.mxu0 0.0
        %4508 = vmatprep.subr.mxu0 0.0
        %4509 = vmatpush1.msra.mxu0 0.0
        %4510 = vmatprep.subr.mxu0 0.0
        %4511 = vmatpush1.msra.mxu0 0.0
        %4512 = vmatprep.subr.mxu0 0.0
        %4513 = vmatpush1.msra.mxu0 0.0
        %4514 = vmatprep.subr.mxu0 0.0
        %4515 = vmatpush1.msra.mxu0 0.0
        %4516 = vmatprep.subr.mxu0 0.0
        %4517 = vmatpush1.msra.mxu0 0.0
        %4518 = vmatprep.subr.mxu0 0.0
        %4519 = vmatpush1.msra.mxu0 0.0
        %4520 = vmatprep.subr.mxu0 0.0
        %4521 = vmatpush1.msra.mxu0 0.0
        %4522 = vmatprep.subr.mxu0 0.0
        %4523 = vmatpush1.msra.mxu0 0.0
        %4524 = vmatprep.subr.mxu0 0.0
        %4525 = vmatpush1.msra.mxu0 0.0
        %4526 = vmatprep.subr.mxu0 0.0
        %4527 = vmatpush1.msra.mxu0 0.0
        %4528 = vmatprep.subr.mxu0 0.0
        %4529 = vmatpush1.msra.mxu0 0.0
        %4530 = vmatprep.subr.mxu0 0.0
        %4531 = vmatpush1.msra.mxu0 0.0
        %4532 = vmatprep.subr.mxu0 0.0
        %4533 = vmatpush1.msra.mxu0 0.0
        %4534 = vmatprep.mubr.f32.mxu0 0.0
        %4535 = vmatmul.mubr.f32.gmra.mrb[0].mxu0 %v3261
        %v4536 = vpop.f32.mrb[0].mxu0
        %v4537 = vadd.f32 %v4469, %v4536
        %v4538 = vpop.f32.mrb[0].mxu0
        %4539 = vmatprep.mubr.f32.mxu0 0.0
        %4540 = vmatmul.mubr.f32.gmra.mrb[0].mxu0 %v3264
        %v4541 = vpop.f32.mrb[0].mxu0
        %v4542 = vadd.f32 %v4469, %v4541
        %v4543 = vpop.f32.mrb[0].mxu0
        %4544 = vdwg.mxu0
        %v4546 = vsel %vm1141, %v4375, 0
        %v4549 = vsel %vm1141, %v4380, 0
        %v4552 = vsel %vm1141, %v4456, 0
        %v4555 = vsel %vm1141, %v4461, 0
        %4557 = vmatprep.subr.mxu0 0.0
        %4558 = vmatpush1.xpose.msra.mxu0 %v4552
        %4559 = vmatprep.subr.mxu0 0.0
        %4560 = vmatpush1.xpose.msra.mxu0 %v4555
        %4561 = vmatprep.subr.mxu0 0.0
        %4562 = vmatpush1.xpose.msra.mxu0 0.0
        %4563 = vmatprep.subr.mxu0 0.0
        %4564 = vmatpush1.xpose.msra.mxu0 0.0
        %4565 = vmatprep.subr.mxu0 0.0
        %4566 = vmatpush1.xpose.msra.mxu0 0.0
        %4567 = vmatprep.subr.mxu0 0.0
        %4568 = vmatpush1.xpose.msra.mxu0 0.0
        %4569 = vmatprep.subr.mxu0 0.0
        %4570 = vmatpush1.xpose.msra.mxu0 0.0
        %4571 = vmatprep.subr.mxu0 0.0
        %4572 = vmatpush1.xpose.msra.mxu0 0.0
        %4573 = vmatprep.subr.mxu0 0.0
        %4574 = vmatpush1.xpose.msra.mxu0 0.0
        %4575 = vmatprep.subr.mxu0 0.0
        %4576 = vmatpush1.xpose.msra.mxu0 0.0
        %4577 = vmatprep.subr.mxu0 0.0
        %4578 = vmatpush1.xpose.msra.mxu0 0.0
        %4579 = vmatprep.subr.mxu0 0.0
        %4580 = vmatpush1.xpose.msra.mxu0 0.0
        %4581 = vmatprep.subr.mxu0 0.0
        %4582 = vmatpush1.xpose.msra.mxu0 0.0
        %4583 = vmatprep.subr.mxu0 0.0
        %4584 = vmatpush1.xpose.msra.mxu0 0.0
        %4585 = vmatprep.subr.mxu0 0.0
        %4586 = vmatpush1.xpose.msra.mxu0 0.0
        %4587 = vmatprep.subr.mxu0 0.0
        %4588 = vmatpush1.xpose.msra.mxu0 0.0
        %4589 = vmatprep.subr.mxu0 0.0
        %4590 = vmatpush1.xpose.msra.mxu0 0.0
        %4591 = vmatprep.subr.mxu0 0.0
        %4592 = vmatpush1.xpose.msra.mxu0 0.0
        %4593 = vmatprep.subr.mxu0 0.0
        %4594 = vmatpush1.xpose.msra.mxu0 0.0
        %4595 = vmatprep.subr.mxu0 0.0
        %4596 = vmatpush1.xpose.msra.mxu0 0.0
        %4597 = vmatprep.subr.mxu0 0.0
        %4598 = vmatpush1.xpose.msra.mxu0 0.0
        %4599 = vmatprep.subr.mxu0 0.0
        %4600 = vmatpush1.xpose.msra.mxu0 0.0
        %4601 = vmatprep.subr.mxu0 0.0
        %4602 = vmatpush1.xpose.msra.mxu0 0.0
        %4603 = vmatprep.subr.mxu0 0.0
        %4604 = vmatpush1.xpose.msra.mxu0 0.0
        %4605 = vmatprep.subr.mxu0 0.0
        %4606 = vmatpush1.xpose.msra.mxu0 0.0
        %4607 = vmatprep.subr.mxu0 0.0
        %4608 = vmatpush1.xpose.msra.mxu0 0.0
        %4609 = vmatprep.subr.mxu0 0.0
        %4610 = vmatpush1.xpose.msra.mxu0 0.0
        %4611 = vmatprep.subr.mxu0 0.0
        %4612 = vmatpush1.xpose.msra.mxu0 0.0
        %4613 = vmatprep.subr.mxu0 0.0
        %4614 = vmatpush1.xpose.msra.mxu0 0.0
        %4615 = vmatprep.subr.mxu0 0.0
        %4616 = vmatpush1.xpose.msra.mxu0 0.0
        %4617 = vmatprep.subr.mxu0 0.0
        %4618 = vmatpush1.xpose.msra.mxu0 0.0
        %4619 = vmatprep.subr.mxu0 0.0
        %4620 = vmatpush1.xpose.msra.mxu0 0.0
        %4621 = vmatprep.mubr.f32.mxu0 0.0
        %4622 = vmatmul.mubr.f32.gmra.mrb[0].mxu0 %v4546
        %v4623 = vpop.f32.mrb[0].mxu0
        %v4624 = vadd.f32 %v222, %v4623
        %v4625 = vpop.f32.mrb[0].mxu0
        %4626 = vmatprep.mubr.f32.mxu0 0.0
        %4627 = vmatmul.mubr.f32.gmra.mrb[0].mxu0 %v4549
        %v4628 = vpop.f32.mrb[0].mxu0
        %v4629 = vadd.f32 %v223, %v4628
        %v4630 = vpop.f32.mrb[0].mxu0
        %4631 = vdwg.mxu0
        %v4632 = vsel %vm350, %v4624, -inf
        %4633 = vmax.xlane.f32.xlu0 %v4632
        %v4634 = vpop.xlane.xlu0 %4633
        %v4635 = vsel %vm350, %v4629, -inf
        %4636 = vmax.xlane.f32.xlu0 %v4635
        %v4637 = vpop.xlane.xlu0 %4636
        %v4638 = vsub.f32 %v4624, %v4634
        %v4639 = vsub.f32 %v4629, %v4637
        %v4640 = vmul.f32 %v4638, 1.442695
        %v4641 = vpow.pop %v4640
        %v4642 = vmul.f32 %v4639, 1.442695
        %v4643 = vpow.pop %v4642
        %v4644 = vsel %vm350, %v4641, 0.0
        %4645 = vadd.xlane.f32.xlu0 %v4644
        %v4646 = vpop.xlane.xlu0 %4645
        %v4647 = vsel %vm350, %v4643, 0.0
        %4648 = vadd.xlane.f32.xlu0 %v4647
        %v4649 = vpop.xlane.xlu0 %4648
        %v4650 = vrcp.pop %v4646
        %v4651 = vrcp.pop %v4649
        %v4652 = vmul.f32 %v4641, %v4650
        %v4653 = vmul.f32 %v4643, %v4651
        %v4655 = vsel %vm350, %v4652, 0
        %v4658 = vsel %vm350, %v4653, 0
        %4660 = vmatprep.subr.mxu0 0.0
        %4661 = vmatpush1.msra.mxu0 %v4537
        %4662 = vmatprep.subr.mxu0 0.0
        %4663 = vmatpush1.msra.mxu0 %v4542
        %4664 = vmatprep.subr.mxu0 0.0
        %4665 = vmatpush1.msra.mxu0 0.0
        %4666 = vmatprep.subr.mxu0 0.0
        %4667 = vmatpush1.msra.mxu0 0.0
        %4668 = vmatprep.subr.mxu0 0.0
        %4669 = vmatpush1.msra.mxu0 0.0
        %4670 = vmatprep.subr.mxu0 0.0
        %4671 = vmatpush1.msra.mxu0 0.0
        %4672 = vmatprep.subr.mxu0 0.0
        %4673 = vmatpush1.msra.mxu0 0.0
        %4674 = vmatprep.subr.mxu0 0.0
        %4675 = vmatpush1.msra.mxu0 0.0
        %4676 = vmatprep.subr.mxu0 0.0
        %4677 = vmatpush1.msra.mxu0 0.0
        %4678 = vmatprep.subr.mxu0 0.0
        %4679 = vmatpush1.msra.mxu0 0.0
        %4680 = vmatprep.subr.mxu0 0.0
        %4681 = vmatpush1.msra.mxu0 0.0
        %4682 = vmatprep.subr.mxu0 0.0
        %4683 = vmatpush1.msra.mxu0 0.0
        %4684 = vmatprep.subr.mxu0 0.0
        %4685 = vmatpush1.msra.mxu0 0.0
        %4686 = vmatprep.subr.mxu0 0.0
        %4687 = vmatpush1.msra.mxu0 0.0
        %4688 = vmatprep.subr.mxu0 0.0
        %4689 = vmatpush1.msra.mxu0 0.0
        %4690 = vmatprep.subr.mxu0 0.0
        %4691 = vmatpush1.msra.mxu0 0.0
        %4692 = vmatprep.subr.mxu0 0.0
        %4693 = vmatpush1.msra.mxu0 0.0
        %4694 = vmatprep.subr.mxu0 0.0
        %4695 = vmatpush1.msra.mxu0 0.0
        %4696 = vmatprep.subr.mxu0 0.0
        %4697 = vmatpush1.msra.mxu0 0.0
        %4698 = vmatprep.subr.mxu0 0.0
        %4699 = vmatpush1.msra.mxu0 0.0
        %4700 = vmatprep.subr.mxu0 0.0
        %4701 = vmatpush1.msra.mxu0 0.0
        %4702 = vmatprep.subr.mxu0 0.0
        %4703 = vmatpush1.msra.mxu0 0.0
        %4704 = vmatprep.subr.mxu0 0.0
        %4705 = vmatpush1.msra.mxu0 0.0
        %4706 = vmatprep.subr.mxu0 0.0
        %4707 = vmatpush1.msra.mxu0 0.0
        %4708 = vmatprep.subr.mxu0 0.0
        %4709 = vmatpush1.msra.mxu0 0.0
        %4710 = vmatprep.subr.mxu0 0.0
        %4711 = vmatpush1.msra.mxu0 0.0
        %4712 = vmatprep.subr.mxu0 0.0
        %4713 = vmatpush1.msra.mxu0 0.0
        %4714 = vmatprep.subr.mxu0 0.0
        %4715 = vmatpush1.msra.mxu0 0.0
        %4716 = vmatprep.subr.mxu0 0.0
        %4717 = vmatpush1.msra.mxu0 0.0
        %4718 = vmatprep.subr.mxu0 0.0
        %4719 = vmatpush1.msra.mxu0 0.0
        %4720 = vmatprep.subr.mxu0 0.0
        %4721 = vmatpush1.msra.mxu0 0.0
        %4722 = vmatprep.subr.mxu0 0.0
        %4723 = vmatpush1.msra.mxu0 0.0
        %4724 = vmatprep.mubr.f32.mxu0 0.0
        %4725 = vmatmul.mubr.f32.gmra.mrb[0].mxu0 %v4655
        %v4726 = vpop.f32.mrb[0].mxu0
        %v4727 = vadd.f32 0.0, %v4726
        %v4728 = vpop.f32.mrb[0].mxu0
        %4729 = vmatprep.mubr.f32.mxu0 0.0
        %4730 = vmatmul.mubr.f32.gmra.mrb[0].mxu0 %v4658
        %v4731 = vpop.f32.mrb[0].mxu0
        %v4732 = vadd.f32 0.0, %v4731
        %v4733 = vpop.f32.mrb[0].mxu0
        %4734 = vdwg.mxu0
        %v4735 = vld [vmem:[%s153 + $0x2f0] sm:$0xf]
        %v4737 = vsel %vm1141, %v4727, 0
        %v4740 = vsel %vm1141, %v4732, 0
        %v4743 = vsel %vm237, %v4735, 0
        %4745 = vmatprep.subr.mxu0 0.0
        %4746 = vmatpush1.msra.mxu0 %v4743
        %4747 = vmatprep.subr.mxu0 0.0
        %4748 = vmatpush1.msra.mxu0 0.0
        %4749 = vmatprep.subr.mxu0 0.0
        %4750 = vmatpush1.msra.mxu0 0.0
        %4751 = vmatprep.subr.mxu0 0.0
        %4752 = vmatpush1.msra.mxu0 0.0
        %4753 = vmatprep.subr.mxu0 0.0
        %4754 = vmatpush1.msra.mxu0 0.0
        %4755 = vmatprep.subr.mxu0 0.0
        %4756 = vmatpush1.msra.mxu0 0.0
        %4757 = vmatprep.subr.mxu0 0.0
        %4758 = vmatpush1.msra.mxu0 0.0
        %4759 = vmatprep.subr.mxu0 0.0
        %4760 = vmatpush1.msra.mxu0 0.0
        %4761 = vmatprep.subr.mxu0 0.0
        %4762 = vmatpush1.msra.mxu0 0.0
        %4763 = vmatprep.subr.mxu0 0.0
        %4764 = vmatpush1.msra.mxu0 0.0
        %4765 = vmatprep.subr.mxu0 0.0
        %4766 = vmatpush1.msra.mxu0 0.0
        %4767 = vmatprep.subr.mxu0 0.0
        %4768 = vmatpush1.msra.mxu0 0.0
        %4769 = vmatprep.subr.mxu0 0.0
        %4770 = vmatpush1.msra.mxu0 0.0
        %4771 = vmatprep.subr.mxu0 0.0
        %4772 = vmatpush1.msra.mxu0 0.0
        %4773 = vmatprep.subr.mxu0 0.0
        %4774 = vmatpush1.msra.mxu0 0.0
        %4775 = vmatprep.subr.mxu0 0.0
        %4776 = vmatpush1.msra.mxu0 0.0
        %4777 = vmatprep.subr.mxu0 0.0
        %4778 = vmatpush1.msra.mxu0 0.0
        %4779 = vmatprep.subr.mxu0 0.0
        %4780 = vmatpush1.msra.mxu0 0.0
        %4781 = vmatprep.subr.mxu0 0.0
        %4782 = vmatpush1.msra.mxu0 0.0
        %4783 = vmatprep.subr.mxu0 0.0
        %4784 = vmatpush1.msra.mxu0 0.0
        %4785 = vmatprep.subr.mxu0 0.0
        %4786 = vmatpush1.msra.mxu0 0.0
        %4787 = vmatprep.subr.mxu0 0.0
        %4788 = vmatpush1.msra.mxu0 0.0
        %4789 = vmatprep.subr.mxu0 0.0
        %4790 = vmatpush1.msra.mxu0 0.0
        %4791 = vmatprep.subr.mxu0 0.0
        %4792 = vmatpush1.msra.mxu0 0.0
        %4793 = vmatprep.subr.mxu0 0.0
        %4794 = vmatpush1.msra.mxu0 0.0
        %4795 = vmatprep.subr.mxu0 0.0
        %4796 = vmatpush1.msra.mxu0 0.0
        %4797 = vmatprep.subr.mxu0 0.0
        %4798 = vmatpush1.msra.mxu0 0.0
        %4799 = vmatprep.subr.mxu0 0.0
        %4800 = vmatpush1.msra.mxu0 0.0
        %4801 = vmatprep.subr.mxu0 0.0
        %4802 = vmatpush1.msra.mxu0 0.0
        %4803 = vmatprep.subr.mxu0 0.0
        %4804 = vmatpush1.msra.mxu0 0.0
        %4805 = vmatprep.subr.mxu0 0.0
        %4806 = vmatpush1.msra.mxu0 0.0
        %4807 = vmatprep.subr.mxu0 0.0
        %4808 = vmatpush1.msra.mxu0 0.0
        %4809 = vmatprep.mubr.f32.mxu0 0.0
        %4810 = vmatmul.mubr.f32.gmra.mrb[0].mxu0 %v4737
        %v4811 = vpop.f32.mrb[0].mxu0
        %v4812 = vadd.f32 0.0, %v4811
        %v4813 = vpop.f32.mrb[0].mxu0
        %4814 = vmatprep.mubr.f32.mxu0 0.0
        %4815 = vmatmul.mubr.f32.gmra.mrb[0].mxu0 %v4740
        %v4816 = vpop.f32.mrb[0].mxu0
        %v4817 = vadd.f32 0.0, %v4816
        %v4818 = vpop.f32.mrb[0].mxu0
        %4819 = vdwg.mxu0
        %v4820 = vadd.f32 %v4299, %v4812
        %v4821 = vadd.f32 %v4300, %v4817
        %v4822 = vld [vmem:[%s153 + $0x328] sm:$0x7]
        %v4823 = vld [vmem:[%s153 + $0x2f8] sm:$0xff]
        %v4824 = vld [vmem:[%s153 + $0x300] sm:$0xff]
        %v4825 = vlaneseq
        %v4826 = vshrl.u32 %v4825, 7
        %v4827 = vsub.s32 0, %v4826
        %v4828 = vrot.slane %v4822, %v4827
        %4829 = vmatprep.subr.mxu0 0.0
        %4830 = vmatpush1.msra.mxu0 %v4823
        %4831 = vmatprep.subr.mxu0 0.0
        %4832 = vmatpush1.msra.mxu0 %v4824
        %4833 = vmatprep.subr.mxu0 0.0
        %4834 = vmatpush1.msra.mxu0 0.0
        %4835 = vmatprep.subr.mxu0 0.0
        %4836 = vmatpush1.msra.mxu0 0.0
        %4837 = vmatprep.subr.mxu0 0.0
        %4838 = vmatpush1.msra.mxu0 0.0
        %4839 = vmatprep.subr.mxu0 0.0
        %4840 = vmatpush1.msra.mxu0 0.0
        %4841 = vmatprep.subr.mxu0 0.0
        %4842 = vmatpush1.msra.mxu0 0.0
        %4843 = vmatprep.subr.mxu0 0.0
        %4844 = vmatpush1.msra.mxu0 0.0
        %4845 = vmatprep.subr.mxu0 0.0
        %4846 = vmatpush1.msra.mxu0 0.0
        %4847 = vmatprep.subr.mxu0 0.0
        %4848 = vmatpush1.msra.mxu0 0.0
        %4849 = vmatprep.subr.mxu0 0.0
        %4850 = vmatpush1.msra.mxu0 0.0
        %4851 = vmatprep.subr.mxu0 0.0
        %4852 = vmatpush1.msra.mxu0 0.0
        %4853 = vmatprep.subr.mxu0 0.0
        %4854 = vmatpush1.msra.mxu0 0.0
        %4855 = vmatprep.subr.mxu0 0.0
        %4856 = vmatpush1.msra.mxu0 0.0
        %4857 = vmatprep.subr.mxu0 0.0
        %4858 = vmatpush1.msra.mxu0 0.0
        %4859 = vmatprep.subr.mxu0 0.0
        %4860 = vmatpush1.msra.mxu0 0.0
        %4861 = vmatprep.subr.mxu0 0.0
        %4862 = vmatpush1.msra.mxu0 0.0
        %4863 = vmatprep.subr.mxu0 0.0
        %4864 = vmatpush1.msra.mxu0 0.0
        %4865 = vmatprep.subr.mxu0 0.0
        %4866 = vmatpush1.msra.mxu0 0.0
        %4867 = vmatprep.subr.mxu0 0.0
        %4868 = vmatpush1.msra.mxu0 0.0
        %4869 = vmatprep.subr.mxu0 0.0
        %4870 = vmatpush1.msra.mxu0 0.0
        %4871 = vmatprep.subr.mxu0 0.0
        %4872 = vmatpush1.msra.mxu0 0.0
        %4873 = vmatprep.subr.mxu0 0.0
        %4874 = vmatpush1.msra.mxu0 0.0
        %4875 = vmatprep.subr.mxu0 0.0
        %4876 = vmatpush1.msra.mxu0 0.0
        %4877 = vmatprep.subr.mxu0 0.0
        %4878 = vmatpush1.msra.mxu0 0.0
        %4879 = vmatprep.subr.mxu0 0.0
        %4880 = vmatpush1.msra.mxu0 0.0
        %4881 = vmatprep.subr.mxu0 0.0
        %4882 = vmatpush1.msra.mxu0 0.0
        %4883 = vmatprep.subr.mxu0 0.0
        %4884 = vmatpush1.msra.mxu0 0.0
        %4885 = vmatprep.subr.mxu0 0.0
        %4886 = vmatpush1.msra.mxu0 0.0
        %4887 = vmatprep.subr.mxu0 0.0
        %4888 = vmatpush1.msra.mxu0 0.0
        %4889 = vmatprep.subr.mxu0 0.0
        %4890 = vmatpush1.msra.mxu0 0.0
        %4891 = vmatprep.subr.mxu0 0.0
        %4892 = vmatpush1.msra.mxu0 0.0
        %4893 = vmatprep.mubr.f32.mxu0 0.0
        %4894 = vmatmul.mubr.f32.gmra.mrb[0].mxu0 %v3261
        %v4895 = vpop.f32.mrb[0].mxu0
        %v4896 = vadd.f32 %v4828, %v4895
        %v4897 = vpop.f32.mrb[0].mxu0
        %4898 = vmatprep.mubr.f32.mxu0 0.0
        %4899 = vmatmul.mubr.f32.gmra.mrb[0].mxu0 %v3264
        %v4900 = vpop.f32.mrb[0].mxu0
        %v4901 = vadd.f32 %v4828, %v4900
        %v4902 = vpop.f32.mrb[0].mxu0
        %4903 = vdwg.mxu0
        %v4904 = vld [vmem:[%s153 + $0x308] sm:$0xff]
        %v4905 = vld [vmem:[%s153 + $0x310] sm:$0xff]
        %v4906 = vlaneseq
        %v4907 = vshrl.u32 %v4906, 7
        %v4908 = vsub.s32 1, %v4907
        %v4909 = vrot.slane %v4822, %v4908
        %4910 = vmatprep.subr.mxu0 0.0
        %4911 = vmatpush1.msra.mxu0 %v4904
        %4912 = vmatprep.subr.mxu0 0.0
        %4913 = vmatpush1.msra.mxu0 %v4905
        %4914 = vmatprep.subr.mxu0 0.0
        %4915 = vmatpush1.msra.mxu0 0.0
        %4916 = vmatprep.subr.mxu0 0.0
        %4917 = vmatpush1.msra.mxu0 0.0
        %4918 = vmatprep.subr.mxu0 0.0
        %4919 = vmatpush1.msra.mxu0 0.0
        %4920 = vmatprep.subr.mxu0 0.0
        %4921 = vmatpush1.msra.mxu0 0.0
        %4922 = vmatprep.subr.mxu0 0.0
        %4923 = vmatpush1.msra.mxu0 0.0
        %4924 = vmatprep.subr.mxu0 0.0
        %4925 = vmatpush1.msra.mxu0 0.0
        %4926 = vmatprep.subr.mxu0 0.0
        %4927 = vmatpush1.msra.mxu0 0.0
        %4928 = vmatprep.subr.mxu0 0.0
        %4929 = vmatpush1.msra.mxu0 0.0
        %4930 = vmatprep.subr.mxu0 0.0
        %4931 = vmatpush1.msra.mxu0 0.0
        %4932 = vmatprep.subr.mxu0 0.0
        %4933 = vmatpush1.msra.mxu0 0.0
        %4934 = vmatprep.subr.mxu0 0.0
        %4935 = vmatpush1.msra.mxu0 0.0
        %4936 = vmatprep.subr.mxu0 0.0
        %4937 = vmatpush1.msra.mxu0 0.0
        %4938 = vmatprep.subr.mxu0 0.0
        %4939 = vmatpush1.msra.mxu0 0.0
        %4940 = vmatprep.subr.mxu0 0.0
        %4941 = vmatpush1.msra.mxu0 0.0
        %4942 = vmatprep.subr.mxu0 0.0
        %4943 = vmatpush1.msra.mxu0 0.0
        %4944 = vmatprep.subr.mxu0 0.0
        %4945 = vmatpush1.msra.mxu0 0.0
        %4946 = vmatprep.subr.mxu0 0.0
        %4947 = vmatpush1.msra.mxu0 0.0
        %4948 = vmatprep.subr.mxu0 0.0
        %4949 = vmatpush1.msra.mxu0 0.0
        %4950 = vmatprep.subr.mxu0 0.0
        %4951 = vmatpush1.msra.mxu0 0.0
        %4952 = vmatprep.subr.mxu0 0.0
        %4953 = vmatpush1.msra.mxu0 0.0
        %4954 = vmatprep.subr.mxu0 0.0
        %4955 = vmatpush1.msra.mxu0 0.0
        %4956 = vmatprep.subr.mxu0 0.0
        %4957 = vmatpush1.msra.mxu0 0.0
        %4958 = vmatprep.subr.mxu0 0.0
        %4959 = vmatpush1.msra.mxu0 0.0
        %4960 = vmatprep.subr.mxu0 0.0
        %4961 = vmatpush1.msra.mxu0 0.0
        %4962 = vmatprep.subr.mxu0 0.0
        %4963 = vmatpush1.msra.mxu0 0.0
        %4964 = vmatprep.subr.mxu0 0.0
        %4965 = vmatpush1.msra.mxu0 0.0
        %4966 = vmatprep.subr.mxu0 0.0
        %4967 = vmatpush1.msra.mxu0 0.0
        %4968 = vmatprep.subr.mxu0 0.0
        %4969 = vmatpush1.msra.mxu0 0.0
        %4970 = vmatprep.subr.mxu0 0.0
        %4971 = vmatpush1.msra.mxu0 0.0
        %4972 = vmatprep.subr.mxu0 0.0
        %4973 = vmatpush1.msra.mxu0 0.0
        %4974 = vmatprep.mubr.f32.mxu0 0.0
        %4975 = vmatmul.mubr.f32.gmra.mrb[0].mxu0 %v3261
        %v4976 = vpop.f32.mrb[0].mxu0
        %v4977 = vadd.f32 %v4909, %v4976
        %v4978 = vpop.f32.mrb[0].mxu0
        %4979 = vmatprep.mubr.f32.mxu0 0.0
        %4980 = vmatmul.mubr.f32.gmra.mrb[0].mxu0 %v3264
        %v4981 = vpop.f32.mrb[0].mxu0
        %v4982 = vadd.f32 %v4909, %v4981
        %v4983 = vpop.f32.mrb[0].mxu0
        %4984 = vdwg.mxu0
        %v4985 = vld [vmem:[%s153 + $0x318] sm:$0xff]
        %v4986 = vld [vmem:[%s153 + $0x320] sm:$0xff]
        %v4987 = vlaneseq
        %v4988 = vshrl.u32 %v4987, 7
        %v4989 = vsub.s32 2, %v4988
        %v4990 = vrot.slane %v4822, %v4989
        %4991 = vmatprep.subr.mxu0 0.0
        %4992 = vmatpush1.msra.mxu0 %v4985
        %4993 = vmatprep.subr.mxu0 0.0
        %4994 = vmatpush1.msra.mxu0 %v4986
        %4995 = vmatprep.subr.mxu0 0.0
        %4996 = vmatpush1.msra.mxu0 0.0
        %4997 = vmatprep.subr.mxu0 0.0
        %4998 = vmatpush1.msra.mxu0 0.0
        %4999 = vmatprep.subr.mxu0 0.0
        %5000 = vmatpush1.msra.mxu0 0.0
        %5001 = vmatprep.subr.mxu0 0.0
        %5002 = vmatpush1.msra.mxu0 0.0
        %5003 = vmatprep.subr.mxu0 0.0
        %5004 = vmatpush1.msra.mxu0 0.0
        %5005 = vmatprep.subr.mxu0 0.0
        %5006 = vmatpush1.msra.mxu0 0.0
        %5007 = vmatprep.subr.mxu0 0.0
        %5008 = vmatpush1.msra.mxu0 0.0
        %5009 = vmatprep.subr.mxu0 0.0
        %5010 = vmatpush1.msra.mxu0 0.0
        %5011 = vmatprep.subr.mxu0 0.0
        %5012 = vmatpush1.msra.mxu0 0.0
        %5013 = vmatprep.subr.mxu0 0.0
        %5014 = vmatpush1.msra.mxu0 0.0
        %5015 = vmatprep.subr.mxu0 0.0
        %5016 = vmatpush1.msra.mxu0 0.0
        %5017 = vmatprep.subr.mxu0 0.0
        %5018 = vmatpush1.msra.mxu0 0.0
        %5019 = vmatprep.subr.mxu0 0.0
        %5020 = vmatpush1.msra.mxu0 0.0
        %5021 = vmatprep.subr.mxu0 0.0
        %5022 = vmatpush1.msra.mxu0 0.0
        %5023 = vmatprep.subr.mxu0 0.0
        %5024 = vmatpush1.msra.mxu0 0.0
        %5025 = vmatprep.subr.mxu0 0.0
        %5026 = vmatpush1.msra.mxu0 0.0
        %5027 = vmatprep.subr.mxu0 0.0
        %5028 = vmatpush1.msra.mxu0 0.0
        %5029 = vmatprep.subr.mxu0 0.0
        %5030 = vmatpush1.msra.mxu0 0.0
        %5031 = vmatprep.subr.mxu0 0.0
        %5032 = vmatpush1.msra.mxu0 0.0
        %5033 = vmatprep.subr.mxu0 0.0
        %5034 = vmatpush1.msra.mxu0 0.0
        %5035 = vmatprep.subr.mxu0 0.0
        %5036 = vmatpush1.msra.mxu0 0.0
        %5037 = vmatprep.subr.mxu0 0.0
        %5038 = vmatpush1.msra.mxu0 0.0
        %5039 = vmatprep.subr.mxu0 0.0
        %5040 = vmatpush1.msra.mxu0 0.0
        %5041 = vmatprep.subr.mxu0 0.0
        %5042 = vmatpush1.msra.mxu0 0.0
        %5043 = vmatprep.subr.mxu0 0.0
        %5044 = vmatpush1.msra.mxu0 0.0
        %5045 = vmatprep.subr.mxu0 0.0
        %5046 = vmatpush1.msra.mxu0 0.0
        %5047 = vmatprep.subr.mxu0 0.0
        %5048 = vmatpush1.msra.mxu0 0.0
        %5049 = vmatprep.subr.mxu0 0.0
        %5050 = vmatpush1.msra.mxu0 0.0
        %5051 = vmatprep.subr.mxu0 0.0
        %5052 = vmatpush1.msra.mxu0 0.0
        %5053 = vmatprep.subr.mxu0 0.0
        %5054 = vmatpush1.msra.mxu0 0.0
        %5055 = vmatprep.mubr.f32.mxu0 0.0
        %5056 = vmatmul.mubr.f32.gmra.mrb[0].mxu0 %v3261
        %v5057 = vpop.f32.mrb[0].mxu0
        %v5058 = vadd.f32 %v4990, %v5057
        %v5059 = vpop.f32.mrb[0].mxu0
        %5060 = vmatprep.mubr.f32.mxu0 0.0
        %5061 = vmatmul.mubr.f32.gmra.mrb[0].mxu0 %v3264
        %v5062 = vpop.f32.mrb[0].mxu0
        %v5063 = vadd.f32 %v4990, %v5062
        %v5064 = vpop.f32.mrb[0].mxu0
        %5065 = vdwg.mxu0
        %v5067 = vsel %vm1141, %v4896, 0
        %v5070 = vsel %vm1141, %v4901, 0
        %v5073 = vsel %vm1141, %v4977, 0
        %v5076 = vsel %vm1141, %v4982, 0
        %5078 = vmatprep.subr.mxu0 0.0
        %5079 = vmatpush1.xpose.msra.mxu0 %v5073
        %5080 = vmatprep.subr.mxu0 0.0
        %5081 = vmatpush1.xpose.msra.mxu0 %v5076
        %5082 = vmatprep.subr.mxu0 0.0
        %5083 = vmatpush1.xpose.msra.mxu0 0.0
        %5084 = vmatprep.subr.mxu0 0.0
        %5085 = vmatpush1.xpose.msra.mxu0 0.0
        %5086 = vmatprep.subr.mxu0 0.0
        %5087 = vmatpush1.xpose.msra.mxu0 0.0
        %5088 = vmatprep.subr.mxu0 0.0
        %5089 = vmatpush1.xpose.msra.mxu0 0.0
        %5090 = vmatprep.subr.mxu0 0.0
        %5091 = vmatpush1.xpose.msra.mxu0 0.0
        %5092 = vmatprep.subr.mxu0 0.0
        %5093 = vmatpush1.xpose.msra.mxu0 0.0
        %5094 = vmatprep.subr.mxu0 0.0
        %5095 = vmatpush1.xpose.msra.mxu0 0.0
        %5096 = vmatprep.subr.mxu0 0.0
        %5097 = vmatpush1.xpose.msra.mxu0 0.0
        %5098 = vmatprep.subr.mxu0 0.0
        %5099 = vmatpush1.xpose.msra.mxu0 0.0
        %5100 = vmatprep.subr.mxu0 0.0
        %5101 = vmatpush1.xpose.msra.mxu0 0.0
        %5102 = vmatprep.subr.mxu0 0.0
        %5103 = vmatpush1.xpose.msra.mxu0 0.0
        %5104 = vmatprep.subr.mxu0 0.0
        %5105 = vmatpush1.xpose.msra.mxu0 0.0
        %5106 = vmatprep.subr.mxu0 0.0
        %5107 = vmatpush1.xpose.msra.mxu0 0.0
        %5108 = vmatprep.subr.mxu0 0.0
        %5109 = vmatpush1.xpose.msra.mxu0 0.0
        %5110 = vmatprep.subr.mxu0 0.0
        %5111 = vmatpush1.xpose.msra.mxu0 0.0
        %5112 = vmatprep.subr.mxu0 0.0
        %5113 = vmatpush1.xpose.msra.mxu0 0.0
        %5114 = vmatprep.subr.mxu0 0.0
        %5115 = vmatpush1.xpose.msra.mxu0 0.0
        %5116 = vmatprep.subr.mxu0 0.0
        %5117 = vmatpush1.xpose.msra.mxu0 0.0
        %5118 = vmatprep.subr.mxu0 0.0
        %5119 = vmatpush1.xpose.msra.mxu0 0.0
        %5120 = vmatprep.subr.mxu0 0.0
        %5121 = vmatpush1.xpose.msra.mxu0 0.0
        %5122 = vmatprep.subr.mxu0 0.0
        %5123 = vmatpush1.xpose.msra.mxu0 0.0
        %5124 = vmatprep.subr.mxu0 0.0
        %5125 = vmatpush1.xpose.msra.mxu0 0.0
        %5126 = vmatprep.subr.mxu0 0.0
        %5127 = vmatpush1.xpose.msra.mxu0 0.0
        %5128 = vmatprep.subr.mxu0 0.0
        %5129 = vmatpush1.xpose.msra.mxu0 0.0
        %5130 = vmatprep.subr.mxu0 0.0
        %5131 = vmatpush1.xpose.msra.mxu0 0.0
        %5132 = vmatprep.subr.mxu0 0.0
        %5133 = vmatpush1.xpose.msra.mxu0 0.0
        %5134 = vmatprep.subr.mxu0 0.0
        %5135 = vmatpush1.xpose.msra.mxu0 0.0
        %5136 = vmatprep.subr.mxu0 0.0
        %5137 = vmatpush1.xpose.msra.mxu0 0.0
        %5138 = vmatprep.subr.mxu0 0.0
        %5139 = vmatpush1.xpose.msra.mxu0 0.0
        %5140 = vmatprep.subr.mxu0 0.0
        %5141 = vmatpush1.xpose.msra.mxu0 0.0
        %5142 = vmatprep.mubr.f32.mxu0 0.0
        %5143 = vmatmul.mubr.f32.gmra.mrb[0].mxu0 %v5067
        %v5144 = vpop.f32.mrb[0].mxu0
        %v5145 = vadd.f32 %v222, %v5144
        %v5146 = vpop.f32.mrb[0].mxu0
        %5147 = vmatprep.mubr.f32.mxu0 0.0
        %5148 = vmatmul.mubr.f32.gmra.mrb[0].mxu0 %v5070
        %v5149 = vpop.f32.mrb[0].mxu0
        %v5150 = vadd.f32 %v223, %v5149
        %v5151 = vpop.f32.mrb[0].mxu0
        %5152 = vdwg.mxu0
        %v5153 = vsel %vm350, %v5145, -inf
        %5154 = vmax.xlane.f32.xlu0 %v5153
        %v5155 = vpop.xlane.xlu0 %5154
        %v5156 = vsel %vm350, %v5150, -inf
        %5157 = vmax.xlane.f32.xlu0 %v5156
        %v5158 = vpop.xlane.xlu0 %5157
        %v5159 = vsub.f32 %v5145, %v5155
        %v5160 = vsub.f32 %v5150, %v5158
        %v5161 = vmul.f32 %v5159, 1.442695
        %v5162 = vpow.pop %v5161
        %v5163 = vmul.f32 %v5160, 1.442695
        %v5164 = vpow.pop %v5163
        %v5165 = vsel %vm350, %v5162, 0.0
        %5166 = vadd.xlane.f32.xlu0 %v5165
        %v5167 = vpop.xlane.xlu0 %5166
        %v5168 = vsel %vm350, %v5164, 0.0
        %5169 = vadd.xlane.f32.xlu0 %v5168
        %v5170 = vpop.xlane.xlu0 %5169
        %v5171 = vrcp.pop %v5167
        %v5172 = vrcp.pop %v5170
        %v5173 = vmul.f32 %v5162, %v5171
        %v5174 = vmul.f32 %v5164, %v5172
        %v5176 = vsel %vm350, %v5173, 0
        %v5179 = vsel %vm350, %v5174, 0
        %5181 = vmatprep.subr.mxu0 0.0
        %5182 = vmatpush1.msra.mxu0 %v5058
        %5183 = vmatprep.subr.mxu0 0.0
        %5184 = vmatpush1.msra.mxu0 %v5063
        %5185 = vmatprep.subr.mxu0 0.0
        %5186 = vmatpush1.msra.mxu0 0.0
        %5187 = vmatprep.subr.mxu0 0.0
        %5188 = vmatpush1.msra.mxu0 0.0
        %5189 = vmatprep.subr.mxu0 0.0
        %5190 = vmatpush1.msra.mxu0 0.0
        %5191 = vmatprep.subr.mxu0 0.0
        %5192 = vmatpush1.msra.mxu0 0.0
        %5193 = vmatprep.subr.mxu0 0.0
        %5194 = vmatpush1.msra.mxu0 0.0
        %5195 = vmatprep.subr.mxu0 0.0
        %5196 = vmatpush1.msra.mxu0 0.0
        %5197 = vmatprep.subr.mxu0 0.0
        %5198 = vmatpush1.msra.mxu0 0.0
        %5199 = vmatprep.subr.mxu0 0.0
        %5200 = vmatpush1.msra.mxu0 0.0
        %5201 = vmatprep.subr.mxu0 0.0
        %5202 = vmatpush1.msra.mxu0 0.0
        %5203 = vmatprep.subr.mxu0 0.0
        %5204 = vmatpush1.msra.mxu0 0.0
        %5205 = vmatprep.subr.mxu0 0.0
        %5206 = vmatpush1.msra.mxu0 0.0
        %5207 = vmatprep.subr.mxu0 0.0
        %5208 = vmatpush1.msra.mxu0 0.0
        %5209 = vmatprep.subr.mxu0 0.0
        %5210 = vmatpush1.msra.mxu0 0.0
        %5211 = vmatprep.subr.mxu0 0.0
        %5212 = vmatpush1.msra.mxu0 0.0
        %5213 = vmatprep.subr.mxu0 0.0
        %5214 = vmatpush1.msra.mxu0 0.0
        %5215 = vmatprep.subr.mxu0 0.0
        %5216 = vmatpush1.msra.mxu0 0.0
        %5217 = vmatprep.subr.mxu0 0.0
        %5218 = vmatpush1.msra.mxu0 0.0
        %5219 = vmatprep.subr.mxu0 0.0
        %5220 = vmatpush1.msra.mxu0 0.0
        %5221 = vmatprep.subr.mxu0 0.0
        %5222 = vmatpush1.msra.mxu0 0.0
        %5223 = vmatprep.subr.mxu0 0.0
        %5224 = vmatpush1.msra.mxu0 0.0
        %5225 = vmatprep.subr.mxu0 0.0
        %5226 = vmatpush1.msra.mxu0 0.0
        %5227 = vmatprep.subr.mxu0 0.0
        %5228 = vmatpush1.msra.mxu0 0.0
        %5229 = vmatprep.subr.mxu0 0.0
        %5230 = vmatpush1.msra.mxu0 0.0
        %5231 = vmatprep.subr.mxu0 0.0
        %5232 = vmatpush1.msra.mxu0 0.0
        %5233 = vmatprep.subr.mxu0 0.0
        %5234 = vmatpush1.msra.mxu0 0.0
        %5235 = vmatprep.subr.mxu0 0.0
        %5236 = vmatpush1.msra.mxu0 0.0
        %5237 = vmatprep.subr.mxu0 0.0
        %5238 = vmatpush1.msra.mxu0 0.0
        %5239 = vmatprep.subr.mxu0 0.0
        %5240 = vmatpush1.msra.mxu0 0.0
        %5241 = vmatprep.subr.mxu0 0.0
        %5242 = vmatpush1.msra.mxu0 0.0
        %5243 = vmatprep.subr.mxu0 0.0
        %5244 = vmatpush1.msra.mxu0 0.0
        %5245 = vmatprep.mubr.f32.mxu0 0.0
        %5246 = vmatmul.mubr.f32.gmra.mrb[0].mxu0 %v5176
        %v5247 = vpop.f32.mrb[0].mxu0
        %v5248 = vadd.f32 0.0, %v5247
        %v5249 = vpop.f32.mrb[0].mxu0
        %5250 = vmatprep.mubr.f32.mxu0 0.0
        %5251 = vmatmul.mubr.f32.gmra.mrb[0].mxu0 %v5179
        %v5252 = vpop.f32.mrb[0].mxu0
        %v5253 = vadd.f32 0.0, %v5252
        %v5254 = vpop.f32.mrb[0].mxu0
        %5255 = vdwg.mxu0
        %v5256 = vld [vmem:[%s153 + $0x330] sm:$0xf]
        %v5258 = vsel %vm1141, %v5248, 0
        %v5261 = vsel %vm1141, %v5253, 0
        %v5264 = vsel %vm237, %v5256, 0
        %5266 = vmatprep.subr.mxu0 0.0
        %5267 = vmatpush1.msra.mxu0 %v5264
        %5268 = vmatprep.subr.mxu0 0.0
        %5269 = vmatpush1.msra.mxu0 0.0
        %5270 = vmatprep.subr.mxu0 0.0
        %5271 = vmatpush1.msra.mxu0 0.0
        %5272 = vmatprep.subr.mxu0 0.0
        %5273 = vmatpush1.msra.mxu0 0.0
        %5274 = vmatprep.subr.mxu0 0.0
        %5275 = vmatpush1.msra.mxu0 0.0
        %5276 = vmatprep.subr.mxu0 0.0
        %5277 = vmatpush1.msra.mxu0 0.0
        %5278 = vmatprep.subr.mxu0 0.0
        %5279 = vmatpush1.msra.mxu0 0.0
        %5280 = vmatprep.subr.mxu0 0.0
        %5281 = vmatpush1.msra.mxu0 0.0
        %5282 = vmatprep.subr.mxu0 0.0
        %5283 = vmatpush1.msra.mxu0 0.0
        %5284 = vmatprep.subr.mxu0 0.0
        %5285 = vmatpush1.msra.mxu0 0.0
        %5286 = vmatprep.subr.mxu0 0.0
        %5287 = vmatpush1.msra.mxu0 0.0
        %5288 = vmatprep.subr.mxu0 0.0
        %5289 = vmatpush1.msra.mxu0 0.0
        %5290 = vmatprep.subr.mxu0 0.0
        %5291 = vmatpush1.msra.mxu0 0.0
        %5292 = vmatprep.subr.mxu0 0.0
        %5293 = vmatpush1.msra.mxu0 0.0
        %5294 = vmatprep.subr.mxu0 0.0
        %5295 = vmatpush1.msra.mxu0 0.0
        %5296 = vmatprep.subr.mxu0 0.0
        %5297 = vmatpush1.msra.mxu0 0.0
        %5298 = vmatprep.subr.mxu0 0.0
        %5299 = vmatpush1.msra.mxu0 0.0
        %5300 = vmatprep.subr.mxu0 0.0
        %5301 = vmatpush1.msra.mxu0 0.0
        %5302 = vmatprep.subr.mxu0 0.0
        %5303 = vmatpush1.msra.mxu0 0.0
        %5304 = vmatprep.subr.mxu0 0.0
        %5305 = vmatpush1.msra.mxu0 0.0
        %5306 = vmatprep.subr.mxu0 0.0
        %5307 = vmatpush1.msra.mxu0 0.0
        %5308 = vmatprep.subr.mxu0 0.0
        %5309 = vmatpush1.msra.mxu0 0.0
        %5310 = vmatprep.subr.mxu0 0.0
        %5311 = vmatpush1.msra.mxu0 0.0
        %5312 = vmatprep.subr.mxu0 0.0
        %5313 = vmatpush1.msra.mxu0 0.0
        %5314 = vmatprep.subr.mxu0 0.0
        %5315 = vmatpush1.msra.mxu0 0.0
        %5316 = vmatprep.subr.mxu0 0.0
        %5317 = vmatpush1.msra.mxu0 0.0
        %5318 = vmatprep.subr.mxu0 0.0
        %5319 = vmatpush1.msra.mxu0 0.0
        %5320 = vmatprep.subr.mxu0 0.0
        %5321 = vmatpush1.msra.mxu0 0.0
        %5322 = vmatprep.subr.mxu0 0.0
        %5323 = vmatpush1.msra.mxu0 0.0
        %5324 = vmatprep.subr.mxu0 0.0
        %5325 = vmatpush1.msra.mxu0 0.0
        %5326 = vmatprep.subr.mxu0 0.0
        %5327 = vmatpush1.msra.mxu0 0.0
        %5328 = vmatprep.subr.mxu0 0.0
        %5329 = vmatpush1.msra.mxu0 0.0
        %5330 = vmatprep.mubr.f32.mxu0 0.0
        %5331 = vmatmul.mubr.f32.gmra.mrb[0].mxu0 %v5258
        %v5332 = vpop.f32.mrb[0].mxu0
        %v5333 = vadd.f32 0.0, %v5332
        %v5334 = vpop.f32.mrb[0].mxu0
        %5335 = vmatprep.mubr.f32.mxu0 0.0
        %5336 = vmatmul.mubr.f32.gmra.mrb[0].mxu0 %v5261
        %v5337 = vpop.f32.mrb[0].mxu0
        %v5338 = vadd.f32 0.0, %v5337
        %v5339 = vpop.f32.mrb[0].mxu0
        %5340 = vdwg.mxu0
        %v5341 = vadd.f32 %v4820, %v5333
        %v5342 = vadd.f32 %v4821, %v5338
        %v5343 = vadd.f32 %v3245, %v5341
        %v5344 = vadd.f32 %v3246, %v5342
        %v5345 = vld [vmem:[%s153 + $0x380] sm:$0x1]
        %v5346 = vld [vmem:[%s153 + $0x388] sm:$0x1]
        %v5347 = vsel %vm350, %v5343, 0.0
        %5348 = vadd.xlane.f32.xlu0 %v5347
        %v5349 = vpop.xlane.xlu0 %5348
        %v5350 = vsel %vm350, %v5344, 0.0
        %5351 = vadd.xlane.f32.xlu0 %v5350
        %v5352 = vpop.xlane.xlu0 %5351
        %v5353 = vmul.f32 %v5349, %v2992
        %v5354 = vmul.f32 %v5352, %v2992
        %v5355 = vsub.f32 %v5343, %v5353
        %v5356 = vsub.f32 %v5344, %v5354
        %v5357 = vmul.f32 %v5355, %v5355
        %v5358 = vmul.f32 %v5356, %v5356
        %v5359 = vsel %vm350, %v5357, 0.0
        %5360 = vadd.xlane.f32.xlu0 %v5359
        %v5361 = vpop.xlane.xlu0 %5360
        %v5362 = vsel %vm350, %v5358, 0.0
        %5363 = vadd.xlane.f32.xlu0 %v5362
        %v5364 = vpop.xlane.xlu0 %5363
        %v5365 = vmul.f32 %v5361, %v2992
        %v5366 = vmul.f32 %v5364, %v2992
        %v5367 = vadd.f32 %v5365, 1e-05
        %v5368 = vadd.f32 %v5366, 1e-05
        %v5369 = vrsqrt.pop %v5367
        %v5370 = vrsqrt.pop %v5368
        %v5371 = vmul.f32 %v5355, %v5369
        %v5372 = vmul.f32 %v5356, %v5370
        %v5373 = vlaneseq
        %v5374 = vshrl.u32 %v5373, 7
        %v5375 = vsub.s32 0, %v5374
        %v5376 = vrot.slane %v5345, %v5375
        %v5377 = vmul.f32 %v5371, %v5376
        %v5378 = vmul.f32 %v5372, %v5376
        %v5379 = vlaneseq
        %v5380 = vshrl.u32 %v5379, 7
        %v5381 = vsub.s32 0, %v5380
        %v5382 = vrot.slane %v5346, %v5381
        %v5383 = vadd.f32 %v5377, %v5382
        %v5384 = vadd.f32 %v5378, %v5382
        %v5385 = vld [vmem:[%s153 + $0x340] sm:$0xff]
        %v5386 = vld [vmem:[%s153 + $0x348] sm:$0xff]
        %v5387 = vld [vmem:[%s153 + $0x350] sm:$0x1]
        %v5388 = vlaneseq
        %v5389 = vshrl.u32 %v5388, 7
        %v5390 = vsub.s32 0, %v5389
        %v5391 = vrot.slane %v5387, %v5390
        %v5393 = vsel %vm350, %v5383, 0
        %v5396 = vsel %vm350, %v5384, 0
        %5398 = vmatprep.subr.mxu0 0.0
        %5399 = vmatpush1.msra.mxu0 %v5385
        %5400 = vmatprep.subr.mxu0 0.0
        %5401 = vmatpush1.msra.mxu0 %v5386
        %5402 = vmatprep.subr.mxu0 0.0
        %5403 = vmatpush1.msra.mxu0 0.0
        %5404 = vmatprep.subr.mxu0 0.0
        %5405 = vmatpush1.msra.mxu0 0.0
        %5406 = vmatprep.subr.mxu0 0.0
        %5407 = vmatpush1.msra.mxu0 0.0
        %5408 = vmatprep.subr.mxu0 0.0
        %5409 = vmatpush1.msra.mxu0 0.0
        %5410 = vmatprep.subr.mxu0 0.0
        %5411 = vmatpush1.msra.mxu0 0.0
        %5412 = vmatprep.subr.mxu0 0.0
        %5413 = vmatpush1.msra.mxu0 0.0
        %5414 = vmatprep.subr.mxu0 0.0
        %5415 = vmatpush1.msra.mxu0 0.0
        %5416 = vmatprep.subr.mxu0 0.0
        %5417 = vmatpush1.msra.mxu0 0.0
        %5418 = vmatprep.subr.mxu0 0.0
        %5419 = vmatpush1.msra.mxu0 0.0
        %5420 = vmatprep.subr.mxu0 0.0
        %5421 = vmatpush1.msra.mxu0 0.0
        %5422 = vmatprep.subr.mxu0 0.0
        %5423 = vmatpush1.msra.mxu0 0.0
        %5424 = vmatprep.subr.mxu0 0.0
        %5425 = vmatpush1.msra.mxu0 0.0
        %5426 = vmatprep.subr.mxu0 0.0
        %5427 = vmatpush1.msra.mxu0 0.0
        %5428 = vmatprep.subr.mxu0 0.0
        %5429 = vmatpush1.msra.mxu0 0.0
        %5430 = vmatprep.subr.mxu0 0.0
        %5431 = vmatpush1.msra.mxu0 0.0
        %5432 = vmatprep.subr.mxu0 0.0
        %5433 = vmatpush1.msra.mxu0 0.0
        %5434 = vmatprep.subr.mxu0 0.0
        %5435 = vmatpush1.msra.mxu0 0.0
        %5436 = vmatprep.subr.mxu0 0.0
        %5437 = vmatpush1.msra.mxu0 0.0
        %5438 = vmatprep.subr.mxu0 0.0
        %5439 = vmatpush1.msra.mxu0 0.0
        %5440 = vmatprep.subr.mxu0 0.0
        %5441 = vmatpush1.msra.mxu0 0.0
        %5442 = vmatprep.subr.mxu0 0.0
        %5443 = vmatpush1.msra.mxu0 0.0
        %5444 = vmatprep.subr.mxu0 0.0
        %5445 = vmatpush1.msra.mxu0 0.0
        %5446 = vmatprep.subr.mxu0 0.0
        %5447 = vmatpush1.msra.mxu0 0.0
        %5448 = vmatprep.subr.mxu0 0.0
        %5449 = vmatpush1.msra.mxu0 0.0
        %5450 = vmatprep.subr.mxu0 0.0
        %5451 = vmatpush1.msra.mxu0 0.0
        %5452 = vmatprep.subr.mxu0 0.0
        %5453 = vmatpush1.msra.mxu0 0.0
        %5454 = vmatprep.subr.mxu0 0.0
        %5455 = vmatpush1.msra.mxu0 0.0
        %5456 = vmatprep.subr.mxu0 0.0
        %5457 = vmatpush1.msra.mxu0 0.0
        %5458 = vmatprep.subr.mxu0 0.0
        %5459 = vmatpush1.msra.mxu0 0.0
        %5460 = vmatprep.subr.mxu0 0.0
        %5461 = vmatpush1.msra.mxu0 0.0
        %5462 = vmatprep.mubr.f32.mxu0 0.0
        %5463 = vmatmul.mubr.f32.gmra.mrb[0].mxu0 %v5393
        %v5464 = vpop.f32.mrb[0].mxu0
        %v5465 = vadd.f32 %v5391, %v5464
        %v5466 = vpop.f32.mrb[0].mxu0
        %5467 = vmatprep.mubr.f32.mxu0 0.0
        %5468 = vmatmul.mubr.f32.gmra.mrb[0].mxu0 %v5396
        %v5469 = vpop.f32.mrb[0].mxu0
        %v5470 = vadd.f32 %v5391, %v5469
        %v5471 = vpop.f32.mrb[0].mxu0
        %5472 = vdwg.mxu0
        %v5473 = vmax.f32 %v5465, 0.0
        %v5474 = vmax.f32 %v5470, 0.0
        %v5475 = vld [vmem:[%s153 + $0x358] sm:$0xff]
        %v5476 = vld [vmem:[%s153 + $0x360] sm:$0xff]
        %v5477 = vld [vmem:[%s153 + $0x368] sm:$0xff]
        %v5478 = vld [vmem:[%s153 + $0x370] sm:$0xff]
        %v5479 = vld [vmem:[%s153 + $0x378] sm:$0x1]
        %v5480 = vlaneseq
        %v5481 = vshrl.u32 %v5480, 7
        %v5482 = vsub.s32 0, %v5481
        %v5483 = vrot.slane %v5479, %v5482
        %v5485 = vsel %vm353, %v5473, 0
        %v5488 = vsel %vm353, %v5474, 0
        %5490 = vmatprep.subr.mxu0 0.0
        %5491 = vmatpush1.msra.mxu0 %v5475
        %5492 = vmatprep.subr.mxu0 0.0
        %5493 = vmatpush1.msra.mxu0 %v5476
        %5494 = vmatprep.subr.mxu0 0.0
        %5495 = vmatpush1.msra.mxu0 %v5477
        %5496 = vmatprep.subr.mxu0 0.0
        %5497 = vmatpush1.msra.mxu0 %v5478
        %5498 = vmatprep.subr.mxu0 0.0
        %5499 = vmatpush1.msra.mxu0 0.0
        %5500 = vmatprep.subr.mxu0 0.0
        %5501 = vmatpush1.msra.mxu0 0.0
        %5502 = vmatprep.subr.mxu0 0.0
        %5503 = vmatpush1.msra.mxu0 0.0
        %5504 = vmatprep.subr.mxu0 0.0
        %5505 = vmatpush1.msra.mxu0 0.0
        %5506 = vmatprep.subr.mxu0 0.0
        %5507 = vmatpush1.msra.mxu0 0.0
        %5508 = vmatprep.subr.mxu0 0.0
        %5509 = vmatpush1.msra.mxu0 0.0
        %5510 = vmatprep.subr.mxu0 0.0
        %5511 = vmatpush1.msra.mxu0 0.0
        %5512 = vmatprep.subr.mxu0 0.0
        %5513 = vmatpush1.msra.mxu0 0.0
        %5514 = vmatprep.subr.mxu0 0.0
        %5515 = vmatpush1.msra.mxu0 0.0
        %5516 = vmatprep.subr.mxu0 0.0
        %5517 = vmatpush1.msra.mxu0 0.0
        %5518 = vmatprep.subr.mxu0 0.0
        %5519 = vmatpush1.msra.mxu0 0.0
        %5520 = vmatprep.subr.mxu0 0.0
        %5521 = vmatpush1.msra.mxu0 0.0
        %5522 = vmatprep.subr.mxu0 0.0
        %5523 = vmatpush1.msra.mxu0 0.0
        %5524 = vmatprep.subr.mxu0 0.0
        %5525 = vmatpush1.msra.mxu0 0.0
        %5526 = vmatprep.subr.mxu0 0.0
        %5527 = vmatpush1.msra.mxu0 0.0
        %5528 = vmatprep.subr.mxu0 0.0
        %5529 = vmatpush1.msra.mxu0 0.0
        %5530 = vmatprep.subr.mxu0 0.0
        %5531 = vmatpush1.msra.mxu0 0.0
        %5532 = vmatprep.subr.mxu0 0.0
        %5533 = vmatpush1.msra.mxu0 0.0
        %5534 = vmatprep.subr.mxu0 0.0
        %5535 = vmatpush1.msra.mxu0 0.0
        %5536 = vmatprep.subr.mxu0 0.0
        %5537 = vmatpush1.msra.mxu0 0.0
        %5538 = vmatprep.subr.mxu0 0.0
        %5539 = vmatpush1.msra.mxu0 0.0
        %5540 = vmatprep.subr.mxu0 0.0
        %5541 = vmatpush1.msra.mxu0 0.0
        %5542 = vmatprep.subr.mxu0 0.0
        %5543 = vmatpush1.msra.mxu0 0.0
        %5544 = vmatprep.subr.mxu0 0.0
        %5545 = vmatpush1.msra.mxu0 0.0
        %5546 = vmatprep.subr.mxu0 0.0
        %5547 = vmatpush1.msra.mxu0 0.0
        %5548 = vmatprep.subr.mxu0 0.0
        %5549 = vmatpush1.msra.mxu0 0.0
        %5550 = vmatprep.subr.mxu0 0.0
        %5551 = vmatpush1.msra.mxu0 0.0
        %5552 = vmatprep.subr.mxu0 0.0
        %5553 = vmatpush1.msra.mxu0 0.0
        %5554 = vmatprep.mubr.f32.mxu0 0.0
        %5555 = vmatmul.mubr.f32.gmra.mrb[0].mxu0 %v5485
        %v5556 = vpop.f32.mrb[0].mxu0
        %v5557 = vadd.f32 %v5483, %v5556
        %v5558 = vpop.f32.mrb[0].mxu0
        %5559 = vmatprep.mubr.f32.mxu0 0.0
        %5560 = vmatmul.mubr.f32.gmra.mrb[0].mxu0 %v5488
        %v5561 = vpop.f32.mrb[0].mxu0
        %v5562 = vadd.f32 %v5483, %v5561
        %v5563 = vpop.f32.mrb[0].mxu0
        %5564 = vdwg.mxu0
        %v5565 = vadd.f32 %v5383, %v5557
        %v5566 = vadd.f32 %v5384, %v5562
        %v5567 = vld [vmem:[%s153 + $0x390] sm:$0x1]
        %v5568 = vld [vmem:[%s153 + $0x398] sm:$0x1]
        %v5569 = vsel %vm350, %v5565, 0.0
        %5570 = vadd.xlane.f32.xlu0 %v5569
        %v5571 = vpop.xlane.xlu0 %5570
        %v5572 = vsel %vm350, %v5566, 0.0
        %5573 = vadd.xlane.f32.xlu0 %v5572
        %v5574 = vpop.xlane.xlu0 %5573
        %v5575 = vmul.f32 %v5571, %v2992
        %v5576 = vmul.f32 %v5574, %v2992
        %v5577 = vsub.f32 %v5565, %v5575
        %v5578 = vsub.f32 %v5566, %v5576
        %v5579 = vmul.f32 %v5577, %v5577
        %v5580 = vmul.f32 %v5578, %v5578
        %v5581 = vsel %vm350, %v5579, 0.0
        %5582 = vadd.xlane.f32.xlu0 %v5581
        %v5583 = vpop.xlane.xlu0 %5582
        %v5584 = vsel %vm350, %v5580, 0.0
        %5585 = vadd.xlane.f32.xlu0 %v5584
        %v5586 = vpop.xlane.xlu0 %5585
        %v5587 = vmul.f32 %v5583, %v2992
        %v5588 = vmul.f32 %v5586, %v2992
        %v5589 = vadd.f32 %v5587, 1e-05
        %v5590 = vadd.f32 %v5588, 1e-05
        %v5591 = vrsqrt.pop %v5589
        %v5592 = vrsqrt.pop %v5590
        %v5593 = vmul.f32 %v5577, %v5591
        %v5594 = vmul.f32 %v5578, %v5592
        %v5595 = vlaneseq
        %v5596 = vshrl.u32 %v5595, 7
        %v5597 = vsub.s32 0, %v5596
        %v5598 = vrot.slane %v5567, %v5597
        %v5599 = vmul.f32 %v5593, %v5598
        %v5600 = vmul.f32 %v5594, %v5598
        %v5601 = vlaneseq
        %v5602 = vshrl.u32 %v5601, 7
        %v5603 = vsub.s32 0, %v5602
        %v5604 = vrot.slane %v5568, %v5603
        %v5605 = vadd.f32 %v5599, %v5604
        %v5606 = vadd.f32 %v5600, %v5604
        %v5607 = vld [vmem:[%s153 + $0x3a0] sm:$0xff]
        %v5608 = vld [vmem:[%s153 + $0x3a8] sm:$0xff]
        %v5609 = vld [vmem:[%s153 + $0x3b0] sm:$0x1]
        %v5610 = vlaneseq
        %v5611 = vshrl.u32 %v5610, 7
        %v5612 = vsub.s32 0, %v5611
        %v5613 = vrot.slane %v5609, %v5612
        %v5615 = vsel %vm350, %v5605, 0
        %v5618 = vsel %vm350, %v5606, 0
        %5620 = vmatprep.subr.mxu0 0.0
        %5621 = vmatpush1.msra.mxu0 %v5607
        %5622 = vmatprep.subr.mxu0 0.0
        %5623 = vmatpush1.msra.mxu0 %v5608
        %5624 = vmatprep.subr.mxu0 0.0
        %5625 = vmatpush1.msra.mxu0 0.0
        %5626 = vmatprep.subr.mxu0 0.0
        %5627 = vmatpush1.msra.mxu0 0.0
        %5628 = vmatprep.subr.mxu0 0.0
        %5629 = vmatpush1.msra.mxu0 0.0
        %5630 = vmatprep.subr.mxu0 0.0
        %5631 = vmatpush1.msra.mxu0 0.0
        %5632 = vmatprep.subr.mxu0 0.0
        %5633 = vmatpush1.msra.mxu0 0.0
        %5634 = vmatprep.subr.mxu0 0.0
        %5635 = vmatpush1.msra.mxu0 0.0
        %5636 = vmatprep.subr.mxu0 0.0
        %5637 = vmatpush1.msra.mxu0 0.0
        %5638 = vmatprep.subr.mxu0 0.0
        %5639 = vmatpush1.msra.mxu0 0.0
        %5640 = vmatprep.subr.mxu0 0.0
        %5641 = vmatpush1.msra.mxu0 0.0
        %5642 = vmatprep.subr.mxu0 0.0
        %5643 = vmatpush1.msra.mxu0 0.0
        %5644 = vmatprep.subr.mxu0 0.0
        %5645 = vmatpush1.msra.mxu0 0.0
        %5646 = vmatprep.subr.mxu0 0.0
        %5647 = vmatpush1.msra.mxu0 0.0
        %5648 = vmatprep.subr.mxu0 0.0
        %5649 = vmatpush1.msra.mxu0 0.0
        %5650 = vmatprep.subr.mxu0 0.0
        %5651 = vmatpush1.msra.mxu0 0.0
        %5652 = vmatprep.subr.mxu0 0.0
        %5653 = vmatpush1.msra.mxu0 0.0
        %5654 = vmatprep.subr.mxu0 0.0
        %5655 = vmatpush1.msra.mxu0 0.0
        %5656 = vmatprep.subr.mxu0 0.0
        %5657 = vmatpush1.msra.mxu0 0.0
        %5658 = vmatprep.subr.mxu0 0.0
        %5659 = vmatpush1.msra.mxu0 0.0
        %5660 = vmatprep.subr.mxu0 0.0
        %5661 = vmatpush1.msra.mxu0 0.0
        %5662 = vmatprep.subr.mxu0 0.0
        %5663 = vmatpush1.msra.mxu0 0.0
        %5664 = vmatprep.subr.mxu0 0.0
        %5665 = vmatpush1.msra.mxu0 0.0
        %5666 = vmatprep.subr.mxu0 0.0
        %5667 = vmatpush1.msra.mxu0 0.0
        %5668 = vmatprep.subr.mxu0 0.0
        %5669 = vmatpush1.msra.mxu0 0.0
        %5670 = vmatprep.subr.mxu0 0.0
        %5671 = vmatpush1.msra.mxu0 0.0
        %5672 = vmatprep.subr.mxu0 0.0
        %5673 = vmatpush1.msra.mxu0 0.0
        %5674 = vmatprep.subr.mxu0 0.0
        %5675 = vmatpush1.msra.mxu0 0.0
        %5676 = vmatprep.subr.mxu0 0.0
        %5677 = vmatpush1.msra.mxu0 0.0
        %5678 = vmatprep.subr.mxu0 0.0
        %5679 = vmatpush1.msra.mxu0 0.0
        %5680 = vmatprep.subr.mxu0 0.0
        %5681 = vmatpush1.msra.mxu0 0.0
        %5682 = vmatprep.subr.mxu0 0.0
        %5683 = vmatpush1.msra.mxu0 0.0
        %5684 = vmatprep.mubr.f32.mxu0 0.0
        %5685 = vmatmul.mubr.f32.gmra.mrb[0].mxu0 %v5615
        %v5686 = vpop.f32.mrb[0].mxu0
        %v5687 = vadd.f32 %v5613, %v5686
        %v5688 = vpop.f32.mrb[0].mxu0
        %5689 = vmatprep.mubr.f32.mxu0 0.0
        %5690 = vmatmul.mubr.f32.gmra.mrb[0].mxu0 %v5618
        %v5691 = vpop.f32.mrb[0].mxu0
        %v5692 = vadd.f32 %v5613, %v5691
        %v5693 = vpop.f32.mrb[0].mxu0
        %5694 = vdwg.mxu0
        %v5695 = vld [vmem:[%s153 + $0x3b8] sm:$0xff]
        %v5696 = vld [vmem:[%s153 + $0x3c0] sm:$0xff]
        %v5698 = vsel %vm474, %v5687, 0
        %v5701 = vsel %vm474, %v5692, 0
        %5703 = vmatprep.subr.mxu0 0.0
        %5704 = vmatpush1.msra.mxu0 %v5696
        %5705 = vmatprep.subr.mxu0 0.0
        %5706 = vmatpush1.msra.mxu0 0.0
        %5707 = vmatprep.subr.mxu0 0.0
        %5708 = vmatpush1.msra.mxu0 0.0
        %5709 = vmatprep.subr.mxu0 0.0
        %5710 = vmatpush1.msra.mxu0 0.0
        %5711 = vmatprep.subr.mxu0 0.0
        %5712 = vmatpush1.msra.mxu0 0.0
        %5713 = vmatprep.subr.mxu0 0.0
        %5714 = vmatpush1.msra.mxu0 0.0
        %5715 = vmatprep.subr.mxu0 0.0
        %5716 = vmatpush1.msra.mxu0 0.0
        %5717 = vmatprep.subr.mxu0 0.0
        %5718 = vmatpush1.msra.mxu0 0.0
        %5719 = vmatprep.subr.mxu0 0.0
        %5720 = vmatpush1.msra.mxu0 0.0
        %5721 = vmatprep.subr.mxu0 0.0
        %5722 = vmatpush1.msra.mxu0 0.0
        %5723 = vmatprep.subr.mxu0 0.0
        %5724 = vmatpush1.msra.mxu0 0.0
        %5725 = vmatprep.subr.mxu0 0.0
        %5726 = vmatpush1.msra.mxu0 0.0
        %5727 = vmatprep.subr.mxu0 0.0
        %5728 = vmatpush1.msra.mxu0 0.0
        %5729 = vmatprep.subr.mxu0 0.0
        %5730 = vmatpush1.msra.mxu0 0.0
        %5731 = vmatprep.subr.mxu0 0.0
        %5732 = vmatpush1.msra.mxu0 0.0
        %5733 = vmatprep.subr.mxu0 0.0
        %5734 = vmatpush1.msra.mxu0 0.0
        %5735 = vmatprep.subr.mxu0 0.0
        %5736 = vmatpush1.msra.mxu0 0.0
        %5737 = vmatprep.subr.mxu0 0.0
        %5738 = vmatpush1.msra.mxu0 0.0
        %5739 = vmatprep.subr.mxu0 0.0
        %5740 = vmatpush1.msra.mxu0 0.0
        %5741 = vmatprep.subr.mxu0 0.0
        %5742 = vmatpush1.msra.mxu0 0.0
        %5743 = vmatprep.subr.mxu0 0.0
        %5744 = vmatpush1.msra.mxu0 0.0
        %5745 = vmatprep.subr.mxu0 0.0
        %5746 = vmatpush1.msra.mxu0 0.0
        %5747 = vmatprep.subr.mxu0 0.0
        %5748 = vmatpush1.msra.mxu0 0.0
        %5749 = vmatprep.subr.mxu0 0.0
        %5750 = vmatpush1.msra.mxu0 0.0
        %5751 = vmatprep.subr.mxu0 0.0
        %5752 = vmatpush1.msra.mxu0 0.0
        %5753 = vmatprep.subr.mxu0 0.0
        %5754 = vmatpush1.msra.mxu0 0.0
        %5755 = vmatprep.subr.mxu0 0.0
        %5756 = vmatpush1.msra.mxu0 0.0
        %5757 = vmatprep.subr.mxu0 0.0
        %5758 = vmatpush1.msra.mxu0 0.0
        %5759 = vmatprep.subr.mxu0 0.0
        %5760 = vmatpush1.msra.mxu0 0.0
        %5761 = vmatprep.subr.mxu0 0.0
        %5762 = vmatpush1.msra.mxu0 0.0
        %5763 = vmatprep.subr.mxu0 0.0
        %5764 = vmatpush1.msra.mxu0 0.0
        %5765 = vmatprep.subr.mxu0 0.0
        %5766 = vmatpush1.msra.mxu0 0.0
        %5767 = vmatprep.mubr.f32.mxu0 0.0
        %5768 = vmatmul.mubr.f32.gmra.mrb[0].mxu0 %v5698
        %v5769 = vpop.f32.mrb[0].mxu0
        %v5770 = vadd.f32 0.0, %v5769
        %v5771 = vpop.f32.mrb[0].mxu0
        %5772 = vmatprep.mubr.f32.mxu0 0.0
        %5773 = vmatmul.mubr.f32.gmra.mrb[0].mxu0 %v5701
        %v5774 = vpop.f32.mrb[0].mxu0
        %v5775 = vadd.f32 0.0, %v5774
        %v5776 = vpop.f32.mrb[0].mxu0
        %5777 = vdwg.mxu0
        %v5779 = vsel %vm474, %v889, 0
        %v5782 = vsel %vm474, %v890, 0
        %5784 = vmatprep.subr.mxu0 0.0
        %5785 = vmatpush1.msra.mxu0 %v5695
        %5786 = vmatprep.subr.mxu0 0.0
        %5787 = vmatpush1.msra.mxu0 0.0
        %5788 = vmatprep.subr.mxu0 0.0
        %5789 = vmatpush1.msra.mxu0 0.0
        %5790 = vmatprep.subr.mxu0 0.0
        %5791 = vmatpush1.msra.mxu0 0.0
        %5792 = vmatprep.subr.mxu0 0.0
        %5793 = vmatpush1.msra.mxu0 0.0
        %5794 = vmatprep.subr.mxu0 0.0
        %5795 = vmatpush1.msra.mxu0 0.0
        %5796 = vmatprep.subr.mxu0 0.0
        %5797 = vmatpush1.msra.mxu0 0.0
        %5798 = vmatprep.subr.mxu0 0.0
        %5799 = vmatpush1.msra.mxu0 0.0
        %5800 = vmatprep.subr.mxu0 0.0
        %5801 = vmatpush1.msra.mxu0 0.0
        %5802 = vmatprep.subr.mxu0 0.0
        %5803 = vmatpush1.msra.mxu0 0.0
        %5804 = vmatprep.subr.mxu0 0.0
        %5805 = vmatpush1.msra.mxu0 0.0
        %5806 = vmatprep.subr.mxu0 0.0
        %5807 = vmatpush1.msra.mxu0 0.0
        %5808 = vmatprep.subr.mxu0 0.0
        %5809 = vmatpush1.msra.mxu0 0.0
        %5810 = vmatprep.subr.mxu0 0.0
        %5811 = vmatpush1.msra.mxu0 0.0
        %5812 = vmatprep.subr.mxu0 0.0
        %5813 = vmatpush1.msra.mxu0 0.0
        %5814 = vmatprep.subr.mxu0 0.0
        %5815 = vmatpush1.msra.mxu0 0.0
        %5816 = vmatprep.subr.mxu0 0.0
        %5817 = vmatpush1.msra.mxu0 0.0
        %5818 = vmatprep.subr.mxu0 0.0
        %5819 = vmatpush1.msra.mxu0 0.0
        %5820 = vmatprep.subr.mxu0 0.0
        %5821 = vmatpush1.msra.mxu0 0.0
        %5822 = vmatprep.subr.mxu0 0.0
        %5823 = vmatpush1.msra.mxu0 0.0
        %5824 = vmatprep.subr.mxu0 0.0
        %5825 = vmatpush1.msra.mxu0 0.0
        %5826 = vmatprep.subr.mxu0 0.0
        %5827 = vmatpush1.msra.mxu0 0.0
        %5828 = vmatprep.subr.mxu0 0.0
        %5829 = vmatpush1.msra.mxu0 0.0
        %5830 = vmatprep.subr.mxu0 0.0
        %5831 = vmatpush1.msra.mxu0 0.0
        %5832 = vmatprep.subr.mxu0 0.0
        %5833 = vmatpush1.msra.mxu0 0.0
        %5834 = vmatprep.subr.mxu0 0.0
        %5835 = vmatpush1.msra.mxu0 0.0
        %5836 = vmatprep.subr.mxu0 0.0
        %5837 = vmatpush1.msra.mxu0 0.0
        %5838 = vmatprep.subr.mxu0 0.0
        %5839 = vmatpush1.msra.mxu0 0.0
        %5840 = vmatprep.subr.mxu0 0.0
        %5841 = vmatpush1.msra.mxu0 0.0
        %5842 = vmatprep.subr.mxu0 0.0
        %5843 = vmatpush1.msra.mxu0 0.0
        %5844 = vmatprep.subr.mxu0 0.0
        %5845 = vmatpush1.msra.mxu0 0.0
        %5846 = vmatprep.subr.mxu0 0.0
        %5847 = vmatpush1.msra.mxu0 0.0
        %5848 = vmatprep.mubr.f32.mxu0 0.0
        %5849 = vmatmul.mubr.f32.gmra.mrb[0].mxu0 %v5779
        %v5850 = vpop.f32.mrb[0].mxu0
        %v5851 = vadd.f32 %v5770, %v5850
        %v5852 = vpop.f32.mrb[0].mxu0
        %5853 = vmatprep.mubr.f32.mxu0 0.0
        %5854 = vmatmul.mubr.f32.gmra.mrb[0].mxu0 %v5782
        %v5855 = vpop.f32.mrb[0].mxu0
        %v5856 = vadd.f32 %v5775, %v5855
        %v5857 = vpop.f32.mrb[0].mxu0
        %5858 = vdwg.mxu0
        %v5859 = vld [vmem:[%s153 + $0x3c8] sm:$0x1]
        %v5860 = vlaneseq
        %v5861 = vshrl.u32 %v5860, 7
        %v5862 = vsub.s32 0, %v5861
        %v5863 = vrot.slane %v5859, %v5862
        %v5864 = vadd.f32 %v5851, %v5863
        %v5865 = vadd.f32 %v5856, %v5863
        %5866 = vst.msk [vmem:[%s178] sm:$0xff] %vm474, %v5864
        %5867 = vst.msk [vmem:[%s178 + $0x8] sm:$0xff] %vm474, %v5865
        %p5868 = scmp.lt.s32.totalorder %s17, 1
        %s5869 = scalar_select %p5868, %s17, 1
        %s5870 = smul.addr %s5869, 2
        %s5871 = smul.addr %s5870, 8
        %s5872 = scalar_lea.vmem %s2, %s5871
        // Predicated region
        $region37: #{multi_tbert_forward.1} parent=27 // pred_check
          %p5873 = pneg %p82
        $region38: #{multi_tbert_forward.1} parent=27 // pred_check_branch
          %5875 = sbr.rel (%p5873) target = $region40
        $region39: #{multi_tbert_forward.1} parent=27 // pred_region
          _
        $region40: #{multi_tbert_forward.1} parent=27 // pred_fallthru
          _
      $region28: #{multi_tbert_forward.1} parent=5 // pred_fallthru
        _
      %p5876 = scmp.le.s32.totalorder 2, %s12
      // Predicated region
      $region41: #{multi_tbert_forward.1} parent=5 // pred_check
        %p5877 = pneg %p5876
      $region42: #{multi_tbert_forward.1} parent=5 // pred_check_branch
        %5879 = sbr.rel (%p5877) target = $region44
      $region43: #{multi_tbert_forward.1} parent=5 // pred_region
        %s5880 = ssub.s32 %s12, 2
        // Predicated region
        $region45: #{multi_tbert_forward.1} parent=43 // pred_check
          %p5881 = pneg %p88
        $region46: #{multi_tbert_forward.1} parent=43 // pred_check_branch
          %5883 = sbr.rel (%p5881) target = $region48
        $region47: #{multi_tbert_forward.1} parent=43 // pred_region
          %p5884 = scmp.lt.s32.totalorder %s18, 1
          %s5885 = scalar_select %p5884, %s18, 1
          %s5886 = smul.addr %s5885, 2
          %s5887 = smul.addr %s5886, 8
          %s5888 = scalar_lea.vmem %s2, %s5887
        $region48: #{multi_tbert_forward.1} parent=43 // pred_fallthru
          _
      $region44: #{multi_tbert_forward.1} parent=5 // pred_fallthru
        _
    $region6: #{multi_tbert_forward.1} parent=1 // loop_footer
      %s16 = sadd.s32 1, %s12
    $region7: #{multi_tbert_forward.1} parent=1 // loop_footer_branch
      %11 = sbr.rel target = $region3
    $region8: #{multi_tbert_forward.1} parent=1 // loop_exit
      _
    %5889 = vsyncpa [#allocation3], 1
    %s5890 = scalar_lea.sflag [#allocation3], 1
    %5891 = vsyncpa %s5890, 1
    %5892 = vsyncpa [#allocation5], 1
    %s5893 = scalar_lea.sflag [#allocation5], 1
    %5894 = vsyncpa %s5893, 1

</llo_original>
